<compile_context>
chip_gen: v6e
topology: v6e:2x2x1
jax: 0.10.0
libtpu: 0.0.40
codegen_flags: <defaults>
</compile_context>

<pallas_src>
import functools

import jax
import jax.numpy as jnp
from jax.experimental import pallas as pl
from jax.experimental.pallas import tpu as pltpu

D_IN = 784          # 28 * 28
K_PAD = 896         # 7 * 128  (padded feature dim for layer 1)
H1, H2, H3 = 1024, 1024, 256
D_OUT = 10
N_PAD = 128         # lane-dense padded logits width


def _round_up(n, m):
    return ((n + m - 1) // m) * m


def _choose_tile(B, batch_tile):
    """Pick a batch tile (multiple of 8). Aim for >=2 grid steps (v7x megacore)."""
    if B >= 2 * batch_tile:
        return batch_tile
    if B >= 16:
        return _round_up((B + 1) // 2, 8)
    return _round_up(max(B, 1), 8)


def mlp_kernel(x_ref, w1_ref, b1_ref, w2_ref, b2_ref,
               w3_ref, b3_ref, w4_ref, b4_ref, o_ref):
    # The (x*2-1) affine is pre-folded into w1/b1, so x feeds the MXU directly.
    h = jnp.dot(x_ref[...], w1_ref[...], preferred_element_type=jnp.float32) + b1_ref[...]
    h = jnp.maximum(h, 0.0).astype(jnp.bfloat16)
    h = jnp.dot(h, w2_ref[...], preferred_element_type=jnp.float32) + b2_ref[...]
    h = jnp.maximum(h, 0.0).astype(jnp.bfloat16)
    h = jnp.dot(h, w3_ref[...], preferred_element_type=jnp.float32) + b3_ref[...]
    h = jnp.maximum(h, 0.0).astype(jnp.bfloat16)
    h = jnp.dot(h, w4_ref[...], preferred_element_type=jnp.float32) + b4_ref[...]
    o_ref[...] = h.astype(o_ref.dtype)


def pack_params(params):
    """One-time packing: fold the input affine into layer 1, pad, cast to bf16.

    y1 = (2x - 1) @ w1 + b1  ==  x @ (2*w1) + (b1 - sum(w1, axis=0)).
    """
    (w1, b1), (w2, b2), (w3, b3), (w4, b4) = params
    w1_eff = 2.0 * w1
    b1_eff = (b1 - jnp.sum(w1, axis=0, keepdims=True)).astype(jnp.float32)

    w1p = jnp.pad(w1_eff, ((0, K_PAD - D_IN), (0, 0))).astype(jnp.bfloat16)
    w2p = w2.astype(jnp.bfloat16)
    w3p = w3.astype(jnp.bfloat16)
    w4p = jnp.pad(w4, ((0, 0), (0, N_PAD - D_OUT))).astype(jnp.bfloat16)
    b4p = jnp.pad(b4, ((0, 0), (0, N_PAD - D_OUT))).astype(jnp.float32)

    return (w1p, b1_eff, w2p, b2.astype(jnp.float32),
            w3p, b3.astype(jnp.float32), w4p, b4p)


@functools.partial(jax.jit, static_argnames=("batch_tile",))
def mlp_forward(x, packed, *, batch_tile=1024):
    """x: [B, 1, 28, 28] or [B, 784]. packed: output of pack_params.
    Returns logits [B, 10] float32."""
    w1p, b1, w2p, b2, w3p, b3, w4p, b4p = packed

    B = x.shape[0]
    # bf16 x: halves HBM traffic and the x tile VMEM footprint.
    x2 = x.reshape(B, D_IN).astype(jnp.bfloat16)
    x2 = jnp.pad(x2, ((0, 0), (0, K_PAD - D_IN)))   # zero-pad features 784 -> 896

    TB = _choose_tile(B, batch_tile)
    B_pad = _round_up(B, TB)
    if B_pad != B:
        x2 = jnp.pad(x2, ((0, B_pad - B), (0, 0)))

    grid = (B_pad // TB,)

    def resident(shape):
        nd = len(shape)
        # Constant block index -> fetched once, stays in VMEM. Single-buffered
        # (no point double-buffering a block that never changes).
        return pl.BlockSpec(shape, lambda i: (0,) * nd,
                            pipeline_mode=pl.Buffered(1))

    in_specs = [
        pl.BlockSpec((TB, K_PAD), lambda i: (i, 0)),   # x tile (pipelined over B)
        resident((K_PAD, H1)), resident((1, H1)),      # w1', b1'
        resident((H1, H2)),    resident((1, H2)),      # w2, b2
        resident((H2, H3)),    resident((1, H3)),      # w3, b3
        resident((H3, N_PAD)), resident((1, N_PAD)),   # w4, b4 (padded to 128)
    ]
    out_spec = pl.BlockSpec((TB, N_PAD), lambda i: (i, 0))

    flops = 2 * B_pad * (K_PAD * H1 + H1 * H2 + H2 * H3 + H3 * N_PAD)
    weight_bytes = 2 * (K_PAD * H1 + H1 * H2 + H2 * H3 + H3 * N_PAD)  # bf16
    bytes_accessed = weight_bytes + B_pad * K_PAD * 2 + B_pad * N_PAD * 4

    out = pl.pallas_call(
        mlp_kernel,
        out_shape=jax.ShapeDtypeStruct((B_pad, N_PAD), jnp.float32),
        grid=grid,
        in_specs=in_specs,
        out_specs=out_spec,
        compiler_params=pltpu.CompilerParams(
            dimension_semantics=("parallel",),
            vmem_limit_bytes=32 << 20,   # v7x-safe; fits TB=1024 bf16 tiles.
        ),
        cost_estimate=pl.CostEstimate(
            flops=flops, transcendentals=0, bytes_accessed=bytes_accessed),
    )(x2, w1p, b1, w2p, b2, w3p, b3, w4p, b4p)

    return out[:B, :D_OUT]


def init_params(key):
    """Deterministic init mirroring nn.Linear default (uniform +-1/sqrt(fan_in)).

    Weights are created directly in [in, out] layout used by the kernel.
    """
    dims = [(D_IN, H1), (H1, H2), (H2, H3), (H3, D_OUT)]
    params = []
    for i, (fan_in, fan_out) in enumerate(dims):
        kw, kb = jax.random.split(jax.random.fold_in(key, i))
        bound = 1.0 / jnp.sqrt(jnp.float32(fan_in))
        w = jax.random.uniform(kw, (fan_in, fan_out), jnp.float32, -bound, bound)
        b = jax.random.uniform(kb, (1, fan_out), jnp.float32, -bound, bound)
        params.append((w, b))
    return params


def mlp_reference(x, params):
    """Pure-JAX f32 reference of the same forward pass."""
    B = x.shape[0]
    h = x.reshape(B, D_IN).astype(jnp.float32) * 2.0 - 1.0
    (w1, b1), (w2, b2), (w3, b3), (w4, b4) = params
    h = jnp.maximum(h @ w1 + b1, 0.0)
    h = jnp.maximum(h @ w2 + b2, 0.0)
    h = jnp.maximum(h @ w3 + b3, 0.0)
    return h @ w4 + b4


if __name__ == "__main__":
    key = jax.random.PRNGKey(0)
    k_x, k_p = jax.random.split(key)

    # Small batch, MNIST-like input (the forward implies 28*28 = 784 features).
    x = jax.random.uniform(k_x, (2, 1, 28, 28), jnp.float32)
    params = init_params(k_p)
    packed = pack_params(params)   # one-time weight packing (hoisted out of forward)

    y = mlp_forward(x, packed)
    y = jax.block_until_ready(y)

    y_ref = mlp_reference(x, params)
    assert y.shape == (2, 10)
    # bf16 x / bf16 matmul inputs with f32 accumulation -> loosened tolerance.
    assert jnp.allclose(y, y_ref, atol=5e-2, rtol=5e-2), (
        float(jnp.max(jnp.abs(y - y_ref))))

    print("KERNEL_OK")
</pallas_src>

<mosaic_0001>
module attributes {stable_mosaic.version = 11 : i64} {
  func.func @mlp_kernel(%arg0: i32, %arg1: memref<8x896xbf16, #tpu.memory_space<vmem>>, %arg2: memref<896x1024xbf16, #tpu.memory_space<vmem>>, %arg3: memref<1x1024xf32, #tpu.memory_space<vmem>>, %arg4: memref<1024x1024xbf16, #tpu.memory_space<vmem>>, %arg5: memref<1x1024xf32, #tpu.memory_space<vmem>>, %arg6: memref<1024x256xbf16, #tpu.memory_space<vmem>>, %arg7: memref<1x256xf32, #tpu.memory_space<vmem>>, %arg8: memref<256x128xbf16, #tpu.memory_space<vmem>>, %arg9: memref<1x128xf32, #tpu.memory_space<vmem>>, %arg10: memref<8x128xf32, #tpu.memory_space<vmem>>) attributes {dimension_semantics = [#tpu.dimension_semantics<parallel>], iteration_bounds = array<i64: 1>, scalar_prefetch = 0 : i64, scratch_operands = 0 : i64, tpu.core_type = #tpu.core_type<tc>, window_params = [{transform_indices = @transform_0, window_bounds = array<i64: 8, 896>}, {pipeline_mode = #tpu.pipeline_mode<synchronous>, transform_indices = @transform_1, window_bounds = array<i64: 896, 1024>}, {pipeline_mode = #tpu.pipeline_mode<synchronous>, transform_indices = @transform_2, window_bounds = array<i64: 1, 1024>}, {pipeline_mode = #tpu.pipeline_mode<synchronous>, transform_indices = @transform_3, window_bounds = array<i64: 1024, 1024>}, {pipeline_mode = #tpu.pipeline_mode<synchronous>, transform_indices = @transform_4, window_bounds = array<i64: 1, 1024>}, {pipeline_mode = #tpu.pipeline_mode<synchronous>, transform_indices = @transform_5, window_bounds = array<i64: 1024, 256>}, {pipeline_mode = #tpu.pipeline_mode<synchronous>, transform_indices = @transform_6, window_bounds = array<i64: 1, 256>}, {pipeline_mode = #tpu.pipeline_mode<synchronous>, transform_indices = @transform_7, window_bounds = array<i64: 256, 128>}, {pipeline_mode = #tpu.pipeline_mode<synchronous>, transform_indices = @transform_8, window_bounds = array<i64: 1, 128>}, {transform_indices = @transform_9, window_bounds = array<i64: 8, 128>}]} {
    %c0 = arith.constant 0 : index
    %c0_0 = arith.constant 0 : index
    %0 = vector.load %arg1[%c0, %c0_0] : memref<8x896xbf16, #tpu.memory_space<vmem>>, vector<8x896xbf16>
    %c0_1 = arith.constant 0 : index
    %c0_2 = arith.constant 0 : index
    %1 = vector.load %arg2[%c0_1, %c0_2] : memref<896x1024xbf16, #tpu.memory_space<vmem>>, vector<896x1024xbf16>
    %cst = arith.constant dense<0.000000e+00> : vector<8x1024xf32>
    %2 = tpu.matmul %0, %1, %cst {dimension_numbers = #tpu.dot_dimension_numbers<[1], [0], [0], [1], [0, 0, 1, 1], [], []>} : vector<8x896xbf16>, vector<896x1024xbf16>, vector<8x1024xf32> -> vector<8x1024xf32>
    %c0_3 = arith.constant 0 : index
    %c0_4 = arith.constant 0 : index
    %3 = vector.load %arg3[%c0_3, %c0_4] : memref<1x1024xf32, #tpu.memory_space<vmem>>, vector<1x1024xf32>
    %4 = vector.broadcast %3 : vector<1x1024xf32> to vector<8x1024xf32>
    %5 = arith.addf %2, %4 : vector<8x1024xf32>
    %cst_5 = arith.constant 0.000000e+00 : f32
    %6 = vector.broadcast %cst_5 : f32 to vector<8x1024xf32>
    %7 = arith.maximumf %5, %6 : vector<8x1024xf32>
    %8 = arith.truncf %7 : vector<8x1024xf32> to vector<8x1024xbf16>
    %c0_6 = arith.constant 0 : index
    %c0_7 = arith.constant 0 : index
    %9 = vector.load %arg4[%c0_6, %c0_7] : memref<1024x1024xbf16, #tpu.memory_space<vmem>>, vector<1024x1024xbf16>
    %cst_8 = arith.constant dense<0.000000e+00> : vector<8x1024xf32>
    %10 = tpu.matmul %8, %9, %cst_8 {dimension_numbers = #tpu.dot_dimension_numbers<[1], [0], [0], [1], [0, 0, 1, 1], [], []>} : vector<8x1024xbf16>, vector<1024x1024xbf16>, vector<8x1024xf32> -> vector<8x1024xf32>
    %c0_9 = arith.constant 0 : index
    %c0_10 = arith.constant 0 : index
    %11 = vector.load %arg5[%c0_9, %c0_10] : memref<1x1024xf32, #tpu.memory_space<vmem>>, vector<1x1024xf32>
    %12 = vector.broadcast %11 : vector<1x1024xf32> to vector<8x1024xf32>
    %13 = arith.addf %10, %12 : vector<8x1024xf32>
    %cst_11 = arith.constant 0.000000e+00 : f32
    %14 = vector.broadcast %cst_11 : f32 to vector<8x1024xf32>
    %15 = arith.maximumf %13, %14 : vector<8x1024xf32>
    %16 = arith.truncf %15 : vector<8x1024xf32> to vector<8x1024xbf16>
    %c0_12 = arith.constant 0 : index
    %c0_13 = arith.constant 0 : index
    %17 = vector.load %arg6[%c0_12, %c0_13] : memref<1024x256xbf16, #tpu.memory_space<vmem>>, vector<1024x256xbf16>
    %cst_14 = arith.constant dense<0.000000e+00> : vector<8x256xf32>
    %18 = tpu.matmul %16, %17, %cst_14 {dimension_numbers = #tpu.dot_dimension_numbers<[1], [0], [0], [1], [0, 0, 1, 1], [], []>} : vector<8x1024xbf16>, vector<1024x256xbf16>, vector<8x256xf32> -> vector<8x256xf32>
    %c0_15 = arith.constant 0 : index
    %c0_16 = arith.constant 0 : index
    %19 = vector.load %arg7[%c0_15, %c0_16] : memref<1x256xf32, #tpu.memory_space<vmem>>, vector<1x256xf32>
    %20 = vector.broadcast %19 : vector<1x256xf32> to vector<8x256xf32>
    %21 = arith.addf %18, %20 : vector<8x256xf32>
    %cst_17 = arith.constant 0.000000e+00 : f32
    %22 = vector.broadcast %cst_17 : f32 to vector<8x256xf32>
    %23 = arith.maximumf %21, %22 : vector<8x256xf32>
    %24 = arith.truncf %23 : vector<8x256xf32> to vector<8x256xbf16>
    %c0_18 = arith.constant 0 : index
    %c0_19 = arith.constant 0 : index
    %25 = vector.load %arg8[%c0_18, %c0_19] : memref<256x128xbf16, #tpu.memory_space<vmem>>, vector<256x128xbf16>
    %cst_20 = arith.constant dense<0.000000e+00> : vector<8x128xf32>
    %26 = tpu.matmul %24, %25, %cst_20 {dimension_numbers = #tpu.dot_dimension_numbers<[1], [0], [0], [1], [0, 0, 1, 1], [], []>} : vector<8x256xbf16>, vector<256x128xbf16>, vector<8x128xf32> -> vector<8x128xf32>
    %c0_21 = arith.constant 0 : index
    %c0_22 = arith.constant 0 : index
    %27 = vector.load %arg9[%c0_21, %c0_22] : memref<1x128xf32, #tpu.memory_space<vmem>>, vector<1x128xf32>
    %28 = vector.broadcast %27 : vector<1x128xf32> to vector<8x128xf32>
    %29 = arith.addf %26, %28 : vector<8x128xf32>
    %c0_23 = arith.constant 0 : index
    %c0_24 = arith.constant 0 : index
    %30 = vector.load %arg10[%c0_23, %c0_24] : memref<8x128xf32, #tpu.memory_space<vmem>>, vector<8x128xf32>
    tpu.vector_store %arg10[%c0_23, %c0_24], %29 {strides = array<i32>} : memref<8x128xf32, #tpu.memory_space<vmem>>, vector<8x128xf32>,
    return
  }
  func.func @transform_0(%arg0: i32) -> (i32, i32) {
    %c0_i32 = arith.constant 0 : i32
    %c0_i32_0 = arith.constant 0 : i32
    return %arg0, %c0_i32 : i32, i32
  }
  func.func @transform_1(%arg0: i32) -> (i32, i32) {
    %c0_i32 = arith.constant 0 : i32
    %c0_i32_0 = arith.constant 0 : i32
    %c0_i32_1 = arith.constant 0 : i32
    return %c0_i32, %c0_i32_0 : i32, i32
  }
  func.func @transform_2(%arg0: i32) -> (i32, i32) {
    %c0_i32 = arith.constant 0 : i32
    %c0_i32_0 = arith.constant 0 : i32
    %c0_i32_1 = arith.constant 0 : i32
    return %c0_i32, %c0_i32_0 : i32, i32
  }
  func.func @transform_3(%arg0: i32) -> (i32, i32) {
    %c0_i32 = arith.constant 0 : i32
    %c0_i32_0 = arith.constant 0 : i32
    %c0_i32_1 = arith.constant 0 : i32
    return %c0_i32, %c0_i32_0 : i32, i32
  }
  func.func @transform_4(%arg0: i32) -> (i32, i32) {
    %c0_i32 = arith.constant 0 : i32
    %c0_i32_0 = arith.constant 0 : i32
    %c0_i32_1 = arith.constant 0 : i32
    return %c0_i32, %c0_i32_0 : i32, i32
  }
  func.func @transform_5(%arg0: i32) -> (i32, i32) {
    %c0_i32 = arith.constant 0 : i32
    %c0_i32_0 = arith.constant 0 : i32
    %c0_i32_1 = arith.constant 0 : i32
    return %c0_i32, %c0_i32_0 : i32, i32
  }
  func.func @transform_6(%arg0: i32) -> (i32, i32) {
    %c0_i32 = arith.constant 0 : i32
    %c0_i32_0 = arith.constant 0 : i32
    %c0_i32_1 = arith.constant 0 : i32
    return %c0_i32, %c0_i32_0 : i32, i32
  }
  func.func @transform_7(%arg0: i32) -> (i32, i32) {
    %c0_i32 = arith.constant 0 : i32
    %c0_i32_0 = arith.constant 0 : i32
    %c0_i32_1 = arith.constant 0 : i32
    return %c0_i32, %c0_i32_0 : i32, i32
  }
  func.func @transform_8(%arg0: i32) -> (i32, i32) {
    %c0_i32 = arith.constant 0 : i32
    %c0_i32_0 = arith.constant 0 : i32
    %c0_i32_1 = arith.constant 0 : i32
    return %c0_i32, %c0_i32_0 : i32, i32
  }
  func.func @transform_9(%arg0: i32) -> (i32, i32) {
    %c0_i32 = arith.constant 0 : i32
    %c0_i32_0 = arith.constant 0 : i32
    return %arg0, %c0_i32 : i32, i32
  }
}

</mosaic_0001>

<llo_original>
// kernel: mlp_forward.1
$region0: #{mlp_forward.1}
  #allocation0 [shape = 'u32[]', space=smem, size = 0x4, offset = 0x4, fixed_abs, tag = 'smem constant byte address 0x4 - core index']
  #allocation1 [shape = 'u32[144,128]{1,0:T(1,128)}', space=vmem, size = 0x12000, scoped, tag = 'internal scratch']
  %s0 = inlined_call_operand.vmem [shape: bf16[8,896], index: 0, kind: input, shape index: {}]
  %s1 = inlined_call_operand.hbm [shape: bf16[896,1024], index: 1, kind: input, shape index: {}]
  %s2 = inlined_call_operand.hbm [shape: f32[1,1024], index: 2, kind: input, shape index: {}]
  %s3 = inlined_call_operand.hbm [shape: bf16[1024,1024], index: 3, kind: input, shape index: {}]
  %s4 = inlined_call_operand.hbm [shape: f32[1,1024], index: 4, kind: input, shape index: {}]
  %s5 = inlined_call_operand.hbm [shape: bf16[1024,256], index: 5, kind: input, shape index: {}]
  %s6 = inlined_call_operand.hbm [shape: f32[1,256], index: 6, kind: input, shape index: {}]
  %s7 = inlined_call_operand.hbm [shape: bf16[256,128], index: 7, kind: input, shape index: {}]
  %s8 = inlined_call_operand.hbm [shape: f32[1,128], index: 8, kind: input, shape index: {}]
  %s9 = inlined_call_operand.vmem [shape: f32[8,128], index: 9, kind: output, shape index: {}]
  %s10 = sld [smem:[#allocation0]]
  $region78: #{mlp_forward.1} parent=0
    _
  %s12 = ssub.s32 1, %s10
  %s13 = scalar_select 0, %s12, %s10
  $region1: #{mlp_forward.1} parent=0
    #allocation2 [shape = 'u8[1835008]{0}', space=vmem, size = 0x1c0000, scoped, tag = 'input window, operand 1, single buffered']
    #allocation3 [shape = 's32[1]{0}', space=sflag, size = 0x4, scoped, tag = 'scoped memory for mlp_forward.1']
    #allocation4 [shape = 'u8[4096]{0}', space=vmem, size = 0x1000, scoped, tag = 'input window, operand 2, single buffered']
    #allocation5 [shape = 's32[1]{0}', space=sflag, size = 0x4, scoped, tag = 'scoped memory for mlp_forward.1']
    #allocation6 [shape = 'u8[2097152]{0}', space=vmem, size = 0x200000, scoped, tag = 'input window, operand 3, single buffered']
    #allocation7 [shape = 'u8[4096]{0}', space=vmem, size = 0x1000, scoped, tag = 'input window, operand 4, single buffered']
    #allocation8 [shape = 's32[1]{0}', space=sflag, size = 0x4, scoped, tag = 'scoped memory for mlp_forward.1']
    #allocation9 [shape = 'u8[524288]{0}', space=vmem, size = 0x80000, scoped, tag = 'input window, operand 5, single buffered']
    #allocation10 [shape = 'u8[1024]{0}', space=vmem, size = 0x400, scoped, tag = 'input window, operand 6, single buffered']
    #allocation11 [shape = 's32[1]{0}', space=sflag, size = 0x4, scoped, tag = 'scoped memory for mlp_forward.1']
    #allocation12 [shape = 'u8[65536]{0}', space=vmem, size = 0x10000, scoped, tag = 'input window, operand 7, single buffered']
    #allocation13 [shape = 'u8[512]{0}', space=vmem, size = 0x400, scoped, tag = 'input window, operand 8, single buffered']
    #allocation14 [shape = 's32[1]{0}', space=sflag, size = 0x4, scoped, tag = 'scoped memory for mlp_forward.1']
    %14 = vsyncpa [#allocation3], 0
    %15 = vsyncpa [#allocation5], 0
    %16 = vsyncpa [#allocation8], 0
    %17 = vsyncpa [#allocation11], 0
    %18 = vsyncpa [#allocation14], 0
    // Predicated region
    $region2: #{mlp_forward.1} parent=1 // pred_check
      _
    $region3: #{mlp_forward.1} parent=1 // pred_check_branch
      %20 = sbr.rel (0) target = $region5
    $region4: #{mlp_forward.1} parent=1 // pred_region
      _
    $region5: #{mlp_forward.1} parent=1 // pred_fallthru
      _
    // Predicated region
    $region6: #{mlp_forward.1} parent=1 // pred_check
      _
    $region7: #{mlp_forward.1} parent=1 // pred_check_branch
      %22 = sbr.rel (0) target = $region9
    $region8: #{mlp_forward.1} parent=1 // pred_region
      %s24 = ssub.s32 57344, 57344
      %25 = vsyncadd [#allocation3], %s24
      %s26 = sshll.u32 [#allocation2], 4
      %s27 = int_to_ptr.vmem [resolvable:$true] %s26
      %32 = dma.hbm_to_vmem [thread:$0]  %s1, 57344, %s27, [#allocation3], 512, 512, 32
    $region9: #{mlp_forward.1} parent=1 // pred_fallthru
      _
    // Predicated region
    $region10: #{mlp_forward.1} parent=1 // pred_check
      _
    $region11: #{mlp_forward.1} parent=1 // pred_check_branch
      %34 = sbr.rel (0) target = $region13
    $region12: #{mlp_forward.1} parent=1 // pred_region
      %s36 = ssub.s32 128, 128
      %37 = vsyncadd [#allocation5], %s36
      %s39 = sshll.u32 [#allocation4], 4
      %s40 = int_to_ptr.vmem [resolvable:$true] %s39
      %42 = dma.hbm_to_vmem [thread:$0]  %s2, 128, %s40, [#allocation5]
    $region13: #{mlp_forward.1} parent=1 // pred_fallthru
      _
    // Predicated region
    $region14: #{mlp_forward.1} parent=1 // pred_check
      _
    $region15: #{mlp_forward.1} parent=1 // pred_check_branch
      %44 = sbr.rel (0) target = $region17
    $region16: #{mlp_forward.1} parent=1 // pred_region
      %s46 = ssub.s32 65536, 65536
      %47 = vsyncadd [#allocation5], %s46
      %s48 = sshll.u32 [#allocation6], 4
      %s49 = int_to_ptr.vmem [resolvable:$true] %s48
      %54 = dma.hbm_to_vmem [thread:$0]  %s3, 65536, %s49, [#allocation5], 512, 512, 32
    $region17: #{mlp_forward.1} parent=1 // pred_fallthru
      _
    // Predicated region
    $region18: #{mlp_forward.1} parent=1 // pred_check
      _
    $region19: #{mlp_forward.1} parent=1 // pred_check_branch
      %56 = sbr.rel (0) target = $region21
    $region20: #{mlp_forward.1} parent=1 // pred_region
      %s58 = ssub.s32 128, 128
      %59 = vsyncadd [#allocation8], %s58
      %s61 = sshll.u32 [#allocation7], 4
      %s62 = int_to_ptr.vmem [resolvable:$true] %s61
      %64 = dma.hbm_to_vmem [thread:$0]  %s4, 128, %s62, [#allocation8]
    $region21: #{mlp_forward.1} parent=1 // pred_fallthru
      _
    // Predicated region
    $region22: #{mlp_forward.1} parent=1 // pred_check
      _
    $region23: #{mlp_forward.1} parent=1 // pred_check_branch
      %66 = sbr.rel (0) target = $region25
    $region24: #{mlp_forward.1} parent=1 // pred_region
      %s68 = ssub.s32 16384, 16384
      %69 = vsyncadd [#allocation8], %s68
      %s70 = sshll.u32 [#allocation9], 4
      %s71 = int_to_ptr.vmem [resolvable:$true] %s70
      %76 = dma.hbm_to_vmem [thread:$0]  %s5, 16384, %s71, [#allocation8], 128, 128, 8
    $region25: #{mlp_forward.1} parent=1 // pred_fallthru
      _
    // Predicated region
    $region26: #{mlp_forward.1} parent=1 // pred_check
      _
    $region27: #{mlp_forward.1} parent=1 // pred_check_branch
      %78 = sbr.rel (0) target = $region29
    $region28: #{mlp_forward.1} parent=1 // pred_region
      %s80 = ssub.s32 32, 32
      %81 = vsyncadd [#allocation11], %s80
      %s83 = sshll.u32 [#allocation10], 4
      %s84 = int_to_ptr.vmem [resolvable:$true] %s83
      %86 = dma.hbm_to_vmem [thread:$0]  %s6, 32, %s84, [#allocation11]
    $region29: #{mlp_forward.1} parent=1 // pred_fallthru
      _
    // Predicated region
    $region30: #{mlp_forward.1} parent=1 // pred_check
      _
    $region31: #{mlp_forward.1} parent=1 // pred_check_branch
      %88 = sbr.rel (0) target = $region33
    $region32: #{mlp_forward.1} parent=1 // pred_region
      %s90 = ssub.s32 2048, 2048
      %91 = vsyncadd [#allocation11], %s90
      %s92 = sshll.u32 [#allocation12], 4
      %s93 = int_to_ptr.vmem [resolvable:$true] %s92
      %98 = dma.hbm_to_vmem [thread:$0]  %s7, 2048, %s93, [#allocation11], 64, 64, 4
    $region33: #{mlp_forward.1} parent=1 // pred_fallthru
      _
    // Predicated region
    $region34: #{mlp_forward.1} parent=1 // pred_check
      _
    $region35: #{mlp_forward.1} parent=1 // pred_check_branch
      %100 = sbr.rel (0) target = $region37
    $region36: #{mlp_forward.1} parent=1 // pred_region
      %s102 = ssub.s32 16, 16
      %103 = vsyncadd [#allocation14], %s102
      %s105 = sshll.u32 [#allocation13], 4
      %s106 = int_to_ptr.vmem [resolvable:$true] %s105
      %108 = dma.hbm_to_vmem [thread:$0]  %s8, 16, %s106, [#allocation14]
    $region37: #{mlp_forward.1} parent=1 // pred_fallthru
      _
    // Predicated region
    $region38: #{mlp_forward.1} parent=1 // pred_check
      _
    $region39: #{mlp_forward.1} parent=1 // pred_check_branch
      %110 = sbr.rel (0) target = $region41
    $region40: #{mlp_forward.1} parent=1 // pred_region
      %111 = dma.done [#allocation3], 57344
    $region41: #{mlp_forward.1} parent=1 // pred_fallthru
      _
    // Predicated region
    $region42: #{mlp_forward.1} parent=1 // pred_check
      _
    $region43: #{mlp_forward.1} parent=1 // pred_check_branch
      %113 = sbr.rel (0) target = $region45
    $region44: #{mlp_forward.1} parent=1 // pred_region
      %114 = dma.done [#allocation5], 128
    $region45: #{mlp_forward.1} parent=1 // pred_fallthru
      _
    // Predicated region
    $region46: #{mlp_forward.1} parent=1 // pred_check
      _
    $region47: #{mlp_forward.1} parent=1 // pred_check_branch
      %116 = sbr.rel (0) target = $region49
    $region48: #{mlp_forward.1} parent=1 // pred_region
      %117 = dma.done [#allocation5], 65536
    $region49: #{mlp_forward.1} parent=1 // pred_fallthru
      _
    // Predicated region
    $region50: #{mlp_forward.1} parent=1 // pred_check
      _
    $region51: #{mlp_forward.1} parent=1 // pred_check_branch
      %119 = sbr.rel (0) target = $region53
    $region52: #{mlp_forward.1} parent=1 // pred_region
      %120 = dma.done [#allocation8], 128
    $region53: #{mlp_forward.1} parent=1 // pred_fallthru
      _
    // Predicated region
    $region54: #{mlp_forward.1} parent=1 // pred_check
      _
    $region55: #{mlp_forward.1} parent=1 // pred_check_branch
      %122 = sbr.rel (0) target = $region57
    $region56: #{mlp_forward.1} parent=1 // pred_region
      %123 = dma.done [#allocation8], 16384
    $region57: #{mlp_forward.1} parent=1 // pred_fallthru
      _
    // Predicated region
    $region58: #{mlp_forward.1} parent=1 // pred_check
      _
    $region59: #{mlp_forward.1} parent=1 // pred_check_branch
      %125 = sbr.rel (0) target = $region61
    $region60: #{mlp_forward.1} parent=1 // pred_region
      %126 = dma.done [#allocation11], 32
    $region61: #{mlp_forward.1} parent=1 // pred_fallthru
      _
    // Predicated region
    $region62: #{mlp_forward.1} parent=1 // pred_check
      _
    $region63: #{mlp_forward.1} parent=1 // pred_check_branch
      %128 = sbr.rel (0) target = $region65
    $region64: #{mlp_forward.1} parent=1 // pred_region
      %129 = dma.done [#allocation11], 2048
    $region65: #{mlp_forward.1} parent=1 // pred_fallthru
      _
    // Predicated region
    $region66: #{mlp_forward.1} parent=1 // pred_check
      _
    $region67: #{mlp_forward.1} parent=1 // pred_check_branch
      %131 = sbr.rel (0) target = $region69
    $region68: #{mlp_forward.1} parent=1 // pred_region
      %132 = dma.done [#allocation14], 16
    $region69: #{mlp_forward.1} parent=1 // pred_fallthru
      _
    %v134 = vld [vmem:[%s0] sm:$0xff]
    %v135 = vld [vmem:[%s0 + $0x8] sm:$0xff]
    %v136 = vld [vmem:[%s0 + $0x10] sm:$0xff]
    %v137 = vld [vmem:[%s0 + $0x18] sm:$0xf]
    %v138 = vld [vmem:[#allocation2] sm:$0xff]
    %v139 = vld [vmem:[#allocation2 + $0x8] sm:$0xff]
    %v140 = vld [vmem:[#allocation2 + $0x10] sm:$0xff]
    %v141 = vld [vmem:[#allocation2 + $0x18] sm:$0xff]
    %v142 = vld [vmem:[#allocation2 + $0x20] sm:$0xff]
    %v143 = vld [vmem:[#allocation2 + $0x28] sm:$0xff]
    %v144 = vld [vmem:[#allocation2 + $0x30] sm:$0xff]
    %v145 = vld [vmem:[#allocation2 + $0x38] sm:$0xff]
    %v146 = vld [vmem:[#allocation2 + $0x40] sm:$0xff]
    %v147 = vld [vmem:[#allocation2 + $0x48] sm:$0xff]
    %v148 = vld [vmem:[#allocation2 + $0x50] sm:$0xff]
    %v149 = vld [vmem:[#allocation2 + $0x58] sm:$0xff]
    %v150 = vld [vmem:[#allocation2 + $0x60] sm:$0xff]
    %v151 = vld [vmem:[#allocation2 + $0x68] sm:$0xff]
    %v152 = vld [vmem:[#allocation2 + $0x70] sm:$0xff]
    %v153 = vld [vmem:[#allocation2 + $0x78] sm:$0xff]
    %v154 = vld [vmem:[#allocation2 + $0x80] sm:$0xff]
    %v155 = vld [vmem:[#allocation2 + $0x88] sm:$0xff]
    %v156 = vld [vmem:[#allocation2 + $0x90] sm:$0xff]
    %v157 = vld [vmem:[#allocation2 + $0x98] sm:$0xff]
    %v158 = vld [vmem:[#allocation2 + $0xa0] sm:$0xff]
    %v159 = vld [vmem:[#allocation2 + $0xa8] sm:$0xff]
    %v160 = vld [vmem:[#allocation2 + $0xb0] sm:$0xff]
    %v161 = vld [vmem:[#allocation2 + $0xb8] sm:$0xff]
    %v162 = vld [vmem:[#allocation2 + $0xc0] sm:$0xff]
    %v163 = vld [vmem:[#allocation2 + $0xc8] sm:$0xff]
    %v164 = vld [vmem:[#allocation2 + $0xd0] sm:$0xff]
    %v165 = vld [vmem:[#allocation2 + $0xd8] sm:$0xff]
    %v166 = vld [vmem:[#allocation2 + $0xe0] sm:$0xff]
    %v167 = vld [vmem:[#allocation2 + $0xe8] sm:$0xff]
    %v168 = vld [vmem:[#allocation2 + $0xf0] sm:$0xff]
    %v169 = vld [vmem:[#allocation2 + $0xf8] sm:$0xff]
    %v170 = vld [vmem:[#allocation2 + $0x100] sm:$0xff]
    %v171 = vld [vmem:[#allocation2 + $0x108] sm:$0xff]
    %v172 = vld [vmem:[#allocation2 + $0x110] sm:$0xff]
    %v173 = vld [vmem:[#allocation2 + $0x118] sm:$0xff]
    %v174 = vld [vmem:[#allocation2 + $0x120] sm:$0xff]
    %v175 = vld [vmem:[#allocation2 + $0x128] sm:$0xff]
    %v176 = vld [vmem:[#allocation2 + $0x130] sm:$0xff]
    %v177 = vld [vmem:[#allocation2 + $0x138] sm:$0xff]
    %v178 = vld [vmem:[#allocation2 + $0x140] sm:$0xff]
    %v179 = vld [vmem:[#allocation2 + $0x148] sm:$0xff]
    %v180 = vld [vmem:[#allocation2 + $0x150] sm:$0xff]
    %v181 = vld [vmem:[#allocation2 + $0x158] sm:$0xff]
    %v182 = vld [vmem:[#allocation2 + $0x160] sm:$0xff]
    %v183 = vld [vmem:[#allocation2 + $0x168] sm:$0xff]
    %v184 = vld [vmem:[#allocation2 + $0x170] sm:$0xff]
    %v185 = vld [vmem:[#allocation2 + $0x178] sm:$0xff]
    %v186 = vld [vmem:[#allocation2 + $0x180] sm:$0xff]
    %v187 = vld [vmem:[#allocation2 + $0x188] sm:$0xff]
    %v188 = vld [vmem:[#allocation2 + $0x190] sm:$0xff]
    %v189 = vld [vmem:[#allocation2 + $0x198] sm:$0xff]
    %v190 = vld [vmem:[#allocation2 + $0x1a0] sm:$0xff]
    %v191 = vld [vmem:[#allocation2 + $0x1a8] sm:$0xff]
    %v192 = vld [vmem:[#allocation2 + $0x1b0] sm:$0xff]
    %v193 = vld [vmem:[#allocation2 + $0x1b8] sm:$0xff]
    %v194 = vld [vmem:[#allocation2 + $0x1c0] sm:$0xff]
    %v195 = vld [vmem:[#allocation2 + $0x1c8] sm:$0xff]
    %v196 = vld [vmem:[#allocation2 + $0x1d0] sm:$0xff]
    %v197 = vld [vmem:[#allocation2 + $0x1d8] sm:$0xff]
    %v198 = vld [vmem:[#allocation2 + $0x1e0] sm:$0xff]
    %v199 = vld [vmem:[#allocation2 + $0x1e8] sm:$0xff]
    %v200 = vld [vmem:[#allocation2 + $0x1f0] sm:$0xff]
    %v201 = vld [vmem:[#allocation2 + $0x1f8] sm:$0xff]
    %v202 = vld [vmem:[#allocation2 + $0x200] sm:$0xff]
    %v203 = vld [vmem:[#allocation2 + $0x208] sm:$0xff]
    %v204 = vld [vmem:[#allocation2 + $0x210] sm:$0xff]
    %v205 = vld [vmem:[#allocation2 + $0x218] sm:$0xff]
    %v206 = vld [vmem:[#allocation2 + $0x220] sm:$0xff]
    %v207 = vld [vmem:[#allocation2 + $0x228] sm:$0xff]
    %v208 = vld [vmem:[#allocation2 + $0x230] sm:$0xff]
    %v209 = vld [vmem:[#allocation2 + $0x238] sm:$0xff]
    %v210 = vld [vmem:[#allocation2 + $0x240] sm:$0xff]
    %v211 = vld [vmem:[#allocation2 + $0x248] sm:$0xff]
    %v212 = vld [vmem:[#allocation2 + $0x250] sm:$0xff]
    %v213 = vld [vmem:[#allocation2 + $0x258] sm:$0xff]
    %v214 = vld [vmem:[#allocation2 + $0x260] sm:$0xff]
    %v215 = vld [vmem:[#allocation2 + $0x268] sm:$0xff]
    %v216 = vld [vmem:[#allocation2 + $0x270] sm:$0xff]
    %v217 = vld [vmem:[#allocation2 + $0x278] sm:$0xff]
    %v218 = vld [vmem:[#allocation2 + $0x280] sm:$0xff]
    %v219 = vld [vmem:[#allocation2 + $0x288] sm:$0xff]
    %v220 = vld [vmem:[#allocation2 + $0x290] sm:$0xff]
    %v221 = vld [vmem:[#allocation2 + $0x298] sm:$0xff]
    %v222 = vld [vmem:[#allocation2 + $0x2a0] sm:$0xff]
    %v223 = vld [vmem:[#allocation2 + $0x2a8] sm:$0xff]
    %v224 = vld [vmem:[#allocation2 + $0x2b0] sm:$0xff]
    %v225 = vld [vmem:[#allocation2 + $0x2b8] sm:$0xff]
    %v226 = vld [vmem:[#allocation2 + $0x2c0] sm:$0xff]
    %v227 = vld [vmem:[#allocation2 + $0x2c8] sm:$0xff]
    %v228 = vld [vmem:[#allocation2 + $0x2d0] sm:$0xff]
    %v229 = vld [vmem:[#allocation2 + $0x2d8] sm:$0xff]
    %v230 = vld [vmem:[#allocation2 + $0x2e0] sm:$0xff]
    %v231 = vld [vmem:[#allocation2 + $0x2e8] sm:$0xff]
    %v232 = vld [vmem:[#allocation2 + $0x2f0] sm:$0xff]
    %v233 = vld [vmem:[#allocation2 + $0x2f8] sm:$0xff]
    %v234 = vld [vmem:[#allocation2 + $0x300] sm:$0xff]
    %v235 = vld [vmem:[#allocation2 + $0x308] sm:$0xff]
    %v236 = vld [vmem:[#allocation2 + $0x310] sm:$0xff]
    %v237 = vld [vmem:[#allocation2 + $0x318] sm:$0xff]
    %v238 = vld [vmem:[#allocation2 + $0x320] sm:$0xff]
    %v239 = vld [vmem:[#allocation2 + $0x328] sm:$0xff]
    %v240 = vld [vmem:[#allocation2 + $0x330] sm:$0xff]
    %v241 = vld [vmem:[#allocation2 + $0x338] sm:$0xff]
    %v242 = vld [vmem:[#allocation2 + $0x340] sm:$0xff]
    %v243 = vld [vmem:[#allocation2 + $0x348] sm:$0xff]
    %v244 = vld [vmem:[#allocation2 + $0x350] sm:$0xff]
    %v245 = vld [vmem:[#allocation2 + $0x358] sm:$0xff]
    %v246 = vld [vmem:[#allocation2 + $0x360] sm:$0xff]
    %v247 = vld [vmem:[#allocation2 + $0x368] sm:$0xff]
    %v248 = vld [vmem:[#allocation2 + $0x370] sm:$0xff]
    %v249 = vld [vmem:[#allocation2 + $0x378] sm:$0xff]
    %v250 = vld [vmem:[#allocation2 + $0x380] sm:$0xff]
    %v251 = vld [vmem:[#allocation2 + $0x388] sm:$0xff]
    %v252 = vld [vmem:[#allocation2 + $0x390] sm:$0xff]
    %v253 = vld [vmem:[#allocation2 + $0x398] sm:$0xff]
    %v254 = vld [vmem:[#allocation2 + $0x3a0] sm:$0xff]
    %v255 = vld [vmem:[#allocation2 + $0x3a8] sm:$0xff]
    %v256 = vld [vmem:[#allocation2 + $0x3b0] sm:$0xff]
    %v257 = vld [vmem:[#allocation2 + $0x3b8] sm:$0xff]
    %v258 = vld [vmem:[#allocation2 + $0x3c0] sm:$0xff]
    %v259 = vld [vmem:[#allocation2 + $0x3c8] sm:$0xff]
    %v260 = vld [vmem:[#allocation2 + $0x3d0] sm:$0xff]
    %v261 = vld [vmem:[#allocation2 + $0x3d8] sm:$0xff]
    %v262 = vld [vmem:[#allocation2 + $0x3e0] sm:$0xff]
    %v263 = vld [vmem:[#allocation2 + $0x3e8] sm:$0xff]
    %v264 = vld [vmem:[#allocation2 + $0x3f0] sm:$0xff]
    %v265 = vld [vmem:[#allocation2 + $0x3f8] sm:$0xff]
    %v266 = vld [vmem:[#allocation2 + $0x400] sm:$0xff]
    %v267 = vld [vmem:[#allocation2 + $0x408] sm:$0xff]
    %v268 = vld [vmem:[#allocation2 + $0x410] sm:$0xff]
    %v269 = vld [vmem:[#allocation2 + $0x418] sm:$0xff]
    %v270 = vld [vmem:[#allocation2 + $0x420] sm:$0xff]
    %v271 = vld [vmem:[#allocation2 + $0x428] sm:$0xff]
    %v272 = vld [vmem:[#allocation2 + $0x430] sm:$0xff]
    %v273 = vld [vmem:[#allocation2 + $0x438] sm:$0xff]
    %v274 = vld [vmem:[#allocation2 + $0x440] sm:$0xff]
    %v275 = vld [vmem:[#allocation2 + $0x448] sm:$0xff]
    %v276 = vld [vmem:[#allocation2 + $0x450] sm:$0xff]
    %v277 = vld [vmem:[#allocation2 + $0x458] sm:$0xff]
    %v278 = vld [vmem:[#allocation2 + $0x460] sm:$0xff]
    %v279 = vld [vmem:[#allocation2 + $0x468] sm:$0xff]
    %v280 = vld [vmem:[#allocation2 + $0x470] sm:$0xff]
    %v281 = vld [vmem:[#allocation2 + $0x478] sm:$0xff]
    %v282 = vld [vmem:[#allocation2 + $0x480] sm:$0xff]
    %v283 = vld [vmem:[#allocation2 + $0x488] sm:$0xff]
    %v284 = vld [vmem:[#allocation2 + $0x490] sm:$0xff]
    %v285 = vld [vmem:[#allocation2 + $0x498] sm:$0xff]
    %v286 = vld [vmem:[#allocation2 + $0x4a0] sm:$0xff]
    %v287 = vld [vmem:[#allocation2 + $0x4a8] sm:$0xff]
    %v288 = vld [vmem:[#allocation2 + $0x4b0] sm:$0xff]
    %v289 = vld [vmem:[#allocation2 + $0x4b8] sm:$0xff]
    %v290 = vld [vmem:[#allocation2 + $0x4c0] sm:$0xff]
    %v291 = vld [vmem:[#allocation2 + $0x4c8] sm:$0xff]
    %v292 = vld [vmem:[#allocation2 + $0x4d0] sm:$0xff]
    %v293 = vld [vmem:[#allocation2 + $0x4d8] sm:$0xff]
    %v294 = vld [vmem:[#allocation2 + $0x4e0] sm:$0xff]
    %v295 = vld [vmem:[#allocation2 + $0x4e8] sm:$0xff]
    %v296 = vld [vmem:[#allocation2 + $0x4f0] sm:$0xff]
    %v297 = vld [vmem:[#allocation2 + $0x4f8] sm:$0xff]
    %v298 = vld [vmem:[#allocation2 + $0x500] sm:$0xff]
    %v299 = vld [vmem:[#allocation2 + $0x508] sm:$0xff]
    %v300 = vld [vmem:[#allocation2 + $0x510] sm:$0xff]
    %v301 = vld [vmem:[#allocation2 + $0x518] sm:$0xff]
    %v302 = vld [vmem:[#allocation2 + $0x520] sm:$0xff]
    %v303 = vld [vmem:[#allocation2 + $0x528] sm:$0xff]
    %v304 = vld [vmem:[#allocation2 + $0x530] sm:$0xff]
    %v305 = vld [vmem:[#allocation2 + $0x538] sm:$0xff]
    %v306 = vld [vmem:[#allocation2 + $0x540] sm:$0xff]
    %v307 = vld [vmem:[#allocation2 + $0x548] sm:$0xff]
    %v308 = vld [vmem:[#allocation2 + $0x550] sm:$0xff]
    %v309 = vld [vmem:[#allocation2 + $0x558] sm:$0xff]
    %v310 = vld [vmem:[#allocation2 + $0x560] sm:$0xff]
    %v311 = vld [vmem:[#allocation2 + $0x568] sm:$0xff]
    %v312 = vld [vmem:[#allocation2 + $0x570] sm:$0xff]
    %v313 = vld [vmem:[#allocation2 + $0x578] sm:$0xff]
    %v314 = vld [vmem:[#allocation2 + $0x580] sm:$0xff]
    %v315 = vld [vmem:[#allocation2 + $0x588] sm:$0xff]
    %v316 = vld [vmem:[#allocation2 + $0x590] sm:$0xff]
    %v317 = vld [vmem:[#allocation2 + $0x598] sm:$0xff]
    %v318 = vld [vmem:[#allocation2 + $0x5a0] sm:$0xff]
    %v319 = vld [vmem:[#allocation2 + $0x5a8] sm:$0xff]
    %v320 = vld [vmem:[#allocation2 + $0x5b0] sm:$0xff]
    %v321 = vld [vmem:[#allocation2 + $0x5b8] sm:$0xff]
    %v322 = vld [vmem:[#allocation2 + $0x5c0] sm:$0xff]
    %v323 = vld [vmem:[#allocation2 + $0x5c8] sm:$0xff]
    %v324 = vld [vmem:[#allocation2 + $0x5d0] sm:$0xff]
    %v325 = vld [vmem:[#allocation2 + $0x5d8] sm:$0xff]
    %v326 = vld [vmem:[#allocation2 + $0x5e0] sm:$0xff]
    %v327 = vld [vmem:[#allocation2 + $0x5e8] sm:$0xff]
    %v328 = vld [vmem:[#allocation2 + $0x5f0] sm:$0xff]
    %v329 = vld [vmem:[#allocation2 + $0x5f8] sm:$0xff]
    %v330 = vld [vmem:[#allocation2 + $0x600] sm:$0xff]
    %v331 = vld [vmem:[#allocation2 + $0x608] sm:$0xff]
    %v332 = vld [vmem:[#allocation2 + $0x610] sm:$0xff]
    %v333 = vld [vmem:[#allocation2 + $0x618] sm:$0xff]
    %v334 = vld [vmem:[#allocation2 + $0x620] sm:$0xff]
    %v335 = vld [vmem:[#allocation2 + $0x628] sm:$0xff]
    %v336 = vld [vmem:[#allocation2 + $0x630] sm:$0xff]
    %v337 = vld [vmem:[#allocation2 + $0x638] sm:$0xff]
    %v338 = vld [vmem:[#allocation2 + $0x640] sm:$0xff]
    %v339 = vld [vmem:[#allocation2 + $0x648] sm:$0xff]
    %v340 = vld [vmem:[#allocation2 + $0x650] sm:$0xff]
    %v341 = vld [vmem:[#allocation2 + $0x658] sm:$0xff]
    %v342 = vld [vmem:[#allocation2 + $0x660] sm:$0xff]
    %v343 = vld [vmem:[#allocation2 + $0x668] sm:$0xff]
    %v344 = vld [vmem:[#allocation2 + $0x670] sm:$0xff]
    %v345 = vld [vmem:[#allocation2 + $0x678] sm:$0xff]
    %v346 = vld [vmem:[#allocation2 + $0x680] sm:$0xff]
    %v347 = vld [vmem:[#allocation2 + $0x688] sm:$0xff]
    %v348 = vld [vmem:[#allocation2 + $0x690] sm:$0xff]
    %v349 = vld [vmem:[#allocation2 + $0x698] sm:$0xff]
    %v350 = vld [vmem:[#allocation2 + $0x6a0] sm:$0xff]
    %v351 = vld [vmem:[#allocation2 + $0x6a8] sm:$0xff]
    %v352 = vld [vmem:[#allocation2 + $0x6b0] sm:$0xff]
    %v353 = vld [vmem:[#allocation2 + $0x6b8] sm:$0xff]
    %v354 = vld [vmem:[#allocation2 + $0x6c0] sm:$0xff]
    %v355 = vld [vmem:[#allocation2 + $0x6c8] sm:$0xff]
    %v356 = vld [vmem:[#allocation2 + $0x6d0] sm:$0xff]
    %v357 = vld [vmem:[#allocation2 + $0x6d8] sm:$0xff]
    %v358 = vld [vmem:[#allocation2 + $0x6e0] sm:$0xff]
    %v359 = vld [vmem:[#allocation2 + $0x6e8] sm:$0xff]
    %v360 = vld [vmem:[#allocation2 + $0x6f0] sm:$0xff]
    %v361 = vld [vmem:[#allocation2 + $0x6f8] sm:$0xff]
    %v362 = vld [vmem:[#allocation2 + $0x700] sm:$0xff]
    %v363 = vld [vmem:[#allocation2 + $0x708] sm:$0xff]
    %v364 = vld [vmem:[#allocation2 + $0x710] sm:$0xff]
    %v365 = vld [vmem:[#allocation2 + $0x718] sm:$0xff]
    %v366 = vld [vmem:[#allocation2 + $0x720] sm:$0xff]
    %v367 = vld [vmem:[#allocation2 + $0x728] sm:$0xff]
    %v368 = vld [vmem:[#allocation2 + $0x730] sm:$0xff]
    %v369 = vld [vmem:[#allocation2 + $0x738] sm:$0xff]
    %v370 = vld [vmem:[#allocation2 + $0x740] sm:$0xff]
    %v371 = vld [vmem:[#allocation2 + $0x748] sm:$0xff]
    %v372 = vld [vmem:[#allocation2 + $0x750] sm:$0xff]
    %v373 = vld [vmem:[#allocation2 + $0x758] sm:$0xff]
    %v374 = vld [vmem:[#allocation2 + $0x760] sm:$0xff]
    %v375 = vld [vmem:[#allocation2 + $0x768] sm:$0xff]
    %v376 = vld [vmem:[#allocation2 + $0x770] sm:$0xff]
    %v377 = vld [vmem:[#allocation2 + $0x778] sm:$0xff]
    %v378 = vld [vmem:[#allocation2 + $0x780] sm:$0xff]
    %v379 = vld [vmem:[#allocation2 + $0x788] sm:$0xff]
    %v380 = vld [vmem:[#allocation2 + $0x790] sm:$0xff]
    %v381 = vld [vmem:[#allocation2 + $0x798] sm:$0xff]
    %v382 = vld [vmem:[#allocation2 + $0x7a0] sm:$0xff]
    %v383 = vld [vmem:[#allocation2 + $0x7a8] sm:$0xff]
    %v384 = vld [vmem:[#allocation2 + $0x7b0] sm:$0xff]
    %v385 = vld [vmem:[#allocation2 + $0x7b8] sm:$0xff]
    %v386 = vld [vmem:[#allocation2 + $0x7c0] sm:$0xff]
    %v387 = vld [vmem:[#allocation2 + $0x7c8] sm:$0xff]
    %v388 = vld [vmem:[#allocation2 + $0x7d0] sm:$0xff]
    %v389 = vld [vmem:[#allocation2 + $0x7d8] sm:$0xff]
    %v390 = vld [vmem:[#allocation2 + $0x7e0] sm:$0xff]
    %v391 = vld [vmem:[#allocation2 + $0x7e8] sm:$0xff]
    %v392 = vld [vmem:[#allocation2 + $0x7f0] sm:$0xff]
    %v393 = vld [vmem:[#allocation2 + $0x7f8] sm:$0xff]
    %v394 = vld [vmem:[#allocation2 + $0x800] sm:$0xff]
    %v395 = vld [vmem:[#allocation2 + $0x808] sm:$0xff]
    %v396 = vld [vmem:[#allocation2 + $0x810] sm:$0xff]
    %v397 = vld [vmem:[#allocation2 + $0x818] sm:$0xff]
    %v398 = vld [vmem:[#allocation2 + $0x820] sm:$0xff]
    %v399 = vld [vmem:[#allocation2 + $0x828] sm:$0xff]
    %v400 = vld [vmem:[#allocation2 + $0x830] sm:$0xff]
    %v401 = vld [vmem:[#allocation2 + $0x838] sm:$0xff]
    %v402 = vld [vmem:[#allocation2 + $0x840] sm:$0xff]
    %v403 = vld [vmem:[#allocation2 + $0x848] sm:$0xff]
    %v404 = vld [vmem:[#allocation2 + $0x850] sm:$0xff]
    %v405 = vld [vmem:[#allocation2 + $0x858] sm:$0xff]
    %v406 = vld [vmem:[#allocation2 + $0x860] sm:$0xff]
    %v407 = vld [vmem:[#allocation2 + $0x868] sm:$0xff]
    %v408 = vld [vmem:[#allocation2 + $0x870] sm:$0xff]
    %v409 = vld [vmem:[#allocation2 + $0x878] sm:$0xff]
    %v410 = vld [vmem:[#allocation2 + $0x880] sm:$0xff]
    %v411 = vld [vmem:[#allocation2 + $0x888] sm:$0xff]
    %v412 = vld [vmem:[#allocation2 + $0x890] sm:$0xff]
    %v413 = vld [vmem:[#allocation2 + $0x898] sm:$0xff]
    %v414 = vld [vmem:[#allocation2 + $0x8a0] sm:$0xff]
    %v415 = vld [vmem:[#allocation2 + $0x8a8] sm:$0xff]
    %v416 = vld [vmem:[#allocation2 + $0x8b0] sm:$0xff]
    %v417 = vld [vmem:[#allocation2 + $0x8b8] sm:$0xff]
    %v418 = vld [vmem:[#allocation2 + $0x8c0] sm:$0xff]
    %v419 = vld [vmem:[#allocation2 + $0x8c8] sm:$0xff]
    %v420 = vld [vmem:[#allocation2 + $0x8d0] sm:$0xff]
    %v421 = vld [vmem:[#allocation2 + $0x8d8] sm:$0xff]
    %v422 = vld [vmem:[#allocation2 + $0x8e0] sm:$0xff]
    %v423 = vld [vmem:[#allocation2 + $0x8e8] sm:$0xff]
    %v424 = vld [vmem:[#allocation2 + $0x8f0] sm:$0xff]
    %v425 = vld [vmem:[#allocation2 + $0x8f8] sm:$0xff]
    %v426 = vld [vmem:[#allocation2 + $0x900] sm:$0xff]
    %v427 = vld [vmem:[#allocation2 + $0x908] sm:$0xff]
    %v428 = vld [vmem:[#allocation2 + $0x910] sm:$0xff]
    %v429 = vld [vmem:[#allocation2 + $0x918] sm:$0xff]
    %v430 = vld [vmem:[#allocation2 + $0x920] sm:$0xff]
    %v431 = vld [vmem:[#allocation2 + $0x928] sm:$0xff]
    %v432 = vld [vmem:[#allocation2 + $0x930] sm:$0xff]
    %v433 = vld [vmem:[#allocation2 + $0x938] sm:$0xff]
    %v434 = vld [vmem:[#allocation2 + $0x940] sm:$0xff]
    %v435 = vld [vmem:[#allocation2 + $0x948] sm:$0xff]
    %v436 = vld [vmem:[#allocation2 + $0x950] sm:$0xff]
    %v437 = vld [vmem:[#allocation2 + $0x958] sm:$0xff]
    %v438 = vld [vmem:[#allocation2 + $0x960] sm:$0xff]
    %v439 = vld [vmem:[#allocation2 + $0x968] sm:$0xff]
    %v440 = vld [vmem:[#allocation2 + $0x970] sm:$0xff]
    %v441 = vld [vmem:[#allocation2 + $0x978] sm:$0xff]
    %v442 = vld [vmem:[#allocation2 + $0x980] sm:$0xff]
    %v443 = vld [vmem:[#allocation2 + $0x988] sm:$0xff]
    %v444 = vld [vmem:[#allocation2 + $0x990] sm:$0xff]
    %v445 = vld [vmem:[#allocation2 + $0x998] sm:$0xff]
    %v446 = vld [vmem:[#allocation2 + $0x9a0] sm:$0xff]
    %v447 = vld [vmem:[#allocation2 + $0x9a8] sm:$0xff]
    %v448 = vld [vmem:[#allocation2 + $0x9b0] sm:$0xff]
    %v449 = vld [vmem:[#allocation2 + $0x9b8] sm:$0xff]
    %v450 = vld [vmem:[#allocation2 + $0x9c0] sm:$0xff]
    %v451 = vld [vmem:[#allocation2 + $0x9c8] sm:$0xff]
    %v452 = vld [vmem:[#allocation2 + $0x9d0] sm:$0xff]
    %v453 = vld [vmem:[#allocation2 + $0x9d8] sm:$0xff]
    %v454 = vld [vmem:[#allocation2 + $0x9e0] sm:$0xff]
    %v455 = vld [vmem:[#allocation2 + $0x9e8] sm:$0xff]
    %v456 = vld [vmem:[#allocation2 + $0x9f0] sm:$0xff]
    %v457 = vld [vmem:[#allocation2 + $0x9f8] sm:$0xff]
    %v458 = vld [vmem:[#allocation2 + $0xa00] sm:$0xff]
    %v459 = vld [vmem:[#allocation2 + $0xa08] sm:$0xff]
    %v460 = vld [vmem:[#allocation2 + $0xa10] sm:$0xff]
    %v461 = vld [vmem:[#allocation2 + $0xa18] sm:$0xff]
    %v462 = vld [vmem:[#allocation2 + $0xa20] sm:$0xff]
    %v463 = vld [vmem:[#allocation2 + $0xa28] sm:$0xff]
    %v464 = vld [vmem:[#allocation2 + $0xa30] sm:$0xff]
    %v465 = vld [vmem:[#allocation2 + $0xa38] sm:$0xff]
    %v466 = vld [vmem:[#allocation2 + $0xa40] sm:$0xff]
    %v467 = vld [vmem:[#allocation2 + $0xa48] sm:$0xff]
    %v468 = vld [vmem:[#allocation2 + $0xa50] sm:$0xff]
    %v469 = vld [vmem:[#allocation2 + $0xa58] sm:$0xff]
    %v470 = vld [vmem:[#allocation2 + $0xa60] sm:$0xff]
    %v471 = vld [vmem:[#allocation2 + $0xa68] sm:$0xff]
    %v472 = vld [vmem:[#allocation2 + $0xa70] sm:$0xff]
    %v473 = vld [vmem:[#allocation2 + $0xa78] sm:$0xff]
    %v474 = vld [vmem:[#allocation2 + $0xa80] sm:$0xff]
    %v475 = vld [vmem:[#allocation2 + $0xa88] sm:$0xff]
    %v476 = vld [vmem:[#allocation2 + $0xa90] sm:$0xff]
    %v477 = vld [vmem:[#allocation2 + $0xa98] sm:$0xff]
    %v478 = vld [vmem:[#allocation2 + $0xaa0] sm:$0xff]
    %v479 = vld [vmem:[#allocation2 + $0xaa8] sm:$0xff]
    %v480 = vld [vmem:[#allocation2 + $0xab0] sm:$0xff]
    %v481 = vld [vmem:[#allocation2 + $0xab8] sm:$0xff]
    %v482 = vld [vmem:[#allocation2 + $0xac0] sm:$0xff]
    %v483 = vld [vmem:[#allocation2 + $0xac8] sm:$0xff]
    %v484 = vld [vmem:[#allocation2 + $0xad0] sm:$0xff]
    %v485 = vld [vmem:[#allocation2 + $0xad8] sm:$0xff]
    %v486 = vld [vmem:[#allocation2 + $0xae0] sm:$0xff]
    %v487 = vld [vmem:[#allocation2 + $0xae8] sm:$0xff]
    %v488 = vld [vmem:[#allocation2 + $0xaf0] sm:$0xff]
    %v489 = vld [vmem:[#allocation2 + $0xaf8] sm:$0xff]
    %v490 = vld [vmem:[#allocation2 + $0xb00] sm:$0xff]
    %v491 = vld [vmem:[#allocation2 + $0xb08] sm:$0xff]
    %v492 = vld [vmem:[#allocation2 + $0xb10] sm:$0xff]
    %v493 = vld [vmem:[#allocation2 + $0xb18] sm:$0xff]
    %v494 = vld [vmem:[#allocation2 + $0xb20] sm:$0xff]
    %v495 = vld [vmem:[#allocation2 + $0xb28] sm:$0xff]
    %v496 = vld [vmem:[#allocation2 + $0xb30] sm:$0xff]
    %v497 = vld [vmem:[#allocation2 + $0xb38] sm:$0xff]
    %v498 = vld [vmem:[#allocation2 + $0xb40] sm:$0xff]
    %v499 = vld [vmem:[#allocation2 + $0xb48] sm:$0xff]
    %v500 = vld [vmem:[#allocation2 + $0xb50] sm:$0xff]
    %v501 = vld [vmem:[#allocation2 + $0xb58] sm:$0xff]
    %v502 = vld [vmem:[#allocation2 + $0xb60] sm:$0xff]
    %v503 = vld [vmem:[#allocation2 + $0xb68] sm:$0xff]
    %v504 = vld [vmem:[#allocation2 + $0xb70] sm:$0xff]
    %v505 = vld [vmem:[#allocation2 + $0xb78] sm:$0xff]
    %v506 = vld [vmem:[#allocation2 + $0xb80] sm:$0xff]
    %v507 = vld [vmem:[#allocation2 + $0xb88] sm:$0xff]
    %v508 = vld [vmem:[#allocation2 + $0xb90] sm:$0xff]
    %v509 = vld [vmem:[#allocation2 + $0xb98] sm:$0xff]
    %v510 = vld [vmem:[#allocation2 + $0xba0] sm:$0xff]
    %v511 = vld [vmem:[#allocation2 + $0xba8] sm:$0xff]
    %v512 = vld [vmem:[#allocation2 + $0xbb0] sm:$0xff]
    %v513 = vld [vmem:[#allocation2 + $0xbb8] sm:$0xff]
    %v514 = vld [vmem:[#allocation2 + $0xbc0] sm:$0xff]
    %v515 = vld [vmem:[#allocation2 + $0xbc8] sm:$0xff]
    %v516 = vld [vmem:[#allocation2 + $0xbd0] sm:$0xff]
    %v517 = vld [vmem:[#allocation2 + $0xbd8] sm:$0xff]
    %v518 = vld [vmem:[#allocation2 + $0xbe0] sm:$0xff]
    %v519 = vld [vmem:[#allocation2 + $0xbe8] sm:$0xff]
    %v520 = vld [vmem:[#allocation2 + $0xbf0] sm:$0xff]
    %v521 = vld [vmem:[#allocation2 + $0xbf8] sm:$0xff]
    %v522 = vld [vmem:[#allocation2 + $0xc00] sm:$0xff]
    %v523 = vld [vmem:[#allocation2 + $0xc08] sm:$0xff]
    %v524 = vld [vmem:[#allocation2 + $0xc10] sm:$0xff]
    %v525 = vld [vmem:[#allocation2 + $0xc18] sm:$0xff]
    %v526 = vld [vmem:[#allocation2 + $0xc20] sm:$0xff]
    %v527 = vld [vmem:[#allocation2 + $0xc28] sm:$0xff]
    %v528 = vld [vmem:[#allocation2 + $0xc30] sm:$0xff]
    %v529 = vld [vmem:[#allocation2 + $0xc38] sm:$0xff]
    %v530 = vld [vmem:[#allocation2 + $0xc40] sm:$0xff]
    %v531 = vld [vmem:[#allocation2 + $0xc48] sm:$0xff]
    %v532 = vld [vmem:[#allocation2 + $0xc50] sm:$0xff]
    %v533 = vld [vmem:[#allocation2 + $0xc58] sm:$0xff]
    %v534 = vld [vmem:[#allocation2 + $0xc60] sm:$0xff]
    %v535 = vld [vmem:[#allocation2 + $0xc68] sm:$0xff]
    %v536 = vld [vmem:[#allocation2 + $0xc70] sm:$0xff]
    %v537 = vld [vmem:[#allocation2 + $0xc78] sm:$0xff]
    %v538 = vld [vmem:[#allocation2 + $0xc80] sm:$0xff]
    %v539 = vld [vmem:[#allocation2 + $0xc88] sm:$0xff]
    %v540 = vld [vmem:[#allocation2 + $0xc90] sm:$0xff]
    %v541 = vld [vmem:[#allocation2 + $0xc98] sm:$0xff]
    %v542 = vld [vmem:[#allocation2 + $0xca0] sm:$0xff]
    %v543 = vld [vmem:[#allocation2 + $0xca8] sm:$0xff]
    %v544 = vld [vmem:[#allocation2 + $0xcb0] sm:$0xff]
    %v545 = vld [vmem:[#allocation2 + $0xcb8] sm:$0xff]
    %v546 = vld [vmem:[#allocation2 + $0xcc0] sm:$0xff]
    %v547 = vld [vmem:[#allocation2 + $0xcc8] sm:$0xff]
    %v548 = vld [vmem:[#allocation2 + $0xcd0] sm:$0xff]
    %v549 = vld [vmem:[#allocation2 + $0xcd8] sm:$0xff]
    %v550 = vld [vmem:[#allocation2 + $0xce0] sm:$0xff]
    %v551 = vld [vmem:[#allocation2 + $0xce8] sm:$0xff]
    %v552 = vld [vmem:[#allocation2 + $0xcf0] sm:$0xff]
    %v553 = vld [vmem:[#allocation2 + $0xcf8] sm:$0xff]
    %v554 = vld [vmem:[#allocation2 + $0xd00] sm:$0xff]
    %v555 = vld [vmem:[#allocation2 + $0xd08] sm:$0xff]
    %v556 = vld [vmem:[#allocation2 + $0xd10] sm:$0xff]
    %v557 = vld [vmem:[#allocation2 + $0xd18] sm:$0xff]
    %v558 = vld [vmem:[#allocation2 + $0xd20] sm:$0xff]
    %v559 = vld [vmem:[#allocation2 + $0xd28] sm:$0xff]
    %v560 = vld [vmem:[#allocation2 + $0xd30] sm:$0xff]
    %v561 = vld [vmem:[#allocation2 + $0xd38] sm:$0xff]
    %v562 = vld [vmem:[#allocation2 + $0xd40] sm:$0xff]
    %v563 = vld [vmem:[#allocation2 + $0xd48] sm:$0xff]
    %v564 = vld [vmem:[#allocation2 + $0xd50] sm:$0xff]
    %v565 = vld [vmem:[#allocation2 + $0xd58] sm:$0xff]
    %v566 = vld [vmem:[#allocation2 + $0xd60] sm:$0xff]
    %v567 = vld [vmem:[#allocation2 + $0xd68] sm:$0xff]
    %v568 = vld [vmem:[#allocation2 + $0xd70] sm:$0xff]
    %v569 = vld [vmem:[#allocation2 + $0xd78] sm:$0xff]
    %v570 = vld [vmem:[#allocation2 + $0xd80] sm:$0xff]
    %v571 = vld [vmem:[#allocation2 + $0xd88] sm:$0xff]
    %v572 = vld [vmem:[#allocation2 + $0xd90] sm:$0xff]
    %v573 = vld [vmem:[#allocation2 + $0xd98] sm:$0xff]
    %v574 = vld [vmem:[#allocation2 + $0xda0] sm:$0xff]
    %v575 = vld [vmem:[#allocation2 + $0xda8] sm:$0xff]
    %v576 = vld [vmem:[#allocation2 + $0xdb0] sm:$0xff]
    %v577 = vld [vmem:[#allocation2 + $0xdb8] sm:$0xff]
    %v578 = vld [vmem:[#allocation2 + $0xdc0] sm:$0xff]
    %v579 = vld [vmem:[#allocation2 + $0xdc8] sm:$0xff]
    %v580 = vld [vmem:[#allocation2 + $0xdd0] sm:$0xff]
    %v581 = vld [vmem:[#allocation2 + $0xdd8] sm:$0xff]
    %v582 = vld [vmem:[#allocation2 + $0xde0] sm:$0xff]
    %v583 = vld [vmem:[#allocation2 + $0xde8] sm:$0xff]
    %v584 = vld [vmem:[#allocation2 + $0xdf0] sm:$0xff]
    %v585 = vld [vmem:[#allocation2 + $0xdf8] sm:$0xff]
    %v586 = vld [vmem:[#allocation4] sm:$0xff]
    %v588 = vlaneseq
    %v589 = vshrl.u32 %v588, 7
    %v590 = vsub.s32 0, %v589
    %v591 = vrot.slane %v586, %v590
    %v592 = vlaneseq
    %v593 = vshrl.u32 %v592, 7
    %v594 = vsub.s32 1, %v593
    %v595 = vrot.slane %v586, %v594
    %v596 = vlaneseq
    %v597 = vshrl.u32 %v596, 7
    %v598 = vsub.s32 2, %v597
    %v599 = vrot.slane %v586, %v598
    %v600 = vlaneseq
    %v601 = vshrl.u32 %v600, 7
    %v602 = vsub.s32 3, %v601
    %v603 = vrot.slane %v586, %v602
    %v604 = vlaneseq
    %v605 = vshrl.u32 %v604, 7
    %v606 = vsub.s32 4, %v605
    %v607 = vrot.slane %v586, %v606
    %v608 = vlaneseq
    %v609 = vshrl.u32 %v608, 7
    %v610 = vsub.s32 5, %v609
    %v611 = vrot.slane %v586, %v610
    %v612 = vlaneseq
    %v613 = vshrl.u32 %v612, 7
    %v614 = vsub.s32 6, %v613
    %v615 = vrot.slane %v586, %v614
    %v616 = vlaneseq
    %v617 = vshrl.u32 %v616, 7
    %v618 = vsub.s32 7, %v617
    %v619 = vrot.slane %v586, %v618
    %v632 = vunpack.c.l.b16 %v134
    %v633 = vunpack.c.h.b16 %v134
    %v634 = vunpack.c.l.b16 %v135
    %v635 = vunpack.c.h.b16 %v135
    %v636 = vunpack.c.l.b16 %v136
    %v637 = vunpack.c.h.b16 %v136
    %v638 = vunpack.c.l.b16 %v137
    %v639 = vpack.c.b16 %v632, %v632
    %v640 = vpack.c.b16 %v633, %v633
    %v641 = vpack.c.b16 %v634, %v634
    %v642 = vpack.c.b16 %v635, %v635
    %v643 = vpack.c.b16 %v636, %v636
    %v644 = vpack.c.b16 %v637, %v637
    %v645 = vpack.c.b16 %v638, %v638
    %v1101 = vunpack.c.l.b16 %v138
    %v1102 = vunpack.c.h.b16 %v138
    %v1103 = vunpack.c.l.b16 %v139
    %v1104 = vunpack.c.h.b16 %v139
    %v1105 = vunpack.c.l.b16 %v140
    %v1106 = vunpack.c.h.b16 %v140
    %v1107 = vunpack.c.l.b16 %v141
    %v1108 = vunpack.c.h.b16 %v141
    %v1109 = vunpack.c.l.b16 %v142
    %v1110 = vunpack.c.h.b16 %v142
    %v1111 = vunpack.c.l.b16 %v143
    %v1112 = vunpack.c.h.b16 %v143
    %v1113 = vunpack.c.l.b16 %v144
    %v1114 = vunpack.c.h.b16 %v144
    %v1115 = vunpack.c.l.b16 %v145
    %v1116 = vunpack.c.h.b16 %v145
    %v1117 = vunpack.c.l.b16 %v146
    %v1118 = vunpack.c.h.b16 %v146
    %v1119 = vunpack.c.l.b16 %v147
    %v1120 = vunpack.c.h.b16 %v147
    %v1121 = vunpack.c.l.b16 %v148
    %v1122 = vunpack.c.h.b16 %v148
    %v1123 = vunpack.c.l.b16 %v149
    %v1124 = vunpack.c.h.b16 %v149
    %v1125 = vunpack.c.l.b16 %v150
    %v1126 = vunpack.c.h.b16 %v150
    %v1127 = vunpack.c.l.b16 %v151
    %v1128 = vunpack.c.h.b16 %v151
    %v1129 = vunpack.c.l.b16 %v152
    %v1130 = vunpack.c.h.b16 %v152
    %v1131 = vunpack.c.l.b16 %v153
    %v1132 = vunpack.c.h.b16 %v153
    %v1133 = vunpack.c.l.b16 %v154
    %v1134 = vunpack.c.h.b16 %v154
    %v1135 = vunpack.c.l.b16 %v155
    %v1136 = vunpack.c.h.b16 %v155
    %v1137 = vunpack.c.l.b16 %v156
    %v1138 = vunpack.c.h.b16 %v156
    %v1139 = vunpack.c.l.b16 %v157
    %v1140 = vunpack.c.h.b16 %v157
    %v1141 = vunpack.c.l.b16 %v158
    %v1142 = vunpack.c.h.b16 %v158
    %v1143 = vunpack.c.l.b16 %v159
    %v1144 = vunpack.c.h.b16 %v159
    %v1145 = vunpack.c.l.b16 %v160
    %v1146 = vunpack.c.h.b16 %v160
    %v1147 = vunpack.c.l.b16 %v161
    %v1148 = vunpack.c.h.b16 %v161
    %v1149 = vunpack.c.l.b16 %v162
    %v1150 = vunpack.c.h.b16 %v162
    %v1151 = vunpack.c.l.b16 %v163
    %v1152 = vunpack.c.h.b16 %v163
    %v1153 = vunpack.c.l.b16 %v164
    %v1154 = vunpack.c.h.b16 %v164
    %v1155 = vunpack.c.l.b16 %v165
    %v1156 = vunpack.c.h.b16 %v165
    %v1157 = vunpack.c.l.b16 %v166
    %v1158 = vunpack.c.h.b16 %v166
    %v1159 = vunpack.c.l.b16 %v167
    %v1160 = vunpack.c.h.b16 %v167
    %v1161 = vunpack.c.l.b16 %v168
    %v1162 = vunpack.c.h.b16 %v168
    %v1163 = vunpack.c.l.b16 %v169
    %v1164 = vunpack.c.h.b16 %v169
    %v1165 = vunpack.c.l.b16 %v170
    %v1166 = vunpack.c.h.b16 %v170
    %v1167 = vunpack.c.l.b16 %v171
    %v1168 = vunpack.c.h.b16 %v171
    %v1169 = vunpack.c.l.b16 %v172
    %v1170 = vunpack.c.h.b16 %v172
    %v1171 = vunpack.c.l.b16 %v173
    %v1172 = vunpack.c.h.b16 %v173
    %v1173 = vunpack.c.l.b16 %v174
    %v1174 = vunpack.c.h.b16 %v174
    %v1175 = vunpack.c.l.b16 %v175
    %v1176 = vunpack.c.h.b16 %v175
    %v1177 = vunpack.c.l.b16 %v176
    %v1178 = vunpack.c.h.b16 %v176
    %v1179 = vunpack.c.l.b16 %v177
    %v1180 = vunpack.c.h.b16 %v177
    %v1181 = vunpack.c.l.b16 %v178
    %v1182 = vunpack.c.h.b16 %v178
    %v1183 = vunpack.c.l.b16 %v179
    %v1184 = vunpack.c.h.b16 %v179
    %v1185 = vunpack.c.l.b16 %v180
    %v1186 = vunpack.c.h.b16 %v180
    %v1187 = vunpack.c.l.b16 %v181
    %v1188 = vunpack.c.h.b16 %v181
    %v1189 = vunpack.c.l.b16 %v182
    %v1190 = vunpack.c.h.b16 %v182
    %v1191 = vunpack.c.l.b16 %v183
    %v1192 = vunpack.c.h.b16 %v183
    %v1193 = vunpack.c.l.b16 %v184
    %v1194 = vunpack.c.h.b16 %v184
    %v1195 = vunpack.c.l.b16 %v185
    %v1196 = vunpack.c.h.b16 %v185
    %v1197 = vunpack.c.l.b16 %v186
    %v1198 = vunpack.c.h.b16 %v186
    %v1199 = vunpack.c.l.b16 %v187
    %v1200 = vunpack.c.h.b16 %v187
    %v1201 = vunpack.c.l.b16 %v188
    %v1202 = vunpack.c.h.b16 %v188
    %v1203 = vunpack.c.l.b16 %v189
    %v1204 = vunpack.c.h.b16 %v189
    %v1205 = vunpack.c.l.b16 %v190
    %v1206 = vunpack.c.h.b16 %v190
    %v1207 = vunpack.c.l.b16 %v191
    %v1208 = vunpack.c.h.b16 %v191
    %v1209 = vunpack.c.l.b16 %v192
    %v1210 = vunpack.c.h.b16 %v192
    %v1211 = vunpack.c.l.b16 %v193
    %v1212 = vunpack.c.h.b16 %v193
    %v1213 = vunpack.c.l.b16 %v194
    %v1214 = vunpack.c.h.b16 %v194
    %v1215 = vunpack.c.l.b16 %v195
    %v1216 = vunpack.c.h.b16 %v195
    %v1217 = vunpack.c.l.b16 %v196
    %v1218 = vunpack.c.h.b16 %v196
    %v1219 = vunpack.c.l.b16 %v197
    %v1220 = vunpack.c.h.b16 %v197
    %v1221 = vunpack.c.l.b16 %v198
    %v1222 = vunpack.c.h.b16 %v198
    %v1223 = vunpack.c.l.b16 %v199
    %v1224 = vunpack.c.h.b16 %v199
    %v1225 = vunpack.c.l.b16 %v200
    %v1226 = vunpack.c.h.b16 %v200
    %v1227 = vunpack.c.l.b16 %v201
    %v1228 = vunpack.c.h.b16 %v201
    %v1229 = vunpack.c.l.b16 %v202
    %v1230 = vunpack.c.h.b16 %v202
    %v1231 = vunpack.c.l.b16 %v203
    %v1232 = vunpack.c.h.b16 %v203
    %v1233 = vunpack.c.l.b16 %v204
    %v1234 = vunpack.c.h.b16 %v204
    %v1235 = vunpack.c.l.b16 %v205
    %v1236 = vunpack.c.h.b16 %v205
    %v1237 = vunpack.c.l.b16 %v206
    %v1238 = vunpack.c.h.b16 %v206
    %v1239 = vunpack.c.l.b16 %v207
    %v1240 = vunpack.c.h.b16 %v207
    %v1241 = vunpack.c.l.b16 %v208
    %v1242 = vunpack.c.h.b16 %v208
    %v1243 = vunpack.c.l.b16 %v209
    %v1244 = vunpack.c.h.b16 %v209
    %v1245 = vunpack.c.l.b16 %v210
    %v1246 = vunpack.c.h.b16 %v210
    %v1247 = vunpack.c.l.b16 %v211
    %v1248 = vunpack.c.h.b16 %v211
    %v1249 = vunpack.c.l.b16 %v212
    %v1250 = vunpack.c.h.b16 %v212
    %v1251 = vunpack.c.l.b16 %v213
    %v1252 = vunpack.c.h.b16 %v213
    %v1253 = vunpack.c.l.b16 %v214
    %v1254 = vunpack.c.h.b16 %v214
    %v1255 = vunpack.c.l.b16 %v215
    %v1256 = vunpack.c.h.b16 %v215
    %v1257 = vunpack.c.l.b16 %v216
    %v1258 = vunpack.c.h.b16 %v216
    %v1259 = vunpack.c.l.b16 %v217
    %v1260 = vunpack.c.h.b16 %v217
    %v1261 = vunpack.c.l.b16 %v218
    %v1262 = vunpack.c.h.b16 %v218
    %v1263 = vunpack.c.l.b16 %v219
    %v1264 = vunpack.c.h.b16 %v219
    %v1265 = vunpack.c.l.b16 %v220
    %v1266 = vunpack.c.h.b16 %v220
    %v1267 = vunpack.c.l.b16 %v221
    %v1268 = vunpack.c.h.b16 %v221
    %v1269 = vunpack.c.l.b16 %v222
    %v1270 = vunpack.c.h.b16 %v222
    %v1271 = vunpack.c.l.b16 %v223
    %v1272 = vunpack.c.h.b16 %v223
    %v1273 = vunpack.c.l.b16 %v224
    %v1274 = vunpack.c.h.b16 %v224
    %v1275 = vunpack.c.l.b16 %v225
    %v1276 = vunpack.c.h.b16 %v225
    %v1277 = vunpack.c.l.b16 %v226
    %v1278 = vunpack.c.h.b16 %v226
    %v1279 = vunpack.c.l.b16 %v227
    %v1280 = vunpack.c.h.b16 %v227
    %v1281 = vunpack.c.l.b16 %v228
    %v1282 = vunpack.c.h.b16 %v228
    %v1283 = vunpack.c.l.b16 %v229
    %v1284 = vunpack.c.h.b16 %v229
    %v1285 = vunpack.c.l.b16 %v230
    %v1286 = vunpack.c.h.b16 %v230
    %v1287 = vunpack.c.l.b16 %v231
    %v1288 = vunpack.c.h.b16 %v231
    %v1289 = vunpack.c.l.b16 %v232
    %v1290 = vunpack.c.h.b16 %v232
    %v1291 = vunpack.c.l.b16 %v233
    %v1292 = vunpack.c.h.b16 %v233
    %v1293 = vunpack.c.l.b16 %v234
    %v1294 = vunpack.c.h.b16 %v234
    %v1295 = vunpack.c.l.b16 %v235
    %v1296 = vunpack.c.h.b16 %v235
    %v1297 = vunpack.c.l.b16 %v236
    %v1298 = vunpack.c.h.b16 %v236
    %v1299 = vunpack.c.l.b16 %v237
    %v1300 = vunpack.c.h.b16 %v237
    %v1301 = vunpack.c.l.b16 %v238
    %v1302 = vunpack.c.h.b16 %v238
    %v1303 = vunpack.c.l.b16 %v239
    %v1304 = vunpack.c.h.b16 %v239
    %v1305 = vunpack.c.l.b16 %v240
    %v1306 = vunpack.c.h.b16 %v240
    %v1307 = vunpack.c.l.b16 %v241
    %v1308 = vunpack.c.h.b16 %v241
    %v1309 = vunpack.c.l.b16 %v242
    %v1310 = vunpack.c.h.b16 %v242
    %v1311 = vunpack.c.l.b16 %v243
    %v1312 = vunpack.c.h.b16 %v243
    %v1313 = vunpack.c.l.b16 %v244
    %v1314 = vunpack.c.h.b16 %v244
    %v1315 = vunpack.c.l.b16 %v245
    %v1316 = vunpack.c.h.b16 %v245
    %v1317 = vunpack.c.l.b16 %v246
    %v1318 = vunpack.c.h.b16 %v246
    %v1319 = vunpack.c.l.b16 %v247
    %v1320 = vunpack.c.h.b16 %v247
    %v1321 = vunpack.c.l.b16 %v248
    %v1322 = vunpack.c.h.b16 %v248
    %v1323 = vunpack.c.l.b16 %v249
    %v1324 = vunpack.c.h.b16 %v249
    %v1325 = vunpack.c.l.b16 %v250
    %v1326 = vunpack.c.h.b16 %v250
    %v1327 = vunpack.c.l.b16 %v251
    %v1328 = vunpack.c.h.b16 %v251
    %v1329 = vunpack.c.l.b16 %v252
    %v1330 = vunpack.c.h.b16 %v252
    %v1331 = vunpack.c.l.b16 %v253
    %v1332 = vunpack.c.h.b16 %v253
    %v1333 = vunpack.c.l.b16 %v254
    %v1334 = vunpack.c.h.b16 %v254
    %v1335 = vunpack.c.l.b16 %v255
    %v1336 = vunpack.c.h.b16 %v255
    %v1337 = vunpack.c.l.b16 %v256
    %v1338 = vunpack.c.h.b16 %v256
    %v1339 = vunpack.c.l.b16 %v257
    %v1340 = vunpack.c.h.b16 %v257
    %v1341 = vunpack.c.l.b16 %v258
    %v1342 = vunpack.c.h.b16 %v258
    %v1343 = vunpack.c.l.b16 %v259
    %v1344 = vunpack.c.h.b16 %v259
    %v1345 = vunpack.c.l.b16 %v260
    %v1346 = vunpack.c.h.b16 %v260
    %v1347 = vunpack.c.l.b16 %v261
    %v1348 = vunpack.c.h.b16 %v261
    %v1349 = vunpack.c.l.b16 %v262
    %v1350 = vunpack.c.h.b16 %v262
    %v1351 = vunpack.c.l.b16 %v263
    %v1352 = vunpack.c.h.b16 %v263
    %v1353 = vunpack.c.l.b16 %v264
    %v1354 = vunpack.c.h.b16 %v264
    %v1355 = vunpack.c.l.b16 %v265
    %v1356 = vunpack.c.h.b16 %v265
    %v1357 = vunpack.c.l.b16 %v266
    %v1358 = vunpack.c.h.b16 %v266
    %v1359 = vunpack.c.l.b16 %v267
    %v1360 = vunpack.c.h.b16 %v267
    %v1361 = vunpack.c.l.b16 %v268
    %v1362 = vunpack.c.h.b16 %v268
    %v1363 = vunpack.c.l.b16 %v269
    %v1364 = vunpack.c.h.b16 %v269
    %v1365 = vunpack.c.l.b16 %v270
    %v1366 = vunpack.c.h.b16 %v270
    %v1367 = vunpack.c.l.b16 %v271
    %v1368 = vunpack.c.h.b16 %v271
    %v1369 = vunpack.c.l.b16 %v272
    %v1370 = vunpack.c.h.b16 %v272
    %v1371 = vunpack.c.l.b16 %v273
    %v1372 = vunpack.c.h.b16 %v273
    %v1373 = vunpack.c.l.b16 %v274
    %v1374 = vunpack.c.h.b16 %v274
    %v1375 = vunpack.c.l.b16 %v275
    %v1376 = vunpack.c.h.b16 %v275
    %v1377 = vunpack.c.l.b16 %v276
    %v1378 = vunpack.c.h.b16 %v276
    %v1379 = vunpack.c.l.b16 %v277
    %v1380 = vunpack.c.h.b16 %v277
    %v1381 = vunpack.c.l.b16 %v278
    %v1382 = vunpack.c.h.b16 %v278
    %v1383 = vunpack.c.l.b16 %v279
    %v1384 = vunpack.c.h.b16 %v279
    %v1385 = vunpack.c.l.b16 %v280
    %v1386 = vunpack.c.h.b16 %v280
    %v1387 = vunpack.c.l.b16 %v281
    %v1388 = vunpack.c.h.b16 %v281
    %v1389 = vunpack.c.l.b16 %v282
    %v1390 = vunpack.c.h.b16 %v282
    %v1391 = vunpack.c.l.b16 %v283
    %v1392 = vunpack.c.h.b16 %v283
    %v1393 = vunpack.c.l.b16 %v284
    %v1394 = vunpack.c.h.b16 %v284
    %v1395 = vunpack.c.l.b16 %v285
    %v1396 = vunpack.c.h.b16 %v285
    %v1397 = vunpack.c.l.b16 %v286
    %v1398 = vunpack.c.h.b16 %v286
    %v1399 = vunpack.c.l.b16 %v287
    %v1400 = vunpack.c.h.b16 %v287
    %v1401 = vunpack.c.l.b16 %v288
    %v1402 = vunpack.c.h.b16 %v288
    %v1403 = vunpack.c.l.b16 %v289
    %v1404 = vunpack.c.h.b16 %v289
    %v1405 = vunpack.c.l.b16 %v290
    %v1406 = vunpack.c.h.b16 %v290
    %v1407 = vunpack.c.l.b16 %v291
    %v1408 = vunpack.c.h.b16 %v291
    %v1409 = vunpack.c.l.b16 %v292
    %v1410 = vunpack.c.h.b16 %v292
    %v1411 = vunpack.c.l.b16 %v293
    %v1412 = vunpack.c.h.b16 %v293
    %v1413 = vunpack.c.l.b16 %v294
    %v1414 = vunpack.c.h.b16 %v294
    %v1415 = vunpack.c.l.b16 %v295
    %v1416 = vunpack.c.h.b16 %v295
    %v1417 = vunpack.c.l.b16 %v296
    %v1418 = vunpack.c.h.b16 %v296
    %v1419 = vunpack.c.l.b16 %v297
    %v1420 = vunpack.c.h.b16 %v297
    %v1421 = vunpack.c.l.b16 %v298
    %v1422 = vunpack.c.h.b16 %v298
    %v1423 = vunpack.c.l.b16 %v299
    %v1424 = vunpack.c.h.b16 %v299
    %v1425 = vunpack.c.l.b16 %v300
    %v1426 = vunpack.c.h.b16 %v300
    %v1427 = vunpack.c.l.b16 %v301
    %v1428 = vunpack.c.h.b16 %v301
    %v1429 = vunpack.c.l.b16 %v302
    %v1430 = vunpack.c.h.b16 %v302
    %v1431 = vunpack.c.l.b16 %v303
    %v1432 = vunpack.c.h.b16 %v303
    %v1433 = vunpack.c.l.b16 %v304
    %v1434 = vunpack.c.h.b16 %v304
    %v1435 = vunpack.c.l.b16 %v305
    %v1436 = vunpack.c.h.b16 %v305
    %v1437 = vunpack.c.l.b16 %v306
    %v1438 = vunpack.c.h.b16 %v306
    %v1439 = vunpack.c.l.b16 %v307
    %v1440 = vunpack.c.h.b16 %v307
    %v1441 = vunpack.c.l.b16 %v308
    %v1442 = vunpack.c.h.b16 %v308
    %v1443 = vunpack.c.l.b16 %v309
    %v1444 = vunpack.c.h.b16 %v309
    %v1445 = vunpack.c.l.b16 %v310
    %v1446 = vunpack.c.h.b16 %v310
    %v1447 = vunpack.c.l.b16 %v311
    %v1448 = vunpack.c.h.b16 %v311
    %v1449 = vunpack.c.l.b16 %v312
    %v1450 = vunpack.c.h.b16 %v312
    %v1451 = vunpack.c.l.b16 %v313
    %v1452 = vunpack.c.h.b16 %v313
    %v1453 = vunpack.c.l.b16 %v314
    %v1454 = vunpack.c.h.b16 %v314
    %v1455 = vunpack.c.l.b16 %v315
    %v1456 = vunpack.c.h.b16 %v315
    %v1457 = vunpack.c.l.b16 %v316
    %v1458 = vunpack.c.h.b16 %v316
    %v1459 = vunpack.c.l.b16 %v317
    %v1460 = vunpack.c.h.b16 %v317
    %v1461 = vunpack.c.l.b16 %v318
    %v1462 = vunpack.c.h.b16 %v318
    %v1463 = vunpack.c.l.b16 %v319
    %v1464 = vunpack.c.h.b16 %v319
    %v1465 = vunpack.c.l.b16 %v320
    %v1466 = vunpack.c.h.b16 %v320
    %v1467 = vunpack.c.l.b16 %v321
    %v1468 = vunpack.c.h.b16 %v321
    %v1469 = vunpack.c.l.b16 %v322
    %v1470 = vunpack.c.h.b16 %v322
    %v1471 = vunpack.c.l.b16 %v323
    %v1472 = vunpack.c.h.b16 %v323
    %v1473 = vunpack.c.l.b16 %v324
    %v1474 = vunpack.c.h.b16 %v324
    %v1475 = vunpack.c.l.b16 %v325
    %v1476 = vunpack.c.h.b16 %v325
    %v1477 = vunpack.c.l.b16 %v326
    %v1478 = vunpack.c.h.b16 %v326
    %v1479 = vunpack.c.l.b16 %v327
    %v1480 = vunpack.c.h.b16 %v327
    %v1481 = vunpack.c.l.b16 %v328
    %v1482 = vunpack.c.h.b16 %v328
    %v1483 = vunpack.c.l.b16 %v329
    %v1484 = vunpack.c.h.b16 %v329
    %v1485 = vunpack.c.l.b16 %v330
    %v1486 = vunpack.c.h.b16 %v330
    %v1487 = vunpack.c.l.b16 %v331
    %v1488 = vunpack.c.h.b16 %v331
    %v1489 = vunpack.c.l.b16 %v332
    %v1490 = vunpack.c.h.b16 %v332
    %v1491 = vunpack.c.l.b16 %v333
    %v1492 = vunpack.c.h.b16 %v333
    %v1493 = vunpack.c.l.b16 %v334
    %v1494 = vunpack.c.h.b16 %v334
    %v1495 = vunpack.c.l.b16 %v335
    %v1496 = vunpack.c.h.b16 %v335
    %v1497 = vunpack.c.l.b16 %v336
    %v1498 = vunpack.c.h.b16 %v336
    %v1499 = vunpack.c.l.b16 %v337
    %v1500 = vunpack.c.h.b16 %v337
    %v1501 = vunpack.c.l.b16 %v338
    %v1502 = vunpack.c.h.b16 %v338
    %v1503 = vunpack.c.l.b16 %v339
    %v1504 = vunpack.c.h.b16 %v339
    %v1505 = vunpack.c.l.b16 %v340
    %v1506 = vunpack.c.h.b16 %v340
    %v1507 = vunpack.c.l.b16 %v341
    %v1508 = vunpack.c.h.b16 %v341
    %v1509 = vunpack.c.l.b16 %v342
    %v1510 = vunpack.c.h.b16 %v342
    %v1511 = vunpack.c.l.b16 %v343
    %v1512 = vunpack.c.h.b16 %v343
    %v1513 = vunpack.c.l.b16 %v344
    %v1514 = vunpack.c.h.b16 %v344
    %v1515 = vunpack.c.l.b16 %v345
    %v1516 = vunpack.c.h.b16 %v345
    %v1517 = vunpack.c.l.b16 %v346
    %v1518 = vunpack.c.h.b16 %v346
    %v1519 = vunpack.c.l.b16 %v347
    %v1520 = vunpack.c.h.b16 %v347
    %v1521 = vunpack.c.l.b16 %v348
    %v1522 = vunpack.c.h.b16 %v348
    %v1523 = vunpack.c.l.b16 %v349
    %v1524 = vunpack.c.h.b16 %v349
    %v1525 = vunpack.c.l.b16 %v350
    %v1526 = vunpack.c.h.b16 %v350
    %v1527 = vunpack.c.l.b16 %v351
    %v1528 = vunpack.c.h.b16 %v351
    %v1529 = vunpack.c.l.b16 %v352
    %v1530 = vunpack.c.h.b16 %v352
    %v1531 = vunpack.c.l.b16 %v353
    %v1532 = vunpack.c.h.b16 %v353
    %v1533 = vunpack.c.l.b16 %v354
    %v1534 = vunpack.c.h.b16 %v354
    %v1535 = vunpack.c.l.b16 %v355
    %v1536 = vunpack.c.h.b16 %v355
    %v1537 = vunpack.c.l.b16 %v356
    %v1538 = vunpack.c.h.b16 %v356
    %v1539 = vunpack.c.l.b16 %v357
    %v1540 = vunpack.c.h.b16 %v357
    %v1541 = vunpack.c.l.b16 %v358
    %v1542 = vunpack.c.h.b16 %v358
    %v1543 = vunpack.c.l.b16 %v359
    %v1544 = vunpack.c.h.b16 %v359
    %v1545 = vunpack.c.l.b16 %v360
    %v1546 = vunpack.c.h.b16 %v360
    %v1547 = vunpack.c.l.b16 %v361
    %v1548 = vunpack.c.h.b16 %v361
    %v1549 = vunpack.c.l.b16 %v362
    %v1550 = vunpack.c.h.b16 %v362
    %v1551 = vunpack.c.l.b16 %v363
    %v1552 = vunpack.c.h.b16 %v363
    %v1553 = vunpack.c.l.b16 %v364
    %v1554 = vunpack.c.h.b16 %v364
    %v1555 = vunpack.c.l.b16 %v365
    %v1556 = vunpack.c.h.b16 %v365
    %v1557 = vunpack.c.l.b16 %v366
    %v1558 = vunpack.c.h.b16 %v366
    %v1559 = vunpack.c.l.b16 %v367
    %v1560 = vunpack.c.h.b16 %v367
    %v1561 = vunpack.c.l.b16 %v368
    %v1562 = vunpack.c.h.b16 %v368
    %v1563 = vunpack.c.l.b16 %v369
    %v1564 = vunpack.c.h.b16 %v369
    %v1565 = vunpack.c.l.b16 %v370
    %v1566 = vunpack.c.h.b16 %v370
    %v1567 = vunpack.c.l.b16 %v371
    %v1568 = vunpack.c.h.b16 %v371
    %v1569 = vunpack.c.l.b16 %v372
    %v1570 = vunpack.c.h.b16 %v372
    %v1571 = vunpack.c.l.b16 %v373
    %v1572 = vunpack.c.h.b16 %v373
    %v1573 = vunpack.c.l.b16 %v374
    %v1574 = vunpack.c.h.b16 %v374
    %v1575 = vunpack.c.l.b16 %v375
    %v1576 = vunpack.c.h.b16 %v375
    %v1577 = vunpack.c.l.b16 %v376
    %v1578 = vunpack.c.h.b16 %v376
    %v1579 = vunpack.c.l.b16 %v377
    %v1580 = vunpack.c.h.b16 %v377
    %v1581 = vunpack.c.l.b16 %v378
    %v1582 = vunpack.c.h.b16 %v378
    %v1583 = vunpack.c.l.b16 %v379
    %v1584 = vunpack.c.h.b16 %v379
    %v1585 = vunpack.c.l.b16 %v380
    %v1586 = vunpack.c.h.b16 %v380
    %v1587 = vunpack.c.l.b16 %v381
    %v1588 = vunpack.c.h.b16 %v381
    %v1589 = vunpack.c.l.b16 %v382
    %v1590 = vunpack.c.h.b16 %v382
    %v1591 = vunpack.c.l.b16 %v383
    %v1592 = vunpack.c.h.b16 %v383
    %v1593 = vunpack.c.l.b16 %v384
    %v1594 = vunpack.c.h.b16 %v384
    %v1595 = vunpack.c.l.b16 %v385
    %v1596 = vunpack.c.h.b16 %v385
    %v1597 = vunpack.c.l.b16 %v386
    %v1598 = vunpack.c.h.b16 %v386
    %v1599 = vunpack.c.l.b16 %v387
    %v1600 = vunpack.c.h.b16 %v387
    %v1601 = vunpack.c.l.b16 %v388
    %v1602 = vunpack.c.h.b16 %v388
    %v1603 = vunpack.c.l.b16 %v389
    %v1604 = vunpack.c.h.b16 %v389
    %v1605 = vunpack.c.l.b16 %v390
    %v1606 = vunpack.c.h.b16 %v390
    %v1607 = vunpack.c.l.b16 %v391
    %v1608 = vunpack.c.h.b16 %v391
    %v1609 = vunpack.c.l.b16 %v392
    %v1610 = vunpack.c.h.b16 %v392
    %v1611 = vunpack.c.l.b16 %v393
    %v1612 = vunpack.c.h.b16 %v393
    %v1613 = vunpack.c.l.b16 %v394
    %v1614 = vunpack.c.h.b16 %v394
    %v1615 = vunpack.c.l.b16 %v395
    %v1616 = vunpack.c.h.b16 %v395
    %v1617 = vunpack.c.l.b16 %v396
    %v1618 = vunpack.c.h.b16 %v396
    %v1619 = vunpack.c.l.b16 %v397
    %v1620 = vunpack.c.h.b16 %v397
    %v1621 = vunpack.c.l.b16 %v398
    %v1622 = vunpack.c.h.b16 %v398
    %v1623 = vunpack.c.l.b16 %v399
    %v1624 = vunpack.c.h.b16 %v399
    %v1625 = vunpack.c.l.b16 %v400
    %v1626 = vunpack.c.h.b16 %v400
    %v1627 = vunpack.c.l.b16 %v401
    %v1628 = vunpack.c.h.b16 %v401
    %v1629 = vunpack.c.l.b16 %v402
    %v1630 = vunpack.c.h.b16 %v402
    %v1631 = vunpack.c.l.b16 %v403
    %v1632 = vunpack.c.h.b16 %v403
    %v1633 = vunpack.c.l.b16 %v404
    %v1634 = vunpack.c.h.b16 %v404
    %v1635 = vunpack.c.l.b16 %v405
    %v1636 = vunpack.c.h.b16 %v405
    %v1637 = vunpack.c.l.b16 %v406
    %v1638 = vunpack.c.h.b16 %v406
    %v1639 = vunpack.c.l.b16 %v407
    %v1640 = vunpack.c.h.b16 %v407
    %v1641 = vunpack.c.l.b16 %v408
    %v1642 = vunpack.c.h.b16 %v408
    %v1643 = vunpack.c.l.b16 %v409
    %v1644 = vunpack.c.h.b16 %v409
    %v1645 = vunpack.c.l.b16 %v410
    %v1646 = vunpack.c.h.b16 %v410
    %v1647 = vunpack.c.l.b16 %v411
    %v1648 = vunpack.c.h.b16 %v411
    %v1649 = vunpack.c.l.b16 %v412
    %v1650 = vunpack.c.h.b16 %v412
    %v1651 = vunpack.c.l.b16 %v413
    %v1652 = vunpack.c.h.b16 %v413
    %v1653 = vunpack.c.l.b16 %v414
    %v1654 = vunpack.c.h.b16 %v414
    %v1655 = vunpack.c.l.b16 %v415
    %v1656 = vunpack.c.h.b16 %v415
    %v1657 = vunpack.c.l.b16 %v416
    %v1658 = vunpack.c.h.b16 %v416
    %v1659 = vunpack.c.l.b16 %v417
    %v1660 = vunpack.c.h.b16 %v417
    %v1661 = vunpack.c.l.b16 %v418
    %v1662 = vunpack.c.h.b16 %v418
    %v1663 = vunpack.c.l.b16 %v419
    %v1664 = vunpack.c.h.b16 %v419
    %v1665 = vunpack.c.l.b16 %v420
    %v1666 = vunpack.c.h.b16 %v420
    %v1667 = vunpack.c.l.b16 %v421
    %v1668 = vunpack.c.h.b16 %v421
    %v1669 = vunpack.c.l.b16 %v422
    %v1670 = vunpack.c.h.b16 %v422
    %v1671 = vunpack.c.l.b16 %v423
    %v1672 = vunpack.c.h.b16 %v423
    %v1673 = vunpack.c.l.b16 %v424
    %v1674 = vunpack.c.h.b16 %v424
    %v1675 = vunpack.c.l.b16 %v425
    %v1676 = vunpack.c.h.b16 %v425
    %v1677 = vunpack.c.l.b16 %v426
    %v1678 = vunpack.c.h.b16 %v426
    %v1679 = vunpack.c.l.b16 %v427
    %v1680 = vunpack.c.h.b16 %v427
    %v1681 = vunpack.c.l.b16 %v428
    %v1682 = vunpack.c.h.b16 %v428
    %v1683 = vunpack.c.l.b16 %v429
    %v1684 = vunpack.c.h.b16 %v429
    %v1685 = vunpack.c.l.b16 %v430
    %v1686 = vunpack.c.h.b16 %v430
    %v1687 = vunpack.c.l.b16 %v431
    %v1688 = vunpack.c.h.b16 %v431
    %v1689 = vunpack.c.l.b16 %v432
    %v1690 = vunpack.c.h.b16 %v432
    %v1691 = vunpack.c.l.b16 %v433
    %v1692 = vunpack.c.h.b16 %v433
    %v1693 = vunpack.c.l.b16 %v434
    %v1694 = vunpack.c.h.b16 %v434
    %v1695 = vunpack.c.l.b16 %v435
    %v1696 = vunpack.c.h.b16 %v435
    %v1697 = vunpack.c.l.b16 %v436
    %v1698 = vunpack.c.h.b16 %v436
    %v1699 = vunpack.c.l.b16 %v437
    %v1700 = vunpack.c.h.b16 %v437
    %v1701 = vunpack.c.l.b16 %v438
    %v1702 = vunpack.c.h.b16 %v438
    %v1703 = vunpack.c.l.b16 %v439
    %v1704 = vunpack.c.h.b16 %v439
    %v1705 = vunpack.c.l.b16 %v440
    %v1706 = vunpack.c.h.b16 %v440
    %v1707 = vunpack.c.l.b16 %v441
    %v1708 = vunpack.c.h.b16 %v441
    %v1709 = vunpack.c.l.b16 %v442
    %v1710 = vunpack.c.h.b16 %v442
    %v1711 = vunpack.c.l.b16 %v443
    %v1712 = vunpack.c.h.b16 %v443
    %v1713 = vunpack.c.l.b16 %v444
    %v1714 = vunpack.c.h.b16 %v444
    %v1715 = vunpack.c.l.b16 %v445
    %v1716 = vunpack.c.h.b16 %v445
    %v1717 = vunpack.c.l.b16 %v446
    %v1718 = vunpack.c.h.b16 %v446
    %v1719 = vunpack.c.l.b16 %v447
    %v1720 = vunpack.c.h.b16 %v447
    %v1721 = vunpack.c.l.b16 %v448
    %v1722 = vunpack.c.h.b16 %v448
    %v1723 = vunpack.c.l.b16 %v449
    %v1724 = vunpack.c.h.b16 %v449
    %v1725 = vunpack.c.l.b16 %v450
    %v1726 = vunpack.c.h.b16 %v450
    %v1727 = vunpack.c.l.b16 %v451
    %v1728 = vunpack.c.h.b16 %v451
    %v1729 = vunpack.c.l.b16 %v452
    %v1730 = vunpack.c.h.b16 %v452
    %v1731 = vunpack.c.l.b16 %v453
    %v1732 = vunpack.c.h.b16 %v453
    %v1733 = vunpack.c.l.b16 %v454
    %v1734 = vunpack.c.h.b16 %v454
    %v1735 = vunpack.c.l.b16 %v455
    %v1736 = vunpack.c.h.b16 %v455
    %v1737 = vunpack.c.l.b16 %v456
    %v1738 = vunpack.c.h.b16 %v456
    %v1739 = vunpack.c.l.b16 %v457
    %v1740 = vunpack.c.h.b16 %v457
    %v1741 = vunpack.c.l.b16 %v458
    %v1742 = vunpack.c.h.b16 %v458
    %v1743 = vunpack.c.l.b16 %v459
    %v1744 = vunpack.c.h.b16 %v459
    %v1745 = vunpack.c.l.b16 %v460
    %v1746 = vunpack.c.h.b16 %v460
    %v1747 = vunpack.c.l.b16 %v461
    %v1748 = vunpack.c.h.b16 %v461
    %v1749 = vunpack.c.l.b16 %v462
    %v1750 = vunpack.c.h.b16 %v462
    %v1751 = vunpack.c.l.b16 %v463
    %v1752 = vunpack.c.h.b16 %v463
    %v1753 = vunpack.c.l.b16 %v464
    %v1754 = vunpack.c.h.b16 %v464
    %v1755 = vunpack.c.l.b16 %v465
    %v1756 = vunpack.c.h.b16 %v465
    %v1757 = vunpack.c.l.b16 %v466
    %v1758 = vunpack.c.h.b16 %v466
    %v1759 = vunpack.c.l.b16 %v467
    %v1760 = vunpack.c.h.b16 %v467
    %v1761 = vunpack.c.l.b16 %v468
    %v1762 = vunpack.c.h.b16 %v468
    %v1763 = vunpack.c.l.b16 %v469
    %v1764 = vunpack.c.h.b16 %v469
    %v1765 = vunpack.c.l.b16 %v470
    %v1766 = vunpack.c.h.b16 %v470
    %v1767 = vunpack.c.l.b16 %v471
    %v1768 = vunpack.c.h.b16 %v471
    %v1769 = vunpack.c.l.b16 %v472
    %v1770 = vunpack.c.h.b16 %v472
    %v1771 = vunpack.c.l.b16 %v473
    %v1772 = vunpack.c.h.b16 %v473
    %v1773 = vunpack.c.l.b16 %v474
    %v1774 = vunpack.c.h.b16 %v474
    %v1775 = vunpack.c.l.b16 %v475
    %v1776 = vunpack.c.h.b16 %v475
    %v1777 = vunpack.c.l.b16 %v476
    %v1778 = vunpack.c.h.b16 %v476
    %v1779 = vunpack.c.l.b16 %v477
    %v1780 = vunpack.c.h.b16 %v477
    %v1781 = vunpack.c.l.b16 %v478
    %v1782 = vunpack.c.h.b16 %v478
    %v1783 = vunpack.c.l.b16 %v479
    %v1784 = vunpack.c.h.b16 %v479
    %v1785 = vunpack.c.l.b16 %v480
    %v1786 = vunpack.c.h.b16 %v480
    %v1787 = vunpack.c.l.b16 %v481
    %v1788 = vunpack.c.h.b16 %v481
    %v1789 = vunpack.c.l.b16 %v482
    %v1790 = vunpack.c.h.b16 %v482
    %v1791 = vunpack.c.l.b16 %v483
    %v1792 = vunpack.c.h.b16 %v483
    %v1793 = vunpack.c.l.b16 %v484
    %v1794 = vunpack.c.h.b16 %v484
    %v1795 = vunpack.c.l.b16 %v485
    %v1796 = vunpack.c.h.b16 %v485
    %v1797 = vunpack.c.l.b16 %v486
    %v1798 = vunpack.c.h.b16 %v486
    %v1799 = vunpack.c.l.b16 %v487
    %v1800 = vunpack.c.h.b16 %v487
    %v1801 = vunpack.c.l.b16 %v488
    %v1802 = vunpack.c.h.b16 %v488
    %v1803 = vunpack.c.l.b16 %v489
    %v1804 = vunpack.c.h.b16 %v489
    %v1805 = vunpack.c.l.b16 %v490
    %v1806 = vunpack.c.h.b16 %v490
    %v1807 = vunpack.c.l.b16 %v491
    %v1808 = vunpack.c.h.b16 %v491
    %v1809 = vunpack.c.l.b16 %v492
    %v1810 = vunpack.c.h.b16 %v492
    %v1811 = vunpack.c.l.b16 %v493
    %v1812 = vunpack.c.h.b16 %v493
    %v1813 = vunpack.c.l.b16 %v494
    %v1814 = vunpack.c.h.b16 %v494
    %v1815 = vunpack.c.l.b16 %v495
    %v1816 = vunpack.c.h.b16 %v495
    %v1817 = vunpack.c.l.b16 %v496
    %v1818 = vunpack.c.h.b16 %v496
    %v1819 = vunpack.c.l.b16 %v497
    %v1820 = vunpack.c.h.b16 %v497
    %v1821 = vunpack.c.l.b16 %v498
    %v1822 = vunpack.c.h.b16 %v498
    %v1823 = vunpack.c.l.b16 %v499
    %v1824 = vunpack.c.h.b16 %v499
    %v1825 = vunpack.c.l.b16 %v500
    %v1826 = vunpack.c.h.b16 %v500
    %v1827 = vunpack.c.l.b16 %v501
    %v1828 = vunpack.c.h.b16 %v501
    %v1829 = vunpack.c.l.b16 %v502
    %v1830 = vunpack.c.h.b16 %v502
    %v1831 = vunpack.c.l.b16 %v503
    %v1832 = vunpack.c.h.b16 %v503
    %v1833 = vunpack.c.l.b16 %v504
    %v1834 = vunpack.c.h.b16 %v504
    %v1835 = vunpack.c.l.b16 %v505
    %v1836 = vunpack.c.h.b16 %v505
    %v1837 = vunpack.c.l.b16 %v506
    %v1838 = vunpack.c.h.b16 %v506
    %v1839 = vunpack.c.l.b16 %v507
    %v1840 = vunpack.c.h.b16 %v507
    %v1841 = vunpack.c.l.b16 %v508
    %v1842 = vunpack.c.h.b16 %v508
    %v1843 = vunpack.c.l.b16 %v509
    %v1844 = vunpack.c.h.b16 %v509
    %v1845 = vunpack.c.l.b16 %v510
    %v1846 = vunpack.c.h.b16 %v510
    %v1847 = vunpack.c.l.b16 %v511
    %v1848 = vunpack.c.h.b16 %v511
    %v1849 = vunpack.c.l.b16 %v512
    %v1850 = vunpack.c.h.b16 %v512
    %v1851 = vunpack.c.l.b16 %v513
    %v1852 = vunpack.c.h.b16 %v513
    %v1853 = vunpack.c.l.b16 %v514
    %v1854 = vunpack.c.h.b16 %v514
    %v1855 = vunpack.c.l.b16 %v515
    %v1856 = vunpack.c.h.b16 %v515
    %v1857 = vunpack.c.l.b16 %v516
    %v1858 = vunpack.c.h.b16 %v516
    %v1859 = vunpack.c.l.b16 %v517
    %v1860 = vunpack.c.h.b16 %v517
    %v1861 = vunpack.c.l.b16 %v518
    %v1862 = vunpack.c.h.b16 %v518
    %v1863 = vunpack.c.l.b16 %v519
    %v1864 = vunpack.c.h.b16 %v519
    %v1865 = vunpack.c.l.b16 %v520
    %v1866 = vunpack.c.h.b16 %v520
    %v1867 = vunpack.c.l.b16 %v521
    %v1868 = vunpack.c.h.b16 %v521
    %v1869 = vunpack.c.l.b16 %v522
    %v1870 = vunpack.c.h.b16 %v522
    %v1871 = vunpack.c.l.b16 %v523
    %v1872 = vunpack.c.h.b16 %v523
    %v1873 = vunpack.c.l.b16 %v524
    %v1874 = vunpack.c.h.b16 %v524
    %v1875 = vunpack.c.l.b16 %v525
    %v1876 = vunpack.c.h.b16 %v525
    %v1877 = vunpack.c.l.b16 %v526
    %v1878 = vunpack.c.h.b16 %v526
    %v1879 = vunpack.c.l.b16 %v527
    %v1880 = vunpack.c.h.b16 %v527
    %v1881 = vunpack.c.l.b16 %v528
    %v1882 = vunpack.c.h.b16 %v528
    %v1883 = vunpack.c.l.b16 %v529
    %v1884 = vunpack.c.h.b16 %v529
    %v1885 = vunpack.c.l.b16 %v530
    %v1886 = vunpack.c.h.b16 %v530
    %v1887 = vunpack.c.l.b16 %v531
    %v1888 = vunpack.c.h.b16 %v531
    %v1889 = vunpack.c.l.b16 %v532
    %v1890 = vunpack.c.h.b16 %v532
    %v1891 = vunpack.c.l.b16 %v533
    %v1892 = vunpack.c.h.b16 %v533
    %v1893 = vunpack.c.l.b16 %v534
    %v1894 = vunpack.c.h.b16 %v534
    %v1895 = vunpack.c.l.b16 %v535
    %v1896 = vunpack.c.h.b16 %v535
    %v1897 = vunpack.c.l.b16 %v536
    %v1898 = vunpack.c.h.b16 %v536
    %v1899 = vunpack.c.l.b16 %v537
    %v1900 = vunpack.c.h.b16 %v537
    %v1901 = vunpack.c.l.b16 %v538
    %v1902 = vunpack.c.h.b16 %v538
    %v1903 = vunpack.c.l.b16 %v539
    %v1904 = vunpack.c.h.b16 %v539
    %v1905 = vunpack.c.l.b16 %v540
    %v1906 = vunpack.c.h.b16 %v540
    %v1907 = vunpack.c.l.b16 %v541
    %v1908 = vunpack.c.h.b16 %v541
    %v1909 = vunpack.c.l.b16 %v542
    %v1910 = vunpack.c.h.b16 %v542
    %v1911 = vunpack.c.l.b16 %v543
    %v1912 = vunpack.c.h.b16 %v543
    %v1913 = vunpack.c.l.b16 %v544
    %v1914 = vunpack.c.h.b16 %v544
    %v1915 = vunpack.c.l.b16 %v545
    %v1916 = vunpack.c.h.b16 %v545
    %v1917 = vunpack.c.l.b16 %v546
    %v1918 = vunpack.c.h.b16 %v546
    %v1919 = vunpack.c.l.b16 %v547
    %v1920 = vunpack.c.h.b16 %v547
    %v1921 = vunpack.c.l.b16 %v548
    %v1922 = vunpack.c.h.b16 %v548
    %v1923 = vunpack.c.l.b16 %v549
    %v1924 = vunpack.c.h.b16 %v549
    %v1925 = vunpack.c.l.b16 %v550
    %v1926 = vunpack.c.h.b16 %v550
    %v1927 = vunpack.c.l.b16 %v551
    %v1928 = vunpack.c.h.b16 %v551
    %v1929 = vunpack.c.l.b16 %v552
    %v1930 = vunpack.c.h.b16 %v552
    %v1931 = vunpack.c.l.b16 %v553
    %v1932 = vunpack.c.h.b16 %v553
    %v1933 = vunpack.c.l.b16 %v554
    %v1934 = vunpack.c.h.b16 %v554
    %v1935 = vunpack.c.l.b16 %v555
    %v1936 = vunpack.c.h.b16 %v555
    %v1937 = vunpack.c.l.b16 %v556
    %v1938 = vunpack.c.h.b16 %v556
    %v1939 = vunpack.c.l.b16 %v557
    %v1940 = vunpack.c.h.b16 %v557
    %v1941 = vunpack.c.l.b16 %v558
    %v1942 = vunpack.c.h.b16 %v558
    %v1943 = vunpack.c.l.b16 %v559
    %v1944 = vunpack.c.h.b16 %v559
    %v1945 = vunpack.c.l.b16 %v560
    %v1946 = vunpack.c.h.b16 %v560
    %v1947 = vunpack.c.l.b16 %v561
    %v1948 = vunpack.c.h.b16 %v561
    %v1949 = vunpack.c.l.b16 %v562
    %v1950 = vunpack.c.h.b16 %v562
    %v1951 = vunpack.c.l.b16 %v563
    %v1952 = vunpack.c.h.b16 %v563
    %v1953 = vunpack.c.l.b16 %v564
    %v1954 = vunpack.c.h.b16 %v564
    %v1955 = vunpack.c.l.b16 %v565
    %v1956 = vunpack.c.h.b16 %v565
    %v1957 = vunpack.c.l.b16 %v566
    %v1958 = vunpack.c.h.b16 %v566
    %v1959 = vunpack.c.l.b16 %v567
    %v1960 = vunpack.c.h.b16 %v567
    %v1961 = vunpack.c.l.b16 %v568
    %v1962 = vunpack.c.h.b16 %v568
    %v1963 = vunpack.c.l.b16 %v569
    %v1964 = vunpack.c.h.b16 %v569
    %v1965 = vunpack.c.l.b16 %v570
    %v1966 = vunpack.c.h.b16 %v570
    %v1967 = vunpack.c.l.b16 %v571
    %v1968 = vunpack.c.h.b16 %v571
    %v1969 = vunpack.c.l.b16 %v572
    %v1970 = vunpack.c.h.b16 %v572
    %v1971 = vunpack.c.l.b16 %v573
    %v1972 = vunpack.c.h.b16 %v573
    %v1973 = vunpack.c.l.b16 %v574
    %v1974 = vunpack.c.h.b16 %v574
    %v1975 = vunpack.c.l.b16 %v575
    %v1976 = vunpack.c.h.b16 %v575
    %v1977 = vunpack.c.l.b16 %v576
    %v1978 = vunpack.c.h.b16 %v576
    %v1979 = vunpack.c.l.b16 %v577
    %v1980 = vunpack.c.h.b16 %v577
    %v1981 = vunpack.c.l.b16 %v578
    %v1982 = vunpack.c.h.b16 %v578
    %v1983 = vunpack.c.l.b16 %v579
    %v1984 = vunpack.c.h.b16 %v579
    %v1985 = vunpack.c.l.b16 %v580
    %v1986 = vunpack.c.h.b16 %v580
    %v1987 = vunpack.c.l.b16 %v581
    %v1988 = vunpack.c.h.b16 %v581
    %v1989 = vunpack.c.l.b16 %v582
    %v1990 = vunpack.c.h.b16 %v582
    %v1991 = vunpack.c.l.b16 %v583
    %v1992 = vunpack.c.h.b16 %v583
    %v1993 = vunpack.c.l.b16 %v584
    %v1994 = vunpack.c.h.b16 %v584
    %v1995 = vunpack.c.l.b16 %v585
    %v1996 = vunpack.c.h.b16 %v585
    %v1997 = vpack.c.b16 %v1109, %v1101
    %v1998 = vpack.c.b16 %v1110, %v1102
    %v1999 = vpack.c.b16 %v1111, %v1103
    %v2000 = vpack.c.b16 %v1112, %v1104
    %v2001 = vpack.c.b16 %v1113, %v1105
    %v2002 = vpack.c.b16 %v1114, %v1106
    %v2003 = vpack.c.b16 %v1115, %v1107
    %v2004 = vpack.c.b16 %v1116, %v1108
    %v2005 = vpack.c.b16 %v1125, %v1117
    %v2006 = vpack.c.b16 %v1126, %v1118
    %v2007 = vpack.c.b16 %v1127, %v1119
    %v2008 = vpack.c.b16 %v1128, %v1120
    %v2009 = vpack.c.b16 %v1129, %v1121
    %v2010 = vpack.c.b16 %v1130, %v1122
    %v2011 = vpack.c.b16 %v1131, %v1123
    %v2012 = vpack.c.b16 %v1132, %v1124
    %v2013 = vpack.c.b16 %v1141, %v1133
    %v2014 = vpack.c.b16 %v1142, %v1134
    %v2015 = vpack.c.b16 %v1143, %v1135
    %v2016 = vpack.c.b16 %v1144, %v1136
    %v2017 = vpack.c.b16 %v1145, %v1137
    %v2018 = vpack.c.b16 %v1146, %v1138
    %v2019 = vpack.c.b16 %v1147, %v1139
    %v2020 = vpack.c.b16 %v1148, %v1140
    %v2021 = vpack.c.b16 %v1157, %v1149
    %v2022 = vpack.c.b16 %v1158, %v1150
    %v2023 = vpack.c.b16 %v1159, %v1151
    %v2024 = vpack.c.b16 %v1160, %v1152
    %v2025 = vpack.c.b16 %v1161, %v1153
    %v2026 = vpack.c.b16 %v1162, %v1154
    %v2027 = vpack.c.b16 %v1163, %v1155
    %v2028 = vpack.c.b16 %v1164, %v1156
    %v2029 = vpack.c.b16 %v1173, %v1165
    %v2030 = vpack.c.b16 %v1174, %v1166
    %v2031 = vpack.c.b16 %v1175, %v1167
    %v2032 = vpack.c.b16 %v1176, %v1168
    %v2033 = vpack.c.b16 %v1177, %v1169
    %v2034 = vpack.c.b16 %v1178, %v1170
    %v2035 = vpack.c.b16 %v1179, %v1171
    %v2036 = vpack.c.b16 %v1180, %v1172
    %v2037 = vpack.c.b16 %v1189, %v1181
    %v2038 = vpack.c.b16 %v1190, %v1182
    %v2039 = vpack.c.b16 %v1191, %v1183
    %v2040 = vpack.c.b16 %v1192, %v1184
    %v2041 = vpack.c.b16 %v1193, %v1185
    %v2042 = vpack.c.b16 %v1194, %v1186
    %v2043 = vpack.c.b16 %v1195, %v1187
    %v2044 = vpack.c.b16 %v1196, %v1188
    %v2045 = vpack.c.b16 %v1205, %v1197
    %v2046 = vpack.c.b16 %v1206, %v1198
    %v2047 = vpack.c.b16 %v1207, %v1199
    %v2048 = vpack.c.b16 %v1208, %v1200
    %v2049 = vpack.c.b16 %v1209, %v1201
    %v2050 = vpack.c.b16 %v1210, %v1202
    %v2051 = vpack.c.b16 %v1211, %v1203
    %v2052 = vpack.c.b16 %v1212, %v1204
    %v2053 = vpack.c.b16 %v1221, %v1213
    %v2054 = vpack.c.b16 %v1222, %v1214
    %v2055 = vpack.c.b16 %v1223, %v1215
    %v2056 = vpack.c.b16 %v1224, %v1216
    %v2057 = vpack.c.b16 %v1225, %v1217
    %v2058 = vpack.c.b16 %v1226, %v1218
    %v2059 = vpack.c.b16 %v1227, %v1219
    %v2060 = vpack.c.b16 %v1228, %v1220
    %v2061 = vpack.c.b16 %v1237, %v1229
    %v2062 = vpack.c.b16 %v1238, %v1230
    %v2063 = vpack.c.b16 %v1239, %v1231
    %v2064 = vpack.c.b16 %v1240, %v1232
    %v2065 = vpack.c.b16 %v1241, %v1233
    %v2066 = vpack.c.b16 %v1242, %v1234
    %v2067 = vpack.c.b16 %v1243, %v1235
    %v2068 = vpack.c.b16 %v1244, %v1236
    %v2069 = vpack.c.b16 %v1253, %v1245
    %v2070 = vpack.c.b16 %v1254, %v1246
    %v2071 = vpack.c.b16 %v1255, %v1247
    %v2072 = vpack.c.b16 %v1256, %v1248
    %v2073 = vpack.c.b16 %v1257, %v1249
    %v2074 = vpack.c.b16 %v1258, %v1250
    %v2075 = vpack.c.b16 %v1259, %v1251
    %v2076 = vpack.c.b16 %v1260, %v1252
    %v2077 = vpack.c.b16 %v1269, %v1261
    %v2078 = vpack.c.b16 %v1270, %v1262
    %v2079 = vpack.c.b16 %v1271, %v1263
    %v2080 = vpack.c.b16 %v1272, %v1264
    %v2081 = vpack.c.b16 %v1273, %v1265
    %v2082 = vpack.c.b16 %v1274, %v1266
    %v2083 = vpack.c.b16 %v1275, %v1267
    %v2084 = vpack.c.b16 %v1276, %v1268
    %v2085 = vpack.c.b16 %v1285, %v1277
    %v2086 = vpack.c.b16 %v1286, %v1278
    %v2087 = vpack.c.b16 %v1287, %v1279
    %v2088 = vpack.c.b16 %v1288, %v1280
    %v2089 = vpack.c.b16 %v1289, %v1281
    %v2090 = vpack.c.b16 %v1290, %v1282
    %v2091 = vpack.c.b16 %v1291, %v1283
    %v2092 = vpack.c.b16 %v1292, %v1284
    %v2093 = vpack.c.b16 %v1301, %v1293
    %v2094 = vpack.c.b16 %v1302, %v1294
    %v2095 = vpack.c.b16 %v1303, %v1295
    %v2096 = vpack.c.b16 %v1304, %v1296
    %v2097 = vpack.c.b16 %v1305, %v1297
    %v2098 = vpack.c.b16 %v1306, %v1298
    %v2099 = vpack.c.b16 %v1307, %v1299
    %v2100 = vpack.c.b16 %v1308, %v1300
    %v2101 = vpack.c.b16 %v1317, %v1309
    %v2102 = vpack.c.b16 %v1318, %v1310
    %v2103 = vpack.c.b16 %v1319, %v1311
    %v2104 = vpack.c.b16 %v1320, %v1312
    %v2105 = vpack.c.b16 %v1321, %v1313
    %v2106 = vpack.c.b16 %v1322, %v1314
    %v2107 = vpack.c.b16 %v1323, %v1315
    %v2108 = vpack.c.b16 %v1324, %v1316
    %v2109 = vpack.c.b16 %v1333, %v1325
    %v2110 = vpack.c.b16 %v1334, %v1326
    %v2111 = vpack.c.b16 %v1335, %v1327
    %v2112 = vpack.c.b16 %v1336, %v1328
    %v2113 = vpack.c.b16 %v1337, %v1329
    %v2114 = vpack.c.b16 %v1338, %v1330
    %v2115 = vpack.c.b16 %v1339, %v1331
    %v2116 = vpack.c.b16 %v1340, %v1332
    %v2117 = vpack.c.b16 %v1349, %v1341
    %v2118 = vpack.c.b16 %v1350, %v1342
    %v2119 = vpack.c.b16 %v1351, %v1343
    %v2120 = vpack.c.b16 %v1352, %v1344
    %v2121 = vpack.c.b16 %v1353, %v1345
    %v2122 = vpack.c.b16 %v1354, %v1346
    %v2123 = vpack.c.b16 %v1355, %v1347
    %v2124 = vpack.c.b16 %v1356, %v1348
    %v2125 = vpack.c.b16 %v1365, %v1357
    %v2126 = vpack.c.b16 %v1366, %v1358
    %v2127 = vpack.c.b16 %v1367, %v1359
    %v2128 = vpack.c.b16 %v1368, %v1360
    %v2129 = vpack.c.b16 %v1369, %v1361
    %v2130 = vpack.c.b16 %v1370, %v1362
    %v2131 = vpack.c.b16 %v1371, %v1363
    %v2132 = vpack.c.b16 %v1372, %v1364
    %v2133 = vpack.c.b16 %v1381, %v1373
    %v2134 = vpack.c.b16 %v1382, %v1374
    %v2135 = vpack.c.b16 %v1383, %v1375
    %v2136 = vpack.c.b16 %v1384, %v1376
    %v2137 = vpack.c.b16 %v1385, %v1377
    %v2138 = vpack.c.b16 %v1386, %v1378
    %v2139 = vpack.c.b16 %v1387, %v1379
    %v2140 = vpack.c.b16 %v1388, %v1380
    %v2141 = vpack.c.b16 %v1397, %v1389
    %v2142 = vpack.c.b16 %v1398, %v1390
    %v2143 = vpack.c.b16 %v1399, %v1391
    %v2144 = vpack.c.b16 %v1400, %v1392
    %v2145 = vpack.c.b16 %v1401, %v1393
    %v2146 = vpack.c.b16 %v1402, %v1394
    %v2147 = vpack.c.b16 %v1403, %v1395
    %v2148 = vpack.c.b16 %v1404, %v1396
    %v2149 = vpack.c.b16 %v1413, %v1405
    %v2150 = vpack.c.b16 %v1414, %v1406
    %v2151 = vpack.c.b16 %v1415, %v1407
    %v2152 = vpack.c.b16 %v1416, %v1408
    %v2153 = vpack.c.b16 %v1417, %v1409
    %v2154 = vpack.c.b16 %v1418, %v1410
    %v2155 = vpack.c.b16 %v1419, %v1411
    %v2156 = vpack.c.b16 %v1420, %v1412
    %v2157 = vpack.c.b16 %v1429, %v1421
    %v2158 = vpack.c.b16 %v1430, %v1422
    %v2159 = vpack.c.b16 %v1431, %v1423
    %v2160 = vpack.c.b16 %v1432, %v1424
    %v2161 = vpack.c.b16 %v1433, %v1425
    %v2162 = vpack.c.b16 %v1434, %v1426
    %v2163 = vpack.c.b16 %v1435, %v1427
    %v2164 = vpack.c.b16 %v1436, %v1428
    %v2165 = vpack.c.b16 %v1445, %v1437
    %v2166 = vpack.c.b16 %v1446, %v1438
    %v2167 = vpack.c.b16 %v1447, %v1439
    %v2168 = vpack.c.b16 %v1448, %v1440
    %v2169 = vpack.c.b16 %v1449, %v1441
    %v2170 = vpack.c.b16 %v1450, %v1442
    %v2171 = vpack.c.b16 %v1451, %v1443
    %v2172 = vpack.c.b16 %v1452, %v1444
    %v2173 = vpack.c.b16 %v1461, %v1453
    %v2174 = vpack.c.b16 %v1462, %v1454
    %v2175 = vpack.c.b16 %v1463, %v1455
    %v2176 = vpack.c.b16 %v1464, %v1456
    %v2177 = vpack.c.b16 %v1465, %v1457
    %v2178 = vpack.c.b16 %v1466, %v1458
    %v2179 = vpack.c.b16 %v1467, %v1459
    %v2180 = vpack.c.b16 %v1468, %v1460
    %v2181 = vpack.c.b16 %v1477, %v1469
    %v2182 = vpack.c.b16 %v1478, %v1470
    %v2183 = vpack.c.b16 %v1479, %v1471
    %v2184 = vpack.c.b16 %v1480, %v1472
    %v2185 = vpack.c.b16 %v1481, %v1473
    %v2186 = vpack.c.b16 %v1482, %v1474
    %v2187 = vpack.c.b16 %v1483, %v1475
    %v2188 = vpack.c.b16 %v1484, %v1476
    %v2189 = vpack.c.b16 %v1493, %v1485
    %v2190 = vpack.c.b16 %v1494, %v1486
    %v2191 = vpack.c.b16 %v1495, %v1487
    %v2192 = vpack.c.b16 %v1496, %v1488
    %v2193 = vpack.c.b16 %v1497, %v1489
    %v2194 = vpack.c.b16 %v1498, %v1490
    %v2195 = vpack.c.b16 %v1499, %v1491
    %v2196 = vpack.c.b16 %v1500, %v1492
    %v2197 = vpack.c.b16 %v1509, %v1501
    %v2198 = vpack.c.b16 %v1510, %v1502
    %v2199 = vpack.c.b16 %v1511, %v1503
    %v2200 = vpack.c.b16 %v1512, %v1504
    %v2201 = vpack.c.b16 %v1513, %v1505
    %v2202 = vpack.c.b16 %v1514, %v1506
    %v2203 = vpack.c.b16 %v1515, %v1507
    %v2204 = vpack.c.b16 %v1516, %v1508
    %v2205 = vpack.c.b16 %v1525, %v1517
    %v2206 = vpack.c.b16 %v1526, %v1518
    %v2207 = vpack.c.b16 %v1527, %v1519
    %v2208 = vpack.c.b16 %v1528, %v1520
    %v2209 = vpack.c.b16 %v1529, %v1521
    %v2210 = vpack.c.b16 %v1530, %v1522
    %v2211 = vpack.c.b16 %v1531, %v1523
    %v2212 = vpack.c.b16 %v1532, %v1524
    %v2213 = vpack.c.b16 %v1541, %v1533
    %v2214 = vpack.c.b16 %v1542, %v1534
    %v2215 = vpack.c.b16 %v1543, %v1535
    %v2216 = vpack.c.b16 %v1544, %v1536
    %v2217 = vpack.c.b16 %v1545, %v1537
    %v2218 = vpack.c.b16 %v1546, %v1538
    %v2219 = vpack.c.b16 %v1547, %v1539
    %v2220 = vpack.c.b16 %v1548, %v1540
    %v2221 = vpack.c.b16 %v1557, %v1549
    %v2222 = vpack.c.b16 %v1558, %v1550
    %v2223 = vpack.c.b16 %v1559, %v1551
    %v2224 = vpack.c.b16 %v1560, %v1552
    %v2225 = vpack.c.b16 %v1561, %v1553
    %v2226 = vpack.c.b16 %v1562, %v1554
    %v2227 = vpack.c.b16 %v1563, %v1555
    %v2228 = vpack.c.b16 %v1564, %v1556
    %v2229 = vpack.c.b16 %v1573, %v1565
    %v2230 = vpack.c.b16 %v1574, %v1566
    %v2231 = vpack.c.b16 %v1575, %v1567
    %v2232 = vpack.c.b16 %v1576, %v1568
    %v2233 = vpack.c.b16 %v1577, %v1569
    %v2234 = vpack.c.b16 %v1578, %v1570
    %v2235 = vpack.c.b16 %v1579, %v1571
    %v2236 = vpack.c.b16 %v1580, %v1572
    %v2237 = vpack.c.b16 %v1589, %v1581
    %v2238 = vpack.c.b16 %v1590, %v1582
    %v2239 = vpack.c.b16 %v1591, %v1583
    %v2240 = vpack.c.b16 %v1592, %v1584
    %v2241 = vpack.c.b16 %v1593, %v1585
    %v2242 = vpack.c.b16 %v1594, %v1586
    %v2243 = vpack.c.b16 %v1595, %v1587
    %v2244 = vpack.c.b16 %v1596, %v1588
    %v2245 = vpack.c.b16 %v1605, %v1597
    %v2246 = vpack.c.b16 %v1606, %v1598
    %v2247 = vpack.c.b16 %v1607, %v1599
    %v2248 = vpack.c.b16 %v1608, %v1600
    %v2249 = vpack.c.b16 %v1609, %v1601
    %v2250 = vpack.c.b16 %v1610, %v1602
    %v2251 = vpack.c.b16 %v1611, %v1603
    %v2252 = vpack.c.b16 %v1612, %v1604
    %v2253 = vpack.c.b16 %v1621, %v1613
    %v2254 = vpack.c.b16 %v1622, %v1614
    %v2255 = vpack.c.b16 %v1623, %v1615
    %v2256 = vpack.c.b16 %v1624, %v1616
    %v2257 = vpack.c.b16 %v1625, %v1617
    %v2258 = vpack.c.b16 %v1626, %v1618
    %v2259 = vpack.c.b16 %v1627, %v1619
    %v2260 = vpack.c.b16 %v1628, %v1620
    %v2261 = vpack.c.b16 %v1637, %v1629
    %v2262 = vpack.c.b16 %v1638, %v1630
    %v2263 = vpack.c.b16 %v1639, %v1631
    %v2264 = vpack.c.b16 %v1640, %v1632
    %v2265 = vpack.c.b16 %v1641, %v1633
    %v2266 = vpack.c.b16 %v1642, %v1634
    %v2267 = vpack.c.b16 %v1643, %v1635
    %v2268 = vpack.c.b16 %v1644, %v1636
    %v2269 = vpack.c.b16 %v1653, %v1645
    %v2270 = vpack.c.b16 %v1654, %v1646
    %v2271 = vpack.c.b16 %v1655, %v1647
    %v2272 = vpack.c.b16 %v1656, %v1648
    %v2273 = vpack.c.b16 %v1657, %v1649
    %v2274 = vpack.c.b16 %v1658, %v1650
    %v2275 = vpack.c.b16 %v1659, %v1651
    %v2276 = vpack.c.b16 %v1660, %v1652
    %v2277 = vpack.c.b16 %v1669, %v1661
    %v2278 = vpack.c.b16 %v1670, %v1662
    %v2279 = vpack.c.b16 %v1671, %v1663
    %v2280 = vpack.c.b16 %v1672, %v1664
    %v2281 = vpack.c.b16 %v1673, %v1665
    %v2282 = vpack.c.b16 %v1674, %v1666
    %v2283 = vpack.c.b16 %v1675, %v1667
    %v2284 = vpack.c.b16 %v1676, %v1668
    %v2285 = vpack.c.b16 %v1685, %v1677
    %v2286 = vpack.c.b16 %v1686, %v1678
    %v2287 = vpack.c.b16 %v1687, %v1679
    %v2288 = vpack.c.b16 %v1688, %v1680
    %v2289 = vpack.c.b16 %v1689, %v1681
    %v2290 = vpack.c.b16 %v1690, %v1682
    %v2291 = vpack.c.b16 %v1691, %v1683
    %v2292 = vpack.c.b16 %v1692, %v1684
    %v2293 = vpack.c.b16 %v1701, %v1693
    %v2294 = vpack.c.b16 %v1702, %v1694
    %v2295 = vpack.c.b16 %v1703, %v1695
    %v2296 = vpack.c.b16 %v1704, %v1696
    %v2297 = vpack.c.b16 %v1705, %v1697
    %v2298 = vpack.c.b16 %v1706, %v1698
    %v2299 = vpack.c.b16 %v1707, %v1699
    %v2300 = vpack.c.b16 %v1708, %v1700
    %v2301 = vpack.c.b16 %v1717, %v1709
    %v2302 = vpack.c.b16 %v1718, %v1710
    %v2303 = vpack.c.b16 %v1719, %v1711
    %v2304 = vpack.c.b16 %v1720, %v1712
    %v2305 = vpack.c.b16 %v1721, %v1713
    %v2306 = vpack.c.b16 %v1722, %v1714
    %v2307 = vpack.c.b16 %v1723, %v1715
    %v2308 = vpack.c.b16 %v1724, %v1716
    %v2309 = vpack.c.b16 %v1733, %v1725
    %v2310 = vpack.c.b16 %v1734, %v1726
    %v2311 = vpack.c.b16 %v1735, %v1727
    %v2312 = vpack.c.b16 %v1736, %v1728
    %v2313 = vpack.c.b16 %v1737, %v1729
    %v2314 = vpack.c.b16 %v1738, %v1730
    %v2315 = vpack.c.b16 %v1739, %v1731
    %v2316 = vpack.c.b16 %v1740, %v1732
    %v2317 = vpack.c.b16 %v1749, %v1741
    %v2318 = vpack.c.b16 %v1750, %v1742
    %v2319 = vpack.c.b16 %v1751, %v1743
    %v2320 = vpack.c.b16 %v1752, %v1744
    %v2321 = vpack.c.b16 %v1753, %v1745
    %v2322 = vpack.c.b16 %v1754, %v1746
    %v2323 = vpack.c.b16 %v1755, %v1747
    %v2324 = vpack.c.b16 %v1756, %v1748
    %v2325 = vpack.c.b16 %v1765, %v1757
    %v2326 = vpack.c.b16 %v1766, %v1758
    %v2327 = vpack.c.b16 %v1767, %v1759
    %v2328 = vpack.c.b16 %v1768, %v1760
    %v2329 = vpack.c.b16 %v1769, %v1761
    %v2330 = vpack.c.b16 %v1770, %v1762
    %v2331 = vpack.c.b16 %v1771, %v1763
    %v2332 = vpack.c.b16 %v1772, %v1764
    %v2333 = vpack.c.b16 %v1781, %v1773
    %v2334 = vpack.c.b16 %v1782, %v1774
    %v2335 = vpack.c.b16 %v1783, %v1775
    %v2336 = vpack.c.b16 %v1784, %v1776
    %v2337 = vpack.c.b16 %v1785, %v1777
    %v2338 = vpack.c.b16 %v1786, %v1778
    %v2339 = vpack.c.b16 %v1787, %v1779
    %v2340 = vpack.c.b16 %v1788, %v1780
    %v2341 = vpack.c.b16 %v1797, %v1789
    %v2342 = vpack.c.b16 %v1798, %v1790
    %v2343 = vpack.c.b16 %v1799, %v1791
    %v2344 = vpack.c.b16 %v1800, %v1792
    %v2345 = vpack.c.b16 %v1801, %v1793
    %v2346 = vpack.c.b16 %v1802, %v1794
    %v2347 = vpack.c.b16 %v1803, %v1795
    %v2348 = vpack.c.b16 %v1804, %v1796
    %v2349 = vpack.c.b16 %v1813, %v1805
    %v2350 = vpack.c.b16 %v1814, %v1806
    %v2351 = vpack.c.b16 %v1815, %v1807
    %v2352 = vpack.c.b16 %v1816, %v1808
    %v2353 = vpack.c.b16 %v1817, %v1809
    %v2354 = vpack.c.b16 %v1818, %v1810
    %v2355 = vpack.c.b16 %v1819, %v1811
    %v2356 = vpack.c.b16 %v1820, %v1812
    %v2357 = vpack.c.b16 %v1829, %v1821
    %v2358 = vpack.c.b16 %v1830, %v1822
    %v2359 = vpack.c.b16 %v1831, %v1823
    %v2360 = vpack.c.b16 %v1832, %v1824
    %v2361 = vpack.c.b16 %v1833, %v1825
    %v2362 = vpack.c.b16 %v1834, %v1826
    %v2363 = vpack.c.b16 %v1835, %v1827
    %v2364 = vpack.c.b16 %v1836, %v1828
    %v2365 = vpack.c.b16 %v1845, %v1837
    %v2366 = vpack.c.b16 %v1846, %v1838
    %v2367 = vpack.c.b16 %v1847, %v1839
    %v2368 = vpack.c.b16 %v1848, %v1840
    %v2369 = vpack.c.b16 %v1849, %v1841
    %v2370 = vpack.c.b16 %v1850, %v1842
    %v2371 = vpack.c.b16 %v1851, %v1843
    %v2372 = vpack.c.b16 %v1852, %v1844
    %v2373 = vpack.c.b16 %v1861, %v1853
    %v2374 = vpack.c.b16 %v1862, %v1854
    %v2375 = vpack.c.b16 %v1863, %v1855
    %v2376 = vpack.c.b16 %v1864, %v1856
    %v2377 = vpack.c.b16 %v1865, %v1857
    %v2378 = vpack.c.b16 %v1866, %v1858
    %v2379 = vpack.c.b16 %v1867, %v1859
    %v2380 = vpack.c.b16 %v1868, %v1860
    %v2381 = vpack.c.b16 %v1877, %v1869
    %v2382 = vpack.c.b16 %v1878, %v1870
    %v2383 = vpack.c.b16 %v1879, %v1871
    %v2384 = vpack.c.b16 %v1880, %v1872
    %v2385 = vpack.c.b16 %v1881, %v1873
    %v2386 = vpack.c.b16 %v1882, %v1874
    %v2387 = vpack.c.b16 %v1883, %v1875
    %v2388 = vpack.c.b16 %v1884, %v1876
    %v2389 = vpack.c.b16 %v1893, %v1885
    %v2390 = vpack.c.b16 %v1894, %v1886
    %v2391 = vpack.c.b16 %v1895, %v1887
    %v2392 = vpack.c.b16 %v1896, %v1888
    %v2393 = vpack.c.b16 %v1897, %v1889
    %v2394 = vpack.c.b16 %v1898, %v1890
    %v2395 = vpack.c.b16 %v1899, %v1891
    %v2396 = vpack.c.b16 %v1900, %v1892
    %v2397 = vpack.c.b16 %v1909, %v1901
    %v2398 = vpack.c.b16 %v1910, %v1902
    %v2399 = vpack.c.b16 %v1911, %v1903
    %v2400 = vpack.c.b16 %v1912, %v1904
    %v2401 = vpack.c.b16 %v1913, %v1905
    %v2402 = vpack.c.b16 %v1914, %v1906
    %v2403 = vpack.c.b16 %v1915, %v1907
    %v2404 = vpack.c.b16 %v1916, %v1908
    %v2405 = vpack.c.b16 %v1925, %v1917
    %v2406 = vpack.c.b16 %v1926, %v1918
    %v2407 = vpack.c.b16 %v1927, %v1919
    %v2408 = vpack.c.b16 %v1928, %v1920
    %v2409 = vpack.c.b16 %v1929, %v1921
    %v2410 = vpack.c.b16 %v1930, %v1922
    %v2411 = vpack.c.b16 %v1931, %v1923
    %v2412 = vpack.c.b16 %v1932, %v1924
    %v2413 = vpack.c.b16 %v1941, %v1933
    %v2414 = vpack.c.b16 %v1942, %v1934
    %v2415 = vpack.c.b16 %v1943, %v1935
    %v2416 = vpack.c.b16 %v1944, %v1936
    %v2417 = vpack.c.b16 %v1945, %v1937
    %v2418 = vpack.c.b16 %v1946, %v1938
    %v2419 = vpack.c.b16 %v1947, %v1939
    %v2420 = vpack.c.b16 %v1948, %v1940
    %v2421 = vpack.c.b16 %v1957, %v1949
    %v2422 = vpack.c.b16 %v1958, %v1950
    %v2423 = vpack.c.b16 %v1959, %v1951
    %v2424 = vpack.c.b16 %v1960, %v1952
    %v2425 = vpack.c.b16 %v1961, %v1953
    %v2426 = vpack.c.b16 %v1962, %v1954
    %v2427 = vpack.c.b16 %v1963, %v1955
    %v2428 = vpack.c.b16 %v1964, %v1956
    %v2429 = vpack.c.b16 %v1973, %v1965
    %v2430 = vpack.c.b16 %v1974, %v1966
    %v2431 = vpack.c.b16 %v1975, %v1967
    %v2432 = vpack.c.b16 %v1976, %v1968
    %v2433 = vpack.c.b16 %v1977, %v1969
    %v2434 = vpack.c.b16 %v1978, %v1970
    %v2435 = vpack.c.b16 %v1979, %v1971
    %v2436 = vpack.c.b16 %v1980, %v1972
    %v2437 = vpack.c.b16 %v1989, %v1981
    %v2438 = vpack.c.b16 %v1990, %v1982
    %v2439 = vpack.c.b16 %v1991, %v1983
    %v2440 = vpack.c.b16 %v1992, %v1984
    %v2441 = vpack.c.b16 %v1993, %v1985
    %v2442 = vpack.c.b16 %v1994, %v1986
    %v2443 = vpack.c.b16 %v1995, %v1987
    %v2444 = vpack.c.b16 %v1996, %v1988
    %2893 = vmatprep.subr.bf16.mxu0 %v2054
    %2894 = vmatpush1.bf16.msra.mxu0 %v2053
    %2895 = vmatprep.subr.bf16.mxu0 %v2046
    %2896 = vmatpush1.bf16.msra.mxu0 %v2045
    %2897 = vmatprep.subr.bf16.mxu0 %v2038
    %2898 = vmatpush1.bf16.msra.mxu0 %v2037
    %2899 = vmatprep.subr.bf16.mxu0 %v2030
    %2900 = vmatpush1.bf16.msra.mxu0 %v2029
    %2901 = vmatprep.subr.bf16.mxu0 %v2022
    %2902 = vmatpush1.bf16.msra.mxu0 %v2021
    %2903 = vmatprep.subr.bf16.mxu0 %v2014
    %2904 = vmatpush1.bf16.msra.mxu0 %v2013
    %2905 = vmatprep.subr.bf16.mxu0 %v2006
    %2906 = vmatpush1.bf16.msra.mxu0 %v2005
    %2907 = vmatprep.subr.bf16.mxu0 %v1998
    %2908 = vmatpush1.bf16.msra.mxu0 %v1997
    %2909 = vmatprep.subr.bf16.mxu0 %v2118
    %2910 = vmatpush2.bf16.msra.mxu0 %v2117
    %2911 = vmatprep.subr.bf16.mxu0 %v2110
    %2912 = vmatpush2.bf16.msra.mxu0 %v2109
    %2913 = vmatprep.subr.bf16.mxu0 %v2102
    %2914 = vmatpush2.bf16.msra.mxu0 %v2101
    %2915 = vmatprep.subr.bf16.mxu0 %v2094
    %2916 = vmatpush2.bf16.msra.mxu0 %v2093
    %2917 = vmatprep.subr.bf16.mxu0 %v2086
    %2918 = vmatpush2.bf16.msra.mxu0 %v2085
    %2919 = vmatprep.subr.bf16.mxu0 %v2078
    %2920 = vmatpush2.bf16.msra.mxu0 %v2077
    %2921 = vmatprep.subr.bf16.mxu0 %v2070
    %2922 = vmatpush2.bf16.msra.mxu0 %v2069
    %2923 = vmatprep.subr.bf16.mxu0 %v2062
    %2924 = vmatpush2.bf16.msra.mxu0 %v2061
    %2925 = vmatprep.mubr.bf16.mxu0 %v640
    %2926 = vmatmul.mubr.bf16.gmra.mxu0 %v639
    %v2927 = vpop.f32.mrf.mxu0
    %v2928 = vadd.f32 %v591, %v2927
    %v2929 = vpop.f32.mrf.mxu0
    %v2930 = vadd.f32 %v595, %v2929
    %v2931 = vpop.f32.mrf.mxu0
    %v2932 = vpop.f32.mrf.mxu0
    %2933 = vdwg.mxu0
    %2934 = vmatprep.subr.bf16.mxu0 %v2182
    %2935 = vmatpush1.bf16.msra.mxu0 %v2181
    %2936 = vmatprep.subr.bf16.mxu0 %v2174
    %2937 = vmatpush1.bf16.msra.mxu0 %v2173
    %2938 = vmatprep.subr.bf16.mxu0 %v2166
    %2939 = vmatpush1.bf16.msra.mxu0 %v2165
    %2940 = vmatprep.subr.bf16.mxu0 %v2158
    %2941 = vmatpush1.bf16.msra.mxu0 %v2157
    %2942 = vmatprep.subr.bf16.mxu0 %v2150
    %2943 = vmatpush1.bf16.msra.mxu0 %v2149
    %2944 = vmatprep.subr.bf16.mxu0 %v2142
    %2945 = vmatpush1.bf16.msra.mxu0 %v2141
    %2946 = vmatprep.subr.bf16.mxu0 %v2134
    %2947 = vmatpush1.bf16.msra.mxu0 %v2133
    %2948 = vmatprep.subr.bf16.mxu0 %v2126
    %2949 = vmatpush1.bf16.msra.mxu0 %v2125
    %2950 = vmatprep.subr.bf16.mxu0 %v2246
    %2951 = vmatpush2.bf16.msra.mxu0 %v2245
    %2952 = vmatprep.subr.bf16.mxu0 %v2238
    %2953 = vmatpush2.bf16.msra.mxu0 %v2237
    %2954 = vmatprep.subr.bf16.mxu0 %v2230
    %2955 = vmatpush2.bf16.msra.mxu0 %v2229
    %2956 = vmatprep.subr.bf16.mxu0 %v2222
    %2957 = vmatpush2.bf16.msra.mxu0 %v2221
    %2958 = vmatprep.subr.bf16.mxu0 %v2214
    %2959 = vmatpush2.bf16.msra.mxu0 %v2213
    %2960 = vmatprep.subr.bf16.mxu0 %v2206
    %2961 = vmatpush2.bf16.msra.mxu0 %v2205
    %2962 = vmatprep.subr.bf16.mxu0 %v2198
    %2963 = vmatpush2.bf16.msra.mxu0 %v2197
    %2964 = vmatprep.subr.bf16.mxu0 %v2190
    %2965 = vmatpush2.bf16.msra.mxu0 %v2189
    %2966 = vmatprep.mubr.bf16.mxu0 %v642
    %2967 = vmatmul.mubr.bf16.gmra.mxu0 %v641
    %v2968 = vpop.f32.mrf.mxu0
    %v2969 = vadd.f32 %v2928, %v2968
    %v2970 = vpop.f32.mrf.mxu0
    %v2971 = vadd.f32 %v2930, %v2970
    %v2972 = vpop.f32.mrf.mxu0
    %v2973 = vpop.f32.mrf.mxu0
    %2974 = vdwg.mxu0
    %2975 = vmatprep.subr.bf16.mxu0 %v2310
    %2976 = vmatpush1.bf16.msra.mxu0 %v2309
    %2977 = vmatprep.subr.bf16.mxu0 %v2302
    %2978 = vmatpush1.bf16.msra.mxu0 %v2301
    %2979 = vmatprep.subr.bf16.mxu0 %v2294
    %2980 = vmatpush1.bf16.msra.mxu0 %v2293
    %2981 = vmatprep.subr.bf16.mxu0 %v2286
    %2982 = vmatpush1.bf16.msra.mxu0 %v2285
    %2983 = vmatprep.subr.bf16.mxu0 %v2278
    %2984 = vmatpush1.bf16.msra.mxu0 %v2277
    %2985 = vmatprep.subr.bf16.mxu0 %v2270
    %2986 = vmatpush1.bf16.msra.mxu0 %v2269
    %2987 = vmatprep.subr.bf16.mxu0 %v2262
    %2988 = vmatpush1.bf16.msra.mxu0 %v2261
    %2989 = vmatprep.subr.bf16.mxu0 %v2254
    %2990 = vmatpush1.bf16.msra.mxu0 %v2253
    %2991 = vmatprep.subr.bf16.mxu0 %v2374
    %2992 = vmatpush2.bf16.msra.mxu0 %v2373
    %2993 = vmatprep.subr.bf16.mxu0 %v2366
    %2994 = vmatpush2.bf16.msra.mxu0 %v2365
    %2995 = vmatprep.subr.bf16.mxu0 %v2358
    %2996 = vmatpush2.bf16.msra.mxu0 %v2357
    %2997 = vmatprep.subr.bf16.mxu0 %v2350
    %2998 = vmatpush2.bf16.msra.mxu0 %v2349
    %2999 = vmatprep.subr.bf16.mxu0 %v2342
    %3000 = vmatpush2.bf16.msra.mxu0 %v2341
    %3001 = vmatprep.subr.bf16.mxu0 %v2334
    %3002 = vmatpush2.bf16.msra.mxu0 %v2333
    %3003 = vmatprep.subr.bf16.mxu0 %v2326
    %3004 = vmatpush2.bf16.msra.mxu0 %v2325
    %3005 = vmatprep.subr.bf16.mxu0 %v2318
    %3006 = vmatpush2.bf16.msra.mxu0 %v2317
    %3007 = vmatprep.mubr.bf16.mxu0 %v644
    %3008 = vmatmul.mubr.bf16.gmra.mxu0 %v643
    %v3009 = vpop.f32.mrf.mxu0
    %v3010 = vadd.f32 %v2969, %v3009
    %v3011 = vpop.f32.mrf.mxu0
    %v3012 = vadd.f32 %v2971, %v3011
    %v3013 = vpop.f32.mrf.mxu0
    %v3014 = vpop.f32.mrf.mxu0
    %3015 = vdwg.mxu0
    %3016 = vmatprep.subr.bf16.mxu0 %v2438
    %3017 = vmatpush1.bf16.msra.mxu0 %v2437
    %3018 = vmatprep.subr.bf16.mxu0 %v2430
    %3019 = vmatpush1.bf16.msra.mxu0 %v2429
    %3020 = vmatprep.subr.bf16.mxu0 %v2422
    %3021 = vmatpush1.bf16.msra.mxu0 %v2421
    %3022 = vmatprep.subr.bf16.mxu0 %v2414
    %3023 = vmatpush1.bf16.msra.mxu0 %v2413
    %3024 = vmatprep.subr.bf16.mxu0 %v2406
    %3025 = vmatpush1.bf16.msra.mxu0 %v2405
    %3026 = vmatprep.subr.bf16.mxu0 %v2398
    %3027 = vmatpush1.bf16.msra.mxu0 %v2397
    %3028 = vmatprep.subr.bf16.mxu0 %v2390
    %3029 = vmatpush1.bf16.msra.mxu0 %v2389
    %3030 = vmatprep.subr.bf16.mxu0 %v2382
    %3031 = vmatpush1.bf16.msra.mxu0 %v2381
    %3032 = vmatprep.subr.bf16.mxu0 0
    %3033 = vmatpush2.bf16.msra.mxu0 0
    %3034 = vmatprep.subr.bf16.mxu0 0
    %3035 = vmatpush2.bf16.msra.mxu0 0
    %3036 = vmatprep.subr.bf16.mxu0 0
    %3037 = vmatpush2.bf16.msra.mxu0 0
    %3038 = vmatprep.subr.bf16.mxu0 0
    %3039 = vmatpush2.bf16.msra.mxu0 0
    %3040 = vmatprep.subr.bf16.mxu0 0
    %3041 = vmatpush2.bf16.msra.mxu0 0
    %3042 = vmatprep.subr.bf16.mxu0 0
    %3043 = vmatpush2.bf16.msra.mxu0 0
    %3044 = vmatprep.subr.bf16.mxu0 0
    %3045 = vmatpush2.bf16.msra.mxu0 0
    %3046 = vmatprep.subr.bf16.mxu0 0
    %3047 = vmatpush2.bf16.msra.mxu0 0
    %3048 = vmatprep.mubr.bf16.mxu0 0
    %3049 = vmatmul.mubr.bf16.gmra.mxu0 %v645
    %v3050 = vpop.f32.mrf.mxu0
    %v3051 = vadd.f32 %v3010, %v3050
    %v3052 = vpop.f32.mrf.mxu0
    %v3053 = vadd.f32 %v3012, %v3052
    %v3054 = vpop.f32.mrf.mxu0
    %v3055 = vpop.f32.mrf.mxu0
    %3056 = vdwg.mxu0
    %3057 = vmatprep.subr.bf16.mxu0 %v2056
    %3058 = vmatpush1.bf16.msra.mxu0 %v2055
    %3059 = vmatprep.subr.bf16.mxu0 %v2048
    %3060 = vmatpush1.bf16.msra.mxu0 %v2047
    %3061 = vmatprep.subr.bf16.mxu0 %v2040
    %3062 = vmatpush1.bf16.msra.mxu0 %v2039
    %3063 = vmatprep.subr.bf16.mxu0 %v2032
    %3064 = vmatpush1.bf16.msra.mxu0 %v2031
    %3065 = vmatprep.subr.bf16.mxu0 %v2024
    %3066 = vmatpush1.bf16.msra.mxu0 %v2023
    %3067 = vmatprep.subr.bf16.mxu0 %v2016
    %3068 = vmatpush1.bf16.msra.mxu0 %v2015
    %3069 = vmatprep.subr.bf16.mxu0 %v2008
    %3070 = vmatpush1.bf16.msra.mxu0 %v2007
    %3071 = vmatprep.subr.bf16.mxu0 %v2000
    %3072 = vmatpush1.bf16.msra.mxu0 %v1999
    %3073 = vmatprep.subr.bf16.mxu0 %v2120
    %3074 = vmatpush2.bf16.msra.mxu0 %v2119
    %3075 = vmatprep.subr.bf16.mxu0 %v2112
    %3076 = vmatpush2.bf16.msra.mxu0 %v2111
    %3077 = vmatprep.subr.bf16.mxu0 %v2104
    %3078 = vmatpush2.bf16.msra.mxu0 %v2103
    %3079 = vmatprep.subr.bf16.mxu0 %v2096
    %3080 = vmatpush2.bf16.msra.mxu0 %v2095
    %3081 = vmatprep.subr.bf16.mxu0 %v2088
    %3082 = vmatpush2.bf16.msra.mxu0 %v2087
    %3083 = vmatprep.subr.bf16.mxu0 %v2080
    %3084 = vmatpush2.bf16.msra.mxu0 %v2079
    %3085 = vmatprep.subr.bf16.mxu0 %v2072
    %3086 = vmatpush2.bf16.msra.mxu0 %v2071
    %3087 = vmatprep.subr.bf16.mxu0 %v2064
    %3088 = vmatpush2.bf16.msra.mxu0 %v2063
    %3089 = vmatprep.mubr.bf16.mxu0 %v640
    %3090 = vmatmul.mubr.bf16.gmra.mxu0 %v639
    %v3091 = vpop.f32.mrf.mxu0
    %v3092 = vadd.f32 %v599, %v3091
    %v3093 = vpop.f32.mrf.mxu0
    %v3094 = vadd.f32 %v603, %v3093
    %v3095 = vpop.f32.mrf.mxu0
    %v3096 = vpop.f32.mrf.mxu0
    %3097 = vdwg.mxu0
    %3098 = vmatprep.subr.bf16.mxu0 %v2184
    %3099 = vmatpush1.bf16.msra.mxu0 %v2183
    %3100 = vmatprep.subr.bf16.mxu0 %v2176
    %3101 = vmatpush1.bf16.msra.mxu0 %v2175
    %3102 = vmatprep.subr.bf16.mxu0 %v2168
    %3103 = vmatpush1.bf16.msra.mxu0 %v2167
    %3104 = vmatprep.subr.bf16.mxu0 %v2160
    %3105 = vmatpush1.bf16.msra.mxu0 %v2159
    %3106 = vmatprep.subr.bf16.mxu0 %v2152
    %3107 = vmatpush1.bf16.msra.mxu0 %v2151
    %3108 = vmatprep.subr.bf16.mxu0 %v2144
    %3109 = vmatpush1.bf16.msra.mxu0 %v2143
    %3110 = vmatprep.subr.bf16.mxu0 %v2136
    %3111 = vmatpush1.bf16.msra.mxu0 %v2135
    %3112 = vmatprep.subr.bf16.mxu0 %v2128
    %3113 = vmatpush1.bf16.msra.mxu0 %v2127
    %3114 = vmatprep.subr.bf16.mxu0 %v2248
    %3115 = vmatpush2.bf16.msra.mxu0 %v2247
    %3116 = vmatprep.subr.bf16.mxu0 %v2240
    %3117 = vmatpush2.bf16.msra.mxu0 %v2239
    %3118 = vmatprep.subr.bf16.mxu0 %v2232
    %3119 = vmatpush2.bf16.msra.mxu0 %v2231
    %3120 = vmatprep.subr.bf16.mxu0 %v2224
    %3121 = vmatpush2.bf16.msra.mxu0 %v2223
    %3122 = vmatprep.subr.bf16.mxu0 %v2216
    %3123 = vmatpush2.bf16.msra.mxu0 %v2215
    %3124 = vmatprep.subr.bf16.mxu0 %v2208
    %3125 = vmatpush2.bf16.msra.mxu0 %v2207
    %3126 = vmatprep.subr.bf16.mxu0 %v2200
    %3127 = vmatpush2.bf16.msra.mxu0 %v2199
    %3128 = vmatprep.subr.bf16.mxu0 %v2192
    %3129 = vmatpush2.bf16.msra.mxu0 %v2191
    %3130 = vmatprep.mubr.bf16.mxu0 %v642
    %3131 = vmatmul.mubr.bf16.gmra.mxu0 %v641
    %v3132 = vpop.f32.mrf.mxu0
    %v3133 = vadd.f32 %v3092, %v3132
    %v3134 = vpop.f32.mrf.mxu0
    %v3135 = vadd.f32 %v3094, %v3134
    %v3136 = vpop.f32.mrf.mxu0
    %v3137 = vpop.f32.mrf.mxu0
    %3138 = vdwg.mxu0
    %3139 = vmatprep.subr.bf16.mxu0 %v2312
    %3140 = vmatpush1.bf16.msra.mxu0 %v2311
    %3141 = vmatprep.subr.bf16.mxu0 %v2304
    %3142 = vmatpush1.bf16.msra.mxu0 %v2303
    %3143 = vmatprep.subr.bf16.mxu0 %v2296
    %3144 = vmatpush1.bf16.msra.mxu0 %v2295
    %3145 = vmatprep.subr.bf16.mxu0 %v2288
    %3146 = vmatpush1.bf16.msra.mxu0 %v2287
    %3147 = vmatprep.subr.bf16.mxu0 %v2280
    %3148 = vmatpush1.bf16.msra.mxu0 %v2279
    %3149 = vmatprep.subr.bf16.mxu0 %v2272
    %3150 = vmatpush1.bf16.msra.mxu0 %v2271
    %3151 = vmatprep.subr.bf16.mxu0 %v2264
    %3152 = vmatpush1.bf16.msra.mxu0 %v2263
    %3153 = vmatprep.subr.bf16.mxu0 %v2256
    %3154 = vmatpush1.bf16.msra.mxu0 %v2255
    %3155 = vmatprep.subr.bf16.mxu0 %v2376
    %3156 = vmatpush2.bf16.msra.mxu0 %v2375
    %3157 = vmatprep.subr.bf16.mxu0 %v2368
    %3158 = vmatpush2.bf16.msra.mxu0 %v2367
    %3159 = vmatprep.subr.bf16.mxu0 %v2360
    %3160 = vmatpush2.bf16.msra.mxu0 %v2359
    %3161 = vmatprep.subr.bf16.mxu0 %v2352
    %3162 = vmatpush2.bf16.msra.mxu0 %v2351
    %3163 = vmatprep.subr.bf16.mxu0 %v2344
    %3164 = vmatpush2.bf16.msra.mxu0 %v2343
    %3165 = vmatprep.subr.bf16.mxu0 %v2336
    %3166 = vmatpush2.bf16.msra.mxu0 %v2335
    %3167 = vmatprep.subr.bf16.mxu0 %v2328
    %3168 = vmatpush2.bf16.msra.mxu0 %v2327
    %3169 = vmatprep.subr.bf16.mxu0 %v2320
    %3170 = vmatpush2.bf16.msra.mxu0 %v2319
    %3171 = vmatprep.mubr.bf16.mxu0 %v644
    %3172 = vmatmul.mubr.bf16.gmra.mxu0 %v643
    %v3173 = vpop.f32.mrf.mxu0
    %v3174 = vadd.f32 %v3133, %v3173
    %v3175 = vpop.f32.mrf.mxu0
    %v3176 = vadd.f32 %v3135, %v3175
    %v3177 = vpop.f32.mrf.mxu0
    %v3178 = vpop.f32.mrf.mxu0
    %3179 = vdwg.mxu0
    %3180 = vmatprep.subr.bf16.mxu0 %v2440
    %3181 = vmatpush1.bf16.msra.mxu0 %v2439
    %3182 = vmatprep.subr.bf16.mxu0 %v2432
    %3183 = vmatpush1.bf16.msra.mxu0 %v2431
    %3184 = vmatprep.subr.bf16.mxu0 %v2424
    %3185 = vmatpush1.bf16.msra.mxu0 %v2423
    %3186 = vmatprep.subr.bf16.mxu0 %v2416
    %3187 = vmatpush1.bf16.msra.mxu0 %v2415
    %3188 = vmatprep.subr.bf16.mxu0 %v2408
    %3189 = vmatpush1.bf16.msra.mxu0 %v2407
    %3190 = vmatprep.subr.bf16.mxu0 %v2400
    %3191 = vmatpush1.bf16.msra.mxu0 %v2399
    %3192 = vmatprep.subr.bf16.mxu0 %v2392
    %3193 = vmatpush1.bf16.msra.mxu0 %v2391
    %3194 = vmatprep.subr.bf16.mxu0 %v2384
    %3195 = vmatpush1.bf16.msra.mxu0 %v2383
    %3196 = vmatprep.subr.bf16.mxu0 0
    %3197 = vmatpush2.bf16.msra.mxu0 0
    %3198 = vmatprep.subr.bf16.mxu0 0
    %3199 = vmatpush2.bf16.msra.mxu0 0
    %3200 = vmatprep.subr.bf16.mxu0 0
    %3201 = vmatpush2.bf16.msra.mxu0 0
    %3202 = vmatprep.subr.bf16.mxu0 0
    %3203 = vmatpush2.bf16.msra.mxu0 0
    %3204 = vmatprep.subr.bf16.mxu0 0
    %3205 = vmatpush2.bf16.msra.mxu0 0
    %3206 = vmatprep.subr.bf16.mxu0 0
    %3207 = vmatpush2.bf16.msra.mxu0 0
    %3208 = vmatprep.subr.bf16.mxu0 0
    %3209 = vmatpush2.bf16.msra.mxu0 0
    %3210 = vmatprep.subr.bf16.mxu0 0
    %3211 = vmatpush2.bf16.msra.mxu0 0
    %3212 = vmatprep.mubr.bf16.mxu0 0
    %3213 = vmatmul.mubr.bf16.gmra.mxu0 %v645
    %v3214 = vpop.f32.mrf.mxu0
    %v3215 = vadd.f32 %v3174, %v3214
    %v3216 = vpop.f32.mrf.mxu0
    %v3217 = vadd.f32 %v3176, %v3216
    %v3218 = vpop.f32.mrf.mxu0
    %v3219 = vpop.f32.mrf.mxu0
    %3220 = vdwg.mxu0
    %3221 = vmatprep.subr.bf16.mxu0 %v2058
    %3222 = vmatpush1.bf16.msra.mxu0 %v2057
    %3223 = vmatprep.subr.bf16.mxu0 %v2050
    %3224 = vmatpush1.bf16.msra.mxu0 %v2049
    %3225 = vmatprep.subr.bf16.mxu0 %v2042
    %3226 = vmatpush1.bf16.msra.mxu0 %v2041
    %3227 = vmatprep.subr.bf16.mxu0 %v2034
    %3228 = vmatpush1.bf16.msra.mxu0 %v2033
    %3229 = vmatprep.subr.bf16.mxu0 %v2026
    %3230 = vmatpush1.bf16.msra.mxu0 %v2025
    %3231 = vmatprep.subr.bf16.mxu0 %v2018
    %3232 = vmatpush1.bf16.msra.mxu0 %v2017
    %3233 = vmatprep.subr.bf16.mxu0 %v2010
    %3234 = vmatpush1.bf16.msra.mxu0 %v2009
    %3235 = vmatprep.subr.bf16.mxu0 %v2002
    %3236 = vmatpush1.bf16.msra.mxu0 %v2001
    %3237 = vmatprep.subr.bf16.mxu0 %v2122
    %3238 = vmatpush2.bf16.msra.mxu0 %v2121
    %3239 = vmatprep.subr.bf16.mxu0 %v2114
    %3240 = vmatpush2.bf16.msra.mxu0 %v2113
    %3241 = vmatprep.subr.bf16.mxu0 %v2106
    %3242 = vmatpush2.bf16.msra.mxu0 %v2105
    %3243 = vmatprep.subr.bf16.mxu0 %v2098
    %3244 = vmatpush2.bf16.msra.mxu0 %v2097
    %3245 = vmatprep.subr.bf16.mxu0 %v2090
    %3246 = vmatpush2.bf16.msra.mxu0 %v2089
    %3247 = vmatprep.subr.bf16.mxu0 %v2082
    %3248 = vmatpush2.bf16.msra.mxu0 %v2081
    %3249 = vmatprep.subr.bf16.mxu0 %v2074
    %3250 = vmatpush2.bf16.msra.mxu0 %v2073
    %3251 = vmatprep.subr.bf16.mxu0 %v2066
    %3252 = vmatpush2.bf16.msra.mxu0 %v2065
    %3253 = vmatprep.mubr.bf16.mxu0 %v640
    %3254 = vmatmul.mubr.bf16.gmra.mxu0 %v639
    %v3255 = vpop.f32.mrf.mxu0
    %v3256 = vadd.f32 %v607, %v3255
    %v3257 = vpop.f32.mrf.mxu0
    %v3258 = vadd.f32 %v611, %v3257
    %v3259 = vpop.f32.mrf.mxu0
    %v3260 = vpop.f32.mrf.mxu0
    %3261 = vdwg.mxu0
    %3262 = vmatprep.subr.bf16.mxu0 %v2186
    %3263 = vmatpush1.bf16.msra.mxu0 %v2185
    %3264 = vmatprep.subr.bf16.mxu0 %v2178
    %3265 = vmatpush1.bf16.msra.mxu0 %v2177
    %3266 = vmatprep.subr.bf16.mxu0 %v2170
    %3267 = vmatpush1.bf16.msra.mxu0 %v2169
    %3268 = vmatprep.subr.bf16.mxu0 %v2162
    %3269 = vmatpush1.bf16.msra.mxu0 %v2161
    %3270 = vmatprep.subr.bf16.mxu0 %v2154
    %3271 = vmatpush1.bf16.msra.mxu0 %v2153
    %3272 = vmatprep.subr.bf16.mxu0 %v2146
    %3273 = vmatpush1.bf16.msra.mxu0 %v2145
    %3274 = vmatprep.subr.bf16.mxu0 %v2138
    %3275 = vmatpush1.bf16.msra.mxu0 %v2137
    %3276 = vmatprep.subr.bf16.mxu0 %v2130
    %3277 = vmatpush1.bf16.msra.mxu0 %v2129
    %3278 = vmatprep.subr.bf16.mxu0 %v2250
    %3279 = vmatpush2.bf16.msra.mxu0 %v2249
    %3280 = vmatprep.subr.bf16.mxu0 %v2242
    %3281 = vmatpush2.bf16.msra.mxu0 %v2241
    %3282 = vmatprep.subr.bf16.mxu0 %v2234
    %3283 = vmatpush2.bf16.msra.mxu0 %v2233
    %3284 = vmatprep.subr.bf16.mxu0 %v2226
    %3285 = vmatpush2.bf16.msra.mxu0 %v2225
    %3286 = vmatprep.subr.bf16.mxu0 %v2218
    %3287 = vmatpush2.bf16.msra.mxu0 %v2217
    %3288 = vmatprep.subr.bf16.mxu0 %v2210
    %3289 = vmatpush2.bf16.msra.mxu0 %v2209
    %3290 = vmatprep.subr.bf16.mxu0 %v2202
    %3291 = vmatpush2.bf16.msra.mxu0 %v2201
    %3292 = vmatprep.subr.bf16.mxu0 %v2194
    %3293 = vmatpush2.bf16.msra.mxu0 %v2193
    %3294 = vmatprep.mubr.bf16.mxu0 %v642
    %3295 = vmatmul.mubr.bf16.gmra.mxu0 %v641
    %v3296 = vpop.f32.mrf.mxu0
    %v3297 = vadd.f32 %v3256, %v3296
    %v3298 = vpop.f32.mrf.mxu0
    %v3299 = vadd.f32 %v3258, %v3298
    %v3300 = vpop.f32.mrf.mxu0
    %v3301 = vpop.f32.mrf.mxu0
    %3302 = vdwg.mxu0
    %3303 = vmatprep.subr.bf16.mxu0 %v2314
    %3304 = vmatpush1.bf16.msra.mxu0 %v2313
    %3305 = vmatprep.subr.bf16.mxu0 %v2306
    %3306 = vmatpush1.bf16.msra.mxu0 %v2305
    %3307 = vmatprep.subr.bf16.mxu0 %v2298
    %3308 = vmatpush1.bf16.msra.mxu0 %v2297
    %3309 = vmatprep.subr.bf16.mxu0 %v2290
    %3310 = vmatpush1.bf16.msra.mxu0 %v2289
    %3311 = vmatprep.subr.bf16.mxu0 %v2282
    %3312 = vmatpush1.bf16.msra.mxu0 %v2281
    %3313 = vmatprep.subr.bf16.mxu0 %v2274
    %3314 = vmatpush1.bf16.msra.mxu0 %v2273
    %3315 = vmatprep.subr.bf16.mxu0 %v2266
    %3316 = vmatpush1.bf16.msra.mxu0 %v2265
    %3317 = vmatprep.subr.bf16.mxu0 %v2258
    %3318 = vmatpush1.bf16.msra.mxu0 %v2257
    %3319 = vmatprep.subr.bf16.mxu0 %v2378
    %3320 = vmatpush2.bf16.msra.mxu0 %v2377
    %3321 = vmatprep.subr.bf16.mxu0 %v2370
    %3322 = vmatpush2.bf16.msra.mxu0 %v2369
    %3323 = vmatprep.subr.bf16.mxu0 %v2362
    %3324 = vmatpush2.bf16.msra.mxu0 %v2361
    %3325 = vmatprep.subr.bf16.mxu0 %v2354
    %3326 = vmatpush2.bf16.msra.mxu0 %v2353
    %3327 = vmatprep.subr.bf16.mxu0 %v2346
    %3328 = vmatpush2.bf16.msra.mxu0 %v2345
    %3329 = vmatprep.subr.bf16.mxu0 %v2338
    %3330 = vmatpush2.bf16.msra.mxu0 %v2337
    %3331 = vmatprep.subr.bf16.mxu0 %v2330
    %3332 = vmatpush2.bf16.msra.mxu0 %v2329
    %3333 = vmatprep.subr.bf16.mxu0 %v2322
    %3334 = vmatpush2.bf16.msra.mxu0 %v2321
    %3335 = vmatprep.mubr.bf16.mxu0 %v644
    %3336 = vmatmul.mubr.bf16.gmra.mxu0 %v643
    %v3337 = vpop.f32.mrf.mxu0
    %v3338 = vadd.f32 %v3297, %v3337
    %v3339 = vpop.f32.mrf.mxu0
    %v3340 = vadd.f32 %v3299, %v3339
    %v3341 = vpop.f32.mrf.mxu0
    %v3342 = vpop.f32.mrf.mxu0
    %3343 = vdwg.mxu0
    %3344 = vmatprep.subr.bf16.mxu0 %v2442
    %3345 = vmatpush1.bf16.msra.mxu0 %v2441
    %3346 = vmatprep.subr.bf16.mxu0 %v2434
    %3347 = vmatpush1.bf16.msra.mxu0 %v2433
    %3348 = vmatprep.subr.bf16.mxu0 %v2426
    %3349 = vmatpush1.bf16.msra.mxu0 %v2425
    %3350 = vmatprep.subr.bf16.mxu0 %v2418
    %3351 = vmatpush1.bf16.msra.mxu0 %v2417
    %3352 = vmatprep.subr.bf16.mxu0 %v2410
    %3353 = vmatpush1.bf16.msra.mxu0 %v2409
    %3354 = vmatprep.subr.bf16.mxu0 %v2402
    %3355 = vmatpush1.bf16.msra.mxu0 %v2401
    %3356 = vmatprep.subr.bf16.mxu0 %v2394
    %3357 = vmatpush1.bf16.msra.mxu0 %v2393
    %3358 = vmatprep.subr.bf16.mxu0 %v2386
    %3359 = vmatpush1.bf16.msra.mxu0 %v2385
    %3360 = vmatprep.subr.bf16.mxu0 0
    %3361 = vmatpush2.bf16.msra.mxu0 0
    %3362 = vmatprep.subr.bf16.mxu0 0
    %3363 = vmatpush2.bf16.msra.mxu0 0
    %3364 = vmatprep.subr.bf16.mxu0 0
    %3365 = vmatpush2.bf16.msra.mxu0 0
    %3366 = vmatprep.subr.bf16.mxu0 0
    %3367 = vmatpush2.bf16.msra.mxu0 0
    %3368 = vmatprep.subr.bf16.mxu0 0
    %3369 = vmatpush2.bf16.msra.mxu0 0
    %3370 = vmatprep.subr.bf16.mxu0 0
    %3371 = vmatpush2.bf16.msra.mxu0 0
    %3372 = vmatprep.subr.bf16.mxu0 0
    %3373 = vmatpush2.bf16.msra.mxu0 0
    %3374 = vmatprep.subr.bf16.mxu0 0
    %3375 = vmatpush2.bf16.msra.mxu0 0
    %3376 = vmatprep.mubr.bf16.mxu0 0
    %3377 = vmatmul.mubr.bf16.gmra.mxu0 %v645
    %v3378 = vpop.f32.mrf.mxu0
    %v3379 = vadd.f32 %v3338, %v3378
    %v3380 = vpop.f32.mrf.mxu0
    %v3381 = vadd.f32 %v3340, %v3380
    %v3382 = vpop.f32.mrf.mxu0
    %v3383 = vpop.f32.mrf.mxu0
    %3384 = vdwg.mxu0
    %3385 = vmatprep.subr.bf16.mxu0 %v2060
    %3386 = vmatpush1.bf16.msra.mxu0 %v2059
    %3387 = vmatprep.subr.bf16.mxu0 %v2052
    %3388 = vmatpush1.bf16.msra.mxu0 %v2051
    %3389 = vmatprep.subr.bf16.mxu0 %v2044
    %3390 = vmatpush1.bf16.msra.mxu0 %v2043
    %3391 = vmatprep.subr.bf16.mxu0 %v2036
    %3392 = vmatpush1.bf16.msra.mxu0 %v2035
    %3393 = vmatprep.subr.bf16.mxu0 %v2028
    %3394 = vmatpush1.bf16.msra.mxu0 %v2027
    %3395 = vmatprep.subr.bf16.mxu0 %v2020
    %3396 = vmatpush1.bf16.msra.mxu0 %v2019
    %3397 = vmatprep.subr.bf16.mxu0 %v2012
    %3398 = vmatpush1.bf16.msra.mxu0 %v2011
    %3399 = vmatprep.subr.bf16.mxu0 %v2004
    %3400 = vmatpush1.bf16.msra.mxu0 %v2003
    %3401 = vmatprep.subr.bf16.mxu0 %v2124
    %3402 = vmatpush2.bf16.msra.mxu0 %v2123
    %3403 = vmatprep.subr.bf16.mxu0 %v2116
    %3404 = vmatpush2.bf16.msra.mxu0 %v2115
    %3405 = vmatprep.subr.bf16.mxu0 %v2108
    %3406 = vmatpush2.bf16.msra.mxu0 %v2107
    %3407 = vmatprep.subr.bf16.mxu0 %v2100
    %3408 = vmatpush2.bf16.msra.mxu0 %v2099
    %3409 = vmatprep.subr.bf16.mxu0 %v2092
    %3410 = vmatpush2.bf16.msra.mxu0 %v2091
    %3411 = vmatprep.subr.bf16.mxu0 %v2084
    %3412 = vmatpush2.bf16.msra.mxu0 %v2083
    %3413 = vmatprep.subr.bf16.mxu0 %v2076
    %3414 = vmatpush2.bf16.msra.mxu0 %v2075
    %3415 = vmatprep.subr.bf16.mxu0 %v2068
    %3416 = vmatpush2.bf16.msra.mxu0 %v2067
    %3417 = vmatprep.mubr.bf16.mxu0 %v640
    %3418 = vmatmul.mubr.bf16.gmra.mxu0 %v639
    %v3419 = vpop.f32.mrf.mxu0
    %v3420 = vadd.f32 %v615, %v3419
    %v3421 = vpop.f32.mrf.mxu0
    %v3422 = vadd.f32 %v619, %v3421
    %v3423 = vpop.f32.mrf.mxu0
    %v3424 = vpop.f32.mrf.mxu0
    %3425 = vdwg.mxu0
    %3426 = vmatprep.subr.bf16.mxu0 %v2188
    %3427 = vmatpush1.bf16.msra.mxu0 %v2187
    %3428 = vmatprep.subr.bf16.mxu0 %v2180
    %3429 = vmatpush1.bf16.msra.mxu0 %v2179
    %3430 = vmatprep.subr.bf16.mxu0 %v2172
    %3431 = vmatpush1.bf16.msra.mxu0 %v2171
    %3432 = vmatprep.subr.bf16.mxu0 %v2164
    %3433 = vmatpush1.bf16.msra.mxu0 %v2163
    %3434 = vmatprep.subr.bf16.mxu0 %v2156
    %3435 = vmatpush1.bf16.msra.mxu0 %v2155
    %3436 = vmatprep.subr.bf16.mxu0 %v2148
    %3437 = vmatpush1.bf16.msra.mxu0 %v2147
    %3438 = vmatprep.subr.bf16.mxu0 %v2140
    %3439 = vmatpush1.bf16.msra.mxu0 %v2139
    %3440 = vmatprep.subr.bf16.mxu0 %v2132
    %3441 = vmatpush1.bf16.msra.mxu0 %v2131
    %3442 = vmatprep.subr.bf16.mxu0 %v2252
    %3443 = vmatpush2.bf16.msra.mxu0 %v2251
    %3444 = vmatprep.subr.bf16.mxu0 %v2244
    %3445 = vmatpush2.bf16.msra.mxu0 %v2243
    %3446 = vmatprep.subr.bf16.mxu0 %v2236
    %3447 = vmatpush2.bf16.msra.mxu0 %v2235
    %3448 = vmatprep.subr.bf16.mxu0 %v2228
    %3449 = vmatpush2.bf16.msra.mxu0 %v2227
    %3450 = vmatprep.subr.bf16.mxu0 %v2220
    %3451 = vmatpush2.bf16.msra.mxu0 %v2219
    %3452 = vmatprep.subr.bf16.mxu0 %v2212
    %3453 = vmatpush2.bf16.msra.mxu0 %v2211
    %3454 = vmatprep.subr.bf16.mxu0 %v2204
    %3455 = vmatpush2.bf16.msra.mxu0 %v2203
    %3456 = vmatprep.subr.bf16.mxu0 %v2196
    %3457 = vmatpush2.bf16.msra.mxu0 %v2195
    %3458 = vmatprep.mubr.bf16.mxu0 %v642
    %3459 = vmatmul.mubr.bf16.gmra.mxu0 %v641
    %v3460 = vpop.f32.mrf.mxu0
    %v3461 = vadd.f32 %v3420, %v3460
    %v3462 = vpop.f32.mrf.mxu0
    %v3463 = vadd.f32 %v3422, %v3462
    %v3464 = vpop.f32.mrf.mxu0
    %v3465 = vpop.f32.mrf.mxu0
    %3466 = vdwg.mxu0
    %3467 = vmatprep.subr.bf16.mxu0 %v2316
    %3468 = vmatpush1.bf16.msra.mxu0 %v2315
    %3469 = vmatprep.subr.bf16.mxu0 %v2308
    %3470 = vmatpush1.bf16.msra.mxu0 %v2307
    %3471 = vmatprep.subr.bf16.mxu0 %v2300
    %3472 = vmatpush1.bf16.msra.mxu0 %v2299
    %3473 = vmatprep.subr.bf16.mxu0 %v2292
    %3474 = vmatpush1.bf16.msra.mxu0 %v2291
    %3475 = vmatprep.subr.bf16.mxu0 %v2284
    %3476 = vmatpush1.bf16.msra.mxu0 %v2283
    %3477 = vmatprep.subr.bf16.mxu0 %v2276
    %3478 = vmatpush1.bf16.msra.mxu0 %v2275
    %3479 = vmatprep.subr.bf16.mxu0 %v2268
    %3480 = vmatpush1.bf16.msra.mxu0 %v2267
    %3481 = vmatprep.subr.bf16.mxu0 %v2260
    %3482 = vmatpush1.bf16.msra.mxu0 %v2259
    %3483 = vmatprep.subr.bf16.mxu0 %v2380
    %3484 = vmatpush2.bf16.msra.mxu0 %v2379
    %3485 = vmatprep.subr.bf16.mxu0 %v2372
    %3486 = vmatpush2.bf16.msra.mxu0 %v2371
    %3487 = vmatprep.subr.bf16.mxu0 %v2364
    %3488 = vmatpush2.bf16.msra.mxu0 %v2363
    %3489 = vmatprep.subr.bf16.mxu0 %v2356
    %3490 = vmatpush2.bf16.msra.mxu0 %v2355
    %3491 = vmatprep.subr.bf16.mxu0 %v2348
    %3492 = vmatpush2.bf16.msra.mxu0 %v2347
    %3493 = vmatprep.subr.bf16.mxu0 %v2340
    %3494 = vmatpush2.bf16.msra.mxu0 %v2339
    %3495 = vmatprep.subr.bf16.mxu0 %v2332
    %3496 = vmatpush2.bf16.msra.mxu0 %v2331
    %3497 = vmatprep.subr.bf16.mxu0 %v2324
    %3498 = vmatpush2.bf16.msra.mxu0 %v2323
    %3499 = vmatprep.mubr.bf16.mxu0 %v644
    %3500 = vmatmul.mubr.bf16.gmra.mxu0 %v643
    %v3501 = vpop.f32.mrf.mxu0
    %v3502 = vadd.f32 %v3461, %v3501
    %v3503 = vpop.f32.mrf.mxu0
    %v3504 = vadd.f32 %v3463, %v3503
    %v3505 = vpop.f32.mrf.mxu0
    %v3506 = vpop.f32.mrf.mxu0
    %3507 = vdwg.mxu0
    %3508 = vmatprep.subr.bf16.mxu0 %v2444
    %3509 = vmatpush1.bf16.msra.mxu0 %v2443
    %3510 = vmatprep.subr.bf16.mxu0 %v2436
    %3511 = vmatpush1.bf16.msra.mxu0 %v2435
    %3512 = vmatprep.subr.bf16.mxu0 %v2428
    %3513 = vmatpush1.bf16.msra.mxu0 %v2427
    %3514 = vmatprep.subr.bf16.mxu0 %v2420
    %3515 = vmatpush1.bf16.msra.mxu0 %v2419
    %3516 = vmatprep.subr.bf16.mxu0 %v2412
    %3517 = vmatpush1.bf16.msra.mxu0 %v2411
    %3518 = vmatprep.subr.bf16.mxu0 %v2404
    %3519 = vmatpush1.bf16.msra.mxu0 %v2403
    %3520 = vmatprep.subr.bf16.mxu0 %v2396
    %3521 = vmatpush1.bf16.msra.mxu0 %v2395
    %3522 = vmatprep.subr.bf16.mxu0 %v2388
    %3523 = vmatpush1.bf16.msra.mxu0 %v2387
    %3524 = vmatprep.subr.bf16.mxu0 0
    %3525 = vmatpush2.bf16.msra.mxu0 0
    %3526 = vmatprep.subr.bf16.mxu0 0
    %3527 = vmatpush2.bf16.msra.mxu0 0
    %3528 = vmatprep.subr.bf16.mxu0 0
    %3529 = vmatpush2.bf16.msra.mxu0 0
    %3530 = vmatprep.subr.bf16.mxu0 0
    %3531 = vmatpush2.bf16.msra.mxu0 0
    %3532 = vmatprep.subr.bf16.mxu0 0
    %3533 = vmatpush2.bf16.msra.mxu0 0
    %3534 = vmatprep.subr.bf16.mxu0 0
    %3535 = vmatpush2.bf16.msra.mxu0 0
    %3536 = vmatprep.subr.bf16.mxu0 0
    %3537 = vmatpush2.bf16.msra.mxu0 0
    %3538 = vmatprep.subr.bf16.mxu0 0
    %3539 = vmatpush2.bf16.msra.mxu0 0
    %3540 = vmatprep.mubr.bf16.mxu0 0
    %3541 = vmatmul.mubr.bf16.gmra.mxu0 %v645
    %v3542 = vpop.f32.mrf.mxu0
    %v3543 = vadd.f32 %v3502, %v3542
    %v3544 = vpop.f32.mrf.mxu0
    %v3545 = vadd.f32 %v3504, %v3544
    %v3546 = vpop.f32.mrf.mxu0
    %v3547 = vpop.f32.mrf.mxu0
    %3548 = vdwg.mxu0
    %v3549 = vmax.f32 %v3051, 0.0
    %v3550 = vmax.f32 %v3053, 0.0
    %v3551 = vmax.f32 %v3215, 0.0
    %v3552 = vmax.f32 %v3217, 0.0
    %v3553 = vmax.f32 %v3379, 0.0
    %v3554 = vmax.f32 %v3381, 0.0
    %v3555 = vmax.f32 %v3543, 0.0
    %v3556 = vmax.f32 %v3545, 0.0
    %v3557 = vpack.c.bf16 %v3549, %v3549
    %v3558 = vpack.c.bf16 %v3550, %v3550
    %v3559 = vpack.c.bf16 %v3551, %v3551
    %v3560 = vpack.c.bf16 %v3552, %v3552
    %v3561 = vpack.c.bf16 %v3553, %v3553
    %v3562 = vpack.c.bf16 %v3554, %v3554
    %v3563 = vpack.c.bf16 %v3555, %v3555
    %v3564 = vpack.c.bf16 %v3556, %v3556
    %v3565 = vld [vmem:[#allocation6] sm:$0xff]
    %v3566 = vld [vmem:[#allocation6 + $0x8] sm:$0xff]
    %v3567 = vld [vmem:[#allocation6 + $0x10] sm:$0xff]
    %v3568 = vld [vmem:[#allocation6 + $0x18] sm:$0xff]
    %v3569 = vld [vmem:[#allocation6 + $0x20] sm:$0xff]
    %v3570 = vld [vmem:[#allocation6 + $0x28] sm:$0xff]
    %v3571 = vld [vmem:[#allocation6 + $0x30] sm:$0xff]
    %v3572 = vld [vmem:[#allocation6 + $0x38] sm:$0xff]
    %v3573 = vld [vmem:[#allocation6 + $0x40] sm:$0xff]
    %v3574 = vld [vmem:[#allocation6 + $0x48] sm:$0xff]
    %v3575 = vld [vmem:[#allocation6 + $0x50] sm:$0xff]
    %v3576 = vld [vmem:[#allocation6 + $0x58] sm:$0xff]
    %v3577 = vld [vmem:[#allocation6 + $0x60] sm:$0xff]
    %v3578 = vld [vmem:[#allocation6 + $0x68] sm:$0xff]
    %v3579 = vld [vmem:[#allocation6 + $0x70] sm:$0xff]
    %v3580 = vld [vmem:[#allocation6 + $0x78] sm:$0xff]
    %v3581 = vld [vmem:[#allocation6 + $0x80] sm:$0xff]
    %v3582 = vld [vmem:[#allocation6 + $0x88] sm:$0xff]
    %v3583 = vld [vmem:[#allocation6 + $0x90] sm:$0xff]
    %v3584 = vld [vmem:[#allocation6 + $0x98] sm:$0xff]
    %v3585 = vld [vmem:[#allocation6 + $0xa0] sm:$0xff]
    %v3586 = vld [vmem:[#allocation6 + $0xa8] sm:$0xff]
    %v3587 = vld [vmem:[#allocation6 + $0xb0] sm:$0xff]
    %v3588 = vld [vmem:[#allocation6 + $0xb8] sm:$0xff]
    %v3589 = vld [vmem:[#allocation6 + $0xc0] sm:$0xff]
    %v3590 = vld [vmem:[#allocation6 + $0xc8] sm:$0xff]
    %v3591 = vld [vmem:[#allocation6 + $0xd0] sm:$0xff]
    %v3592 = vld [vmem:[#allocation6 + $0xd8] sm:$0xff]
    %v3593 = vld [vmem:[#allocation6 + $0xe0] sm:$0xff]
    %v3594 = vld [vmem:[#allocation6 + $0xe8] sm:$0xff]
    %v3595 = vld [vmem:[#allocation6 + $0xf0] sm:$0xff]
    %v3596 = vld [vmem:[#allocation6 + $0xf8] sm:$0xff]
    %v3597 = vld [vmem:[#allocation6 + $0x100] sm:$0xff]
    %v3598 = vld [vmem:[#allocation6 + $0x108] sm:$0xff]
    %v3599 = vld [vmem:[#allocation6 + $0x110] sm:$0xff]
    %v3600 = vld [vmem:[#allocation6 + $0x118] sm:$0xff]
    %v3601 = vld [vmem:[#allocation6 + $0x120] sm:$0xff]
    %v3602 = vld [vmem:[#allocation6 + $0x128] sm:$0xff]
    %v3603 = vld [vmem:[#allocation6 + $0x130] sm:$0xff]
    %v3604 = vld [vmem:[#allocation6 + $0x138] sm:$0xff]
    %v3605 = vld [vmem:[#allocation6 + $0x140] sm:$0xff]
    %v3606 = vld [vmem:[#allocation6 + $0x148] sm:$0xff]
    %v3607 = vld [vmem:[#allocation6 + $0x150] sm:$0xff]
    %v3608 = vld [vmem:[#allocation6 + $0x158] sm:$0xff]
    %v3609 = vld [vmem:[#allocation6 + $0x160] sm:$0xff]
    %v3610 = vld [vmem:[#allocation6 + $0x168] sm:$0xff]
    %v3611 = vld [vmem:[#allocation6 + $0x170] sm:$0xff]
    %v3612 = vld [vmem:[#allocation6 + $0x178] sm:$0xff]
    %v3613 = vld [vmem:[#allocation6 + $0x180] sm:$0xff]
    %v3614 = vld [vmem:[#allocation6 + $0x188] sm:$0xff]
    %v3615 = vld [vmem:[#allocation6 + $0x190] sm:$0xff]
    %v3616 = vld [vmem:[#allocation6 + $0x198] sm:$0xff]
    %v3617 = vld [vmem:[#allocation6 + $0x1a0] sm:$0xff]
    %v3618 = vld [vmem:[#allocation6 + $0x1a8] sm:$0xff]
    %v3619 = vld [vmem:[#allocation6 + $0x1b0] sm:$0xff]
    %v3620 = vld [vmem:[#allocation6 + $0x1b8] sm:$0xff]
    %v3621 = vld [vmem:[#allocation6 + $0x1c0] sm:$0xff]
    %v3622 = vld [vmem:[#allocation6 + $0x1c8] sm:$0xff]
    %v3623 = vld [vmem:[#allocation6 + $0x1d0] sm:$0xff]
    %v3624 = vld [vmem:[#allocation6 + $0x1d8] sm:$0xff]
    %v3625 = vld [vmem:[#allocation6 + $0x1e0] sm:$0xff]
    %v3626 = vld [vmem:[#allocation6 + $0x1e8] sm:$0xff]
    %v3627 = vld [vmem:[#allocation6 + $0x1f0] sm:$0xff]
    %v3628 = vld [vmem:[#allocation6 + $0x1f8] sm:$0xff]
    %v3629 = vld [vmem:[#allocation6 + $0x200] sm:$0xff]
    %v3630 = vld [vmem:[#allocation6 + $0x208] sm:$0xff]
    %v3631 = vld [vmem:[#allocation6 + $0x210] sm:$0xff]
    %v3632 = vld [vmem:[#allocation6 + $0x218] sm:$0xff]
    %v3633 = vld [vmem:[#allocation6 + $0x220] sm:$0xff]
    %v3634 = vld [vmem:[#allocation6 + $0x228] sm:$0xff]
    %v3635 = vld [vmem:[#allocation6 + $0x230] sm:$0xff]
    %v3636 = vld [vmem:[#allocation6 + $0x238] sm:$0xff]
    %v3637 = vld [vmem:[#allocation6 + $0x240] sm:$0xff]
    %v3638 = vld [vmem:[#allocation6 + $0x248] sm:$0xff]
    %v3639 = vld [vmem:[#allocation6 + $0x250] sm:$0xff]
    %v3640 = vld [vmem:[#allocation6 + $0x258] sm:$0xff]
    %v3641 = vld [vmem:[#allocation6 + $0x260] sm:$0xff]
    %v3642 = vld [vmem:[#allocation6 + $0x268] sm:$0xff]
    %v3643 = vld [vmem:[#allocation6 + $0x270] sm:$0xff]
    %v3644 = vld [vmem:[#allocation6 + $0x278] sm:$0xff]
    %v3645 = vld [vmem:[#allocation6 + $0x280] sm:$0xff]
    %v3646 = vld [vmem:[#allocation6 + $0x288] sm:$0xff]
    %v3647 = vld [vmem:[#allocation6 + $0x290] sm:$0xff]
    %v3648 = vld [vmem:[#allocation6 + $0x298] sm:$0xff]
    %v3649 = vld [vmem:[#allocation6 + $0x2a0] sm:$0xff]
    %v3650 = vld [vmem:[#allocation6 + $0x2a8] sm:$0xff]
    %v3651 = vld [vmem:[#allocation6 + $0x2b0] sm:$0xff]
    %v3652 = vld [vmem:[#allocation6 + $0x2b8] sm:$0xff]
    %v3653 = vld [vmem:[#allocation6 + $0x2c0] sm:$0xff]
    %v3654 = vld [vmem:[#allocation6 + $0x2c8] sm:$0xff]
    %v3655 = vld [vmem:[#allocation6 + $0x2d0] sm:$0xff]
    %v3656 = vld [vmem:[#allocation6 + $0x2d8] sm:$0xff]
    %v3657 = vld [vmem:[#allocation6 + $0x2e0] sm:$0xff]
    %v3658 = vld [vmem:[#allocation6 + $0x2e8] sm:$0xff]
    %v3659 = vld [vmem:[#allocation6 + $0x2f0] sm:$0xff]
    %v3660 = vld [vmem:[#allocation6 + $0x2f8] sm:$0xff]
    %v3661 = vld [vmem:[#allocation6 + $0x300] sm:$0xff]
    %v3662 = vld [vmem:[#allocation6 + $0x308] sm:$0xff]
    %v3663 = vld [vmem:[#allocation6 + $0x310] sm:$0xff]
    %v3664 = vld [vmem:[#allocation6 + $0x318] sm:$0xff]
    %v3665 = vld [vmem:[#allocation6 + $0x320] sm:$0xff]
    %v3666 = vld [vmem:[#allocation6 + $0x328] sm:$0xff]
    %v3667 = vld [vmem:[#allocation6 + $0x330] sm:$0xff]
    %v3668 = vld [vmem:[#allocation6 + $0x338] sm:$0xff]
    %v3669 = vld [vmem:[#allocation6 + $0x340] sm:$0xff]
    %v3670 = vld [vmem:[#allocation6 + $0x348] sm:$0xff]
    %v3671 = vld [vmem:[#allocation6 + $0x350] sm:$0xff]
    %v3672 = vld [vmem:[#allocation6 + $0x358] sm:$0xff]
    %v3673 = vld [vmem:[#allocation6 + $0x360] sm:$0xff]
    %v3674 = vld [vmem:[#allocation6 + $0x368] sm:$0xff]
    %v3675 = vld [vmem:[#allocation6 + $0x370] sm:$0xff]
    %v3676 = vld [vmem:[#allocation6 + $0x378] sm:$0xff]
    %v3677 = vld [vmem:[#allocation6 + $0x380] sm:$0xff]
    %v3678 = vld [vmem:[#allocation6 + $0x388] sm:$0xff]
    %v3679 = vld [vmem:[#allocation6 + $0x390] sm:$0xff]
    %v3680 = vld [vmem:[#allocation6 + $0x398] sm:$0xff]
    %v3681 = vld [vmem:[#allocation6 + $0x3a0] sm:$0xff]
    %v3682 = vld [vmem:[#allocation6 + $0x3a8] sm:$0xff]
    %v3683 = vld [vmem:[#allocation6 + $0x3b0] sm:$0xff]
    %v3684 = vld [vmem:[#allocation6 + $0x3b8] sm:$0xff]
    %v3685 = vld [vmem:[#allocation6 + $0x3c0] sm:$0xff]
    %v3686 = vld [vmem:[#allocation6 + $0x3c8] sm:$0xff]
    %v3687 = vld [vmem:[#allocation6 + $0x3d0] sm:$0xff]
    %v3688 = vld [vmem:[#allocation6 + $0x3d8] sm:$0xff]
    %v3689 = vld [vmem:[#allocation6 + $0x3e0] sm:$0xff]
    %v3690 = vld [vmem:[#allocation6 + $0x3e8] sm:$0xff]
    %v3691 = vld [vmem:[#allocation6 + $0x3f0] sm:$0xff]
    %v3692 = vld [vmem:[#allocation6 + $0x3f8] sm:$0xff]
    %v3693 = vld [vmem:[#allocation6 + $0x400] sm:$0xff]
    %v3694 = vld [vmem:[#allocation6 + $0x408] sm:$0xff]
    %v3695 = vld [vmem:[#allocation6 + $0x410] sm:$0xff]
    %v3696 = vld [vmem:[#allocation6 + $0x418] sm:$0xff]
    %v3697 = vld [vmem:[#allocation6 + $0x420] sm:$0xff]
    %v3698 = vld [vmem:[#allocation6 + $0x428] sm:$0xff]
    %v3699 = vld [vmem:[#allocation6 + $0x430] sm:$0xff]
    %v3700 = vld [vmem:[#allocation6 + $0x438] sm:$0xff]
    %v3701 = vld [vmem:[#allocation6 + $0x440] sm:$0xff]
    %v3702 = vld [vmem:[#allocation6 + $0x448] sm:$0xff]
    %v3703 = vld [vmem:[#allocation6 + $0x450] sm:$0xff]
    %v3704 = vld [vmem:[#allocation6 + $0x458] sm:$0xff]
    %v3705 = vld [vmem:[#allocation6 + $0x460] sm:$0xff]
    %v3706 = vld [vmem:[#allocation6 + $0x468] sm:$0xff]
    %v3707 = vld [vmem:[#allocation6 + $0x470] sm:$0xff]
    %v3708 = vld [vmem:[#allocation6 + $0x478] sm:$0xff]
    %v3709 = vld [vmem:[#allocation6 + $0x480] sm:$0xff]
    %v3710 = vld [vmem:[#allocation6 + $0x488] sm:$0xff]
    %v3711 = vld [vmem:[#allocation6 + $0x490] sm:$0xff]
    %v3712 = vld [vmem:[#allocation6 + $0x498] sm:$0xff]
    %v3713 = vld [vmem:[#allocation6 + $0x4a0] sm:$0xff]
    %v3714 = vld [vmem:[#allocation6 + $0x4a8] sm:$0xff]
    %v3715 = vld [vmem:[#allocation6 + $0x4b0] sm:$0xff]
    %v3716 = vld [vmem:[#allocation6 + $0x4b8] sm:$0xff]
    %v3717 = vld [vmem:[#allocation6 + $0x4c0] sm:$0xff]
    %v3718 = vld [vmem:[#allocation6 + $0x4c8] sm:$0xff]
    %v3719 = vld [vmem:[#allocation6 + $0x4d0] sm:$0xff]
    %v3720 = vld [vmem:[#allocation6 + $0x4d8] sm:$0xff]
    %v3721 = vld [vmem:[#allocation6 + $0x4e0] sm:$0xff]
    %v3722 = vld [vmem:[#allocation6 + $0x4e8] sm:$0xff]
    %v3723 = vld [vmem:[#allocation6 + $0x4f0] sm:$0xff]
    %v3724 = vld [vmem:[#allocation6 + $0x4f8] sm:$0xff]
    %v3725 = vld [vmem:[#allocation6 + $0x500] sm:$0xff]
    %v3726 = vld [vmem:[#allocation6 + $0x508] sm:$0xff]
    %v3727 = vld [vmem:[#allocation6 + $0x510] sm:$0xff]
    %v3728 = vld [vmem:[#allocation6 + $0x518] sm:$0xff]
    %v3729 = vld [vmem:[#allocation6 + $0x520] sm:$0xff]
    %v3730 = vld [vmem:[#allocation6 + $0x528] sm:$0xff]
    %v3731 = vld [vmem:[#allocation6 + $0x530] sm:$0xff]
    %v3732 = vld [vmem:[#allocation6 + $0x538] sm:$0xff]
    %v3733 = vld [vmem:[#allocation6 + $0x540] sm:$0xff]
    %v3734 = vld [vmem:[#allocation6 + $0x548] sm:$0xff]
    %v3735 = vld [vmem:[#allocation6 + $0x550] sm:$0xff]
    %v3736 = vld [vmem:[#allocation6 + $0x558] sm:$0xff]
    %v3737 = vld [vmem:[#allocation6 + $0x560] sm:$0xff]
    %v3738 = vld [vmem:[#allocation6 + $0x568] sm:$0xff]
    %v3739 = vld [vmem:[#allocation6 + $0x570] sm:$0xff]
    %v3740 = vld [vmem:[#allocation6 + $0x578] sm:$0xff]
    %v3741 = vld [vmem:[#allocation6 + $0x580] sm:$0xff]
    %v3742 = vld [vmem:[#allocation6 + $0x588] sm:$0xff]
    %v3743 = vld [vmem:[#allocation6 + $0x590] sm:$0xff]
    %v3744 = vld [vmem:[#allocation6 + $0x598] sm:$0xff]
    %v3745 = vld [vmem:[#allocation6 + $0x5a0] sm:$0xff]
    %v3746 = vld [vmem:[#allocation6 + $0x5a8] sm:$0xff]
    %v3747 = vld [vmem:[#allocation6 + $0x5b0] sm:$0xff]
    %v3748 = vld [vmem:[#allocation6 + $0x5b8] sm:$0xff]
    %v3749 = vld [vmem:[#allocation6 + $0x5c0] sm:$0xff]
    %v3750 = vld [vmem:[#allocation6 + $0x5c8] sm:$0xff]
    %v3751 = vld [vmem:[#allocation6 + $0x5d0] sm:$0xff]
    %v3752 = vld [vmem:[#allocation6 + $0x5d8] sm:$0xff]
    %v3753 = vld [vmem:[#allocation6 + $0x5e0] sm:$0xff]
    %v3754 = vld [vmem:[#allocation6 + $0x5e8] sm:$0xff]
    %v3755 = vld [vmem:[#allocation6 + $0x5f0] sm:$0xff]
    %v3756 = vld [vmem:[#allocation6 + $0x5f8] sm:$0xff]
    %v3757 = vld [vmem:[#allocation6 + $0x600] sm:$0xff]
    %v3758 = vld [vmem:[#allocation6 + $0x608] sm:$0xff]
    %v3759 = vld [vmem:[#allocation6 + $0x610] sm:$0xff]
    %v3760 = vld [vmem:[#allocation6 + $0x618] sm:$0xff]
    %v3761 = vld [vmem:[#allocation6 + $0x620] sm:$0xff]
    %v3762 = vld [vmem:[#allocation6 + $0x628] sm:$0xff]
    %v3763 = vld [vmem:[#allocation6 + $0x630] sm:$0xff]
    %v3764 = vld [vmem:[#allocation6 + $0x638] sm:$0xff]
    %v3765 = vld [vmem:[#allocation6 + $0x640] sm:$0xff]
    %v3766 = vld [vmem:[#allocation6 + $0x648] sm:$0xff]
    %v3767 = vld [vmem:[#allocation6 + $0x650] sm:$0xff]
    %v3768 = vld [vmem:[#allocation6 + $0x658] sm:$0xff]
    %v3769 = vld [vmem:[#allocation6 + $0x660] sm:$0xff]
    %v3770 = vld [vmem:[#allocation6 + $0x668] sm:$0xff]
    %v3771 = vld [vmem:[#allocation6 + $0x670] sm:$0xff]
    %v3772 = vld [vmem:[#allocation6 + $0x678] sm:$0xff]
    %v3773 = vld [vmem:[#allocation6 + $0x680] sm:$0xff]
    %v3774 = vld [vmem:[#allocation6 + $0x688] sm:$0xff]
    %v3775 = vld [vmem:[#allocation6 + $0x690] sm:$0xff]
    %v3776 = vld [vmem:[#allocation6 + $0x698] sm:$0xff]
    %v3777 = vld [vmem:[#allocation6 + $0x6a0] sm:$0xff]
    %v3778 = vld [vmem:[#allocation6 + $0x6a8] sm:$0xff]
    %v3779 = vld [vmem:[#allocation6 + $0x6b0] sm:$0xff]
    %v3780 = vld [vmem:[#allocation6 + $0x6b8] sm:$0xff]
    %v3781 = vld [vmem:[#allocation6 + $0x6c0] sm:$0xff]
    %v3782 = vld [vmem:[#allocation6 + $0x6c8] sm:$0xff]
    %v3783 = vld [vmem:[#allocation6 + $0x6d0] sm:$0xff]
    %v3784 = vld [vmem:[#allocation6 + $0x6d8] sm:$0xff]
    %v3785 = vld [vmem:[#allocation6 + $0x6e0] sm:$0xff]
    %v3786 = vld [vmem:[#allocation6 + $0x6e8] sm:$0xff]
    %v3787 = vld [vmem:[#allocation6 + $0x6f0] sm:$0xff]
    %v3788 = vld [vmem:[#allocation6 + $0x6f8] sm:$0xff]
    %v3789 = vld [vmem:[#allocation6 + $0x700] sm:$0xff]
    %v3790 = vld [vmem:[#allocation6 + $0x708] sm:$0xff]
    %v3791 = vld [vmem:[#allocation6 + $0x710] sm:$0xff]
    %v3792 = vld [vmem:[#allocation6 + $0x718] sm:$0xff]
    %v3793 = vld [vmem:[#allocation6 + $0x720] sm:$0xff]
    %v3794 = vld [vmem:[#allocation6 + $0x728] sm:$0xff]
    %v3795 = vld [vmem:[#allocation6 + $0x730] sm:$0xff]
    %v3796 = vld [vmem:[#allocation6 + $0x738] sm:$0xff]
    %v3797 = vld [vmem:[#allocation6 + $0x740] sm:$0xff]
    %v3798 = vld [vmem:[#allocation6 + $0x748] sm:$0xff]
    %v3799 = vld [vmem:[#allocation6 + $0x750] sm:$0xff]
    %v3800 = vld [vmem:[#allocation6 + $0x758] sm:$0xff]
    %v3801 = vld [vmem:[#allocation6 + $0x760] sm:$0xff]
    %v3802 = vld [vmem:[#allocation6 + $0x768] sm:$0xff]
    %v3803 = vld [vmem:[#allocation6 + $0x770] sm:$0xff]
    %v3804 = vld [vmem:[#allocation6 + $0x778] sm:$0xff]
    %v3805 = vld [vmem:[#allocation6 + $0x780] sm:$0xff]
    %v3806 = vld [vmem:[#allocation6 + $0x788] sm:$0xff]
    %v3807 = vld [vmem:[#allocation6 + $0x790] sm:$0xff]
    %v3808 = vld [vmem:[#allocation6 + $0x798] sm:$0xff]
    %v3809 = vld [vmem:[#allocation6 + $0x7a0] sm:$0xff]
    %v3810 = vld [vmem:[#allocation6 + $0x7a8] sm:$0xff]
    %v3811 = vld [vmem:[#allocation6 + $0x7b0] sm:$0xff]
    %v3812 = vld [vmem:[#allocation6 + $0x7b8] sm:$0xff]
    %v3813 = vld [vmem:[#allocation6 + $0x7c0] sm:$0xff]
    %v3814 = vld [vmem:[#allocation6 + $0x7c8] sm:$0xff]
    %v3815 = vld [vmem:[#allocation6 + $0x7d0] sm:$0xff]
    %v3816 = vld [vmem:[#allocation6 + $0x7d8] sm:$0xff]
    %v3817 = vld [vmem:[#allocation6 + $0x7e0] sm:$0xff]
    %v3818 = vld [vmem:[#allocation6 + $0x7e8] sm:$0xff]
    %v3819 = vld [vmem:[#allocation6 + $0x7f0] sm:$0xff]
    %v3820 = vld [vmem:[#allocation6 + $0x7f8] sm:$0xff]
    %v3821 = vld [vmem:[#allocation6 + $0x800] sm:$0xff]
    %v3822 = vld [vmem:[#allocation6 + $0x808] sm:$0xff]
    %v3823 = vld [vmem:[#allocation6 + $0x810] sm:$0xff]
    %v3824 = vld [vmem:[#allocation6 + $0x818] sm:$0xff]
    %v3825 = vld [vmem:[#allocation6 + $0x820] sm:$0xff]
    %v3826 = vld [vmem:[#allocation6 + $0x828] sm:$0xff]
    %v3827 = vld [vmem:[#allocation6 + $0x830] sm:$0xff]
    %v3828 = vld [vmem:[#allocation6 + $0x838] sm:$0xff]
    %v3829 = vld [vmem:[#allocation6 + $0x840] sm:$0xff]
    %v3830 = vld [vmem:[#allocation6 + $0x848] sm:$0xff]
    %v3831 = vld [vmem:[#allocation6 + $0x850] sm:$0xff]
    %v3832 = vld [vmem:[#allocation6 + $0x858] sm:$0xff]
    %v3833 = vld [vmem:[#allocation6 + $0x860] sm:$0xff]
    %v3834 = vld [vmem:[#allocation6 + $0x868] sm:$0xff]
    %v3835 = vld [vmem:[#allocation6 + $0x870] sm:$0xff]
    %v3836 = vld [vmem:[#allocation6 + $0x878] sm:$0xff]
    %v3837 = vld [vmem:[#allocation6 + $0x880] sm:$0xff]
    %v3838 = vld [vmem:[#allocation6 + $0x888] sm:$0xff]
    %v3839 = vld [vmem:[#allocation6 + $0x890] sm:$0xff]
    %v3840 = vld [vmem:[#allocation6 + $0x898] sm:$0xff]
    %v3841 = vld [vmem:[#allocation6 + $0x8a0] sm:$0xff]
    %v3842 = vld [vmem:[#allocation6 + $0x8a8] sm:$0xff]
    %v3843 = vld [vmem:[#allocation6 + $0x8b0] sm:$0xff]
    %v3844 = vld [vmem:[#allocation6 + $0x8b8] sm:$0xff]
    %v3845 = vld [vmem:[#allocation6 + $0x8c0] sm:$0xff]
    %v3846 = vld [vmem:[#allocation6 + $0x8c8] sm:$0xff]
    %v3847 = vld [vmem:[#allocation6 + $0x8d0] sm:$0xff]
    %v3848 = vld [vmem:[#allocation6 + $0x8d8] sm:$0xff]
    %v3849 = vld [vmem:[#allocation6 + $0x8e0] sm:$0xff]
    %v3850 = vld [vmem:[#allocation6 + $0x8e8] sm:$0xff]
    %v3851 = vld [vmem:[#allocation6 + $0x8f0] sm:$0xff]
    %v3852 = vld [vmem:[#allocation6 + $0x8f8] sm:$0xff]
    %v3853 = vld [vmem:[#allocation6 + $0x900] sm:$0xff]
    %v3854 = vld [vmem:[#allocation6 + $0x908] sm:$0xff]
    %v3855 = vld [vmem:[#allocation6 + $0x910] sm:$0xff]
    %v3856 = vld [vmem:[#allocation6 + $0x918] sm:$0xff]
    %v3857 = vld [vmem:[#allocation6 + $0x920] sm:$0xff]
    %v3858 = vld [vmem:[#allocation6 + $0x928] sm:$0xff]
    %v3859 = vld [vmem:[#allocation6 + $0x930] sm:$0xff]
    %v3860 = vld [vmem:[#allocation6 + $0x938] sm:$0xff]
    %v3861 = vld [vmem:[#allocation6 + $0x940] sm:$0xff]
    %v3862 = vld [vmem:[#allocation6 + $0x948] sm:$0xff]
    %v3863 = vld [vmem:[#allocation6 + $0x950] sm:$0xff]
    %v3864 = vld [vmem:[#allocation6 + $0x958] sm:$0xff]
    %v3865 = vld [vmem:[#allocation6 + $0x960] sm:$0xff]
    %v3866 = vld [vmem:[#allocation6 + $0x968] sm:$0xff]
    %v3867 = vld [vmem:[#allocation6 + $0x970] sm:$0xff]
    %v3868 = vld [vmem:[#allocation6 + $0x978] sm:$0xff]
    %v3869 = vld [vmem:[#allocation6 + $0x980] sm:$0xff]
    %v3870 = vld [vmem:[#allocation6 + $0x988] sm:$0xff]
    %v3871 = vld [vmem:[#allocation6 + $0x990] sm:$0xff]
    %v3872 = vld [vmem:[#allocation6 + $0x998] sm:$0xff]
    %v3873 = vld [vmem:[#allocation6 + $0x9a0] sm:$0xff]
    %v3874 = vld [vmem:[#allocation6 + $0x9a8] sm:$0xff]
    %v3875 = vld [vmem:[#allocation6 + $0x9b0] sm:$0xff]
    %v3876 = vld [vmem:[#allocation6 + $0x9b8] sm:$0xff]
    %v3877 = vld [vmem:[#allocation6 + $0x9c0] sm:$0xff]
    %v3878 = vld [vmem:[#allocation6 + $0x9c8] sm:$0xff]
    %v3879 = vld [vmem:[#allocation6 + $0x9d0] sm:$0xff]
    %v3880 = vld [vmem:[#allocation6 + $0x9d8] sm:$0xff]
    %v3881 = vld [vmem:[#allocation6 + $0x9e0] sm:$0xff]
    %v3882 = vld [vmem:[#allocation6 + $0x9e8] sm:$0xff]
    %v3883 = vld [vmem:[#allocation6 + $0x9f0] sm:$0xff]
    %v3884 = vld [vmem:[#allocation6 + $0x9f8] sm:$0xff]
    %v3885 = vld [vmem:[#allocation6 + $0xa00] sm:$0xff]
    %v3886 = vld [vmem:[#allocation6 + $0xa08] sm:$0xff]
    %v3887 = vld [vmem:[#allocation6 + $0xa10] sm:$0xff]
    %v3888 = vld [vmem:[#allocation6 + $0xa18] sm:$0xff]
    %v3889 = vld [vmem:[#allocation6 + $0xa20] sm:$0xff]
    %v3890 = vld [vmem:[#allocation6 + $0xa28] sm:$0xff]
    %v3891 = vld [vmem:[#allocation6 + $0xa30] sm:$0xff]
    %v3892 = vld [vmem:[#allocation6 + $0xa38] sm:$0xff]
    %v3893 = vld [vmem:[#allocation6 + $0xa40] sm:$0xff]
    %v3894 = vld [vmem:[#allocation6 + $0xa48] sm:$0xff]
    %v3895 = vld [vmem:[#allocation6 + $0xa50] sm:$0xff]
    %v3896 = vld [vmem:[#allocation6 + $0xa58] sm:$0xff]
    %v3897 = vld [vmem:[#allocation6 + $0xa60] sm:$0xff]
    %v3898 = vld [vmem:[#allocation6 + $0xa68] sm:$0xff]
    %v3899 = vld [vmem:[#allocation6 + $0xa70] sm:$0xff]
    %v3900 = vld [vmem:[#allocation6 + $0xa78] sm:$0xff]
    %v3901 = vld [vmem:[#allocation6 + $0xa80] sm:$0xff]
    %v3902 = vld [vmem:[#allocation6 + $0xa88] sm:$0xff]
    %v3903 = vld [vmem:[#allocation6 + $0xa90] sm:$0xff]
    %v3904 = vld [vmem:[#allocation6 + $0xa98] sm:$0xff]
    %v3905 = vld [vmem:[#allocation6 + $0xaa0] sm:$0xff]
    %v3906 = vld [vmem:[#allocation6 + $0xaa8] sm:$0xff]
    %v3907 = vld [vmem:[#allocation6 + $0xab0] sm:$0xff]
    %v3908 = vld [vmem:[#allocation6 + $0xab8] sm:$0xff]
    %v3909 = vld [vmem:[#allocation6 + $0xac0] sm:$0xff]
    %v3910 = vld [vmem:[#allocation6 + $0xac8] sm:$0xff]
    %v3911 = vld [vmem:[#allocation6 + $0xad0] sm:$0xff]
    %v3912 = vld [vmem:[#allocation6 + $0xad8] sm:$0xff]
    %v3913 = vld [vmem:[#allocation6 + $0xae0] sm:$0xff]
    %v3914 = vld [vmem:[#allocation6 + $0xae8] sm:$0xff]
    %v3915 = vld [vmem:[#allocation6 + $0xaf0] sm:$0xff]
    %v3916 = vld [vmem:[#allocation6 + $0xaf8] sm:$0xff]
    %v3917 = vld [vmem:[#allocation6 + $0xb00] sm:$0xff]
    %v3918 = vld [vmem:[#allocation6 + $0xb08] sm:$0xff]
    %v3919 = vld [vmem:[#allocation6 + $0xb10] sm:$0xff]
    %v3920 = vld [vmem:[#allocation6 + $0xb18] sm:$0xff]
    %v3921 = vld [vmem:[#allocation6 + $0xb20] sm:$0xff]
    %v3922 = vld [vmem:[#allocation6 + $0xb28] sm:$0xff]
    %v3923 = vld [vmem:[#allocation6 + $0xb30] sm:$0xff]
    %v3924 = vld [vmem:[#allocation6 + $0xb38] sm:$0xff]
    %v3925 = vld [vmem:[#allocation6 + $0xb40] sm:$0xff]
    %v3926 = vld [vmem:[#allocation6 + $0xb48] sm:$0xff]
    %v3927 = vld [vmem:[#allocation6 + $0xb50] sm:$0xff]
    %v3928 = vld [vmem:[#allocation6 + $0xb58] sm:$0xff]
    %v3929 = vld [vmem:[#allocation6 + $0xb60] sm:$0xff]
    %v3930 = vld [vmem:[#allocation6 + $0xb68] sm:$0xff]
    %v3931 = vld [vmem:[#allocation6 + $0xb70] sm:$0xff]
    %v3932 = vld [vmem:[#allocation6 + $0xb78] sm:$0xff]
    %v3933 = vld [vmem:[#allocation6 + $0xb80] sm:$0xff]
    %v3934 = vld [vmem:[#allocation6 + $0xb88] sm:$0xff]
    %v3935 = vld [vmem:[#allocation6 + $0xb90] sm:$0xff]
    %v3936 = vld [vmem:[#allocation6 + $0xb98] sm:$0xff]
    %v3937 = vld [vmem:[#allocation6 + $0xba0] sm:$0xff]
    %v3938 = vld [vmem:[#allocation6 + $0xba8] sm:$0xff]
    %v3939 = vld [vmem:[#allocation6 + $0xbb0] sm:$0xff]
    %v3940 = vld [vmem:[#allocation6 + $0xbb8] sm:$0xff]
    %v3941 = vld [vmem:[#allocation6 + $0xbc0] sm:$0xff]
    %v3942 = vld [vmem:[#allocation6 + $0xbc8] sm:$0xff]
    %v3943 = vld [vmem:[#allocation6 + $0xbd0] sm:$0xff]
    %v3944 = vld [vmem:[#allocation6 + $0xbd8] sm:$0xff]
    %v3945 = vld [vmem:[#allocation6 + $0xbe0] sm:$0xff]
    %v3946 = vld [vmem:[#allocation6 + $0xbe8] sm:$0xff]
    %v3947 = vld [vmem:[#allocation6 + $0xbf0] sm:$0xff]
    %v3948 = vld [vmem:[#allocation6 + $0xbf8] sm:$0xff]
    %v3949 = vld [vmem:[#allocation6 + $0xc00] sm:$0xff]
    %v3950 = vld [vmem:[#allocation6 + $0xc08] sm:$0xff]
    %v3951 = vld [vmem:[#allocation6 + $0xc10] sm:$0xff]
    %v3952 = vld [vmem:[#allocation6 + $0xc18] sm:$0xff]
    %v3953 = vld [vmem:[#allocation6 + $0xc20] sm:$0xff]
    %v3954 = vld [vmem:[#allocation6 + $0xc28] sm:$0xff]
    %v3955 = vld [vmem:[#allocation6 + $0xc30] sm:$0xff]
    %v3956 = vld [vmem:[#allocation6 + $0xc38] sm:$0xff]
    %v3957 = vld [vmem:[#allocation6 + $0xc40] sm:$0xff]
    %v3958 = vld [vmem:[#allocation6 + $0xc48] sm:$0xff]
    %v3959 = vld [vmem:[#allocation6 + $0xc50] sm:$0xff]
    %v3960 = vld [vmem:[#allocation6 + $0xc58] sm:$0xff]
    %v3961 = vld [vmem:[#allocation6 + $0xc60] sm:$0xff]
    %v3962 = vld [vmem:[#allocation6 + $0xc68] sm:$0xff]
    %v3963 = vld [vmem:[#allocation6 + $0xc70] sm:$0xff]
    %v3964 = vld [vmem:[#allocation6 + $0xc78] sm:$0xff]
    %v3965 = vld [vmem:[#allocation6 + $0xc80] sm:$0xff]
    %v3966 = vld [vmem:[#allocation6 + $0xc88] sm:$0xff]
    %v3967 = vld [vmem:[#allocation6 + $0xc90] sm:$0xff]
    %v3968 = vld [vmem:[#allocation6 + $0xc98] sm:$0xff]
    %v3969 = vld [vmem:[#allocation6 + $0xca0] sm:$0xff]
    %v3970 = vld [vmem:[#allocation6 + $0xca8] sm:$0xff]
    %v3971 = vld [vmem:[#allocation6 + $0xcb0] sm:$0xff]
    %v3972 = vld [vmem:[#allocation6 + $0xcb8] sm:$0xff]
    %v3973 = vld [vmem:[#allocation6 + $0xcc0] sm:$0xff]
    %v3974 = vld [vmem:[#allocation6 + $0xcc8] sm:$0xff]
    %v3975 = vld [vmem:[#allocation6 + $0xcd0] sm:$0xff]
    %v3976 = vld [vmem:[#allocation6 + $0xcd8] sm:$0xff]
    %v3977 = vld [vmem:[#allocation6 + $0xce0] sm:$0xff]
    %v3978 = vld [vmem:[#allocation6 + $0xce8] sm:$0xff]
    %v3979 = vld [vmem:[#allocation6 + $0xcf0] sm:$0xff]
    %v3980 = vld [vmem:[#allocation6 + $0xcf8] sm:$0xff]
    %v3981 = vld [vmem:[#allocation6 + $0xd00] sm:$0xff]
    %v3982 = vld [vmem:[#allocation6 + $0xd08] sm:$0xff]
    %v3983 = vld [vmem:[#allocation6 + $0xd10] sm:$0xff]
    %v3984 = vld [vmem:[#allocation6 + $0xd18] sm:$0xff]
    %v3985 = vld [vmem:[#allocation6 + $0xd20] sm:$0xff]
    %v3986 = vld [vmem:[#allocation6 + $0xd28] sm:$0xff]
    %v3987 = vld [vmem:[#allocation6 + $0xd30] sm:$0xff]
    %v3988 = vld [vmem:[#allocation6 + $0xd38] sm:$0xff]
    %v3989 = vld [vmem:[#allocation6 + $0xd40] sm:$0xff]
    %v3990 = vld [vmem:[#allocation6 + $0xd48] sm:$0xff]
    %v3991 = vld [vmem:[#allocation6 + $0xd50] sm:$0xff]
    %v3992 = vld [vmem:[#allocation6 + $0xd58] sm:$0xff]
    %v3993 = vld [vmem:[#allocation6 + $0xd60] sm:$0xff]
    %v3994 = vld [vmem:[#allocation6 + $0xd68] sm:$0xff]
    %v3995 = vld [vmem:[#allocation6 + $0xd70] sm:$0xff]
    %v3996 = vld [vmem:[#allocation6 + $0xd78] sm:$0xff]
    %v3997 = vld [vmem:[#allocation6 + $0xd80] sm:$0xff]
    %v3998 = vld [vmem:[#allocation6 + $0xd88] sm:$0xff]
    %v3999 = vld [vmem:[#allocation6 + $0xd90] sm:$0xff]
    %v4000 = vld [vmem:[#allocation6 + $0xd98] sm:$0xff]
    %v4001 = vld [vmem:[#allocation6 + $0xda0] sm:$0xff]
    %v4002 = vld [vmem:[#allocation6 + $0xda8] sm:$0xff]
    %v4003 = vld [vmem:[#allocation6 + $0xdb0] sm:$0xff]
    %v4004 = vld [vmem:[#allocation6 + $0xdb8] sm:$0xff]
    %v4005 = vld [vmem:[#allocation6 + $0xdc0] sm:$0xff]
    %v4006 = vld [vmem:[#allocation6 + $0xdc8] sm:$0xff]
    %v4007 = vld [vmem:[#allocation6 + $0xdd0] sm:$0xff]
    %v4008 = vld [vmem:[#allocation6 + $0xdd8] sm:$0xff]
    %v4009 = vld [vmem:[#allocation6 + $0xde0] sm:$0xff]
    %v4010 = vld [vmem:[#allocation6 + $0xde8] sm:$0xff]
    %v4011 = vld [vmem:[#allocation6 + $0xdf0] sm:$0xff]
    %v4012 = vld [vmem:[#allocation6 + $0xdf8] sm:$0xff]
    %v4013 = vld [vmem:[#allocation6 + $0xe00] sm:$0xff]
    %v4014 = vld [vmem:[#allocation6 + $0xe08] sm:$0xff]
    %v4015 = vld [vmem:[#allocation6 + $0xe10] sm:$0xff]
    %v4016 = vld [vmem:[#allocation6 + $0xe18] sm:$0xff]
    %v4017 = vld [vmem:[#allocation6 + $0xe20] sm:$0xff]
    %v4018 = vld [vmem:[#allocation6 + $0xe28] sm:$0xff]
    %v4019 = vld [vmem:[#allocation6 + $0xe30] sm:$0xff]
    %v4020 = vld [vmem:[#allocation6 + $0xe38] sm:$0xff]
    %v4021 = vld [vmem:[#allocation6 + $0xe40] sm:$0xff]
    %v4022 = vld [vmem:[#allocation6 + $0xe48] sm:$0xff]
    %v4023 = vld [vmem:[#allocation6 + $0xe50] sm:$0xff]
    %v4024 = vld [vmem:[#allocation6 + $0xe58] sm:$0xff]
    %v4025 = vld [vmem:[#allocation6 + $0xe60] sm:$0xff]
    %v4026 = vld [vmem:[#allocation6 + $0xe68] sm:$0xff]
    %v4027 = vld [vmem:[#allocation6 + $0xe70] sm:$0xff]
    %v4028 = vld [vmem:[#allocation6 + $0xe78] sm:$0xff]
    %v4029 = vld [vmem:[#allocation6 + $0xe80] sm:$0xff]
    %v4030 = vld [vmem:[#allocation6 + $0xe88] sm:$0xff]
    %v4031 = vld [vmem:[#allocation6 + $0xe90] sm:$0xff]
    %v4032 = vld [vmem:[#allocation6 + $0xe98] sm:$0xff]
    %v4033 = vld [vmem:[#allocation6 + $0xea0] sm:$0xff]
    %v4034 = vld [vmem:[#allocation6 + $0xea8] sm:$0xff]
    %v4035 = vld [vmem:[#allocation6 + $0xeb0] sm:$0xff]
    %v4036 = vld [vmem:[#allocation6 + $0xeb8] sm:$0xff]
    %v4037 = vld [vmem:[#allocation6 + $0xec0] sm:$0xff]
    %v4038 = vld [vmem:[#allocation6 + $0xec8] sm:$0xff]
    %v4039 = vld [vmem:[#allocation6 + $0xed0] sm:$0xff]
    %v4040 = vld [vmem:[#allocation6 + $0xed8] sm:$0xff]
    %v4041 = vld [vmem:[#allocation6 + $0xee0] sm:$0xff]
    %v4042 = vld [vmem:[#allocation6 + $0xee8] sm:$0xff]
    %v4043 = vld [vmem:[#allocation6 + $0xef0] sm:$0xff]
    %v4044 = vld [vmem:[#allocation6 + $0xef8] sm:$0xff]
    %v4045 = vld [vmem:[#allocation6 + $0xf00] sm:$0xff]
    %v4046 = vld [vmem:[#allocation6 + $0xf08] sm:$0xff]
    %v4047 = vld [vmem:[#allocation6 + $0xf10] sm:$0xff]
    %v4048 = vld [vmem:[#allocation6 + $0xf18] sm:$0xff]
    %v4049 = vld [vmem:[#allocation6 + $0xf20] sm:$0xff]
    %v4050 = vld [vmem:[#allocation6 + $0xf28] sm:$0xff]
    %v4051 = vld [vmem:[#allocation6 + $0xf30] sm:$0xff]
    %v4052 = vld [vmem:[#allocation6 + $0xf38] sm:$0xff]
    %v4053 = vld [vmem:[#allocation6 + $0xf40] sm:$0xff]
    %v4054 = vld [vmem:[#allocation6 + $0xf48] sm:$0xff]
    %v4055 = vld [vmem:[#allocation6 + $0xf50] sm:$0xff]
    %v4056 = vld [vmem:[#allocation6 + $0xf58] sm:$0xff]
    %v4057 = vld [vmem:[#allocation6 + $0xf60] sm:$0xff]
    %v4058 = vld [vmem:[#allocation6 + $0xf68] sm:$0xff]
    %v4059 = vld [vmem:[#allocation6 + $0xf70] sm:$0xff]
    %v4060 = vld [vmem:[#allocation6 + $0xf78] sm:$0xff]
    %v4061 = vld [vmem:[#allocation6 + $0xf80] sm:$0xff]
    %v4062 = vld [vmem:[#allocation6 + $0xf88] sm:$0xff]
    %v4063 = vld [vmem:[#allocation6 + $0xf90] sm:$0xff]
    %v4064 = vld [vmem:[#allocation6 + $0xf98] sm:$0xff]
    %v4065 = vld [vmem:[#allocation6 + $0xfa0] sm:$0xff]
    %v4066 = vld [vmem:[#allocation6 + $0xfa8] sm:$0xff]
    %v4067 = vld [vmem:[#allocation6 + $0xfb0] sm:$0xff]
    %v4068 = vld [vmem:[#allocation6 + $0xfb8] sm:$0xff]
    %v4069 = vld [vmem:[#allocation6 + $0xfc0] sm:$0xff]
    %v4070 = vld [vmem:[#allocation6 + $0xfc8] sm:$0xff]
    %v4071 = vld [vmem:[#allocation6 + $0xfd0] sm:$0xff]
    %v4072 = vld [vmem:[#allocation6 + $0xfd8] sm:$0xff]
    %v4073 = vld [vmem:[#allocation6 + $0xfe0] sm:$0xff]
    %v4074 = vld [vmem:[#allocation6 + $0xfe8] sm:$0xff]
    %v4075 = vld [vmem:[#allocation6 + $0xff0] sm:$0xff]
    %v4076 = vld [vmem:[#allocation6 + $0xff8] sm:$0xff]
    %v4077 = vld [vmem:[#allocation7] sm:$0xff]
    %v4079 = vlaneseq
    %v4080 = vshrl.u32 %v4079, 7
    %v4081 = vsub.s32 0, %v4080
    %v4082 = vrot.slane %v4077, %v4081
    %v4083 = vlaneseq
    %v4084 = vshrl.u32 %v4083, 7
    %v4085 = vsub.s32 1, %v4084
    %v4086 = vrot.slane %v4077, %v4085
    %v4087 = vlaneseq
    %v4088 = vshrl.u32 %v4087, 7
    %v4089 = vsub.s32 2, %v4088
    %v4090 = vrot.slane %v4077, %v4089
    %v4091 = vlaneseq
    %v4092 = vshrl.u32 %v4091, 7
    %v4093 = vsub.s32 3, %v4092
    %v4094 = vrot.slane %v4077, %v4093
    %v4095 = vlaneseq
    %v4096 = vshrl.u32 %v4095, 7
    %v4097 = vsub.s32 4, %v4096
    %v4098 = vrot.slane %v4077, %v4097
    %v4099 = vlaneseq
    %v4100 = vshrl.u32 %v4099, 7
    %v4101 = vsub.s32 5, %v4100
    %v4102 = vrot.slane %v4077, %v4101
    %v4103 = vlaneseq
    %v4104 = vshrl.u32 %v4103, 7
    %v4105 = vsub.s32 6, %v4104
    %v4106 = vrot.slane %v4077, %v4105
    %v4107 = vlaneseq
    %v4108 = vshrl.u32 %v4107, 7
    %v4109 = vsub.s32 7, %v4108
    %v4110 = vrot.slane %v4077, %v4109
    %v4631 = vunpack.c.l.b16 %v3565
    %v4632 = vunpack.c.h.b16 %v3565
    %v4633 = vunpack.c.l.b16 %v3566
    %v4634 = vunpack.c.h.b16 %v3566
    %v4635 = vunpack.c.l.b16 %v3567
    %v4636 = vunpack.c.h.b16 %v3567
    %v4637 = vunpack.c.l.b16 %v3568
    %v4638 = vunpack.c.h.b16 %v3568
    %v4639 = vunpack.c.l.b16 %v3569
    %v4640 = vunpack.c.h.b16 %v3569
    %v4641 = vunpack.c.l.b16 %v3570
    %v4642 = vunpack.c.h.b16 %v3570
    %v4643 = vunpack.c.l.b16 %v3571
    %v4644 = vunpack.c.h.b16 %v3571
    %v4645 = vunpack.c.l.b16 %v3572
    %v4646 = vunpack.c.h.b16 %v3572
    %v4647 = vunpack.c.l.b16 %v3573
    %v4648 = vunpack.c.h.b16 %v3573
    %v4649 = vunpack.c.l.b16 %v3574
    %v4650 = vunpack.c.h.b16 %v3574
    %v4651 = vunpack.c.l.b16 %v3575
    %v4652 = vunpack.c.h.b16 %v3575
    %v4653 = vunpack.c.l.b16 %v3576
    %v4654 = vunpack.c.h.b16 %v3576
    %v4655 = vunpack.c.l.b16 %v3577
    %v4656 = vunpack.c.h.b16 %v3577
    %v4657 = vunpack.c.l.b16 %v3578
    %v4658 = vunpack.c.h.b16 %v3578
    %v4659 = vunpack.c.l.b16 %v3579
    %v4660 = vunpack.c.h.b16 %v3579
    %v4661 = vunpack.c.l.b16 %v3580
    %v4662 = vunpack.c.h.b16 %v3580
    %v4663 = vunpack.c.l.b16 %v3581
    %v4664 = vunpack.c.h.b16 %v3581
    %v4665 = vunpack.c.l.b16 %v3582
    %v4666 = vunpack.c.h.b16 %v3582
    %v4667 = vunpack.c.l.b16 %v3583
    %v4668 = vunpack.c.h.b16 %v3583
    %v4669 = vunpack.c.l.b16 %v3584
    %v4670 = vunpack.c.h.b16 %v3584
    %v4671 = vunpack.c.l.b16 %v3585
    %v4672 = vunpack.c.h.b16 %v3585
    %v4673 = vunpack.c.l.b16 %v3586
    %v4674 = vunpack.c.h.b16 %v3586
    %v4675 = vunpack.c.l.b16 %v3587
    %v4676 = vunpack.c.h.b16 %v3587
    %v4677 = vunpack.c.l.b16 %v3588
    %v4678 = vunpack.c.h.b16 %v3588
    %v4679 = vunpack.c.l.b16 %v3589
    %v4680 = vunpack.c.h.b16 %v3589
    %v4681 = vunpack.c.l.b16 %v3590
    %v4682 = vunpack.c.h.b16 %v3590
    %v4683 = vunpack.c.l.b16 %v3591
    %v4684 = vunpack.c.h.b16 %v3591
    %v4685 = vunpack.c.l.b16 %v3592
    %v4686 = vunpack.c.h.b16 %v3592
    %v4687 = vunpack.c.l.b16 %v3593
    %v4688 = vunpack.c.h.b16 %v3593
    %v4689 = vunpack.c.l.b16 %v3594
    %v4690 = vunpack.c.h.b16 %v3594
    %v4691 = vunpack.c.l.b16 %v3595
    %v4692 = vunpack.c.h.b16 %v3595
    %v4693 = vunpack.c.l.b16 %v3596
    %v4694 = vunpack.c.h.b16 %v3596
    %v4695 = vunpack.c.l.b16 %v3597
    %v4696 = vunpack.c.h.b16 %v3597
    %v4697 = vunpack.c.l.b16 %v3598
    %v4698 = vunpack.c.h.b16 %v3598
    %v4699 = vunpack.c.l.b16 %v3599
    %v4700 = vunpack.c.h.b16 %v3599
    %v4701 = vunpack.c.l.b16 %v3600
    %v4702 = vunpack.c.h.b16 %v3600
    %v4703 = vunpack.c.l.b16 %v3601
    %v4704 = vunpack.c.h.b16 %v3601
    %v4705 = vunpack.c.l.b16 %v3602
    %v4706 = vunpack.c.h.b16 %v3602
    %v4707 = vunpack.c.l.b16 %v3603
    %v4708 = vunpack.c.h.b16 %v3603
    %v4709 = vunpack.c.l.b16 %v3604
    %v4710 = vunpack.c.h.b16 %v3604
    %v4711 = vunpack.c.l.b16 %v3605
    %v4712 = vunpack.c.h.b16 %v3605
    %v4713 = vunpack.c.l.b16 %v3606
    %v4714 = vunpack.c.h.b16 %v3606
    %v4715 = vunpack.c.l.b16 %v3607
    %v4716 = vunpack.c.h.b16 %v3607
    %v4717 = vunpack.c.l.b16 %v3608
    %v4718 = vunpack.c.h.b16 %v3608
    %v4719 = vunpack.c.l.b16 %v3609
    %v4720 = vunpack.c.h.b16 %v3609
    %v4721 = vunpack.c.l.b16 %v3610
    %v4722 = vunpack.c.h.b16 %v3610
    %v4723 = vunpack.c.l.b16 %v3611
    %v4724 = vunpack.c.h.b16 %v3611
    %v4725 = vunpack.c.l.b16 %v3612
    %v4726 = vunpack.c.h.b16 %v3612
    %v4727 = vunpack.c.l.b16 %v3613
    %v4728 = vunpack.c.h.b16 %v3613
    %v4729 = vunpack.c.l.b16 %v3614
    %v4730 = vunpack.c.h.b16 %v3614
    %v4731 = vunpack.c.l.b16 %v3615
    %v4732 = vunpack.c.h.b16 %v3615
    %v4733 = vunpack.c.l.b16 %v3616
    %v4734 = vunpack.c.h.b16 %v3616
    %v4735 = vunpack.c.l.b16 %v3617
    %v4736 = vunpack.c.h.b16 %v3617
    %v4737 = vunpack.c.l.b16 %v3618
    %v4738 = vunpack.c.h.b16 %v3618
    %v4739 = vunpack.c.l.b16 %v3619
    %v4740 = vunpack.c.h.b16 %v3619
    %v4741 = vunpack.c.l.b16 %v3620
    %v4742 = vunpack.c.h.b16 %v3620
    %v4743 = vunpack.c.l.b16 %v3621
    %v4744 = vunpack.c.h.b16 %v3621
    %v4745 = vunpack.c.l.b16 %v3622
    %v4746 = vunpack.c.h.b16 %v3622
    %v4747 = vunpack.c.l.b16 %v3623
    %v4748 = vunpack.c.h.b16 %v3623
    %v4749 = vunpack.c.l.b16 %v3624
    %v4750 = vunpack.c.h.b16 %v3624
    %v4751 = vunpack.c.l.b16 %v3625
    %v4752 = vunpack.c.h.b16 %v3625
    %v4753 = vunpack.c.l.b16 %v3626
    %v4754 = vunpack.c.h.b16 %v3626
    %v4755 = vunpack.c.l.b16 %v3627
    %v4756 = vunpack.c.h.b16 %v3627
    %v4757 = vunpack.c.l.b16 %v3628
    %v4758 = vunpack.c.h.b16 %v3628
    %v4759 = vunpack.c.l.b16 %v3629
    %v4760 = vunpack.c.h.b16 %v3629
    %v4761 = vunpack.c.l.b16 %v3630
    %v4762 = vunpack.c.h.b16 %v3630
    %v4763 = vunpack.c.l.b16 %v3631
    %v4764 = vunpack.c.h.b16 %v3631
    %v4765 = vunpack.c.l.b16 %v3632
    %v4766 = vunpack.c.h.b16 %v3632
    %v4767 = vunpack.c.l.b16 %v3633
    %v4768 = vunpack.c.h.b16 %v3633
    %v4769 = vunpack.c.l.b16 %v3634
    %v4770 = vunpack.c.h.b16 %v3634
    %v4771 = vunpack.c.l.b16 %v3635
    %v4772 = vunpack.c.h.b16 %v3635
    %v4773 = vunpack.c.l.b16 %v3636
    %v4774 = vunpack.c.h.b16 %v3636
    %v4775 = vunpack.c.l.b16 %v3637
    %v4776 = vunpack.c.h.b16 %v3637
    %v4777 = vunpack.c.l.b16 %v3638
    %v4778 = vunpack.c.h.b16 %v3638
    %v4779 = vunpack.c.l.b16 %v3639
    %v4780 = vunpack.c.h.b16 %v3639
    %v4781 = vunpack.c.l.b16 %v3640
    %v4782 = vunpack.c.h.b16 %v3640
    %v4783 = vunpack.c.l.b16 %v3641
    %v4784 = vunpack.c.h.b16 %v3641
    %v4785 = vunpack.c.l.b16 %v3642
    %v4786 = vunpack.c.h.b16 %v3642
    %v4787 = vunpack.c.l.b16 %v3643
    %v4788 = vunpack.c.h.b16 %v3643
    %v4789 = vunpack.c.l.b16 %v3644
    %v4790 = vunpack.c.h.b16 %v3644
    %v4791 = vunpack.c.l.b16 %v3645
    %v4792 = vunpack.c.h.b16 %v3645
    %v4793 = vunpack.c.l.b16 %v3646
    %v4794 = vunpack.c.h.b16 %v3646
    %v4795 = vunpack.c.l.b16 %v3647
    %v4796 = vunpack.c.h.b16 %v3647
    %v4797 = vunpack.c.l.b16 %v3648
    %v4798 = vunpack.c.h.b16 %v3648
    %v4799 = vunpack.c.l.b16 %v3649
    %v4800 = vunpack.c.h.b16 %v3649
    %v4801 = vunpack.c.l.b16 %v3650
    %v4802 = vunpack.c.h.b16 %v3650
    %v4803 = vunpack.c.l.b16 %v3651
    %v4804 = vunpack.c.h.b16 %v3651
    %v4805 = vunpack.c.l.b16 %v3652
    %v4806 = vunpack.c.h.b16 %v3652
    %v4807 = vunpack.c.l.b16 %v3653
    %v4808 = vunpack.c.h.b16 %v3653
    %v4809 = vunpack.c.l.b16 %v3654
    %v4810 = vunpack.c.h.b16 %v3654
    %v4811 = vunpack.c.l.b16 %v3655
    %v4812 = vunpack.c.h.b16 %v3655
    %v4813 = vunpack.c.l.b16 %v3656
    %v4814 = vunpack.c.h.b16 %v3656
    %v4815 = vunpack.c.l.b16 %v3657
    %v4816 = vunpack.c.h.b16 %v3657
    %v4817 = vunpack.c.l.b16 %v3658
    %v4818 = vunpack.c.h.b16 %v3658
    %v4819 = vunpack.c.l.b16 %v3659
    %v4820 = vunpack.c.h.b16 %v3659
    %v4821 = vunpack.c.l.b16 %v3660
    %v4822 = vunpack.c.h.b16 %v3660
    %v4823 = vunpack.c.l.b16 %v3661
    %v4824 = vunpack.c.h.b16 %v3661
    %v4825 = vunpack.c.l.b16 %v3662
    %v4826 = vunpack.c.h.b16 %v3662
    %v4827 = vunpack.c.l.b16 %v3663
    %v4828 = vunpack.c.h.b16 %v3663
    %v4829 = vunpack.c.l.b16 %v3664
    %v4830 = vunpack.c.h.b16 %v3664
    %v4831 = vunpack.c.l.b16 %v3665
    %v4832 = vunpack.c.h.b16 %v3665
    %v4833 = vunpack.c.l.b16 %v3666
    %v4834 = vunpack.c.h.b16 %v3666
    %v4835 = vunpack.c.l.b16 %v3667
    %v4836 = vunpack.c.h.b16 %v3667
    %v4837 = vunpack.c.l.b16 %v3668
    %v4838 = vunpack.c.h.b16 %v3668
    %v4839 = vunpack.c.l.b16 %v3669
    %v4840 = vunpack.c.h.b16 %v3669
    %v4841 = vunpack.c.l.b16 %v3670
    %v4842 = vunpack.c.h.b16 %v3670
    %v4843 = vunpack.c.l.b16 %v3671
    %v4844 = vunpack.c.h.b16 %v3671
    %v4845 = vunpack.c.l.b16 %v3672
    %v4846 = vunpack.c.h.b16 %v3672
    %v4847 = vunpack.c.l.b16 %v3673
    %v4848 = vunpack.c.h.b16 %v3673
    %v4849 = vunpack.c.l.b16 %v3674
    %v4850 = vunpack.c.h.b16 %v3674
    %v4851 = vunpack.c.l.b16 %v3675
    %v4852 = vunpack.c.h.b16 %v3675
    %v4853 = vunpack.c.l.b16 %v3676
    %v4854 = vunpack.c.h.b16 %v3676
    %v4855 = vunpack.c.l.b16 %v3677
    %v4856 = vunpack.c.h.b16 %v3677
    %v4857 = vunpack.c.l.b16 %v3678
    %v4858 = vunpack.c.h.b16 %v3678
    %v4859 = vunpack.c.l.b16 %v3679
    %v4860 = vunpack.c.h.b16 %v3679
    %v4861 = vunpack.c.l.b16 %v3680
    %v4862 = vunpack.c.h.b16 %v3680
    %v4863 = vunpack.c.l.b16 %v3681
    %v4864 = vunpack.c.h.b16 %v3681
    %v4865 = vunpack.c.l.b16 %v3682
    %v4866 = vunpack.c.h.b16 %v3682
    %v4867 = vunpack.c.l.b16 %v3683
    %v4868 = vunpack.c.h.b16 %v3683
    %v4869 = vunpack.c.l.b16 %v3684
    %v4870 = vunpack.c.h.b16 %v3684
    %v4871 = vunpack.c.l.b16 %v3685
    %v4872 = vunpack.c.h.b16 %v3685
    %v4873 = vunpack.c.l.b16 %v3686
    %v4874 = vunpack.c.h.b16 %v3686
    %v4875 = vunpack.c.l.b16 %v3687
    %v4876 = vunpack.c.h.b16 %v3687
    %v4877 = vunpack.c.l.b16 %v3688
    %v4878 = vunpack.c.h.b16 %v3688
    %v4879 = vunpack.c.l.b16 %v3689
    %v4880 = vunpack.c.h.b16 %v3689
    %v4881 = vunpack.c.l.b16 %v3690
    %v4882 = vunpack.c.h.b16 %v3690
    %v4883 = vunpack.c.l.b16 %v3691
    %v4884 = vunpack.c.h.b16 %v3691
    %v4885 = vunpack.c.l.b16 %v3692
    %v4886 = vunpack.c.h.b16 %v3692
    %v4887 = vunpack.c.l.b16 %v3693
    %v4888 = vunpack.c.h.b16 %v3693
    %v4889 = vunpack.c.l.b16 %v3694
    %v4890 = vunpack.c.h.b16 %v3694
    %v4891 = vunpack.c.l.b16 %v3695
    %v4892 = vunpack.c.h.b16 %v3695
    %v4893 = vunpack.c.l.b16 %v3696
    %v4894 = vunpack.c.h.b16 %v3696
    %v4895 = vunpack.c.l.b16 %v3697
    %v4896 = vunpack.c.h.b16 %v3697
    %v4897 = vunpack.c.l.b16 %v3698
    %v4898 = vunpack.c.h.b16 %v3698
    %v4899 = vunpack.c.l.b16 %v3699
    %v4900 = vunpack.c.h.b16 %v3699
    %v4901 = vunpack.c.l.b16 %v3700
    %v4902 = vunpack.c.h.b16 %v3700
    %v4903 = vunpack.c.l.b16 %v3701
    %v4904 = vunpack.c.h.b16 %v3701
    %v4905 = vunpack.c.l.b16 %v3702
    %v4906 = vunpack.c.h.b16 %v3702
    %v4907 = vunpack.c.l.b16 %v3703
    %v4908 = vunpack.c.h.b16 %v3703
    %v4909 = vunpack.c.l.b16 %v3704
    %v4910 = vunpack.c.h.b16 %v3704
    %v4911 = vunpack.c.l.b16 %v3705
    %v4912 = vunpack.c.h.b16 %v3705
    %v4913 = vunpack.c.l.b16 %v3706
    %v4914 = vunpack.c.h.b16 %v3706
    %v4915 = vunpack.c.l.b16 %v3707
    %v4916 = vunpack.c.h.b16 %v3707
    %v4917 = vunpack.c.l.b16 %v3708
    %v4918 = vunpack.c.h.b16 %v3708
    %v4919 = vunpack.c.l.b16 %v3709
    %v4920 = vunpack.c.h.b16 %v3709
    %v4921 = vunpack.c.l.b16 %v3710
    %v4922 = vunpack.c.h.b16 %v3710
    %v4923 = vunpack.c.l.b16 %v3711
    %v4924 = vunpack.c.h.b16 %v3711
    %v4925 = vunpack.c.l.b16 %v3712
    %v4926 = vunpack.c.h.b16 %v3712
    %v4927 = vunpack.c.l.b16 %v3713
    %v4928 = vunpack.c.h.b16 %v3713
    %v4929 = vunpack.c.l.b16 %v3714
    %v4930 = vunpack.c.h.b16 %v3714
    %v4931 = vunpack.c.l.b16 %v3715
    %v4932 = vunpack.c.h.b16 %v3715
    %v4933 = vunpack.c.l.b16 %v3716
    %v4934 = vunpack.c.h.b16 %v3716
    %v4935 = vunpack.c.l.b16 %v3717
    %v4936 = vunpack.c.h.b16 %v3717
    %v4937 = vunpack.c.l.b16 %v3718
    %v4938 = vunpack.c.h.b16 %v3718
    %v4939 = vunpack.c.l.b16 %v3719
    %v4940 = vunpack.c.h.b16 %v3719
    %v4941 = vunpack.c.l.b16 %v3720
    %v4942 = vunpack.c.h.b16 %v3720
    %v4943 = vunpack.c.l.b16 %v3721
    %v4944 = vunpack.c.h.b16 %v3721
    %v4945 = vunpack.c.l.b16 %v3722
    %v4946 = vunpack.c.h.b16 %v3722
    %v4947 = vunpack.c.l.b16 %v3723
    %v4948 = vunpack.c.h.b16 %v3723
    %v4949 = vunpack.c.l.b16 %v3724
    %v4950 = vunpack.c.h.b16 %v3724
    %v4951 = vunpack.c.l.b16 %v3725
    %v4952 = vunpack.c.h.b16 %v3725
    %v4953 = vunpack.c.l.b16 %v3726
    %v4954 = vunpack.c.h.b16 %v3726
    %v4955 = vunpack.c.l.b16 %v3727
    %v4956 = vunpack.c.h.b16 %v3727
    %v4957 = vunpack.c.l.b16 %v3728
    %v4958 = vunpack.c.h.b16 %v3728
    %v4959 = vunpack.c.l.b16 %v3729
    %v4960 = vunpack.c.h.b16 %v3729
    %v4961 = vunpack.c.l.b16 %v3730
    %v4962 = vunpack.c.h.b16 %v3730
    %v4963 = vunpack.c.l.b16 %v3731
    %v4964 = vunpack.c.h.b16 %v3731
    %v4965 = vunpack.c.l.b16 %v3732
    %v4966 = vunpack.c.h.b16 %v3732
    %v4967 = vunpack.c.l.b16 %v3733
    %v4968 = vunpack.c.h.b16 %v3733
    %v4969 = vunpack.c.l.b16 %v3734
    %v4970 = vunpack.c.h.b16 %v3734
    %v4971 = vunpack.c.l.b16 %v3735
    %v4972 = vunpack.c.h.b16 %v3735
    %v4973 = vunpack.c.l.b16 %v3736
    %v4974 = vunpack.c.h.b16 %v3736
    %v4975 = vunpack.c.l.b16 %v3737
    %v4976 = vunpack.c.h.b16 %v3737
    %v4977 = vunpack.c.l.b16 %v3738
    %v4978 = vunpack.c.h.b16 %v3738
    %v4979 = vunpack.c.l.b16 %v3739
    %v4980 = vunpack.c.h.b16 %v3739
    %v4981 = vunpack.c.l.b16 %v3740
    %v4982 = vunpack.c.h.b16 %v3740
    %v4983 = vunpack.c.l.b16 %v3741
    %v4984 = vunpack.c.h.b16 %v3741
    %v4985 = vunpack.c.l.b16 %v3742
    %v4986 = vunpack.c.h.b16 %v3742
    %v4987 = vunpack.c.l.b16 %v3743
    %v4988 = vunpack.c.h.b16 %v3743
    %v4989 = vunpack.c.l.b16 %v3744
    %v4990 = vunpack.c.h.b16 %v3744
    %v4991 = vunpack.c.l.b16 %v3745
    %v4992 = vunpack.c.h.b16 %v3745
    %v4993 = vunpack.c.l.b16 %v3746
    %v4994 = vunpack.c.h.b16 %v3746
    %v4995 = vunpack.c.l.b16 %v3747
    %v4996 = vunpack.c.h.b16 %v3747
    %v4997 = vunpack.c.l.b16 %v3748
    %v4998 = vunpack.c.h.b16 %v3748
    %v4999 = vunpack.c.l.b16 %v3749
    %v5000 = vunpack.c.h.b16 %v3749
    %v5001 = vunpack.c.l.b16 %v3750
    %v5002 = vunpack.c.h.b16 %v3750
    %v5003 = vunpack.c.l.b16 %v3751
    %v5004 = vunpack.c.h.b16 %v3751
    %v5005 = vunpack.c.l.b16 %v3752
    %v5006 = vunpack.c.h.b16 %v3752
    %v5007 = vunpack.c.l.b16 %v3753
    %v5008 = vunpack.c.h.b16 %v3753
    %v5009 = vunpack.c.l.b16 %v3754
    %v5010 = vunpack.c.h.b16 %v3754
    %v5011 = vunpack.c.l.b16 %v3755
    %v5012 = vunpack.c.h.b16 %v3755
    %v5013 = vunpack.c.l.b16 %v3756
    %v5014 = vunpack.c.h.b16 %v3756
    %v5015 = vunpack.c.l.b16 %v3757
    %v5016 = vunpack.c.h.b16 %v3757
    %v5017 = vunpack.c.l.b16 %v3758
    %v5018 = vunpack.c.h.b16 %v3758
    %v5019 = vunpack.c.l.b16 %v3759
    %v5020 = vunpack.c.h.b16 %v3759
    %v5021 = vunpack.c.l.b16 %v3760
    %v5022 = vunpack.c.h.b16 %v3760
    %v5023 = vunpack.c.l.b16 %v3761
    %v5024 = vunpack.c.h.b16 %v3761
    %v5025 = vunpack.c.l.b16 %v3762
    %v5026 = vunpack.c.h.b16 %v3762
    %v5027 = vunpack.c.l.b16 %v3763
    %v5028 = vunpack.c.h.b16 %v3763
    %v5029 = vunpack.c.l.b16 %v3764
    %v5030 = vunpack.c.h.b16 %v3764
    %v5031 = vunpack.c.l.b16 %v3765
    %v5032 = vunpack.c.h.b16 %v3765
    %v5033 = vunpack.c.l.b16 %v3766
    %v5034 = vunpack.c.h.b16 %v3766
    %v5035 = vunpack.c.l.b16 %v3767
    %v5036 = vunpack.c.h.b16 %v3767
    %v5037 = vunpack.c.l.b16 %v3768
    %v5038 = vunpack.c.h.b16 %v3768
    %v5039 = vunpack.c.l.b16 %v3769
    %v5040 = vunpack.c.h.b16 %v3769
    %v5041 = vunpack.c.l.b16 %v3770
    %v5042 = vunpack.c.h.b16 %v3770
    %v5043 = vunpack.c.l.b16 %v3771
    %v5044 = vunpack.c.h.b16 %v3771
    %v5045 = vunpack.c.l.b16 %v3772
    %v5046 = vunpack.c.h.b16 %v3772
    %v5047 = vunpack.c.l.b16 %v3773
    %v5048 = vunpack.c.h.b16 %v3773
    %v5049 = vunpack.c.l.b16 %v3774
    %v5050 = vunpack.c.h.b16 %v3774
    %v5051 = vunpack.c.l.b16 %v3775
    %v5052 = vunpack.c.h.b16 %v3775
    %v5053 = vunpack.c.l.b16 %v3776
    %v5054 = vunpack.c.h.b16 %v3776
    %v5055 = vunpack.c.l.b16 %v3777
    %v5056 = vunpack.c.h.b16 %v3777
    %v5057 = vunpack.c.l.b16 %v3778
    %v5058 = vunpack.c.h.b16 %v3778
    %v5059 = vunpack.c.l.b16 %v3779
    %v5060 = vunpack.c.h.b16 %v3779
    %v5061 = vunpack.c.l.b16 %v3780
    %v5062 = vunpack.c.h.b16 %v3780
    %v5063 = vunpack.c.l.b16 %v3781
    %v5064 = vunpack.c.h.b16 %v3781
    %v5065 = vunpack.c.l.b16 %v3782
    %v5066 = vunpack.c.h.b16 %v3782
    %v5067 = vunpack.c.l.b16 %v3783
    %v5068 = vunpack.c.h.b16 %v3783
    %v5069 = vunpack.c.l.b16 %v3784
    %v5070 = vunpack.c.h.b16 %v3784
    %v5071 = vunpack.c.l.b16 %v3785
    %v5072 = vunpack.c.h.b16 %v3785
    %v5073 = vunpack.c.l.b16 %v3786
    %v5074 = vunpack.c.h.b16 %v3786
    %v5075 = vunpack.c.l.b16 %v3787
    %v5076 = vunpack.c.h.b16 %v3787
    %v5077 = vunpack.c.l.b16 %v3788
    %v5078 = vunpack.c.h.b16 %v3788
    %v5079 = vunpack.c.l.b16 %v3789
    %v5080 = vunpack.c.h.b16 %v3789
    %v5081 = vunpack.c.l.b16 %v3790
    %v5082 = vunpack.c.h.b16 %v3790
    %v5083 = vunpack.c.l.b16 %v3791
    %v5084 = vunpack.c.h.b16 %v3791
    %v5085 = vunpack.c.l.b16 %v3792
    %v5086 = vunpack.c.h.b16 %v3792
    %v5087 = vunpack.c.l.b16 %v3793
    %v5088 = vunpack.c.h.b16 %v3793
    %v5089 = vunpack.c.l.b16 %v3794
    %v5090 = vunpack.c.h.b16 %v3794
    %v5091 = vunpack.c.l.b16 %v3795
    %v5092 = vunpack.c.h.b16 %v3795
    %v5093 = vunpack.c.l.b16 %v3796
    %v5094 = vunpack.c.h.b16 %v3796
    %v5095 = vunpack.c.l.b16 %v3797
    %v5096 = vunpack.c.h.b16 %v3797
    %v5097 = vunpack.c.l.b16 %v3798
    %v5098 = vunpack.c.h.b16 %v3798
    %v5099 = vunpack.c.l.b16 %v3799
    %v5100 = vunpack.c.h.b16 %v3799
    %v5101 = vunpack.c.l.b16 %v3800
    %v5102 = vunpack.c.h.b16 %v3800
    %v5103 = vunpack.c.l.b16 %v3801
    %v5104 = vunpack.c.h.b16 %v3801
    %v5105 = vunpack.c.l.b16 %v3802
    %v5106 = vunpack.c.h.b16 %v3802
    %v5107 = vunpack.c.l.b16 %v3803
    %v5108 = vunpack.c.h.b16 %v3803
    %v5109 = vunpack.c.l.b16 %v3804
    %v5110 = vunpack.c.h.b16 %v3804
    %v5111 = vunpack.c.l.b16 %v3805
    %v5112 = vunpack.c.h.b16 %v3805
    %v5113 = vunpack.c.l.b16 %v3806
    %v5114 = vunpack.c.h.b16 %v3806
    %v5115 = vunpack.c.l.b16 %v3807
    %v5116 = vunpack.c.h.b16 %v3807
    %v5117 = vunpack.c.l.b16 %v3808
    %v5118 = vunpack.c.h.b16 %v3808
    %v5119 = vunpack.c.l.b16 %v3809
    %v5120 = vunpack.c.h.b16 %v3809
    %v5121 = vunpack.c.l.b16 %v3810
    %v5122 = vunpack.c.h.b16 %v3810
    %v5123 = vunpack.c.l.b16 %v3811
    %v5124 = vunpack.c.h.b16 %v3811
    %v5125 = vunpack.c.l.b16 %v3812
    %v5126 = vunpack.c.h.b16 %v3812
    %v5127 = vunpack.c.l.b16 %v3813
    %v5128 = vunpack.c.h.b16 %v3813
    %v5129 = vunpack.c.l.b16 %v3814
    %v5130 = vunpack.c.h.b16 %v3814
    %v5131 = vunpack.c.l.b16 %v3815
    %v5132 = vunpack.c.h.b16 %v3815
    %v5133 = vunpack.c.l.b16 %v3816
    %v5134 = vunpack.c.h.b16 %v3816
    %v5135 = vunpack.c.l.b16 %v3817
    %v5136 = vunpack.c.h.b16 %v3817
    %v5137 = vunpack.c.l.b16 %v3818
    %v5138 = vunpack.c.h.b16 %v3818
    %v5139 = vunpack.c.l.b16 %v3819
    %v5140 = vunpack.c.h.b16 %v3819
    %v5141 = vunpack.c.l.b16 %v3820
    %v5142 = vunpack.c.h.b16 %v3820
    %v5143 = vunpack.c.l.b16 %v3821
    %v5144 = vunpack.c.h.b16 %v3821
    %v5145 = vunpack.c.l.b16 %v3822
    %v5146 = vunpack.c.h.b16 %v3822
    %v5147 = vunpack.c.l.b16 %v3823
    %v5148 = vunpack.c.h.b16 %v3823
    %v5149 = vunpack.c.l.b16 %v3824
    %v5150 = vunpack.c.h.b16 %v3824
    %v5151 = vunpack.c.l.b16 %v3825
    %v5152 = vunpack.c.h.b16 %v3825
    %v5153 = vunpack.c.l.b16 %v3826
    %v5154 = vunpack.c.h.b16 %v3826
    %v5155 = vunpack.c.l.b16 %v3827
    %v5156 = vunpack.c.h.b16 %v3827
    %v5157 = vunpack.c.l.b16 %v3828
    %v5158 = vunpack.c.h.b16 %v3828
    %v5159 = vunpack.c.l.b16 %v3829
    %v5160 = vunpack.c.h.b16 %v3829
    %v5161 = vunpack.c.l.b16 %v3830
    %v5162 = vunpack.c.h.b16 %v3830
    %v5163 = vunpack.c.l.b16 %v3831
    %v5164 = vunpack.c.h.b16 %v3831
    %v5165 = vunpack.c.l.b16 %v3832
    %v5166 = vunpack.c.h.b16 %v3832
    %v5167 = vunpack.c.l.b16 %v3833
    %v5168 = vunpack.c.h.b16 %v3833
    %v5169 = vunpack.c.l.b16 %v3834
    %v5170 = vunpack.c.h.b16 %v3834
    %v5171 = vunpack.c.l.b16 %v3835
    %v5172 = vunpack.c.h.b16 %v3835
    %v5173 = vunpack.c.l.b16 %v3836
    %v5174 = vunpack.c.h.b16 %v3836
    %v5175 = vunpack.c.l.b16 %v3837
    %v5176 = vunpack.c.h.b16 %v3837
    %v5177 = vunpack.c.l.b16 %v3838
    %v5178 = vunpack.c.h.b16 %v3838
    %v5179 = vunpack.c.l.b16 %v3839
    %v5180 = vunpack.c.h.b16 %v3839
    %v5181 = vunpack.c.l.b16 %v3840
    %v5182 = vunpack.c.h.b16 %v3840
    %v5183 = vunpack.c.l.b16 %v3841
    %v5184 = vunpack.c.h.b16 %v3841
    %v5185 = vunpack.c.l.b16 %v3842
    %v5186 = vunpack.c.h.b16 %v3842
    %v5187 = vunpack.c.l.b16 %v3843
    %v5188 = vunpack.c.h.b16 %v3843
    %v5189 = vunpack.c.l.b16 %v3844
    %v5190 = vunpack.c.h.b16 %v3844
    %v5191 = vunpack.c.l.b16 %v3845
    %v5192 = vunpack.c.h.b16 %v3845
    %v5193 = vunpack.c.l.b16 %v3846
    %v5194 = vunpack.c.h.b16 %v3846
    %v5195 = vunpack.c.l.b16 %v3847
    %v5196 = vunpack.c.h.b16 %v3847
    %v5197 = vunpack.c.l.b16 %v3848
    %v5198 = vunpack.c.h.b16 %v3848
    %v5199 = vunpack.c.l.b16 %v3849
    %v5200 = vunpack.c.h.b16 %v3849
    %v5201 = vunpack.c.l.b16 %v3850
    %v5202 = vunpack.c.h.b16 %v3850
    %v5203 = vunpack.c.l.b16 %v3851
    %v5204 = vunpack.c.h.b16 %v3851
    %v5205 = vunpack.c.l.b16 %v3852
    %v5206 = vunpack.c.h.b16 %v3852
    %v5207 = vunpack.c.l.b16 %v3853
    %v5208 = vunpack.c.h.b16 %v3853
    %v5209 = vunpack.c.l.b16 %v3854
    %v5210 = vunpack.c.h.b16 %v3854
    %v5211 = vunpack.c.l.b16 %v3855
    %v5212 = vunpack.c.h.b16 %v3855
    %v5213 = vunpack.c.l.b16 %v3856
    %v5214 = vunpack.c.h.b16 %v3856
    %v5215 = vunpack.c.l.b16 %v3857
    %v5216 = vunpack.c.h.b16 %v3857
    %v5217 = vunpack.c.l.b16 %v3858
    %v5218 = vunpack.c.h.b16 %v3858
    %v5219 = vunpack.c.l.b16 %v3859
    %v5220 = vunpack.c.h.b16 %v3859
    %v5221 = vunpack.c.l.b16 %v3860
    %v5222 = vunpack.c.h.b16 %v3860
    %v5223 = vunpack.c.l.b16 %v3861
    %v5224 = vunpack.c.h.b16 %v3861
    %v5225 = vunpack.c.l.b16 %v3862
    %v5226 = vunpack.c.h.b16 %v3862
    %v5227 = vunpack.c.l.b16 %v3863
    %v5228 = vunpack.c.h.b16 %v3863
    %v5229 = vunpack.c.l.b16 %v3864
    %v5230 = vunpack.c.h.b16 %v3864
    %v5231 = vunpack.c.l.b16 %v3865
    %v5232 = vunpack.c.h.b16 %v3865
    %v5233 = vunpack.c.l.b16 %v3866
    %v5234 = vunpack.c.h.b16 %v3866
    %v5235 = vunpack.c.l.b16 %v3867
    %v5236 = vunpack.c.h.b16 %v3867
    %v5237 = vunpack.c.l.b16 %v3868
    %v5238 = vunpack.c.h.b16 %v3868
    %v5239 = vunpack.c.l.b16 %v3869
    %v5240 = vunpack.c.h.b16 %v3869
    %v5241 = vunpack.c.l.b16 %v3870
    %v5242 = vunpack.c.h.b16 %v3870
    %v5243 = vunpack.c.l.b16 %v3871
    %v5244 = vunpack.c.h.b16 %v3871
    %v5245 = vunpack.c.l.b16 %v3872
    %v5246 = vunpack.c.h.b16 %v3872
    %v5247 = vunpack.c.l.b16 %v3873
    %v5248 = vunpack.c.h.b16 %v3873
    %v5249 = vunpack.c.l.b16 %v3874
    %v5250 = vunpack.c.h.b16 %v3874
    %v5251 = vunpack.c.l.b16 %v3875
    %v5252 = vunpack.c.h.b16 %v3875
    %v5253 = vunpack.c.l.b16 %v3876
    %v5254 = vunpack.c.h.b16 %v3876
    %v5255 = vunpack.c.l.b16 %v3877
    %v5256 = vunpack.c.h.b16 %v3877
    %v5257 = vunpack.c.l.b16 %v3878
    %v5258 = vunpack.c.h.b16 %v3878
    %v5259 = vunpack.c.l.b16 %v3879
    %v5260 = vunpack.c.h.b16 %v3879
    %v5261 = vunpack.c.l.b16 %v3880
    %v5262 = vunpack.c.h.b16 %v3880
    %v5263 = vunpack.c.l.b16 %v3881
    %v5264 = vunpack.c.h.b16 %v3881
    %v5265 = vunpack.c.l.b16 %v3882
    %v5266 = vunpack.c.h.b16 %v3882
    %v5267 = vunpack.c.l.b16 %v3883
    %v5268 = vunpack.c.h.b16 %v3883
    %v5269 = vunpack.c.l.b16 %v3884
    %v5270 = vunpack.c.h.b16 %v3884
    %v5271 = vunpack.c.l.b16 %v3885
    %v5272 = vunpack.c.h.b16 %v3885
    %v5273 = vunpack.c.l.b16 %v3886
    %v5274 = vunpack.c.h.b16 %v3886
    %v5275 = vunpack.c.l.b16 %v3887
    %v5276 = vunpack.c.h.b16 %v3887
    %v5277 = vunpack.c.l.b16 %v3888
    %v5278 = vunpack.c.h.b16 %v3888
    %v5279 = vunpack.c.l.b16 %v3889
    %v5280 = vunpack.c.h.b16 %v3889
    %v5281 = vunpack.c.l.b16 %v3890
    %v5282 = vunpack.c.h.b16 %v3890
    %v5283 = vunpack.c.l.b16 %v3891
    %v5284 = vunpack.c.h.b16 %v3891
    %v5285 = vunpack.c.l.b16 %v3892
    %v5286 = vunpack.c.h.b16 %v3892
    %v5287 = vunpack.c.l.b16 %v3893
    %v5288 = vunpack.c.h.b16 %v3893
    %v5289 = vunpack.c.l.b16 %v3894
    %v5290 = vunpack.c.h.b16 %v3894
    %v5291 = vunpack.c.l.b16 %v3895
    %v5292 = vunpack.c.h.b16 %v3895
    %v5293 = vunpack.c.l.b16 %v3896
    %v5294 = vunpack.c.h.b16 %v3896
    %v5295 = vunpack.c.l.b16 %v3897
    %v5296 = vunpack.c.h.b16 %v3897
    %v5297 = vunpack.c.l.b16 %v3898
    %v5298 = vunpack.c.h.b16 %v3898
    %v5299 = vunpack.c.l.b16 %v3899
    %v5300 = vunpack.c.h.b16 %v3899
    %v5301 = vunpack.c.l.b16 %v3900
    %v5302 = vunpack.c.h.b16 %v3900
    %v5303 = vunpack.c.l.b16 %v3901
    %v5304 = vunpack.c.h.b16 %v3901
    %v5305 = vunpack.c.l.b16 %v3902
    %v5306 = vunpack.c.h.b16 %v3902
    %v5307 = vunpack.c.l.b16 %v3903
    %v5308 = vunpack.c.h.b16 %v3903
    %v5309 = vunpack.c.l.b16 %v3904
    %v5310 = vunpack.c.h.b16 %v3904
    %v5311 = vunpack.c.l.b16 %v3905
    %v5312 = vunpack.c.h.b16 %v3905
    %v5313 = vunpack.c.l.b16 %v3906
    %v5314 = vunpack.c.h.b16 %v3906
    %v5315 = vunpack.c.l.b16 %v3907
    %v5316 = vunpack.c.h.b16 %v3907
    %v5317 = vunpack.c.l.b16 %v3908
    %v5318 = vunpack.c.h.b16 %v3908
    %v5319 = vunpack.c.l.b16 %v3909
    %v5320 = vunpack.c.h.b16 %v3909
    %v5321 = vunpack.c.l.b16 %v3910
    %v5322 = vunpack.c.h.b16 %v3910
    %v5323 = vunpack.c.l.b16 %v3911
    %v5324 = vunpack.c.h.b16 %v3911
    %v5325 = vunpack.c.l.b16 %v3912
    %v5326 = vunpack.c.h.b16 %v3912
    %v5327 = vunpack.c.l.b16 %v3913
    %v5328 = vunpack.c.h.b16 %v3913
    %v5329 = vunpack.c.l.b16 %v3914
    %v5330 = vunpack.c.h.b16 %v3914
    %v5331 = vunpack.c.l.b16 %v3915
    %v5332 = vunpack.c.h.b16 %v3915
    %v5333 = vunpack.c.l.b16 %v3916
    %v5334 = vunpack.c.h.b16 %v3916
    %v5335 = vunpack.c.l.b16 %v3917
    %v5336 = vunpack.c.h.b16 %v3917
    %v5337 = vunpack.c.l.b16 %v3918
    %v5338 = vunpack.c.h.b16 %v3918
    %v5339 = vunpack.c.l.b16 %v3919
    %v5340 = vunpack.c.h.b16 %v3919
    %v5341 = vunpack.c.l.b16 %v3920
    %v5342 = vunpack.c.h.b16 %v3920
    %v5343 = vunpack.c.l.b16 %v3921
    %v5344 = vunpack.c.h.b16 %v3921
    %v5345 = vunpack.c.l.b16 %v3922
    %v5346 = vunpack.c.h.b16 %v3922
    %v5347 = vunpack.c.l.b16 %v3923
    %v5348 = vunpack.c.h.b16 %v3923
    %v5349 = vunpack.c.l.b16 %v3924
    %v5350 = vunpack.c.h.b16 %v3924
    %v5351 = vunpack.c.l.b16 %v3925
    %v5352 = vunpack.c.h.b16 %v3925
    %v5353 = vunpack.c.l.b16 %v3926
    %v5354 = vunpack.c.h.b16 %v3926
    %v5355 = vunpack.c.l.b16 %v3927
    %v5356 = vunpack.c.h.b16 %v3927
    %v5357 = vunpack.c.l.b16 %v3928
    %v5358 = vunpack.c.h.b16 %v3928
    %v5359 = vunpack.c.l.b16 %v3929
    %v5360 = vunpack.c.h.b16 %v3929
    %v5361 = vunpack.c.l.b16 %v3930
    %v5362 = vunpack.c.h.b16 %v3930
    %v5363 = vunpack.c.l.b16 %v3931
    %v5364 = vunpack.c.h.b16 %v3931
    %v5365 = vunpack.c.l.b16 %v3932
    %v5366 = vunpack.c.h.b16 %v3932
    %v5367 = vunpack.c.l.b16 %v3933
    %v5368 = vunpack.c.h.b16 %v3933
    %v5369 = vunpack.c.l.b16 %v3934
    %v5370 = vunpack.c.h.b16 %v3934
    %v5371 = vunpack.c.l.b16 %v3935
    %v5372 = vunpack.c.h.b16 %v3935
    %v5373 = vunpack.c.l.b16 %v3936
    %v5374 = vunpack.c.h.b16 %v3936
    %v5375 = vunpack.c.l.b16 %v3937
    %v5376 = vunpack.c.h.b16 %v3937
    %v5377 = vunpack.c.l.b16 %v3938
    %v5378 = vunpack.c.h.b16 %v3938
    %v5379 = vunpack.c.l.b16 %v3939
    %v5380 = vunpack.c.h.b16 %v3939
    %v5381 = vunpack.c.l.b16 %v3940
    %v5382 = vunpack.c.h.b16 %v3940
    %v5383 = vunpack.c.l.b16 %v3941
    %v5384 = vunpack.c.h.b16 %v3941
    %v5385 = vunpack.c.l.b16 %v3942
    %v5386 = vunpack.c.h.b16 %v3942
    %v5387 = vunpack.c.l.b16 %v3943
    %v5388 = vunpack.c.h.b16 %v3943
    %v5389 = vunpack.c.l.b16 %v3944
    %v5390 = vunpack.c.h.b16 %v3944
    %v5391 = vunpack.c.l.b16 %v3945
    %v5392 = vunpack.c.h.b16 %v3945
    %v5393 = vunpack.c.l.b16 %v3946
    %v5394 = vunpack.c.h.b16 %v3946
    %v5395 = vunpack.c.l.b16 %v3947
    %v5396 = vunpack.c.h.b16 %v3947
    %v5397 = vunpack.c.l.b16 %v3948
    %v5398 = vunpack.c.h.b16 %v3948
    %v5399 = vunpack.c.l.b16 %v3949
    %v5400 = vunpack.c.h.b16 %v3949
    %v5401 = vunpack.c.l.b16 %v3950
    %v5402 = vunpack.c.h.b16 %v3950
    %v5403 = vunpack.c.l.b16 %v3951
    %v5404 = vunpack.c.h.b16 %v3951
    %v5405 = vunpack.c.l.b16 %v3952
    %v5406 = vunpack.c.h.b16 %v3952
    %v5407 = vunpack.c.l.b16 %v3953
    %v5408 = vunpack.c.h.b16 %v3953
    %v5409 = vunpack.c.l.b16 %v3954
    %v5410 = vunpack.c.h.b16 %v3954
    %v5411 = vunpack.c.l.b16 %v3955
    %v5412 = vunpack.c.h.b16 %v3955
    %v5413 = vunpack.c.l.b16 %v3956
    %v5414 = vunpack.c.h.b16 %v3956
    %v5415 = vunpack.c.l.b16 %v3957
    %v5416 = vunpack.c.h.b16 %v3957
    %v5417 = vunpack.c.l.b16 %v3958
    %v5418 = vunpack.c.h.b16 %v3958
    %v5419 = vunpack.c.l.b16 %v3959
    %v5420 = vunpack.c.h.b16 %v3959
    %v5421 = vunpack.c.l.b16 %v3960
    %v5422 = vunpack.c.h.b16 %v3960
    %v5423 = vunpack.c.l.b16 %v3961
    %v5424 = vunpack.c.h.b16 %v3961
    %v5425 = vunpack.c.l.b16 %v3962
    %v5426 = vunpack.c.h.b16 %v3962
    %v5427 = vunpack.c.l.b16 %v3963
    %v5428 = vunpack.c.h.b16 %v3963
    %v5429 = vunpack.c.l.b16 %v3964
    %v5430 = vunpack.c.h.b16 %v3964
    %v5431 = vunpack.c.l.b16 %v3965
    %v5432 = vunpack.c.h.b16 %v3965
    %v5433 = vunpack.c.l.b16 %v3966
    %v5434 = vunpack.c.h.b16 %v3966
    %v5435 = vunpack.c.l.b16 %v3967
    %v5436 = vunpack.c.h.b16 %v3967
    %v5437 = vunpack.c.l.b16 %v3968
    %v5438 = vunpack.c.h.b16 %v3968
    %v5439 = vunpack.c.l.b16 %v3969
    %v5440 = vunpack.c.h.b16 %v3969
    %v5441 = vunpack.c.l.b16 %v3970
    %v5442 = vunpack.c.h.b16 %v3970
    %v5443 = vunpack.c.l.b16 %v3971
    %v5444 = vunpack.c.h.b16 %v3971
    %v5445 = vunpack.c.l.b16 %v3972
    %v5446 = vunpack.c.h.b16 %v3972
    %v5447 = vunpack.c.l.b16 %v3973
    %v5448 = vunpack.c.h.b16 %v3973
    %v5449 = vunpack.c.l.b16 %v3974
    %v5450 = vunpack.c.h.b16 %v3974
    %v5451 = vunpack.c.l.b16 %v3975
    %v5452 = vunpack.c.h.b16 %v3975
    %v5453 = vunpack.c.l.b16 %v3976
    %v5454 = vunpack.c.h.b16 %v3976
    %v5455 = vunpack.c.l.b16 %v3977
    %v5456 = vunpack.c.h.b16 %v3977
    %v5457 = vunpack.c.l.b16 %v3978
    %v5458 = vunpack.c.h.b16 %v3978
    %v5459 = vunpack.c.l.b16 %v3979
    %v5460 = vunpack.c.h.b16 %v3979
    %v5461 = vunpack.c.l.b16 %v3980
    %v5462 = vunpack.c.h.b16 %v3980
    %v5463 = vunpack.c.l.b16 %v3981
    %v5464 = vunpack.c.h.b16 %v3981
    %v5465 = vunpack.c.l.b16 %v3982
    %v5466 = vunpack.c.h.b16 %v3982
    %v5467 = vunpack.c.l.b16 %v3983
    %v5468 = vunpack.c.h.b16 %v3983
    %v5469 = vunpack.c.l.b16 %v3984
    %v5470 = vunpack.c.h.b16 %v3984
    %v5471 = vunpack.c.l.b16 %v3985
    %v5472 = vunpack.c.h.b16 %v3985
    %v5473 = vunpack.c.l.b16 %v3986
    %v5474 = vunpack.c.h.b16 %v3986
    %v5475 = vunpack.c.l.b16 %v3987
    %v5476 = vunpack.c.h.b16 %v3987
    %v5477 = vunpack.c.l.b16 %v3988
    %v5478 = vunpack.c.h.b16 %v3988
    %v5479 = vunpack.c.l.b16 %v3989
    %v5480 = vunpack.c.h.b16 %v3989
    %v5481 = vunpack.c.l.b16 %v3990
    %v5482 = vunpack.c.h.b16 %v3990
    %v5483 = vunpack.c.l.b16 %v3991
    %v5484 = vunpack.c.h.b16 %v3991
    %v5485 = vunpack.c.l.b16 %v3992
    %v5486 = vunpack.c.h.b16 %v3992
    %v5487 = vunpack.c.l.b16 %v3993
    %v5488 = vunpack.c.h.b16 %v3993
    %v5489 = vunpack.c.l.b16 %v3994
    %v5490 = vunpack.c.h.b16 %v3994
    %v5491 = vunpack.c.l.b16 %v3995
    %v5492 = vunpack.c.h.b16 %v3995
    %v5493 = vunpack.c.l.b16 %v3996
    %v5494 = vunpack.c.h.b16 %v3996
    %v5495 = vunpack.c.l.b16 %v3997
    %v5496 = vunpack.c.h.b16 %v3997
    %v5497 = vunpack.c.l.b16 %v3998
    %v5498 = vunpack.c.h.b16 %v3998
    %v5499 = vunpack.c.l.b16 %v3999
    %v5500 = vunpack.c.h.b16 %v3999
    %v5501 = vunpack.c.l.b16 %v4000
    %v5502 = vunpack.c.h.b16 %v4000
    %v5503 = vunpack.c.l.b16 %v4001
    %v5504 = vunpack.c.h.b16 %v4001
    %v5505 = vunpack.c.l.b16 %v4002
    %v5506 = vunpack.c.h.b16 %v4002
    %v5507 = vunpack.c.l.b16 %v4003
    %v5508 = vunpack.c.h.b16 %v4003
    %v5509 = vunpack.c.l.b16 %v4004
    %v5510 = vunpack.c.h.b16 %v4004
    %v5511 = vunpack.c.l.b16 %v4005
    %v5512 = vunpack.c.h.b16 %v4005
    %v5513 = vunpack.c.l.b16 %v4006
    %v5514 = vunpack.c.h.b16 %v4006
    %v5515 = vunpack.c.l.b16 %v4007
    %v5516 = vunpack.c.h.b16 %v4007
    %v5517 = vunpack.c.l.b16 %v4008
    %v5518 = vunpack.c.h.b16 %v4008
    %v5519 = vunpack.c.l.b16 %v4009
    %v5520 = vunpack.c.h.b16 %v4009
    %v5521 = vunpack.c.l.b16 %v4010
    %v5522 = vunpack.c.h.b16 %v4010
    %v5523 = vunpack.c.l.b16 %v4011
    %v5524 = vunpack.c.h.b16 %v4011
    %v5525 = vunpack.c.l.b16 %v4012
    %v5526 = vunpack.c.h.b16 %v4012
    %v5527 = vunpack.c.l.b16 %v4013
    %v5528 = vunpack.c.h.b16 %v4013
    %v5529 = vunpack.c.l.b16 %v4014
    %v5530 = vunpack.c.h.b16 %v4014
    %v5531 = vunpack.c.l.b16 %v4015
    %v5532 = vunpack.c.h.b16 %v4015
    %v5533 = vunpack.c.l.b16 %v4016
    %v5534 = vunpack.c.h.b16 %v4016
    %v5535 = vunpack.c.l.b16 %v4017
    %v5536 = vunpack.c.h.b16 %v4017
    %v5537 = vunpack.c.l.b16 %v4018
    %v5538 = vunpack.c.h.b16 %v4018
    %v5539 = vunpack.c.l.b16 %v4019
    %v5540 = vunpack.c.h.b16 %v4019
    %v5541 = vunpack.c.l.b16 %v4020
    %v5542 = vunpack.c.h.b16 %v4020
    %v5543 = vunpack.c.l.b16 %v4021
    %v5544 = vunpack.c.h.b16 %v4021
    %v5545 = vunpack.c.l.b16 %v4022
    %v5546 = vunpack.c.h.b16 %v4022
    %v5547 = vunpack.c.l.b16 %v4023
    %v5548 = vunpack.c.h.b16 %v4023
    %v5549 = vunpack.c.l.b16 %v4024
    %v5550 = vunpack.c.h.b16 %v4024
    %v5551 = vunpack.c.l.b16 %v4025
    %v5552 = vunpack.c.h.b16 %v4025
    %v5553 = vunpack.c.l.b16 %v4026
    %v5554 = vunpack.c.h.b16 %v4026
    %v5555 = vunpack.c.l.b16 %v4027
    %v5556 = vunpack.c.h.b16 %v4027
    %v5557 = vunpack.c.l.b16 %v4028
    %v5558 = vunpack.c.h.b16 %v4028
    %v5559 = vunpack.c.l.b16 %v4029
    %v5560 = vunpack.c.h.b16 %v4029
    %v5561 = vunpack.c.l.b16 %v4030
    %v5562 = vunpack.c.h.b16 %v4030
    %v5563 = vunpack.c.l.b16 %v4031
    %v5564 = vunpack.c.h.b16 %v4031
    %v5565 = vunpack.c.l.b16 %v4032
    %v5566 = vunpack.c.h.b16 %v4032
    %v5567 = vunpack.c.l.b16 %v4033
    %v5568 = vunpack.c.h.b16 %v4033
    %v5569 = vunpack.c.l.b16 %v4034
    %v5570 = vunpack.c.h.b16 %v4034
    %v5571 = vunpack.c.l.b16 %v4035
    %v5572 = vunpack.c.h.b16 %v4035
    %v5573 = vunpack.c.l.b16 %v4036
    %v5574 = vunpack.c.h.b16 %v4036
    %v5575 = vunpack.c.l.b16 %v4037
    %v5576 = vunpack.c.h.b16 %v4037
    %v5577 = vunpack.c.l.b16 %v4038
    %v5578 = vunpack.c.h.b16 %v4038
    %v5579 = vunpack.c.l.b16 %v4039
    %v5580 = vunpack.c.h.b16 %v4039
    %v5581 = vunpack.c.l.b16 %v4040
    %v5582 = vunpack.c.h.b16 %v4040
    %v5583 = vunpack.c.l.b16 %v4041
    %v5584 = vunpack.c.h.b16 %v4041
    %v5585 = vunpack.c.l.b16 %v4042
    %v5586 = vunpack.c.h.b16 %v4042
    %v5587 = vunpack.c.l.b16 %v4043
    %v5588 = vunpack.c.h.b16 %v4043
    %v5589 = vunpack.c.l.b16 %v4044
    %v5590 = vunpack.c.h.b16 %v4044
    %v5591 = vunpack.c.l.b16 %v4045
    %v5592 = vunpack.c.h.b16 %v4045
    %v5593 = vunpack.c.l.b16 %v4046
    %v5594 = vunpack.c.h.b16 %v4046
    %v5595 = vunpack.c.l.b16 %v4047
    %v5596 = vunpack.c.h.b16 %v4047
    %v5597 = vunpack.c.l.b16 %v4048
    %v5598 = vunpack.c.h.b16 %v4048
    %v5599 = vunpack.c.l.b16 %v4049
    %v5600 = vunpack.c.h.b16 %v4049
    %v5601 = vunpack.c.l.b16 %v4050
    %v5602 = vunpack.c.h.b16 %v4050
    %v5603 = vunpack.c.l.b16 %v4051
    %v5604 = vunpack.c.h.b16 %v4051
    %v5605 = vunpack.c.l.b16 %v4052
    %v5606 = vunpack.c.h.b16 %v4052
    %v5607 = vunpack.c.l.b16 %v4053
    %v5608 = vunpack.c.h.b16 %v4053
    %v5609 = vunpack.c.l.b16 %v4054
    %v5610 = vunpack.c.h.b16 %v4054
    %v5611 = vunpack.c.l.b16 %v4055
    %v5612 = vunpack.c.h.b16 %v4055
    %v5613 = vunpack.c.l.b16 %v4056
    %v5614 = vunpack.c.h.b16 %v4056
    %v5615 = vunpack.c.l.b16 %v4057
    %v5616 = vunpack.c.h.b16 %v4057
    %v5617 = vunpack.c.l.b16 %v4058
    %v5618 = vunpack.c.h.b16 %v4058
    %v5619 = vunpack.c.l.b16 %v4059
    %v5620 = vunpack.c.h.b16 %v4059
    %v5621 = vunpack.c.l.b16 %v4060
    %v5622 = vunpack.c.h.b16 %v4060
    %v5623 = vunpack.c.l.b16 %v4061
    %v5624 = vunpack.c.h.b16 %v4061
    %v5625 = vunpack.c.l.b16 %v4062
    %v5626 = vunpack.c.h.b16 %v4062
    %v5627 = vunpack.c.l.b16 %v4063
    %v5628 = vunpack.c.h.b16 %v4063
    %v5629 = vunpack.c.l.b16 %v4064
    %v5630 = vunpack.c.h.b16 %v4064
    %v5631 = vunpack.c.l.b16 %v4065
    %v5632 = vunpack.c.h.b16 %v4065
    %v5633 = vunpack.c.l.b16 %v4066
    %v5634 = vunpack.c.h.b16 %v4066
    %v5635 = vunpack.c.l.b16 %v4067
    %v5636 = vunpack.c.h.b16 %v4067
    %v5637 = vunpack.c.l.b16 %v4068
    %v5638 = vunpack.c.h.b16 %v4068
    %v5639 = vunpack.c.l.b16 %v4069
    %v5640 = vunpack.c.h.b16 %v4069
    %v5641 = vunpack.c.l.b16 %v4070
    %v5642 = vunpack.c.h.b16 %v4070
    %v5643 = vunpack.c.l.b16 %v4071
    %v5644 = vunpack.c.h.b16 %v4071
    %v5645 = vunpack.c.l.b16 %v4072
    %v5646 = vunpack.c.h.b16 %v4072
    %v5647 = vunpack.c.l.b16 %v4073
    %v5648 = vunpack.c.h.b16 %v4073
    %v5649 = vunpack.c.l.b16 %v4074
    %v5650 = vunpack.c.h.b16 %v4074
    %v5651 = vunpack.c.l.b16 %v4075
    %v5652 = vunpack.c.h.b16 %v4075
    %v5653 = vunpack.c.l.b16 %v4076
    %v5654 = vunpack.c.h.b16 %v4076
    %v5655 = vpack.c.b16 %v4639, %v4631
    %v5656 = vpack.c.b16 %v4640, %v4632
    %v5657 = vpack.c.b16 %v4641, %v4633
    %v5658 = vpack.c.b16 %v4642, %v4634
    %v5659 = vpack.c.b16 %v4643, %v4635
    %v5660 = vpack.c.b16 %v4644, %v4636
    %v5661 = vpack.c.b16 %v4645, %v4637
    %v5662 = vpack.c.b16 %v4646, %v4638
    %v5663 = vpack.c.b16 %v4655, %v4647
    %v5664 = vpack.c.b16 %v4656, %v4648
    %v5665 = vpack.c.b16 %v4657, %v4649
    %v5666 = vpack.c.b16 %v4658, %v4650
    %v5667 = vpack.c.b16 %v4659, %v4651
    %v5668 = vpack.c.b16 %v4660, %v4652
    %v5669 = vpack.c.b16 %v4661, %v4653
    %v5670 = vpack.c.b16 %v4662, %v4654
    %v5671 = vpack.c.b16 %v4671, %v4663
    %v5672 = vpack.c.b16 %v4672, %v4664
    %v5673 = vpack.c.b16 %v4673, %v4665
    %v5674 = vpack.c.b16 %v4674, %v4666
    %v5675 = vpack.c.b16 %v4675, %v4667
    %v5676 = vpack.c.b16 %v4676, %v4668
    %v5677 = vpack.c.b16 %v4677, %v4669
    %v5678 = vpack.c.b16 %v4678, %v4670
    %v5679 = vpack.c.b16 %v4687, %v4679
    %v5680 = vpack.c.b16 %v4688, %v4680
    %v5681 = vpack.c.b16 %v4689, %v4681
    %v5682 = vpack.c.b16 %v4690, %v4682
    %v5683 = vpack.c.b16 %v4691, %v4683
    %v5684 = vpack.c.b16 %v4692, %v4684
    %v5685 = vpack.c.b16 %v4693, %v4685
    %v5686 = vpack.c.b16 %v4694, %v4686
    %v5687 = vpack.c.b16 %v4703, %v4695
    %v5688 = vpack.c.b16 %v4704, %v4696
    %v5689 = vpack.c.b16 %v4705, %v4697
    %v5690 = vpack.c.b16 %v4706, %v4698
    %v5691 = vpack.c.b16 %v4707, %v4699
    %v5692 = vpack.c.b16 %v4708, %v4700
    %v5693 = vpack.c.b16 %v4709, %v4701
    %v5694 = vpack.c.b16 %v4710, %v4702
    %v5695 = vpack.c.b16 %v4719, %v4711
    %v5696 = vpack.c.b16 %v4720, %v4712
    %v5697 = vpack.c.b16 %v4721, %v4713
    %v5698 = vpack.c.b16 %v4722, %v4714
    %v5699 = vpack.c.b16 %v4723, %v4715
    %v5700 = vpack.c.b16 %v4724, %v4716
    %v5701 = vpack.c.b16 %v4725, %v4717
    %v5702 = vpack.c.b16 %v4726, %v4718
    %v5703 = vpack.c.b16 %v4735, %v4727
    %v5704 = vpack.c.b16 %v4736, %v4728
    %v5705 = vpack.c.b16 %v4737, %v4729
    %v5706 = vpack.c.b16 %v4738, %v4730
    %v5707 = vpack.c.b16 %v4739, %v4731
    %v5708 = vpack.c.b16 %v4740, %v4732
    %v5709 = vpack.c.b16 %v4741, %v4733
    %v5710 = vpack.c.b16 %v4742, %v4734
    %v5711 = vpack.c.b16 %v4751, %v4743
    %v5712 = vpack.c.b16 %v4752, %v4744
    %v5713 = vpack.c.b16 %v4753, %v4745
    %v5714 = vpack.c.b16 %v4754, %v4746
    %v5715 = vpack.c.b16 %v4755, %v4747
    %v5716 = vpack.c.b16 %v4756, %v4748
    %v5717 = vpack.c.b16 %v4757, %v4749
    %v5718 = vpack.c.b16 %v4758, %v4750
    %v5719 = vpack.c.b16 %v4767, %v4759
    %v5720 = vpack.c.b16 %v4768, %v4760
    %v5721 = vpack.c.b16 %v4769, %v4761
    %v5722 = vpack.c.b16 %v4770, %v4762
    %v5723 = vpack.c.b16 %v4771, %v4763
    %v5724 = vpack.c.b16 %v4772, %v4764
    %v5725 = vpack.c.b16 %v4773, %v4765
    %v5726 = vpack.c.b16 %v4774, %v4766
    %v5727 = vpack.c.b16 %v4783, %v4775
    %v5728 = vpack.c.b16 %v4784, %v4776
    %v5729 = vpack.c.b16 %v4785, %v4777
    %v5730 = vpack.c.b16 %v4786, %v4778
    %v5731 = vpack.c.b16 %v4787, %v4779
    %v5732 = vpack.c.b16 %v4788, %v4780
    %v5733 = vpack.c.b16 %v4789, %v4781
    %v5734 = vpack.c.b16 %v4790, %v4782
    %v5735 = vpack.c.b16 %v4799, %v4791
    %v5736 = vpack.c.b16 %v4800, %v4792
    %v5737 = vpack.c.b16 %v4801, %v4793
    %v5738 = vpack.c.b16 %v4802, %v4794
    %v5739 = vpack.c.b16 %v4803, %v4795
    %v5740 = vpack.c.b16 %v4804, %v4796
    %v5741 = vpack.c.b16 %v4805, %v4797
    %v5742 = vpack.c.b16 %v4806, %v4798
    %v5743 = vpack.c.b16 %v4815, %v4807
    %v5744 = vpack.c.b16 %v4816, %v4808
    %v5745 = vpack.c.b16 %v4817, %v4809
    %v5746 = vpack.c.b16 %v4818, %v4810
    %v5747 = vpack.c.b16 %v4819, %v4811
    %v5748 = vpack.c.b16 %v4820, %v4812
    %v5749 = vpack.c.b16 %v4821, %v4813
    %v5750 = vpack.c.b16 %v4822, %v4814
    %v5751 = vpack.c.b16 %v4831, %v4823
    %v5752 = vpack.c.b16 %v4832, %v4824
    %v5753 = vpack.c.b16 %v4833, %v4825
    %v5754 = vpack.c.b16 %v4834, %v4826
    %v5755 = vpack.c.b16 %v4835, %v4827
    %v5756 = vpack.c.b16 %v4836, %v4828
    %v5757 = vpack.c.b16 %v4837, %v4829
    %v5758 = vpack.c.b16 %v4838, %v4830
    %v5759 = vpack.c.b16 %v4847, %v4839
    %v5760 = vpack.c.b16 %v4848, %v4840
    %v5761 = vpack.c.b16 %v4849, %v4841
    %v5762 = vpack.c.b16 %v4850, %v4842
    %v5763 = vpack.c.b16 %v4851, %v4843
    %v5764 = vpack.c.b16 %v4852, %v4844
    %v5765 = vpack.c.b16 %v4853, %v4845
    %v5766 = vpack.c.b16 %v4854, %v4846
    %v5767 = vpack.c.b16 %v4863, %v4855
    %v5768 = vpack.c.b16 %v4864, %v4856
    %v5769 = vpack.c.b16 %v4865, %v4857
    %v5770 = vpack.c.b16 %v4866, %v4858
    %v5771 = vpack.c.b16 %v4867, %v4859
    %v5772 = vpack.c.b16 %v4868, %v4860
    %v5773 = vpack.c.b16 %v4869, %v4861
    %v5774 = vpack.c.b16 %v4870, %v4862
    %v5775 = vpack.c.b16 %v4879, %v4871
    %v5776 = vpack.c.b16 %v4880, %v4872
    %v5777 = vpack.c.b16 %v4881, %v4873
    %v5778 = vpack.c.b16 %v4882, %v4874
    %v5779 = vpack.c.b16 %v4883, %v4875
    %v5780 = vpack.c.b16 %v4884, %v4876
    %v5781 = vpack.c.b16 %v4885, %v4877
    %v5782 = vpack.c.b16 %v4886, %v4878
    %v5783 = vpack.c.b16 %v4895, %v4887
    %v5784 = vpack.c.b16 %v4896, %v4888
    %v5785 = vpack.c.b16 %v4897, %v4889
    %v5786 = vpack.c.b16 %v4898, %v4890
    %v5787 = vpack.c.b16 %v4899, %v4891
    %v5788 = vpack.c.b16 %v4900, %v4892
    %v5789 = vpack.c.b16 %v4901, %v4893
    %v5790 = vpack.c.b16 %v4902, %v4894
    %v5791 = vpack.c.b16 %v4911, %v4903
    %v5792 = vpack.c.b16 %v4912, %v4904
    %v5793 = vpack.c.b16 %v4913, %v4905
    %v5794 = vpack.c.b16 %v4914, %v4906
    %v5795 = vpack.c.b16 %v4915, %v4907
    %v5796 = vpack.c.b16 %v4916, %v4908
    %v5797 = vpack.c.b16 %v4917, %v4909
    %v5798 = vpack.c.b16 %v4918, %v4910
    %v5799 = vpack.c.b16 %v4927, %v4919
    %v5800 = vpack.c.b16 %v4928, %v4920
    %v5801 = vpack.c.b16 %v4929, %v4921
    %v5802 = vpack.c.b16 %v4930, %v4922
    %v5803 = vpack.c.b16 %v4931, %v4923
    %v5804 = vpack.c.b16 %v4932, %v4924
    %v5805 = vpack.c.b16 %v4933, %v4925
    %v5806 = vpack.c.b16 %v4934, %v4926
    %v5807 = vpack.c.b16 %v4943, %v4935
    %v5808 = vpack.c.b16 %v4944, %v4936
    %v5809 = vpack.c.b16 %v4945, %v4937
    %v5810 = vpack.c.b16 %v4946, %v4938
    %v5811 = vpack.c.b16 %v4947, %v4939
    %v5812 = vpack.c.b16 %v4948, %v4940
    %v5813 = vpack.c.b16 %v4949, %v4941
    %v5814 = vpack.c.b16 %v4950, %v4942
    %v5815 = vpack.c.b16 %v4959, %v4951
    %v5816 = vpack.c.b16 %v4960, %v4952
    %v5817 = vpack.c.b16 %v4961, %v4953
    %v5818 = vpack.c.b16 %v4962, %v4954
    %v5819 = vpack.c.b16 %v4963, %v4955
    %v5820 = vpack.c.b16 %v4964, %v4956
    %v5821 = vpack.c.b16 %v4965, %v4957
    %v5822 = vpack.c.b16 %v4966, %v4958
    %v5823 = vpack.c.b16 %v4975, %v4967
    %v5824 = vpack.c.b16 %v4976, %v4968
    %v5825 = vpack.c.b16 %v4977, %v4969
    %v5826 = vpack.c.b16 %v4978, %v4970
    %v5827 = vpack.c.b16 %v4979, %v4971
    %v5828 = vpack.c.b16 %v4980, %v4972
    %v5829 = vpack.c.b16 %v4981, %v4973
    %v5830 = vpack.c.b16 %v4982, %v4974
    %v5831 = vpack.c.b16 %v4991, %v4983
    %v5832 = vpack.c.b16 %v4992, %v4984
    %v5833 = vpack.c.b16 %v4993, %v4985
    %v5834 = vpack.c.b16 %v4994, %v4986
    %v5835 = vpack.c.b16 %v4995, %v4987
    %v5836 = vpack.c.b16 %v4996, %v4988
    %v5837 = vpack.c.b16 %v4997, %v4989
    %v5838 = vpack.c.b16 %v4998, %v4990
    %v5839 = vpack.c.b16 %v5007, %v4999
    %v5840 = vpack.c.b16 %v5008, %v5000
    %v5841 = vpack.c.b16 %v5009, %v5001
    %v5842 = vpack.c.b16 %v5010, %v5002
    %v5843 = vpack.c.b16 %v5011, %v5003
    %v5844 = vpack.c.b16 %v5012, %v5004
    %v5845 = vpack.c.b16 %v5013, %v5005
    %v5846 = vpack.c.b16 %v5014, %v5006
    %v5847 = vpack.c.b16 %v5023, %v5015
    %v5848 = vpack.c.b16 %v5024, %v5016
    %v5849 = vpack.c.b16 %v5025, %v5017
    %v5850 = vpack.c.b16 %v5026, %v5018
    %v5851 = vpack.c.b16 %v5027, %v5019
    %v5852 = vpack.c.b16 %v5028, %v5020
    %v5853 = vpack.c.b16 %v5029, %v5021
    %v5854 = vpack.c.b16 %v5030, %v5022
    %v5855 = vpack.c.b16 %v5039, %v5031
    %v5856 = vpack.c.b16 %v5040, %v5032
    %v5857 = vpack.c.b16 %v5041, %v5033
    %v5858 = vpack.c.b16 %v5042, %v5034
    %v5859 = vpack.c.b16 %v5043, %v5035
    %v5860 = vpack.c.b16 %v5044, %v5036
    %v5861 = vpack.c.b16 %v5045, %v5037
    %v5862 = vpack.c.b16 %v5046, %v5038
    %v5863 = vpack.c.b16 %v5055, %v5047
    %v5864 = vpack.c.b16 %v5056, %v5048
    %v5865 = vpack.c.b16 %v5057, %v5049
    %v5866 = vpack.c.b16 %v5058, %v5050
    %v5867 = vpack.c.b16 %v5059, %v5051
    %v5868 = vpack.c.b16 %v5060, %v5052
    %v5869 = vpack.c.b16 %v5061, %v5053
    %v5870 = vpack.c.b16 %v5062, %v5054
    %v5871 = vpack.c.b16 %v5071, %v5063
    %v5872 = vpack.c.b16 %v5072, %v5064
    %v5873 = vpack.c.b16 %v5073, %v5065
    %v5874 = vpack.c.b16 %v5074, %v5066
    %v5875 = vpack.c.b16 %v5075, %v5067
    %v5876 = vpack.c.b16 %v5076, %v5068
    %v5877 = vpack.c.b16 %v5077, %v5069
    %v5878 = vpack.c.b16 %v5078, %v5070
    %v5879 = vpack.c.b16 %v5087, %v5079
    %v5880 = vpack.c.b16 %v5088, %v5080
    %v5881 = vpack.c.b16 %v5089, %v5081
    %v5882 = vpack.c.b16 %v5090, %v5082
    %v5883 = vpack.c.b16 %v5091, %v5083
    %v5884 = vpack.c.b16 %v5092, %v5084
    %v5885 = vpack.c.b16 %v5093, %v5085
    %v5886 = vpack.c.b16 %v5094, %v5086
    %v5887 = vpack.c.b16 %v5103, %v5095
    %v5888 = vpack.c.b16 %v5104, %v5096
    %v5889 = vpack.c.b16 %v5105, %v5097
    %v5890 = vpack.c.b16 %v5106, %v5098
    %v5891 = vpack.c.b16 %v5107, %v5099
    %v5892 = vpack.c.b16 %v5108, %v5100
    %v5893 = vpack.c.b16 %v5109, %v5101
    %v5894 = vpack.c.b16 %v5110, %v5102
    %v5895 = vpack.c.b16 %v5119, %v5111
    %v5896 = vpack.c.b16 %v5120, %v5112
    %v5897 = vpack.c.b16 %v5121, %v5113
    %v5898 = vpack.c.b16 %v5122, %v5114
    %v5899 = vpack.c.b16 %v5123, %v5115
    %v5900 = vpack.c.b16 %v5124, %v5116
    %v5901 = vpack.c.b16 %v5125, %v5117
    %v5902 = vpack.c.b16 %v5126, %v5118
    %v5903 = vpack.c.b16 %v5135, %v5127
    %v5904 = vpack.c.b16 %v5136, %v5128
    %v5905 = vpack.c.b16 %v5137, %v5129
    %v5906 = vpack.c.b16 %v5138, %v5130
    %v5907 = vpack.c.b16 %v5139, %v5131
    %v5908 = vpack.c.b16 %v5140, %v5132
    %v5909 = vpack.c.b16 %v5141, %v5133
    %v5910 = vpack.c.b16 %v5142, %v5134
    %v5911 = vpack.c.b16 %v5151, %v5143
    %v5912 = vpack.c.b16 %v5152, %v5144
    %v5913 = vpack.c.b16 %v5153, %v5145
    %v5914 = vpack.c.b16 %v5154, %v5146
    %v5915 = vpack.c.b16 %v5155, %v5147
    %v5916 = vpack.c.b16 %v5156, %v5148
    %v5917 = vpack.c.b16 %v5157, %v5149
    %v5918 = vpack.c.b16 %v5158, %v5150
    %v5919 = vpack.c.b16 %v5167, %v5159
    %v5920 = vpack.c.b16 %v5168, %v5160
    %v5921 = vpack.c.b16 %v5169, %v5161
    %v5922 = vpack.c.b16 %v5170, %v5162
    %v5923 = vpack.c.b16 %v5171, %v5163
    %v5924 = vpack.c.b16 %v5172, %v5164
    %v5925 = vpack.c.b16 %v5173, %v5165
    %v5926 = vpack.c.b16 %v5174, %v5166
    %v5927 = vpack.c.b16 %v5183, %v5175
    %v5928 = vpack.c.b16 %v5184, %v5176
    %v5929 = vpack.c.b16 %v5185, %v5177
    %v5930 = vpack.c.b16 %v5186, %v5178
    %v5931 = vpack.c.b16 %v5187, %v5179
    %v5932 = vpack.c.b16 %v5188, %v5180
    %v5933 = vpack.c.b16 %v5189, %v5181
    %v5934 = vpack.c.b16 %v5190, %v5182
    %v5935 = vpack.c.b16 %v5199, %v5191
    %v5936 = vpack.c.b16 %v5200, %v5192
    %v5937 = vpack.c.b16 %v5201, %v5193
    %v5938 = vpack.c.b16 %v5202, %v5194
    %v5939 = vpack.c.b16 %v5203, %v5195
    %v5940 = vpack.c.b16 %v5204, %v5196
    %v5941 = vpack.c.b16 %v5205, %v5197
    %v5942 = vpack.c.b16 %v5206, %v5198
    %v5943 = vpack.c.b16 %v5215, %v5207
    %v5944 = vpack.c.b16 %v5216, %v5208
    %v5945 = vpack.c.b16 %v5217, %v5209
    %v5946 = vpack.c.b16 %v5218, %v5210
    %v5947 = vpack.c.b16 %v5219, %v5211
    %v5948 = vpack.c.b16 %v5220, %v5212
    %v5949 = vpack.c.b16 %v5221, %v5213
    %v5950 = vpack.c.b16 %v5222, %v5214
    %v5951 = vpack.c.b16 %v5231, %v5223
    %v5952 = vpack.c.b16 %v5232, %v5224
    %v5953 = vpack.c.b16 %v5233, %v5225
    %v5954 = vpack.c.b16 %v5234, %v5226
    %v5955 = vpack.c.b16 %v5235, %v5227
    %v5956 = vpack.c.b16 %v5236, %v5228
    %v5957 = vpack.c.b16 %v5237, %v5229
    %v5958 = vpack.c.b16 %v5238, %v5230
    %v5959 = vpack.c.b16 %v5247, %v5239
    %v5960 = vpack.c.b16 %v5248, %v5240
    %v5961 = vpack.c.b16 %v5249, %v5241
    %v5962 = vpack.c.b16 %v5250, %v5242
    %v5963 = vpack.c.b16 %v5251, %v5243
    %v5964 = vpack.c.b16 %v5252, %v5244
    %v5965 = vpack.c.b16 %v5253, %v5245
    %v5966 = vpack.c.b16 %v5254, %v5246
    %v5967 = vpack.c.b16 %v5263, %v5255
    %v5968 = vpack.c.b16 %v5264, %v5256
    %v5969 = vpack.c.b16 %v5265, %v5257
    %v5970 = vpack.c.b16 %v5266, %v5258
    %v5971 = vpack.c.b16 %v5267, %v5259
    %v5972 = vpack.c.b16 %v5268, %v5260
    %v5973 = vpack.c.b16 %v5269, %v5261
    %v5974 = vpack.c.b16 %v5270, %v5262
    %v5975 = vpack.c.b16 %v5279, %v5271
    %v5976 = vpack.c.b16 %v5280, %v5272
    %v5977 = vpack.c.b16 %v5281, %v5273
    %v5978 = vpack.c.b16 %v5282, %v5274
    %v5979 = vpack.c.b16 %v5283, %v5275
    %v5980 = vpack.c.b16 %v5284, %v5276
    %v5981 = vpack.c.b16 %v5285, %v5277
    %v5982 = vpack.c.b16 %v5286, %v5278
    %v5983 = vpack.c.b16 %v5295, %v5287
    %v5984 = vpack.c.b16 %v5296, %v5288
    %v5985 = vpack.c.b16 %v5297, %v5289
    %v5986 = vpack.c.b16 %v5298, %v5290
    %v5987 = vpack.c.b16 %v5299, %v5291
    %v5988 = vpack.c.b16 %v5300, %v5292
    %v5989 = vpack.c.b16 %v5301, %v5293
    %v5990 = vpack.c.b16 %v5302, %v5294
    %v5991 = vpack.c.b16 %v5311, %v5303
    %v5992 = vpack.c.b16 %v5312, %v5304
    %v5993 = vpack.c.b16 %v5313, %v5305
    %v5994 = vpack.c.b16 %v5314, %v5306
    %v5995 = vpack.c.b16 %v5315, %v5307
    %v5996 = vpack.c.b16 %v5316, %v5308
    %v5997 = vpack.c.b16 %v5317, %v5309
    %v5998 = vpack.c.b16 %v5318, %v5310
    %v5999 = vpack.c.b16 %v5327, %v5319
    %v6000 = vpack.c.b16 %v5328, %v5320
    %v6001 = vpack.c.b16 %v5329, %v5321
    %v6002 = vpack.c.b16 %v5330, %v5322
    %v6003 = vpack.c.b16 %v5331, %v5323
    %v6004 = vpack.c.b16 %v5332, %v5324
    %v6005 = vpack.c.b16 %v5333, %v5325
    %v6006 = vpack.c.b16 %v5334, %v5326
    %v6007 = vpack.c.b16 %v5343, %v5335
    %v6008 = vpack.c.b16 %v5344, %v5336
    %v6009 = vpack.c.b16 %v5345, %v5337
    %v6010 = vpack.c.b16 %v5346, %v5338
    %v6011 = vpack.c.b16 %v5347, %v5339
    %v6012 = vpack.c.b16 %v5348, %v5340
    %v6013 = vpack.c.b16 %v5349, %v5341
    %v6014 = vpack.c.b16 %v5350, %v5342
    %v6015 = vpack.c.b16 %v5359, %v5351
    %v6016 = vpack.c.b16 %v5360, %v5352
    %v6017 = vpack.c.b16 %v5361, %v5353
    %v6018 = vpack.c.b16 %v5362, %v5354
    %v6019 = vpack.c.b16 %v5363, %v5355
    %v6020 = vpack.c.b16 %v5364, %v5356
    %v6021 = vpack.c.b16 %v5365, %v5357
    %v6022 = vpack.c.b16 %v5366, %v5358
    %v6023 = vpack.c.b16 %v5375, %v5367
    %v6024 = vpack.c.b16 %v5376, %v5368
    %v6025 = vpack.c.b16 %v5377, %v5369
    %v6026 = vpack.c.b16 %v5378, %v5370
    %v6027 = vpack.c.b16 %v5379, %v5371
    %v6028 = vpack.c.b16 %v5380, %v5372
    %v6029 = vpack.c.b16 %v5381, %v5373
    %v6030 = vpack.c.b16 %v5382, %v5374
    %v6031 = vpack.c.b16 %v5391, %v5383
    %v6032 = vpack.c.b16 %v5392, %v5384
    %v6033 = vpack.c.b16 %v5393, %v5385
    %v6034 = vpack.c.b16 %v5394, %v5386
    %v6035 = vpack.c.b16 %v5395, %v5387
    %v6036 = vpack.c.b16 %v5396, %v5388
    %v6037 = vpack.c.b16 %v5397, %v5389
    %v6038 = vpack.c.b16 %v5398, %v5390
    %v6039 = vpack.c.b16 %v5407, %v5399
    %v6040 = vpack.c.b16 %v5408, %v5400
    %v6041 = vpack.c.b16 %v5409, %v5401
    %v6042 = vpack.c.b16 %v5410, %v5402
    %v6043 = vpack.c.b16 %v5411, %v5403
    %v6044 = vpack.c.b16 %v5412, %v5404
    %v6045 = vpack.c.b16 %v5413, %v5405
    %v6046 = vpack.c.b16 %v5414, %v5406
    %v6047 = vpack.c.b16 %v5423, %v5415
    %v6048 = vpack.c.b16 %v5424, %v5416
    %v6049 = vpack.c.b16 %v5425, %v5417
    %v6050 = vpack.c.b16 %v5426, %v5418
    %v6051 = vpack.c.b16 %v5427, %v5419
    %v6052 = vpack.c.b16 %v5428, %v5420
    %v6053 = vpack.c.b16 %v5429, %v5421
    %v6054 = vpack.c.b16 %v5430, %v5422
    %v6055 = vpack.c.b16 %v5439, %v5431
    %v6056 = vpack.c.b16 %v5440, %v5432
    %v6057 = vpack.c.b16 %v5441, %v5433
    %v6058 = vpack.c.b16 %v5442, %v5434
    %v6059 = vpack.c.b16 %v5443, %v5435
    %v6060 = vpack.c.b16 %v5444, %v5436
    %v6061 = vpack.c.b16 %v5445, %v5437
    %v6062 = vpack.c.b16 %v5446, %v5438
    %v6063 = vpack.c.b16 %v5455, %v5447
    %v6064 = vpack.c.b16 %v5456, %v5448
    %v6065 = vpack.c.b16 %v5457, %v5449
    %v6066 = vpack.c.b16 %v5458, %v5450
    %v6067 = vpack.c.b16 %v5459, %v5451
    %v6068 = vpack.c.b16 %v5460, %v5452
    %v6069 = vpack.c.b16 %v5461, %v5453
    %v6070 = vpack.c.b16 %v5462, %v5454
    %v6071 = vpack.c.b16 %v5471, %v5463
    %v6072 = vpack.c.b16 %v5472, %v5464
    %v6073 = vpack.c.b16 %v5473, %v5465
    %v6074 = vpack.c.b16 %v5474, %v5466
    %v6075 = vpack.c.b16 %v5475, %v5467
    %v6076 = vpack.c.b16 %v5476, %v5468
    %v6077 = vpack.c.b16 %v5477, %v5469
    %v6078 = vpack.c.b16 %v5478, %v5470
    %v6079 = vpack.c.b16 %v5487, %v5479
    %v6080 = vpack.c.b16 %v5488, %v5480
    %v6081 = vpack.c.b16 %v5489, %v5481
    %v6082 = vpack.c.b16 %v5490, %v5482
    %v6083 = vpack.c.b16 %v5491, %v5483
    %v6084 = vpack.c.b16 %v5492, %v5484
    %v6085 = vpack.c.b16 %v5493, %v5485
    %v6086 = vpack.c.b16 %v5494, %v5486
    %v6087 = vpack.c.b16 %v5503, %v5495
    %v6088 = vpack.c.b16 %v5504, %v5496
    %v6089 = vpack.c.b16 %v5505, %v5497
    %v6090 = vpack.c.b16 %v5506, %v5498
    %v6091 = vpack.c.b16 %v5507, %v5499
    %v6092 = vpack.c.b16 %v5508, %v5500
    %v6093 = vpack.c.b16 %v5509, %v5501
    %v6094 = vpack.c.b16 %v5510, %v5502
    %v6095 = vpack.c.b16 %v5519, %v5511
    %v6096 = vpack.c.b16 %v5520, %v5512
    %v6097 = vpack.c.b16 %v5521, %v5513
    %v6098 = vpack.c.b16 %v5522, %v5514
    %v6099 = vpack.c.b16 %v5523, %v5515
    %v6100 = vpack.c.b16 %v5524, %v5516
    %v6101 = vpack.c.b16 %v5525, %v5517
    %v6102 = vpack.c.b16 %v5526, %v5518
    %v6103 = vpack.c.b16 %v5535, %v5527
    %v6104 = vpack.c.b16 %v5536, %v5528
    %v6105 = vpack.c.b16 %v5537, %v5529
    %v6106 = vpack.c.b16 %v5538, %v5530
    %v6107 = vpack.c.b16 %v5539, %v5531
    %v6108 = vpack.c.b16 %v5540, %v5532
    %v6109 = vpack.c.b16 %v5541, %v5533
    %v6110 = vpack.c.b16 %v5542, %v5534
    %v6111 = vpack.c.b16 %v5551, %v5543
    %v6112 = vpack.c.b16 %v5552, %v5544
    %v6113 = vpack.c.b16 %v5553, %v5545
    %v6114 = vpack.c.b16 %v5554, %v5546
    %v6115 = vpack.c.b16 %v5555, %v5547
    %v6116 = vpack.c.b16 %v5556, %v5548
    %v6117 = vpack.c.b16 %v5557, %v5549
    %v6118 = vpack.c.b16 %v5558, %v5550
    %v6119 = vpack.c.b16 %v5567, %v5559
    %v6120 = vpack.c.b16 %v5568, %v5560
    %v6121 = vpack.c.b16 %v5569, %v5561
    %v6122 = vpack.c.b16 %v5570, %v5562
    %v6123 = vpack.c.b16 %v5571, %v5563
    %v6124 = vpack.c.b16 %v5572, %v5564
    %v6125 = vpack.c.b16 %v5573, %v5565
    %v6126 = vpack.c.b16 %v5574, %v5566
    %v6127 = vpack.c.b16 %v5583, %v5575
    %v6128 = vpack.c.b16 %v5584, %v5576
    %v6129 = vpack.c.b16 %v5585, %v5577
    %v6130 = vpack.c.b16 %v5586, %v5578
    %v6131 = vpack.c.b16 %v5587, %v5579
    %v6132 = vpack.c.b16 %v5588, %v5580
    %v6133 = vpack.c.b16 %v5589, %v5581
    %v6134 = vpack.c.b16 %v5590, %v5582
    %v6135 = vpack.c.b16 %v5599, %v5591
    %v6136 = vpack.c.b16 %v5600, %v5592
    %v6137 = vpack.c.b16 %v5601, %v5593
    %v6138 = vpack.c.b16 %v5602, %v5594
    %v6139 = vpack.c.b16 %v5603, %v5595
    %v6140 = vpack.c.b16 %v5604, %v5596
    %v6141 = vpack.c.b16 %v5605, %v5597
    %v6142 = vpack.c.b16 %v5606, %v5598
    %v6143 = vpack.c.b16 %v5615, %v5607
    %v6144 = vpack.c.b16 %v5616, %v5608
    %v6145 = vpack.c.b16 %v5617, %v5609
    %v6146 = vpack.c.b16 %v5618, %v5610
    %v6147 = vpack.c.b16 %v5619, %v5611
    %v6148 = vpack.c.b16 %v5620, %v5612
    %v6149 = vpack.c.b16 %v5621, %v5613
    %v6150 = vpack.c.b16 %v5622, %v5614
    %v6151 = vpack.c.b16 %v5631, %v5623
    %v6152 = vpack.c.b16 %v5632, %v5624
    %v6153 = vpack.c.b16 %v5633, %v5625
    %v6154 = vpack.c.b16 %v5634, %v5626
    %v6155 = vpack.c.b16 %v5635, %v5627
    %v6156 = vpack.c.b16 %v5636, %v5628
    %v6157 = vpack.c.b16 %v5637, %v5629
    %v6158 = vpack.c.b16 %v5638, %v5630
    %v6159 = vpack.c.b16 %v5647, %v5639
    %v6160 = vpack.c.b16 %v5648, %v5640
    %v6161 = vpack.c.b16 %v5649, %v5641
    %v6162 = vpack.c.b16 %v5650, %v5642
    %v6163 = vpack.c.b16 %v5651, %v5643
    %v6164 = vpack.c.b16 %v5652, %v5644
    %v6165 = vpack.c.b16 %v5653, %v5645
    %v6166 = vpack.c.b16 %v5654, %v5646
    %6679 = vmatprep.subr.bf16.mxu0 %v5712
    %6680 = vmatpush1.bf16.msra.mxu0 %v5711
    %6681 = vmatprep.subr.bf16.mxu0 %v5704
    %6682 = vmatpush1.bf16.msra.mxu0 %v5703
    %6683 = vmatprep.subr.bf16.mxu0 %v5696
    %6684 = vmatpush1.bf16.msra.mxu0 %v5695
    %6685 = vmatprep.subr.bf16.mxu0 %v5688
    %6686 = vmatpush1.bf16.msra.mxu0 %v5687
    %6687 = vmatprep.subr.bf16.mxu0 %v5680
    %6688 = vmatpush1.bf16.msra.mxu0 %v5679
    %6689 = vmatprep.subr.bf16.mxu0 %v5672
    %6690 = vmatpush1.bf16.msra.mxu0 %v5671
    %6691 = vmatprep.subr.bf16.mxu0 %v5664
    %6692 = vmatpush1.bf16.msra.mxu0 %v5663
    %6693 = vmatprep.subr.bf16.mxu0 %v5656
    %6694 = vmatpush1.bf16.msra.mxu0 %v5655
    %6695 = vmatprep.subr.bf16.mxu0 %v5776
    %6696 = vmatpush2.bf16.msra.mxu0 %v5775
    %6697 = vmatprep.subr.bf16.mxu0 %v5768
    %6698 = vmatpush2.bf16.msra.mxu0 %v5767
    %6699 = vmatprep.subr.bf16.mxu0 %v5760
    %6700 = vmatpush2.bf16.msra.mxu0 %v5759
    %6701 = vmatprep.subr.bf16.mxu0 %v5752
    %6702 = vmatpush2.bf16.msra.mxu0 %v5751
    %6703 = vmatprep.subr.bf16.mxu0 %v5744
    %6704 = vmatpush2.bf16.msra.mxu0 %v5743
    %6705 = vmatprep.subr.bf16.mxu0 %v5736
    %6706 = vmatpush2.bf16.msra.mxu0 %v5735
    %6707 = vmatprep.subr.bf16.mxu0 %v5728
    %6708 = vmatpush2.bf16.msra.mxu0 %v5727
    %6709 = vmatprep.subr.bf16.mxu0 %v5720
    %6710 = vmatpush2.bf16.msra.mxu0 %v5719
    %6711 = vmatprep.mubr.bf16.mxu0 %v3558
    %6712 = vmatmul.mubr.bf16.gmra.mxu0 %v3557
    %v6713 = vpop.f32.mrf.mxu0
    %v6714 = vadd.f32 %v4082, %v6713
    %v6715 = vpop.f32.mrf.mxu0
    %v6716 = vadd.f32 %v4086, %v6715
    %v6717 = vpop.f32.mrf.mxu0
    %v6718 = vpop.f32.mrf.mxu0
    %6719 = vdwg.mxu0
    %6720 = vmatprep.subr.bf16.mxu0 %v5840
    %6721 = vmatpush1.bf16.msra.mxu0 %v5839
    %6722 = vmatprep.subr.bf16.mxu0 %v5832
    %6723 = vmatpush1.bf16.msra.mxu0 %v5831
    %6724 = vmatprep.subr.bf16.mxu0 %v5824
    %6725 = vmatpush1.bf16.msra.mxu0 %v5823
    %6726 = vmatprep.subr.bf16.mxu0 %v5816
    %6727 = vmatpush1.bf16.msra.mxu0 %v5815
    %6728 = vmatprep.subr.bf16.mxu0 %v5808
    %6729 = vmatpush1.bf16.msra.mxu0 %v5807
    %6730 = vmatprep.subr.bf16.mxu0 %v5800
    %6731 = vmatpush1.bf16.msra.mxu0 %v5799
    %6732 = vmatprep.subr.bf16.mxu0 %v5792
    %6733 = vmatpush1.bf16.msra.mxu0 %v5791
    %6734 = vmatprep.subr.bf16.mxu0 %v5784
    %6735 = vmatpush1.bf16.msra.mxu0 %v5783
    %6736 = vmatprep.subr.bf16.mxu0 %v5904
    %6737 = vmatpush2.bf16.msra.mxu0 %v5903
    %6738 = vmatprep.subr.bf16.mxu0 %v5896
    %6739 = vmatpush2.bf16.msra.mxu0 %v5895
    %6740 = vmatprep.subr.bf16.mxu0 %v5888
    %6741 = vmatpush2.bf16.msra.mxu0 %v5887
    %6742 = vmatprep.subr.bf16.mxu0 %v5880
    %6743 = vmatpush2.bf16.msra.mxu0 %v5879
    %6744 = vmatprep.subr.bf16.mxu0 %v5872
    %6745 = vmatpush2.bf16.msra.mxu0 %v5871
    %6746 = vmatprep.subr.bf16.mxu0 %v5864
    %6747 = vmatpush2.bf16.msra.mxu0 %v5863
    %6748 = vmatprep.subr.bf16.mxu0 %v5856
    %6749 = vmatpush2.bf16.msra.mxu0 %v5855
    %6750 = vmatprep.subr.bf16.mxu0 %v5848
    %6751 = vmatpush2.bf16.msra.mxu0 %v5847
    %6752 = vmatprep.mubr.bf16.mxu0 %v3560
    %6753 = vmatmul.mubr.bf16.gmra.mxu0 %v3559
    %v6754 = vpop.f32.mrf.mxu0
    %v6755 = vadd.f32 %v6714, %v6754
    %v6756 = vpop.f32.mrf.mxu0
    %v6757 = vadd.f32 %v6716, %v6756
    %v6758 = vpop.f32.mrf.mxu0
    %v6759 = vpop.f32.mrf.mxu0
    %6760 = vdwg.mxu0
    %6761 = vmatprep.subr.bf16.mxu0 %v5968
    %6762 = vmatpush1.bf16.msra.mxu0 %v5967
    %6763 = vmatprep.subr.bf16.mxu0 %v5960
    %6764 = vmatpush1.bf16.msra.mxu0 %v5959
    %6765 = vmatprep.subr.bf16.mxu0 %v5952
    %6766 = vmatpush1.bf16.msra.mxu0 %v5951
    %6767 = vmatprep.subr.bf16.mxu0 %v5944
    %6768 = vmatpush1.bf16.msra.mxu0 %v5943
    %6769 = vmatprep.subr.bf16.mxu0 %v5936
    %6770 = vmatpush1.bf16.msra.mxu0 %v5935
    %6771 = vmatprep.subr.bf16.mxu0 %v5928
    %6772 = vmatpush1.bf16.msra.mxu0 %v5927
    %6773 = vmatprep.subr.bf16.mxu0 %v5920
    %6774 = vmatpush1.bf16.msra.mxu0 %v5919
    %6775 = vmatprep.subr.bf16.mxu0 %v5912
    %6776 = vmatpush1.bf16.msra.mxu0 %v5911
    %6777 = vmatprep.subr.bf16.mxu0 %v6032
    %6778 = vmatpush2.bf16.msra.mxu0 %v6031
    %6779 = vmatprep.subr.bf16.mxu0 %v6024
    %6780 = vmatpush2.bf16.msra.mxu0 %v6023
    %6781 = vmatprep.subr.bf16.mxu0 %v6016
    %6782 = vmatpush2.bf16.msra.mxu0 %v6015
    %6783 = vmatprep.subr.bf16.mxu0 %v6008
    %6784 = vmatpush2.bf16.msra.mxu0 %v6007
    %6785 = vmatprep.subr.bf16.mxu0 %v6000
    %6786 = vmatpush2.bf16.msra.mxu0 %v5999
    %6787 = vmatprep.subr.bf16.mxu0 %v5992
    %6788 = vmatpush2.bf16.msra.mxu0 %v5991
    %6789 = vmatprep.subr.bf16.mxu0 %v5984
    %6790 = vmatpush2.bf16.msra.mxu0 %v5983
    %6791 = vmatprep.subr.bf16.mxu0 %v5976
    %6792 = vmatpush2.bf16.msra.mxu0 %v5975
    %6793 = vmatprep.mubr.bf16.mxu0 %v3562
    %6794 = vmatmul.mubr.bf16.gmra.mxu0 %v3561
    %v6795 = vpop.f32.mrf.mxu0
    %v6796 = vadd.f32 %v6755, %v6795
    %v6797 = vpop.f32.mrf.mxu0
    %v6798 = vadd.f32 %v6757, %v6797
    %v6799 = vpop.f32.mrf.mxu0
    %v6800 = vpop.f32.mrf.mxu0
    %6801 = vdwg.mxu0
    %6802 = vmatprep.subr.bf16.mxu0 %v6096
    %6803 = vmatpush1.bf16.msra.mxu0 %v6095
    %6804 = vmatprep.subr.bf16.mxu0 %v6088
    %6805 = vmatpush1.bf16.msra.mxu0 %v6087
    %6806 = vmatprep.subr.bf16.mxu0 %v6080
    %6807 = vmatpush1.bf16.msra.mxu0 %v6079
    %6808 = vmatprep.subr.bf16.mxu0 %v6072
    %6809 = vmatpush1.bf16.msra.mxu0 %v6071
    %6810 = vmatprep.subr.bf16.mxu0 %v6064
    %6811 = vmatpush1.bf16.msra.mxu0 %v6063
    %6812 = vmatprep.subr.bf16.mxu0 %v6056
    %6813 = vmatpush1.bf16.msra.mxu0 %v6055
    %6814 = vmatprep.subr.bf16.mxu0 %v6048
    %6815 = vmatpush1.bf16.msra.mxu0 %v6047
    %6816 = vmatprep.subr.bf16.mxu0 %v6040
    %6817 = vmatpush1.bf16.msra.mxu0 %v6039
    %6818 = vmatprep.subr.bf16.mxu0 %v6160
    %6819 = vmatpush2.bf16.msra.mxu0 %v6159
    %6820 = vmatprep.subr.bf16.mxu0 %v6152
    %6821 = vmatpush2.bf16.msra.mxu0 %v6151
    %6822 = vmatprep.subr.bf16.mxu0 %v6144
    %6823 = vmatpush2.bf16.msra.mxu0 %v6143
    %6824 = vmatprep.subr.bf16.mxu0 %v6136
    %6825 = vmatpush2.bf16.msra.mxu0 %v6135
    %6826 = vmatprep.subr.bf16.mxu0 %v6128
    %6827 = vmatpush2.bf16.msra.mxu0 %v6127
    %6828 = vmatprep.subr.bf16.mxu0 %v6120
    %6829 = vmatpush2.bf16.msra.mxu0 %v6119
    %6830 = vmatprep.subr.bf16.mxu0 %v6112
    %6831 = vmatpush2.bf16.msra.mxu0 %v6111
    %6832 = vmatprep.subr.bf16.mxu0 %v6104
    %6833 = vmatpush2.bf16.msra.mxu0 %v6103
    %6834 = vmatprep.mubr.bf16.mxu0 %v3564
    %6835 = vmatmul.mubr.bf16.gmra.mxu0 %v3563
    %v6836 = vpop.f32.mrf.mxu0
    %v6837 = vadd.f32 %v6796, %v6836
    %v6838 = vpop.f32.mrf.mxu0
    %v6839 = vadd.f32 %v6798, %v6838
    %v6840 = vpop.f32.mrf.mxu0
    %v6841 = vpop.f32.mrf.mxu0
    %6842 = vdwg.mxu0
    %6843 = vmatprep.subr.bf16.mxu0 %v5714
    %6844 = vmatpush1.bf16.msra.mxu0 %v5713
    %6845 = vmatprep.subr.bf16.mxu0 %v5706
    %6846 = vmatpush1.bf16.msra.mxu0 %v5705
    %6847 = vmatprep.subr.bf16.mxu0 %v5698
    %6848 = vmatpush1.bf16.msra.mxu0 %v5697
    %6849 = vmatprep.subr.bf16.mxu0 %v5690
    %6850 = vmatpush1.bf16.msra.mxu0 %v5689
    %6851 = vmatprep.subr.bf16.mxu0 %v5682
    %6852 = vmatpush1.bf16.msra.mxu0 %v5681
    %6853 = vmatprep.subr.bf16.mxu0 %v5674
    %6854 = vmatpush1.bf16.msra.mxu0 %v5673
    %6855 = vmatprep.subr.bf16.mxu0 %v5666
    %6856 = vmatpush1.bf16.msra.mxu0 %v5665
    %6857 = vmatprep.subr.bf16.mxu0 %v5658
    %6858 = vmatpush1.bf16.msra.mxu0 %v5657
    %6859 = vmatprep.subr.bf16.mxu0 %v5778
    %6860 = vmatpush2.bf16.msra.mxu0 %v5777
    %6861 = vmatprep.subr.bf16.mxu0 %v5770
    %6862 = vmatpush2.bf16.msra.mxu0 %v5769
    %6863 = vmatprep.subr.bf16.mxu0 %v5762
    %6864 = vmatpush2.bf16.msra.mxu0 %v5761
    %6865 = vmatprep.subr.bf16.mxu0 %v5754
    %6866 = vmatpush2.bf16.msra.mxu0 %v5753
    %6867 = vmatprep.subr.bf16.mxu0 %v5746
    %6868 = vmatpush2.bf16.msra.mxu0 %v5745
    %6869 = vmatprep.subr.bf16.mxu0 %v5738
    %6870 = vmatpush2.bf16.msra.mxu0 %v5737
    %6871 = vmatprep.subr.bf16.mxu0 %v5730
    %6872 = vmatpush2.bf16.msra.mxu0 %v5729
    %6873 = vmatprep.subr.bf16.mxu0 %v5722
    %6874 = vmatpush2.bf16.msra.mxu0 %v5721
    %6875 = vmatprep.mubr.bf16.mxu0 %v3558
    %6876 = vmatmul.mubr.bf16.gmra.mxu0 %v3557
    %v6877 = vpop.f32.mrf.mxu0
    %v6878 = vadd.f32 %v4090, %v6877
    %v6879 = vpop.f32.mrf.mxu0
    %v6880 = vadd.f32 %v4094, %v6879
    %v6881 = vpop.f32.mrf.mxu0
    %v6882 = vpop.f32.mrf.mxu0
    %6883 = vdwg.mxu0
    %6884 = vmatprep.subr.bf16.mxu0 %v5842
    %6885 = vmatpush1.bf16.msra.mxu0 %v5841
    %6886 = vmatprep.subr.bf16.mxu0 %v5834
    %6887 = vmatpush1.bf16.msra.mxu0 %v5833
    %6888 = vmatprep.subr.bf16.mxu0 %v5826
    %6889 = vmatpush1.bf16.msra.mxu0 %v5825
    %6890 = vmatprep.subr.bf16.mxu0 %v5818
    %6891 = vmatpush1.bf16.msra.mxu0 %v5817
    %6892 = vmatprep.subr.bf16.mxu0 %v5810
    %6893 = vmatpush1.bf16.msra.mxu0 %v5809
    %6894 = vmatprep.subr.bf16.mxu0 %v5802
    %6895 = vmatpush1.bf16.msra.mxu0 %v5801
    %6896 = vmatprep.subr.bf16.mxu0 %v5794
    %6897 = vmatpush1.bf16.msra.mxu0 %v5793
    %6898 = vmatprep.subr.bf16.mxu0 %v5786
    %6899 = vmatpush1.bf16.msra.mxu0 %v5785
    %6900 = vmatprep.subr.bf16.mxu0 %v5906
    %6901 = vmatpush2.bf16.msra.mxu0 %v5905
    %6902 = vmatprep.subr.bf16.mxu0 %v5898
    %6903 = vmatpush2.bf16.msra.mxu0 %v5897
    %6904 = vmatprep.subr.bf16.mxu0 %v5890
    %6905 = vmatpush2.bf16.msra.mxu0 %v5889
    %6906 = vmatprep.subr.bf16.mxu0 %v5882
    %6907 = vmatpush2.bf16.msra.mxu0 %v5881
    %6908 = vmatprep.subr.bf16.mxu0 %v5874
    %6909 = vmatpush2.bf16.msra.mxu0 %v5873
    %6910 = vmatprep.subr.bf16.mxu0 %v5866
    %6911 = vmatpush2.bf16.msra.mxu0 %v5865
    %6912 = vmatprep.subr.bf16.mxu0 %v5858
    %6913 = vmatpush2.bf16.msra.mxu0 %v5857
    %6914 = vmatprep.subr.bf16.mxu0 %v5850
    %6915 = vmatpush2.bf16.msra.mxu0 %v5849
    %6916 = vmatprep.mubr.bf16.mxu0 %v3560
    %6917 = vmatmul.mubr.bf16.gmra.mxu0 %v3559
    %v6918 = vpop.f32.mrf.mxu0
    %v6919 = vadd.f32 %v6878, %v6918
    %v6920 = vpop.f32.mrf.mxu0
    %v6921 = vadd.f32 %v6880, %v6920
    %v6922 = vpop.f32.mrf.mxu0
    %v6923 = vpop.f32.mrf.mxu0
    %6924 = vdwg.mxu0
    %6925 = vmatprep.subr.bf16.mxu0 %v5970
    %6926 = vmatpush1.bf16.msra.mxu0 %v5969
    %6927 = vmatprep.subr.bf16.mxu0 %v5962
    %6928 = vmatpush1.bf16.msra.mxu0 %v5961
    %6929 = vmatprep.subr.bf16.mxu0 %v5954
    %6930 = vmatpush1.bf16.msra.mxu0 %v5953
    %6931 = vmatprep.subr.bf16.mxu0 %v5946
    %6932 = vmatpush1.bf16.msra.mxu0 %v5945
    %6933 = vmatprep.subr.bf16.mxu0 %v5938
    %6934 = vmatpush1.bf16.msra.mxu0 %v5937
    %6935 = vmatprep.subr.bf16.mxu0 %v5930
    %6936 = vmatpush1.bf16.msra.mxu0 %v5929
    %6937 = vmatprep.subr.bf16.mxu0 %v5922
    %6938 = vmatpush1.bf16.msra.mxu0 %v5921
    %6939 = vmatprep.subr.bf16.mxu0 %v5914
    %6940 = vmatpush1.bf16.msra.mxu0 %v5913
    %6941 = vmatprep.subr.bf16.mxu0 %v6034
    %6942 = vmatpush2.bf16.msra.mxu0 %v6033
    %6943 = vmatprep.subr.bf16.mxu0 %v6026
    %6944 = vmatpush2.bf16.msra.mxu0 %v6025
    %6945 = vmatprep.subr.bf16.mxu0 %v6018
    %6946 = vmatpush2.bf16.msra.mxu0 %v6017
    %6947 = vmatprep.subr.bf16.mxu0 %v6010
    %6948 = vmatpush2.bf16.msra.mxu0 %v6009
    %6949 = vmatprep.subr.bf16.mxu0 %v6002
    %6950 = vmatpush2.bf16.msra.mxu0 %v6001
    %6951 = vmatprep.subr.bf16.mxu0 %v5994
    %6952 = vmatpush2.bf16.msra.mxu0 %v5993
    %6953 = vmatprep.subr.bf16.mxu0 %v5986
    %6954 = vmatpush2.bf16.msra.mxu0 %v5985
    %6955 = vmatprep.subr.bf16.mxu0 %v5978
    %6956 = vmatpush2.bf16.msra.mxu0 %v5977
    %6957 = vmatprep.mubr.bf16.mxu0 %v3562
    %6958 = vmatmul.mubr.bf16.gmra.mxu0 %v3561
    %v6959 = vpop.f32.mrf.mxu0
    %v6960 = vadd.f32 %v6919, %v6959
    %v6961 = vpop.f32.mrf.mxu0
    %v6962 = vadd.f32 %v6921, %v6961
    %v6963 = vpop.f32.mrf.mxu0
    %v6964 = vpop.f32.mrf.mxu0
    %6965 = vdwg.mxu0
    %6966 = vmatprep.subr.bf16.mxu0 %v6098
    %6967 = vmatpush1.bf16.msra.mxu0 %v6097
    %6968 = vmatprep.subr.bf16.mxu0 %v6090
    %6969 = vmatpush1.bf16.msra.mxu0 %v6089
    %6970 = vmatprep.subr.bf16.mxu0 %v6082
    %6971 = vmatpush1.bf16.msra.mxu0 %v6081
    %6972 = vmatprep.subr.bf16.mxu0 %v6074
    %6973 = vmatpush1.bf16.msra.mxu0 %v6073
    %6974 = vmatprep.subr.bf16.mxu0 %v6066
    %6975 = vmatpush1.bf16.msra.mxu0 %v6065
    %6976 = vmatprep.subr.bf16.mxu0 %v6058
    %6977 = vmatpush1.bf16.msra.mxu0 %v6057
    %6978 = vmatprep.subr.bf16.mxu0 %v6050
    %6979 = vmatpush1.bf16.msra.mxu0 %v6049
    %6980 = vmatprep.subr.bf16.mxu0 %v6042
    %6981 = vmatpush1.bf16.msra.mxu0 %v6041
    %6982 = vmatprep.subr.bf16.mxu0 %v6162
    %6983 = vmatpush2.bf16.msra.mxu0 %v6161
    %6984 = vmatprep.subr.bf16.mxu0 %v6154
    %6985 = vmatpush2.bf16.msra.mxu0 %v6153
    %6986 = vmatprep.subr.bf16.mxu0 %v6146
    %6987 = vmatpush2.bf16.msra.mxu0 %v6145
    %6988 = vmatprep.subr.bf16.mxu0 %v6138
    %6989 = vmatpush2.bf16.msra.mxu0 %v6137
    %6990 = vmatprep.subr.bf16.mxu0 %v6130
    %6991 = vmatpush2.bf16.msra.mxu0 %v6129
    %6992 = vmatprep.subr.bf16.mxu0 %v6122
    %6993 = vmatpush2.bf16.msra.mxu0 %v6121
    %6994 = vmatprep.subr.bf16.mxu0 %v6114
    %6995 = vmatpush2.bf16.msra.mxu0 %v6113
    %6996 = vmatprep.subr.bf16.mxu0 %v6106
    %6997 = vmatpush2.bf16.msra.mxu0 %v6105
    %6998 = vmatprep.mubr.bf16.mxu0 %v3564
    %6999 = vmatmul.mubr.bf16.gmra.mxu0 %v3563
    %v7000 = vpop.f32.mrf.mxu0
    %v7001 = vadd.f32 %v6960, %v7000
    %v7002 = vpop.f32.mrf.mxu0
    %v7003 = vadd.f32 %v6962, %v7002
    %v7004 = vpop.f32.mrf.mxu0
    %v7005 = vpop.f32.mrf.mxu0
    %7006 = vdwg.mxu0
    %7007 = vmatprep.subr.bf16.mxu0 %v5716
    %7008 = vmatpush1.bf16.msra.mxu0 %v5715
    %7009 = vmatprep.subr.bf16.mxu0 %v5708
    %7010 = vmatpush1.bf16.msra.mxu0 %v5707
    %7011 = vmatprep.subr.bf16.mxu0 %v5700
    %7012 = vmatpush1.bf16.msra.mxu0 %v5699
    %7013 = vmatprep.subr.bf16.mxu0 %v5692
    %7014 = vmatpush1.bf16.msra.mxu0 %v5691
    %7015 = vmatprep.subr.bf16.mxu0 %v5684
    %7016 = vmatpush1.bf16.msra.mxu0 %v5683
    %7017 = vmatprep.subr.bf16.mxu0 %v5676
    %7018 = vmatpush1.bf16.msra.mxu0 %v5675
    %7019 = vmatprep.subr.bf16.mxu0 %v5668
    %7020 = vmatpush1.bf16.msra.mxu0 %v5667
    %7021 = vmatprep.subr.bf16.mxu0 %v5660
    %7022 = vmatpush1.bf16.msra.mxu0 %v5659
    %7023 = vmatprep.subr.bf16.mxu0 %v5780
    %7024 = vmatpush2.bf16.msra.mxu0 %v5779
    %7025 = vmatprep.subr.bf16.mxu0 %v5772
    %7026 = vmatpush2.bf16.msra.mxu0 %v5771
    %7027 = vmatprep.subr.bf16.mxu0 %v5764
    %7028 = vmatpush2.bf16.msra.mxu0 %v5763
    %7029 = vmatprep.subr.bf16.mxu0 %v5756
    %7030 = vmatpush2.bf16.msra.mxu0 %v5755
    %7031 = vmatprep.subr.bf16.mxu0 %v5748
    %7032 = vmatpush2.bf16.msra.mxu0 %v5747
    %7033 = vmatprep.subr.bf16.mxu0 %v5740
    %7034 = vmatpush2.bf16.msra.mxu0 %v5739
    %7035 = vmatprep.subr.bf16.mxu0 %v5732
    %7036 = vmatpush2.bf16.msra.mxu0 %v5731
    %7037 = vmatprep.subr.bf16.mxu0 %v5724
    %7038 = vmatpush2.bf16.msra.mxu0 %v5723
    %7039 = vmatprep.mubr.bf16.mxu0 %v3558
    %7040 = vmatmul.mubr.bf16.gmra.mxu0 %v3557
    %v7041 = vpop.f32.mrf.mxu0
    %v7042 = vadd.f32 %v4098, %v7041
    %v7043 = vpop.f32.mrf.mxu0
    %v7044 = vadd.f32 %v4102, %v7043
    %v7045 = vpop.f32.mrf.mxu0
    %v7046 = vpop.f32.mrf.mxu0
    %7047 = vdwg.mxu0
    %7048 = vmatprep.subr.bf16.mxu0 %v5844
    %7049 = vmatpush1.bf16.msra.mxu0 %v5843
    %7050 = vmatprep.subr.bf16.mxu0 %v5836
    %7051 = vmatpush1.bf16.msra.mxu0 %v5835
    %7052 = vmatprep.subr.bf16.mxu0 %v5828
    %7053 = vmatpush1.bf16.msra.mxu0 %v5827
    %7054 = vmatprep.subr.bf16.mxu0 %v5820
    %7055 = vmatpush1.bf16.msra.mxu0 %v5819
    %7056 = vmatprep.subr.bf16.mxu0 %v5812
    %7057 = vmatpush1.bf16.msra.mxu0 %v5811
    %7058 = vmatprep.subr.bf16.mxu0 %v5804
    %7059 = vmatpush1.bf16.msra.mxu0 %v5803
    %7060 = vmatprep.subr.bf16.mxu0 %v5796
    %7061 = vmatpush1.bf16.msra.mxu0 %v5795
    %7062 = vmatprep.subr.bf16.mxu0 %v5788
    %7063 = vmatpush1.bf16.msra.mxu0 %v5787
    %7064 = vmatprep.subr.bf16.mxu0 %v5908
    %7065 = vmatpush2.bf16.msra.mxu0 %v5907
    %7066 = vmatprep.subr.bf16.mxu0 %v5900
    %7067 = vmatpush2.bf16.msra.mxu0 %v5899
    %7068 = vmatprep.subr.bf16.mxu0 %v5892
    %7069 = vmatpush2.bf16.msra.mxu0 %v5891
    %7070 = vmatprep.subr.bf16.mxu0 %v5884
    %7071 = vmatpush2.bf16.msra.mxu0 %v5883
    %7072 = vmatprep.subr.bf16.mxu0 %v5876
    %7073 = vmatpush2.bf16.msra.mxu0 %v5875
    %7074 = vmatprep.subr.bf16.mxu0 %v5868
    %7075 = vmatpush2.bf16.msra.mxu0 %v5867
    %7076 = vmatprep.subr.bf16.mxu0 %v5860
    %7077 = vmatpush2.bf16.msra.mxu0 %v5859
    %7078 = vmatprep.subr.bf16.mxu0 %v5852
    %7079 = vmatpush2.bf16.msra.mxu0 %v5851
    %7080 = vmatprep.mubr.bf16.mxu0 %v3560
    %7081 = vmatmul.mubr.bf16.gmra.mxu0 %v3559
    %v7082 = vpop.f32.mrf.mxu0
    %v7083 = vadd.f32 %v7042, %v7082
    %v7084 = vpop.f32.mrf.mxu0
    %v7085 = vadd.f32 %v7044, %v7084
    %v7086 = vpop.f32.mrf.mxu0
    %v7087 = vpop.f32.mrf.mxu0
    %7088 = vdwg.mxu0
    %7089 = vmatprep.subr.bf16.mxu0 %v5972
    %7090 = vmatpush1.bf16.msra.mxu0 %v5971
    %7091 = vmatprep.subr.bf16.mxu0 %v5964
    %7092 = vmatpush1.bf16.msra.mxu0 %v5963
    %7093 = vmatprep.subr.bf16.mxu0 %v5956
    %7094 = vmatpush1.bf16.msra.mxu0 %v5955
    %7095 = vmatprep.subr.bf16.mxu0 %v5948
    %7096 = vmatpush1.bf16.msra.mxu0 %v5947
    %7097 = vmatprep.subr.bf16.mxu0 %v5940
    %7098 = vmatpush1.bf16.msra.mxu0 %v5939
    %7099 = vmatprep.subr.bf16.mxu0 %v5932
    %7100 = vmatpush1.bf16.msra.mxu0 %v5931
    %7101 = vmatprep.subr.bf16.mxu0 %v5924
    %7102 = vmatpush1.bf16.msra.mxu0 %v5923
    %7103 = vmatprep.subr.bf16.mxu0 %v5916
    %7104 = vmatpush1.bf16.msra.mxu0 %v5915
    %7105 = vmatprep.subr.bf16.mxu0 %v6036
    %7106 = vmatpush2.bf16.msra.mxu0 %v6035
    %7107 = vmatprep.subr.bf16.mxu0 %v6028
    %7108 = vmatpush2.bf16.msra.mxu0 %v6027
    %7109 = vmatprep.subr.bf16.mxu0 %v6020
    %7110 = vmatpush2.bf16.msra.mxu0 %v6019
    %7111 = vmatprep.subr.bf16.mxu0 %v6012
    %7112 = vmatpush2.bf16.msra.mxu0 %v6011
    %7113 = vmatprep.subr.bf16.mxu0 %v6004
    %7114 = vmatpush2.bf16.msra.mxu0 %v6003
    %7115 = vmatprep.subr.bf16.mxu0 %v5996
    %7116 = vmatpush2.bf16.msra.mxu0 %v5995
    %7117 = vmatprep.subr.bf16.mxu0 %v5988
    %7118 = vmatpush2.bf16.msra.mxu0 %v5987
    %7119 = vmatprep.subr.bf16.mxu0 %v5980
    %7120 = vmatpush2.bf16.msra.mxu0 %v5979
    %7121 = vmatprep.mubr.bf16.mxu0 %v3562
    %7122 = vmatmul.mubr.bf16.gmra.mxu0 %v3561
    %v7123 = vpop.f32.mrf.mxu0
    %v7124 = vadd.f32 %v7083, %v7123
    %v7125 = vpop.f32.mrf.mxu0
    %v7126 = vadd.f32 %v7085, %v7125
    %v7127 = vpop.f32.mrf.mxu0
    %v7128 = vpop.f32.mrf.mxu0
    %7129 = vdwg.mxu0
    %7130 = vmatprep.subr.bf16.mxu0 %v6100
    %7131 = vmatpush1.bf16.msra.mxu0 %v6099
    %7132 = vmatprep.subr.bf16.mxu0 %v6092
    %7133 = vmatpush1.bf16.msra.mxu0 %v6091
    %7134 = vmatprep.subr.bf16.mxu0 %v6084
    %7135 = vmatpush1.bf16.msra.mxu0 %v6083
    %7136 = vmatprep.subr.bf16.mxu0 %v6076
    %7137 = vmatpush1.bf16.msra.mxu0 %v6075
    %7138 = vmatprep.subr.bf16.mxu0 %v6068
    %7139 = vmatpush1.bf16.msra.mxu0 %v6067
    %7140 = vmatprep.subr.bf16.mxu0 %v6060
    %7141 = vmatpush1.bf16.msra.mxu0 %v6059
    %7142 = vmatprep.subr.bf16.mxu0 %v6052
    %7143 = vmatpush1.bf16.msra.mxu0 %v6051
    %7144 = vmatprep.subr.bf16.mxu0 %v6044
    %7145 = vmatpush1.bf16.msra.mxu0 %v6043
    %7146 = vmatprep.subr.bf16.mxu0 %v6164
    %7147 = vmatpush2.bf16.msra.mxu0 %v6163
    %7148 = vmatprep.subr.bf16.mxu0 %v6156
    %7149 = vmatpush2.bf16.msra.mxu0 %v6155
    %7150 = vmatprep.subr.bf16.mxu0 %v6148
    %7151 = vmatpush2.bf16.msra.mxu0 %v6147
    %7152 = vmatprep.subr.bf16.mxu0 %v6140
    %7153 = vmatpush2.bf16.msra.mxu0 %v6139
    %7154 = vmatprep.subr.bf16.mxu0 %v6132
    %7155 = vmatpush2.bf16.msra.mxu0 %v6131
    %7156 = vmatprep.subr.bf16.mxu0 %v6124
    %7157 = vmatpush2.bf16.msra.mxu0 %v6123
    %7158 = vmatprep.subr.bf16.mxu0 %v6116
    %7159 = vmatpush2.bf16.msra.mxu0 %v6115
    %7160 = vmatprep.subr.bf16.mxu0 %v6108
    %7161 = vmatpush2.bf16.msra.mxu0 %v6107
    %7162 = vmatprep.mubr.bf16.mxu0 %v3564
    %7163 = vmatmul.mubr.bf16.gmra.mxu0 %v3563
    %v7164 = vpop.f32.mrf.mxu0
    %v7165 = vadd.f32 %v7124, %v7164
    %v7166 = vpop.f32.mrf.mxu0
    %v7167 = vadd.f32 %v7126, %v7166
    %v7168 = vpop.f32.mrf.mxu0
    %v7169 = vpop.f32.mrf.mxu0
    %7170 = vdwg.mxu0
    %7171 = vmatprep.subr.bf16.mxu0 %v5718
    %7172 = vmatpush1.bf16.msra.mxu0 %v5717
    %7173 = vmatprep.subr.bf16.mxu0 %v5710
    %7174 = vmatpush1.bf16.msra.mxu0 %v5709
    %7175 = vmatprep.subr.bf16.mxu0 %v5702
    %7176 = vmatpush1.bf16.msra.mxu0 %v5701
    %7177 = vmatprep.subr.bf16.mxu0 %v5694
    %7178 = vmatpush1.bf16.msra.mxu0 %v5693
    %7179 = vmatprep.subr.bf16.mxu0 %v5686
    %7180 = vmatpush1.bf16.msra.mxu0 %v5685
    %7181 = vmatprep.subr.bf16.mxu0 %v5678
    %7182 = vmatpush1.bf16.msra.mxu0 %v5677
    %7183 = vmatprep.subr.bf16.mxu0 %v5670
    %7184 = vmatpush1.bf16.msra.mxu0 %v5669
    %7185 = vmatprep.subr.bf16.mxu0 %v5662
    %7186 = vmatpush1.bf16.msra.mxu0 %v5661
    %7187 = vmatprep.subr.bf16.mxu0 %v5782
    %7188 = vmatpush2.bf16.msra.mxu0 %v5781
    %7189 = vmatprep.subr.bf16.mxu0 %v5774
    %7190 = vmatpush2.bf16.msra.mxu0 %v5773
    %7191 = vmatprep.subr.bf16.mxu0 %v5766
    %7192 = vmatpush2.bf16.msra.mxu0 %v5765
    %7193 = vmatprep.subr.bf16.mxu0 %v5758
    %7194 = vmatpush2.bf16.msra.mxu0 %v5757
    %7195 = vmatprep.subr.bf16.mxu0 %v5750
    %7196 = vmatpush2.bf16.msra.mxu0 %v5749
    %7197 = vmatprep.subr.bf16.mxu0 %v5742
    %7198 = vmatpush2.bf16.msra.mxu0 %v5741
    %7199 = vmatprep.subr.bf16.mxu0 %v5734
    %7200 = vmatpush2.bf16.msra.mxu0 %v5733
    %7201 = vmatprep.subr.bf16.mxu0 %v5726
    %7202 = vmatpush2.bf16.msra.mxu0 %v5725
    %7203 = vmatprep.mubr.bf16.mxu0 %v3558
    %7204 = vmatmul.mubr.bf16.gmra.mxu0 %v3557
    %v7205 = vpop.f32.mrf.mxu0
    %v7206 = vadd.f32 %v4106, %v7205
    %v7207 = vpop.f32.mrf.mxu0
    %v7208 = vadd.f32 %v4110, %v7207
    %v7209 = vpop.f32.mrf.mxu0
    %v7210 = vpop.f32.mrf.mxu0
    %7211 = vdwg.mxu0
    %7212 = vmatprep.subr.bf16.mxu0 %v5846
    %7213 = vmatpush1.bf16.msra.mxu0 %v5845
    %7214 = vmatprep.subr.bf16.mxu0 %v5838
    %7215 = vmatpush1.bf16.msra.mxu0 %v5837
    %7216 = vmatprep.subr.bf16.mxu0 %v5830
    %7217 = vmatpush1.bf16.msra.mxu0 %v5829
    %7218 = vmatprep.subr.bf16.mxu0 %v5822
    %7219 = vmatpush1.bf16.msra.mxu0 %v5821
    %7220 = vmatprep.subr.bf16.mxu0 %v5814
    %7221 = vmatpush1.bf16.msra.mxu0 %v5813
    %7222 = vmatprep.subr.bf16.mxu0 %v5806
    %7223 = vmatpush1.bf16.msra.mxu0 %v5805
    %7224 = vmatprep.subr.bf16.mxu0 %v5798
    %7225 = vmatpush1.bf16.msra.mxu0 %v5797
    %7226 = vmatprep.subr.bf16.mxu0 %v5790
    %7227 = vmatpush1.bf16.msra.mxu0 %v5789
    %7228 = vmatprep.subr.bf16.mxu0 %v5910
    %7229 = vmatpush2.bf16.msra.mxu0 %v5909
    %7230 = vmatprep.subr.bf16.mxu0 %v5902
    %7231 = vmatpush2.bf16.msra.mxu0 %v5901
    %7232 = vmatprep.subr.bf16.mxu0 %v5894
    %7233 = vmatpush2.bf16.msra.mxu0 %v5893
    %7234 = vmatprep.subr.bf16.mxu0 %v5886
    %7235 = vmatpush2.bf16.msra.mxu0 %v5885
    %7236 = vmatprep.subr.bf16.mxu0 %v5878
    %7237 = vmatpush2.bf16.msra.mxu0 %v5877
    %7238 = vmatprep.subr.bf16.mxu0 %v5870
    %7239 = vmatpush2.bf16.msra.mxu0 %v5869
    %7240 = vmatprep.subr.bf16.mxu0 %v5862
    %7241 = vmatpush2.bf16.msra.mxu0 %v5861
    %7242 = vmatprep.subr.bf16.mxu0 %v5854
    %7243 = vmatpush2.bf16.msra.mxu0 %v5853
    %7244 = vmatprep.mubr.bf16.mxu0 %v3560
    %7245 = vmatmul.mubr.bf16.gmra.mxu0 %v3559
    %v7246 = vpop.f32.mrf.mxu0
    %v7247 = vadd.f32 %v7206, %v7246
    %v7248 = vpop.f32.mrf.mxu0
    %v7249 = vadd.f32 %v7208, %v7248
    %v7250 = vpop.f32.mrf.mxu0
    %v7251 = vpop.f32.mrf.mxu0
    %7252 = vdwg.mxu0
    %7253 = vmatprep.subr.bf16.mxu0 %v5974
    %7254 = vmatpush1.bf16.msra.mxu0 %v5973
    %7255 = vmatprep.subr.bf16.mxu0 %v5966
    %7256 = vmatpush1.bf16.msra.mxu0 %v5965
    %7257 = vmatprep.subr.bf16.mxu0 %v5958
    %7258 = vmatpush1.bf16.msra.mxu0 %v5957
    %7259 = vmatprep.subr.bf16.mxu0 %v5950
    %7260 = vmatpush1.bf16.msra.mxu0 %v5949
    %7261 = vmatprep.subr.bf16.mxu0 %v5942
    %7262 = vmatpush1.bf16.msra.mxu0 %v5941
    %7263 = vmatprep.subr.bf16.mxu0 %v5934
    %7264 = vmatpush1.bf16.msra.mxu0 %v5933
    %7265 = vmatprep.subr.bf16.mxu0 %v5926
    %7266 = vmatpush1.bf16.msra.mxu0 %v5925
    %7267 = vmatprep.subr.bf16.mxu0 %v5918
    %7268 = vmatpush1.bf16.msra.mxu0 %v5917
    %7269 = vmatprep.subr.bf16.mxu0 %v6038
    %7270 = vmatpush2.bf16.msra.mxu0 %v6037
    %7271 = vmatprep.subr.bf16.mxu0 %v6030
    %7272 = vmatpush2.bf16.msra.mxu0 %v6029
    %7273 = vmatprep.subr.bf16.mxu0 %v6022
    %7274 = vmatpush2.bf16.msra.mxu0 %v6021
    %7275 = vmatprep.subr.bf16.mxu0 %v6014
    %7276 = vmatpush2.bf16.msra.mxu0 %v6013
    %7277 = vmatprep.subr.bf16.mxu0 %v6006
    %7278 = vmatpush2.bf16.msra.mxu0 %v6005
    %7279 = vmatprep.subr.bf16.mxu0 %v5998
    %7280 = vmatpush2.bf16.msra.mxu0 %v5997
    %7281 = vmatprep.subr.bf16.mxu0 %v5990
    %7282 = vmatpush2.bf16.msra.mxu0 %v5989
    %7283 = vmatprep.subr.bf16.mxu0 %v5982
    %7284 = vmatpush2.bf16.msra.mxu0 %v5981
    %7285 = vmatprep.mubr.bf16.mxu0 %v3562
    %7286 = vmatmul.mubr.bf16.gmra.mxu0 %v3561
    %v7287 = vpop.f32.mrf.mxu0
    %v7288 = vadd.f32 %v7247, %v7287
    %v7289 = vpop.f32.mrf.mxu0
    %v7290 = vadd.f32 %v7249, %v7289
    %v7291 = vpop.f32.mrf.mxu0
    %v7292 = vpop.f32.mrf.mxu0
    %7293 = vdwg.mxu0
    %7294 = vmatprep.subr.bf16.mxu0 %v6102
    %7295 = vmatpush1.bf16.msra.mxu0 %v6101
    %7296 = vmatprep.subr.bf16.mxu0 %v6094
    %7297 = vmatpush1.bf16.msra.mxu0 %v6093
    %7298 = vmatprep.subr.bf16.mxu0 %v6086
    %7299 = vmatpush1.bf16.msra.mxu0 %v6085
    %7300 = vmatprep.subr.bf16.mxu0 %v6078
    %7301 = vmatpush1.bf16.msra.mxu0 %v6077
    %7302 = vmatprep.subr.bf16.mxu0 %v6070
    %7303 = vmatpush1.bf16.msra.mxu0 %v6069
    %7304 = vmatprep.subr.bf16.mxu0 %v6062
    %7305 = vmatpush1.bf16.msra.mxu0 %v6061
    %7306 = vmatprep.subr.bf16.mxu0 %v6054
    %7307 = vmatpush1.bf16.msra.mxu0 %v6053
    %7308 = vmatprep.subr.bf16.mxu0 %v6046
    %7309 = vmatpush1.bf16.msra.mxu0 %v6045
    %7310 = vmatprep.subr.bf16.mxu0 %v6166
    %7311 = vmatpush2.bf16.msra.mxu0 %v6165
    %7312 = vmatprep.subr.bf16.mxu0 %v6158
    %7313 = vmatpush2.bf16.msra.mxu0 %v6157
    %7314 = vmatprep.subr.bf16.mxu0 %v6150
    %7315 = vmatpush2.bf16.msra.mxu0 %v6149
    %7316 = vmatprep.subr.bf16.mxu0 %v6142
    %7317 = vmatpush2.bf16.msra.mxu0 %v6141
    %7318 = vmatprep.subr.bf16.mxu0 %v6134
    %7319 = vmatpush2.bf16.msra.mxu0 %v6133
    %7320 = vmatprep.subr.bf16.mxu0 %v6126
    %7321 = vmatpush2.bf16.msra.mxu0 %v6125
    %7322 = vmatprep.subr.bf16.mxu0 %v6118
    %7323 = vmatpush2.bf16.msra.mxu0 %v6117
    %7324 = vmatprep.subr.bf16.mxu0 %v6110
    %7325 = vmatpush2.bf16.msra.mxu0 %v6109
    %7326 = vmatprep.mubr.bf16.mxu0 %v3564
    %7327 = vmatmul.mubr.bf16.gmra.mxu0 %v3563
    %v7328 = vpop.f32.mrf.mxu0
    %v7329 = vadd.f32 %v7288, %v7328
    %v7330 = vpop.f32.mrf.mxu0
    %v7331 = vadd.f32 %v7290, %v7330
    %v7332 = vpop.f32.mrf.mxu0
    %v7333 = vpop.f32.mrf.mxu0
    %7334 = vdwg.mxu0
    %v7335 = vmax.f32 %v6837, 0.0
    %v7336 = vmax.f32 %v6839, 0.0
    %v7337 = vmax.f32 %v7001, 0.0
    %v7338 = vmax.f32 %v7003, 0.0
    %v7339 = vmax.f32 %v7165, 0.0
    %v7340 = vmax.f32 %v7167, 0.0
    %v7341 = vmax.f32 %v7329, 0.0
    %v7342 = vmax.f32 %v7331, 0.0
    %v7343 = vpack.c.bf16 %v7335, %v7335
    %v7344 = vpack.c.bf16 %v7336, %v7336
    %v7345 = vpack.c.bf16 %v7337, %v7337
    %v7346 = vpack.c.bf16 %v7338, %v7338
    %v7347 = vpack.c.bf16 %v7339, %v7339
    %v7348 = vpack.c.bf16 %v7340, %v7340
    %v7349 = vpack.c.bf16 %v7341, %v7341
    %v7350 = vpack.c.bf16 %v7342, %v7342
    %v7351 = vld [vmem:[#allocation9] sm:$0xff]
    %v7352 = vld [vmem:[#allocation9 + $0x8] sm:$0xff]
    %v7353 = vld [vmem:[#allocation9 + $0x10] sm:$0xff]
    %v7354 = vld [vmem:[#allocation9 + $0x18] sm:$0xff]
    %v7355 = vld [vmem:[#allocation9 + $0x20] sm:$0xff]
    %v7356 = vld [vmem:[#allocation9 + $0x28] sm:$0xff]
    %v7357 = vld [vmem:[#allocation9 + $0x30] sm:$0xff]
    %v7358 = vld [vmem:[#allocation9 + $0x38] sm:$0xff]
    %v7359 = vld [vmem:[#allocation9 + $0x40] sm:$0xff]
    %v7360 = vld [vmem:[#allocation9 + $0x48] sm:$0xff]
    %v7361 = vld [vmem:[#allocation9 + $0x50] sm:$0xff]
    %v7362 = vld [vmem:[#allocation9 + $0x58] sm:$0xff]
    %v7363 = vld [vmem:[#allocation9 + $0x60] sm:$0xff]
    %v7364 = vld [vmem:[#allocation9 + $0x68] sm:$0xff]
    %v7365 = vld [vmem:[#allocation9 + $0x70] sm:$0xff]
    %v7366 = vld [vmem:[#allocation9 + $0x78] sm:$0xff]
    %v7367 = vld [vmem:[#allocation9 + $0x80] sm:$0xff]
    %v7368 = vld [vmem:[#allocation9 + $0x88] sm:$0xff]
    %v7369 = vld [vmem:[#allocation9 + $0x90] sm:$0xff]
    %v7370 = vld [vmem:[#allocation9 + $0x98] sm:$0xff]
    %v7371 = vld [vmem:[#allocation9 + $0xa0] sm:$0xff]
    %v7372 = vld [vmem:[#allocation9 + $0xa8] sm:$0xff]
    %v7373 = vld [vmem:[#allocation9 + $0xb0] sm:$0xff]
    %v7374 = vld [vmem:[#allocation9 + $0xb8] sm:$0xff]
    %v7375 = vld [vmem:[#allocation9 + $0xc0] sm:$0xff]
    %v7376 = vld [vmem:[#allocation9 + $0xc8] sm:$0xff]
    %v7377 = vld [vmem:[#allocation9 + $0xd0] sm:$0xff]
    %v7378 = vld [vmem:[#allocation9 + $0xd8] sm:$0xff]
    %v7379 = vld [vmem:[#allocation9 + $0xe0] sm:$0xff]
    %v7380 = vld [vmem:[#allocation9 + $0xe8] sm:$0xff]
    %v7381 = vld [vmem:[#allocation9 + $0xf0] sm:$0xff]
    %v7382 = vld [vmem:[#allocation9 + $0xf8] sm:$0xff]
    %v7383 = vld [vmem:[#allocation9 + $0x100] sm:$0xff]
    %v7384 = vld [vmem:[#allocation9 + $0x108] sm:$0xff]
    %v7385 = vld [vmem:[#allocation9 + $0x110] sm:$0xff]
    %v7386 = vld [vmem:[#allocation9 + $0x118] sm:$0xff]
    %v7387 = vld [vmem:[#allocation9 + $0x120] sm:$0xff]
    %v7388 = vld [vmem:[#allocation9 + $0x128] sm:$0xff]
    %v7389 = vld [vmem:[#allocation9 + $0x130] sm:$0xff]
    %v7390 = vld [vmem:[#allocation9 + $0x138] sm:$0xff]
    %v7391 = vld [vmem:[#allocation9 + $0x140] sm:$0xff]
    %v7392 = vld [vmem:[#allocation9 + $0x148] sm:$0xff]
    %v7393 = vld [vmem:[#allocation9 + $0x150] sm:$0xff]
    %v7394 = vld [vmem:[#allocation9 + $0x158] sm:$0xff]
    %v7395 = vld [vmem:[#allocation9 + $0x160] sm:$0xff]
    %v7396 = vld [vmem:[#allocation9 + $0x168] sm:$0xff]
    %v7397 = vld [vmem:[#allocation9 + $0x170] sm:$0xff]
    %v7398 = vld [vmem:[#allocation9 + $0x178] sm:$0xff]
    %v7399 = vld [vmem:[#allocation9 + $0x180] sm:$0xff]
    %v7400 = vld [vmem:[#allocation9 + $0x188] sm:$0xff]
    %v7401 = vld [vmem:[#allocation9 + $0x190] sm:$0xff]
    %v7402 = vld [vmem:[#allocation9 + $0x198] sm:$0xff]
    %v7403 = vld [vmem:[#allocation9 + $0x1a0] sm:$0xff]
    %v7404 = vld [vmem:[#allocation9 + $0x1a8] sm:$0xff]
    %v7405 = vld [vmem:[#allocation9 + $0x1b0] sm:$0xff]
    %v7406 = vld [vmem:[#allocation9 + $0x1b8] sm:$0xff]
    %v7407 = vld [vmem:[#allocation9 + $0x1c0] sm:$0xff]
    %v7408 = vld [vmem:[#allocation9 + $0x1c8] sm:$0xff]
    %v7409 = vld [vmem:[#allocation9 + $0x1d0] sm:$0xff]
    %v7410 = vld [vmem:[#allocation9 + $0x1d8] sm:$0xff]
    %v7411 = vld [vmem:[#allocation9 + $0x1e0] sm:$0xff]
    %v7412 = vld [vmem:[#allocation9 + $0x1e8] sm:$0xff]
    %v7413 = vld [vmem:[#allocation9 + $0x1f0] sm:$0xff]
    %v7414 = vld [vmem:[#allocation9 + $0x1f8] sm:$0xff]
    %v7415 = vld [vmem:[#allocation9 + $0x200] sm:$0xff]
    %v7416 = vld [vmem:[#allocation9 + $0x208] sm:$0xff]
    %v7417 = vld [vmem:[#allocation9 + $0x210] sm:$0xff]
    %v7418 = vld [vmem:[#allocation9 + $0x218] sm:$0xff]
    %v7419 = vld [vmem:[#allocation9 + $0x220] sm:$0xff]
    %v7420 = vld [vmem:[#allocation9 + $0x228] sm:$0xff]
    %v7421 = vld [vmem:[#allocation9 + $0x230] sm:$0xff]
    %v7422 = vld [vmem:[#allocation9 + $0x238] sm:$0xff]
    %v7423 = vld [vmem:[#allocation9 + $0x240] sm:$0xff]
    %v7424 = vld [vmem:[#allocation9 + $0x248] sm:$0xff]
    %v7425 = vld [vmem:[#allocation9 + $0x250] sm:$0xff]
    %v7426 = vld [vmem:[#allocation9 + $0x258] sm:$0xff]
    %v7427 = vld [vmem:[#allocation9 + $0x260] sm:$0xff]
    %v7428 = vld [vmem:[#allocation9 + $0x268] sm:$0xff]
    %v7429 = vld [vmem:[#allocation9 + $0x270] sm:$0xff]
    %v7430 = vld [vmem:[#allocation9 + $0x278] sm:$0xff]
    %v7431 = vld [vmem:[#allocation9 + $0x280] sm:$0xff]
    %v7432 = vld [vmem:[#allocation9 + $0x288] sm:$0xff]
    %v7433 = vld [vmem:[#allocation9 + $0x290] sm:$0xff]
    %v7434 = vld [vmem:[#allocation9 + $0x298] sm:$0xff]
    %v7435 = vld [vmem:[#allocation9 + $0x2a0] sm:$0xff]
    %v7436 = vld [vmem:[#allocation9 + $0x2a8] sm:$0xff]
    %v7437 = vld [vmem:[#allocation9 + $0x2b0] sm:$0xff]
    %v7438 = vld [vmem:[#allocation9 + $0x2b8] sm:$0xff]
    %v7439 = vld [vmem:[#allocation9 + $0x2c0] sm:$0xff]
    %v7440 = vld [vmem:[#allocation9 + $0x2c8] sm:$0xff]
    %v7441 = vld [vmem:[#allocation9 + $0x2d0] sm:$0xff]
    %v7442 = vld [vmem:[#allocation9 + $0x2d8] sm:$0xff]
    %v7443 = vld [vmem:[#allocation9 + $0x2e0] sm:$0xff]
    %v7444 = vld [vmem:[#allocation9 + $0x2e8] sm:$0xff]
    %v7445 = vld [vmem:[#allocation9 + $0x2f0] sm:$0xff]
    %v7446 = vld [vmem:[#allocation9 + $0x2f8] sm:$0xff]
    %v7447 = vld [vmem:[#allocation9 + $0x300] sm:$0xff]
    %v7448 = vld [vmem:[#allocation9 + $0x308] sm:$0xff]
    %v7449 = vld [vmem:[#allocation9 + $0x310] sm:$0xff]
    %v7450 = vld [vmem:[#allocation9 + $0x318] sm:$0xff]
    %v7451 = vld [vmem:[#allocation9 + $0x320] sm:$0xff]
    %v7452 = vld [vmem:[#allocation9 + $0x328] sm:$0xff]
    %v7453 = vld [vmem:[#allocation9 + $0x330] sm:$0xff]
    %v7454 = vld [vmem:[#allocation9 + $0x338] sm:$0xff]
    %v7455 = vld [vmem:[#allocation9 + $0x340] sm:$0xff]
    %v7456 = vld [vmem:[#allocation9 + $0x348] sm:$0xff]
    %v7457 = vld [vmem:[#allocation9 + $0x350] sm:$0xff]
    %v7458 = vld [vmem:[#allocation9 + $0x358] sm:$0xff]
    %v7459 = vld [vmem:[#allocation9 + $0x360] sm:$0xff]
    %v7460 = vld [vmem:[#allocation9 + $0x368] sm:$0xff]
    %v7461 = vld [vmem:[#allocation9 + $0x370] sm:$0xff]
    %v7462 = vld [vmem:[#allocation9 + $0x378] sm:$0xff]
    %v7463 = vld [vmem:[#allocation9 + $0x380] sm:$0xff]
    %v7464 = vld [vmem:[#allocation9 + $0x388] sm:$0xff]
    %v7465 = vld [vmem:[#allocation9 + $0x390] sm:$0xff]
    %v7466 = vld [vmem:[#allocation9 + $0x398] sm:$0xff]
    %v7467 = vld [vmem:[#allocation9 + $0x3a0] sm:$0xff]
    %v7468 = vld [vmem:[#allocation9 + $0x3a8] sm:$0xff]
    %v7469 = vld [vmem:[#allocation9 + $0x3b0] sm:$0xff]
    %v7470 = vld [vmem:[#allocation9 + $0x3b8] sm:$0xff]
    %v7471 = vld [vmem:[#allocation9 + $0x3c0] sm:$0xff]
    %v7472 = vld [vmem:[#allocation9 + $0x3c8] sm:$0xff]
    %v7473 = vld [vmem:[#allocation9 + $0x3d0] sm:$0xff]
    %v7474 = vld [vmem:[#allocation9 + $0x3d8] sm:$0xff]
    %v7475 = vld [vmem:[#allocation9 + $0x3e0] sm:$0xff]
    %v7476 = vld [vmem:[#allocation9 + $0x3e8] sm:$0xff]
    %v7477 = vld [vmem:[#allocation9 + $0x3f0] sm:$0xff]
    %v7478 = vld [vmem:[#allocation9 + $0x3f8] sm:$0xff]
    %v7479 = vld [vmem:[#allocation10] sm:$0x3]
    %v7481 = vlaneseq
    %v7482 = vshrl.u32 %v7481, 7
    %v7483 = vsub.s32 0, %v7482
    %v7484 = vrot.slane %v7479, %v7483
    %v7485 = vlaneseq
    %v7486 = vshrl.u32 %v7485, 7
    %v7487 = vsub.s32 1, %v7486
    %v7488 = vrot.slane %v7479, %v7487
    %v7619 = vunpack.c.l.b16 %v7351
    %v7620 = vunpack.c.h.b16 %v7351
    %v7621 = vunpack.c.l.b16 %v7352
    %v7622 = vunpack.c.h.b16 %v7352
    %v7623 = vunpack.c.l.b16 %v7353
    %v7624 = vunpack.c.h.b16 %v7353
    %v7625 = vunpack.c.l.b16 %v7354
    %v7626 = vunpack.c.h.b16 %v7354
    %v7627 = vunpack.c.l.b16 %v7355
    %v7628 = vunpack.c.h.b16 %v7355
    %v7629 = vunpack.c.l.b16 %v7356
    %v7630 = vunpack.c.h.b16 %v7356
    %v7631 = vunpack.c.l.b16 %v7357
    %v7632 = vunpack.c.h.b16 %v7357
    %v7633 = vunpack.c.l.b16 %v7358
    %v7634 = vunpack.c.h.b16 %v7358
    %v7635 = vunpack.c.l.b16 %v7359
    %v7636 = vunpack.c.h.b16 %v7359
    %v7637 = vunpack.c.l.b16 %v7360
    %v7638 = vunpack.c.h.b16 %v7360
    %v7639 = vunpack.c.l.b16 %v7361
    %v7640 = vunpack.c.h.b16 %v7361
    %v7641 = vunpack.c.l.b16 %v7362
    %v7642 = vunpack.c.h.b16 %v7362
    %v7643 = vunpack.c.l.b16 %v7363
    %v7644 = vunpack.c.h.b16 %v7363
    %v7645 = vunpack.c.l.b16 %v7364
    %v7646 = vunpack.c.h.b16 %v7364
    %v7647 = vunpack.c.l.b16 %v7365
    %v7648 = vunpack.c.h.b16 %v7365
    %v7649 = vunpack.c.l.b16 %v7366
    %v7650 = vunpack.c.h.b16 %v7366
    %v7651 = vunpack.c.l.b16 %v7367
    %v7652 = vunpack.c.h.b16 %v7367
    %v7653 = vunpack.c.l.b16 %v7368
    %v7654 = vunpack.c.h.b16 %v7368
    %v7655 = vunpack.c.l.b16 %v7369
    %v7656 = vunpack.c.h.b16 %v7369
    %v7657 = vunpack.c.l.b16 %v7370
    %v7658 = vunpack.c.h.b16 %v7370
    %v7659 = vunpack.c.l.b16 %v7371
    %v7660 = vunpack.c.h.b16 %v7371
    %v7661 = vunpack.c.l.b16 %v7372
    %v7662 = vunpack.c.h.b16 %v7372
    %v7663 = vunpack.c.l.b16 %v7373
    %v7664 = vunpack.c.h.b16 %v7373
    %v7665 = vunpack.c.l.b16 %v7374
    %v7666 = vunpack.c.h.b16 %v7374
    %v7667 = vunpack.c.l.b16 %v7375
    %v7668 = vunpack.c.h.b16 %v7375
    %v7669 = vunpack.c.l.b16 %v7376
    %v7670 = vunpack.c.h.b16 %v7376
    %v7671 = vunpack.c.l.b16 %v7377
    %v7672 = vunpack.c.h.b16 %v7377
    %v7673 = vunpack.c.l.b16 %v7378
    %v7674 = vunpack.c.h.b16 %v7378
    %v7675 = vunpack.c.l.b16 %v7379
    %v7676 = vunpack.c.h.b16 %v7379
    %v7677 = vunpack.c.l.b16 %v7380
    %v7678 = vunpack.c.h.b16 %v7380
    %v7679 = vunpack.c.l.b16 %v7381
    %v7680 = vunpack.c.h.b16 %v7381
    %v7681 = vunpack.c.l.b16 %v7382
    %v7682 = vunpack.c.h.b16 %v7382
    %v7683 = vunpack.c.l.b16 %v7383
    %v7684 = vunpack.c.h.b16 %v7383
    %v7685 = vunpack.c.l.b16 %v7384
    %v7686 = vunpack.c.h.b16 %v7384
    %v7687 = vunpack.c.l.b16 %v7385
    %v7688 = vunpack.c.h.b16 %v7385
    %v7689 = vunpack.c.l.b16 %v7386
    %v7690 = vunpack.c.h.b16 %v7386
    %v7691 = vunpack.c.l.b16 %v7387
    %v7692 = vunpack.c.h.b16 %v7387
    %v7693 = vunpack.c.l.b16 %v7388
    %v7694 = vunpack.c.h.b16 %v7388
    %v7695 = vunpack.c.l.b16 %v7389
    %v7696 = vunpack.c.h.b16 %v7389
    %v7697 = vunpack.c.l.b16 %v7390
    %v7698 = vunpack.c.h.b16 %v7390
    %v7699 = vunpack.c.l.b16 %v7391
    %v7700 = vunpack.c.h.b16 %v7391
    %v7701 = vunpack.c.l.b16 %v7392
    %v7702 = vunpack.c.h.b16 %v7392
    %v7703 = vunpack.c.l.b16 %v7393
    %v7704 = vunpack.c.h.b16 %v7393
    %v7705 = vunpack.c.l.b16 %v7394
    %v7706 = vunpack.c.h.b16 %v7394
    %v7707 = vunpack.c.l.b16 %v7395
    %v7708 = vunpack.c.h.b16 %v7395
    %v7709 = vunpack.c.l.b16 %v7396
    %v7710 = vunpack.c.h.b16 %v7396
    %v7711 = vunpack.c.l.b16 %v7397
    %v7712 = vunpack.c.h.b16 %v7397
    %v7713 = vunpack.c.l.b16 %v7398
    %v7714 = vunpack.c.h.b16 %v7398
    %v7715 = vunpack.c.l.b16 %v7399
    %v7716 = vunpack.c.h.b16 %v7399
    %v7717 = vunpack.c.l.b16 %v7400
    %v7718 = vunpack.c.h.b16 %v7400
    %v7719 = vunpack.c.l.b16 %v7401
    %v7720 = vunpack.c.h.b16 %v7401
    %v7721 = vunpack.c.l.b16 %v7402
    %v7722 = vunpack.c.h.b16 %v7402
    %v7723 = vunpack.c.l.b16 %v7403
    %v7724 = vunpack.c.h.b16 %v7403
    %v7725 = vunpack.c.l.b16 %v7404
    %v7726 = vunpack.c.h.b16 %v7404
    %v7727 = vunpack.c.l.b16 %v7405
    %v7728 = vunpack.c.h.b16 %v7405
    %v7729 = vunpack.c.l.b16 %v7406
    %v7730 = vunpack.c.h.b16 %v7406
    %v7731 = vunpack.c.l.b16 %v7407
    %v7732 = vunpack.c.h.b16 %v7407
    %v7733 = vunpack.c.l.b16 %v7408
    %v7734 = vunpack.c.h.b16 %v7408
    %v7735 = vunpack.c.l.b16 %v7409
    %v7736 = vunpack.c.h.b16 %v7409
    %v7737 = vunpack.c.l.b16 %v7410
    %v7738 = vunpack.c.h.b16 %v7410
    %v7739 = vunpack.c.l.b16 %v7411
    %v7740 = vunpack.c.h.b16 %v7411
    %v7741 = vunpack.c.l.b16 %v7412
    %v7742 = vunpack.c.h.b16 %v7412
    %v7743 = vunpack.c.l.b16 %v7413
    %v7744 = vunpack.c.h.b16 %v7413
    %v7745 = vunpack.c.l.b16 %v7414
    %v7746 = vunpack.c.h.b16 %v7414
    %v7747 = vunpack.c.l.b16 %v7415
    %v7748 = vunpack.c.h.b16 %v7415
    %v7749 = vunpack.c.l.b16 %v7416
    %v7750 = vunpack.c.h.b16 %v7416
    %v7751 = vunpack.c.l.b16 %v7417
    %v7752 = vunpack.c.h.b16 %v7417
    %v7753 = vunpack.c.l.b16 %v7418
    %v7754 = vunpack.c.h.b16 %v7418
    %v7755 = vunpack.c.l.b16 %v7419
    %v7756 = vunpack.c.h.b16 %v7419
    %v7757 = vunpack.c.l.b16 %v7420
    %v7758 = vunpack.c.h.b16 %v7420
    %v7759 = vunpack.c.l.b16 %v7421
    %v7760 = vunpack.c.h.b16 %v7421
    %v7761 = vunpack.c.l.b16 %v7422
    %v7762 = vunpack.c.h.b16 %v7422
    %v7763 = vunpack.c.l.b16 %v7423
    %v7764 = vunpack.c.h.b16 %v7423
    %v7765 = vunpack.c.l.b16 %v7424
    %v7766 = vunpack.c.h.b16 %v7424
    %v7767 = vunpack.c.l.b16 %v7425
    %v7768 = vunpack.c.h.b16 %v7425
    %v7769 = vunpack.c.l.b16 %v7426
    %v7770 = vunpack.c.h.b16 %v7426
    %v7771 = vunpack.c.l.b16 %v7427
    %v7772 = vunpack.c.h.b16 %v7427
    %v7773 = vunpack.c.l.b16 %v7428
    %v7774 = vunpack.c.h.b16 %v7428
    %v7775 = vunpack.c.l.b16 %v7429
    %v7776 = vunpack.c.h.b16 %v7429
    %v7777 = vunpack.c.l.b16 %v7430
    %v7778 = vunpack.c.h.b16 %v7430
    %v7779 = vunpack.c.l.b16 %v7431
    %v7780 = vunpack.c.h.b16 %v7431
    %v7781 = vunpack.c.l.b16 %v7432
    %v7782 = vunpack.c.h.b16 %v7432
    %v7783 = vunpack.c.l.b16 %v7433
    %v7784 = vunpack.c.h.b16 %v7433
    %v7785 = vunpack.c.l.b16 %v7434
    %v7786 = vunpack.c.h.b16 %v7434
    %v7787 = vunpack.c.l.b16 %v7435
    %v7788 = vunpack.c.h.b16 %v7435
    %v7789 = vunpack.c.l.b16 %v7436
    %v7790 = vunpack.c.h.b16 %v7436
    %v7791 = vunpack.c.l.b16 %v7437
    %v7792 = vunpack.c.h.b16 %v7437
    %v7793 = vunpack.c.l.b16 %v7438
    %v7794 = vunpack.c.h.b16 %v7438
    %v7795 = vunpack.c.l.b16 %v7439
    %v7796 = vunpack.c.h.b16 %v7439
    %v7797 = vunpack.c.l.b16 %v7440
    %v7798 = vunpack.c.h.b16 %v7440
    %v7799 = vunpack.c.l.b16 %v7441
    %v7800 = vunpack.c.h.b16 %v7441
    %v7801 = vunpack.c.l.b16 %v7442
    %v7802 = vunpack.c.h.b16 %v7442
    %v7803 = vunpack.c.l.b16 %v7443
    %v7804 = vunpack.c.h.b16 %v7443
    %v7805 = vunpack.c.l.b16 %v7444
    %v7806 = vunpack.c.h.b16 %v7444
    %v7807 = vunpack.c.l.b16 %v7445
    %v7808 = vunpack.c.h.b16 %v7445
    %v7809 = vunpack.c.l.b16 %v7446
    %v7810 = vunpack.c.h.b16 %v7446
    %v7811 = vunpack.c.l.b16 %v7447
    %v7812 = vunpack.c.h.b16 %v7447
    %v7813 = vunpack.c.l.b16 %v7448
    %v7814 = vunpack.c.h.b16 %v7448
    %v7815 = vunpack.c.l.b16 %v7449
    %v7816 = vunpack.c.h.b16 %v7449
    %v7817 = vunpack.c.l.b16 %v7450
    %v7818 = vunpack.c.h.b16 %v7450
    %v7819 = vunpack.c.l.b16 %v7451
    %v7820 = vunpack.c.h.b16 %v7451
    %v7821 = vunpack.c.l.b16 %v7452
    %v7822 = vunpack.c.h.b16 %v7452
    %v7823 = vunpack.c.l.b16 %v7453
    %v7824 = vunpack.c.h.b16 %v7453
    %v7825 = vunpack.c.l.b16 %v7454
    %v7826 = vunpack.c.h.b16 %v7454
    %v7827 = vunpack.c.l.b16 %v7455
    %v7828 = vunpack.c.h.b16 %v7455
    %v7829 = vunpack.c.l.b16 %v7456
    %v7830 = vunpack.c.h.b16 %v7456
    %v7831 = vunpack.c.l.b16 %v7457
    %v7832 = vunpack.c.h.b16 %v7457
    %v7833 = vunpack.c.l.b16 %v7458
    %v7834 = vunpack.c.h.b16 %v7458
    %v7835 = vunpack.c.l.b16 %v7459
    %v7836 = vunpack.c.h.b16 %v7459
    %v7837 = vunpack.c.l.b16 %v7460
    %v7838 = vunpack.c.h.b16 %v7460
    %v7839 = vunpack.c.l.b16 %v7461
    %v7840 = vunpack.c.h.b16 %v7461
    %v7841 = vunpack.c.l.b16 %v7462
    %v7842 = vunpack.c.h.b16 %v7462
    %v7843 = vunpack.c.l.b16 %v7463
    %v7844 = vunpack.c.h.b16 %v7463
    %v7845 = vunpack.c.l.b16 %v7464
    %v7846 = vunpack.c.h.b16 %v7464
    %v7847 = vunpack.c.l.b16 %v7465
    %v7848 = vunpack.c.h.b16 %v7465
    %v7849 = vunpack.c.l.b16 %v7466
    %v7850 = vunpack.c.h.b16 %v7466
    %v7851 = vunpack.c.l.b16 %v7467
    %v7852 = vunpack.c.h.b16 %v7467
    %v7853 = vunpack.c.l.b16 %v7468
    %v7854 = vunpack.c.h.b16 %v7468
    %v7855 = vunpack.c.l.b16 %v7469
    %v7856 = vunpack.c.h.b16 %v7469
    %v7857 = vunpack.c.l.b16 %v7470
    %v7858 = vunpack.c.h.b16 %v7470
    %v7859 = vunpack.c.l.b16 %v7471
    %v7860 = vunpack.c.h.b16 %v7471
    %v7861 = vunpack.c.l.b16 %v7472
    %v7862 = vunpack.c.h.b16 %v7472
    %v7863 = vunpack.c.l.b16 %v7473
    %v7864 = vunpack.c.h.b16 %v7473
    %v7865 = vunpack.c.l.b16 %v7474
    %v7866 = vunpack.c.h.b16 %v7474
    %v7867 = vunpack.c.l.b16 %v7475
    %v7868 = vunpack.c.h.b16 %v7475
    %v7869 = vunpack.c.l.b16 %v7476
    %v7870 = vunpack.c.h.b16 %v7476
    %v7871 = vunpack.c.l.b16 %v7477
    %v7872 = vunpack.c.h.b16 %v7477
    %v7873 = vunpack.c.l.b16 %v7478
    %v7874 = vunpack.c.h.b16 %v7478
    %v7875 = vpack.c.b16 %v7621, %v7619
    %v7876 = vpack.c.b16 %v7622, %v7620
    %v7877 = vpack.c.b16 %v7625, %v7623
    %v7878 = vpack.c.b16 %v7626, %v7624
    %v7879 = vpack.c.b16 %v7629, %v7627
    %v7880 = vpack.c.b16 %v7630, %v7628
    %v7881 = vpack.c.b16 %v7633, %v7631
    %v7882 = vpack.c.b16 %v7634, %v7632
    %v7883 = vpack.c.b16 %v7637, %v7635
    %v7884 = vpack.c.b16 %v7638, %v7636
    %v7885 = vpack.c.b16 %v7641, %v7639
    %v7886 = vpack.c.b16 %v7642, %v7640
    %v7887 = vpack.c.b16 %v7645, %v7643
    %v7888 = vpack.c.b16 %v7646, %v7644
    %v7889 = vpack.c.b16 %v7649, %v7647
    %v7890 = vpack.c.b16 %v7650, %v7648
    %v7891 = vpack.c.b16 %v7653, %v7651
    %v7892 = vpack.c.b16 %v7654, %v7652
    %v7893 = vpack.c.b16 %v7657, %v7655
    %v7894 = vpack.c.b16 %v7658, %v7656
    %v7895 = vpack.c.b16 %v7661, %v7659
    %v7896 = vpack.c.b16 %v7662, %v7660
    %v7897 = vpack.c.b16 %v7665, %v7663
    %v7898 = vpack.c.b16 %v7666, %v7664
    %v7899 = vpack.c.b16 %v7669, %v7667
    %v7900 = vpack.c.b16 %v7670, %v7668
    %v7901 = vpack.c.b16 %v7673, %v7671
    %v7902 = vpack.c.b16 %v7674, %v7672
    %v7903 = vpack.c.b16 %v7677, %v7675
    %v7904 = vpack.c.b16 %v7678, %v7676
    %v7905 = vpack.c.b16 %v7681, %v7679
    %v7906 = vpack.c.b16 %v7682, %v7680
    %v7907 = vpack.c.b16 %v7685, %v7683
    %v7908 = vpack.c.b16 %v7686, %v7684
    %v7909 = vpack.c.b16 %v7689, %v7687
    %v7910 = vpack.c.b16 %v7690, %v7688
    %v7911 = vpack.c.b16 %v7693, %v7691
    %v7912 = vpack.c.b16 %v7694, %v7692
    %v7913 = vpack.c.b16 %v7697, %v7695
    %v7914 = vpack.c.b16 %v7698, %v7696
    %v7915 = vpack.c.b16 %v7701, %v7699
    %v7916 = vpack.c.b16 %v7702, %v7700
    %v7917 = vpack.c.b16 %v7705, %v7703
    %v7918 = vpack.c.b16 %v7706, %v7704
    %v7919 = vpack.c.b16 %v7709, %v7707
    %v7920 = vpack.c.b16 %v7710, %v7708
    %v7921 = vpack.c.b16 %v7713, %v7711
    %v7922 = vpack.c.b16 %v7714, %v7712
    %v7923 = vpack.c.b16 %v7717, %v7715
    %v7924 = vpack.c.b16 %v7718, %v7716
    %v7925 = vpack.c.b16 %v7721, %v7719
    %v7926 = vpack.c.b16 %v7722, %v7720
    %v7927 = vpack.c.b16 %v7725, %v7723
    %v7928 = vpack.c.b16 %v7726, %v7724
    %v7929 = vpack.c.b16 %v7729, %v7727
    %v7930 = vpack.c.b16 %v7730, %v7728
    %v7931 = vpack.c.b16 %v7733, %v7731
    %v7932 = vpack.c.b16 %v7734, %v7732
    %v7933 = vpack.c.b16 %v7737, %v7735
    %v7934 = vpack.c.b16 %v7738, %v7736
    %v7935 = vpack.c.b16 %v7741, %v7739
    %v7936 = vpack.c.b16 %v7742, %v7740
    %v7937 = vpack.c.b16 %v7745, %v7743
    %v7938 = vpack.c.b16 %v7746, %v7744
    %v7939 = vpack.c.b16 %v7749, %v7747
    %v7940 = vpack.c.b16 %v7750, %v7748
    %v7941 = vpack.c.b16 %v7753, %v7751
    %v7942 = vpack.c.b16 %v7754, %v7752
    %v7943 = vpack.c.b16 %v7757, %v7755
    %v7944 = vpack.c.b16 %v7758, %v7756
    %v7945 = vpack.c.b16 %v7761, %v7759
    %v7946 = vpack.c.b16 %v7762, %v7760
    %v7947 = vpack.c.b16 %v7765, %v7763
    %v7948 = vpack.c.b16 %v7766, %v7764
    %v7949 = vpack.c.b16 %v7769, %v7767
    %v7950 = vpack.c.b16 %v7770, %v7768
    %v7951 = vpack.c.b16 %v7773, %v7771
    %v7952 = vpack.c.b16 %v7774, %v7772
    %v7953 = vpack.c.b16 %v7777, %v7775
    %v7954 = vpack.c.b16 %v7778, %v7776
    %v7955 = vpack.c.b16 %v7781, %v7779
    %v7956 = vpack.c.b16 %v7782, %v7780
    %v7957 = vpack.c.b16 %v7785, %v7783
    %v7958 = vpack.c.b16 %v7786, %v7784
    %v7959 = vpack.c.b16 %v7789, %v7787
    %v7960 = vpack.c.b16 %v7790, %v7788
    %v7961 = vpack.c.b16 %v7793, %v7791
    %v7962 = vpack.c.b16 %v7794, %v7792
    %v7963 = vpack.c.b16 %v7797, %v7795
    %v7964 = vpack.c.b16 %v7798, %v7796
    %v7965 = vpack.c.b16 %v7801, %v7799
    %v7966 = vpack.c.b16 %v7802, %v7800
    %v7967 = vpack.c.b16 %v7805, %v7803
    %v7968 = vpack.c.b16 %v7806, %v7804
    %v7969 = vpack.c.b16 %v7809, %v7807
    %v7970 = vpack.c.b16 %v7810, %v7808
    %v7971 = vpack.c.b16 %v7813, %v7811
    %v7972 = vpack.c.b16 %v7814, %v7812
    %v7973 = vpack.c.b16 %v7817, %v7815
    %v7974 = vpack.c.b16 %v7818, %v7816
    %v7975 = vpack.c.b16 %v7821, %v7819
    %v7976 = vpack.c.b16 %v7822, %v7820
    %v7977 = vpack.c.b16 %v7825, %v7823
    %v7978 = vpack.c.b16 %v7826, %v7824
    %v7979 = vpack.c.b16 %v7829, %v7827
    %v7980 = vpack.c.b16 %v7830, %v7828
    %v7981 = vpack.c.b16 %v7833, %v7831
    %v7982 = vpack.c.b16 %v7834, %v7832
    %v7983 = vpack.c.b16 %v7837, %v7835
    %v7984 = vpack.c.b16 %v7838, %v7836
    %v7985 = vpack.c.b16 %v7841, %v7839
    %v7986 = vpack.c.b16 %v7842, %v7840
    %v7987 = vpack.c.b16 %v7845, %v7843
    %v7988 = vpack.c.b16 %v7846, %v7844
    %v7989 = vpack.c.b16 %v7849, %v7847
    %v7990 = vpack.c.b16 %v7850, %v7848
    %v7991 = vpack.c.b16 %v7853, %v7851
    %v7992 = vpack.c.b16 %v7854, %v7852
    %v7993 = vpack.c.b16 %v7857, %v7855
    %v7994 = vpack.c.b16 %v7858, %v7856
    %v7995 = vpack.c.b16 %v7861, %v7859
    %v7996 = vpack.c.b16 %v7862, %v7860
    %v7997 = vpack.c.b16 %v7865, %v7863
    %v7998 = vpack.c.b16 %v7866, %v7864
    %v7999 = vpack.c.b16 %v7869, %v7867
    %v8000 = vpack.c.b16 %v7870, %v7868
    %v8001 = vpack.c.b16 %v7873, %v7871
    %v8002 = vpack.c.b16 %v7874, %v7872
    %8131 = vmatprep.subr.bf16.mxu0 %v7890
    %8132 = vmatpush1.bf16.msra.mxu0 %v7889
    %8133 = vmatprep.subr.bf16.mxu0 %v7888
    %8134 = vmatpush1.bf16.msra.mxu0 %v7887
    %8135 = vmatprep.subr.bf16.mxu0 %v7886
    %8136 = vmatpush1.bf16.msra.mxu0 %v7885
    %8137 = vmatprep.subr.bf16.mxu0 %v7884
    %8138 = vmatpush1.bf16.msra.mxu0 %v7883
    %8139 = vmatprep.subr.bf16.mxu0 %v7882
    %8140 = vmatpush1.bf16.msra.mxu0 %v7881
    %8141 = vmatprep.subr.bf16.mxu0 %v7880
    %8142 = vmatpush1.bf16.msra.mxu0 %v7879
    %8143 = vmatprep.subr.bf16.mxu0 %v7878
    %8144 = vmatpush1.bf16.msra.mxu0 %v7877
    %8145 = vmatprep.subr.bf16.mxu0 %v7876
    %8146 = vmatpush1.bf16.msra.mxu0 %v7875
    %8147 = vmatprep.subr.bf16.mxu0 %v7906
    %8148 = vmatpush2.bf16.msra.mxu0 %v7905
    %8149 = vmatprep.subr.bf16.mxu0 %v7904
    %8150 = vmatpush2.bf16.msra.mxu0 %v7903
    %8151 = vmatprep.subr.bf16.mxu0 %v7902
    %8152 = vmatpush2.bf16.msra.mxu0 %v7901
    %8153 = vmatprep.subr.bf16.mxu0 %v7900
    %8154 = vmatpush2.bf16.msra.mxu0 %v7899
    %8155 = vmatprep.subr.bf16.mxu0 %v7898
    %8156 = vmatpush2.bf16.msra.mxu0 %v7897
    %8157 = vmatprep.subr.bf16.mxu0 %v7896
    %8158 = vmatpush2.bf16.msra.mxu0 %v7895
    %8159 = vmatprep.subr.bf16.mxu0 %v7894
    %8160 = vmatpush2.bf16.msra.mxu0 %v7893
    %8161 = vmatprep.subr.bf16.mxu0 %v7892
    %8162 = vmatpush2.bf16.msra.mxu0 %v7891
    %8163 = vmatprep.mubr.bf16.mxu0 %v7344
    %8164 = vmatmul.mubr.bf16.gmra.mxu0 %v7343
    %v8165 = vpop.f32.mrf.mxu0
    %v8166 = vadd.f32 %v7484, %v8165
    %v8167 = vpop.f32.mrf.mxu0
    %v8168 = vadd.f32 %v7488, %v8167
    %v8169 = vpop.f32.mrf.mxu0
    %v8170 = vpop.f32.mrf.mxu0
    %8171 = vdwg.mxu0
    %8172 = vmatprep.subr.bf16.mxu0 %v7922
    %8173 = vmatpush1.bf16.msra.mxu0 %v7921
    %8174 = vmatprep.subr.bf16.mxu0 %v7920
    %8175 = vmatpush1.bf16.msra.mxu0 %v7919
    %8176 = vmatprep.subr.bf16.mxu0 %v7918
    %8177 = vmatpush1.bf16.msra.mxu0 %v7917
    %8178 = vmatprep.subr.bf16.mxu0 %v7916
    %8179 = vmatpush1.bf16.msra.mxu0 %v7915
    %8180 = vmatprep.subr.bf16.mxu0 %v7914
    %8181 = vmatpush1.bf16.msra.mxu0 %v7913
    %8182 = vmatprep.subr.bf16.mxu0 %v7912
    %8183 = vmatpush1.bf16.msra.mxu0 %v7911
    %8184 = vmatprep.subr.bf16.mxu0 %v7910
    %8185 = vmatpush1.bf16.msra.mxu0 %v7909
    %8186 = vmatprep.subr.bf16.mxu0 %v7908
    %8187 = vmatpush1.bf16.msra.mxu0 %v7907
    %8188 = vmatprep.subr.bf16.mxu0 %v7938
    %8189 = vmatpush2.bf16.msra.mxu0 %v7937
    %8190 = vmatprep.subr.bf16.mxu0 %v7936
    %8191 = vmatpush2.bf16.msra.mxu0 %v7935
    %8192 = vmatprep.subr.bf16.mxu0 %v7934
    %8193 = vmatpush2.bf16.msra.mxu0 %v7933
    %8194 = vmatprep.subr.bf16.mxu0 %v7932
    %8195 = vmatpush2.bf16.msra.mxu0 %v7931
    %8196 = vmatprep.subr.bf16.mxu0 %v7930
    %8197 = vmatpush2.bf16.msra.mxu0 %v7929
    %8198 = vmatprep.subr.bf16.mxu0 %v7928
    %8199 = vmatpush2.bf16.msra.mxu0 %v7927
    %8200 = vmatprep.subr.bf16.mxu0 %v7926
    %8201 = vmatpush2.bf16.msra.mxu0 %v7925
    %8202 = vmatprep.subr.bf16.mxu0 %v7924
    %8203 = vmatpush2.bf16.msra.mxu0 %v7923
    %8204 = vmatprep.mubr.bf16.mxu0 %v7346
    %8205 = vmatmul.mubr.bf16.gmra.mxu0 %v7345
    %v8206 = vpop.f32.mrf.mxu0
    %v8207 = vadd.f32 %v8166, %v8206
    %v8208 = vpop.f32.mrf.mxu0
    %v8209 = vadd.f32 %v8168, %v8208
    %v8210 = vpop.f32.mrf.mxu0
    %v8211 = vpop.f32.mrf.mxu0
    %8212 = vdwg.mxu0
    %8213 = vmatprep.subr.bf16.mxu0 %v7954
    %8214 = vmatpush1.bf16.msra.mxu0 %v7953
    %8215 = vmatprep.subr.bf16.mxu0 %v7952
    %8216 = vmatpush1.bf16.msra.mxu0 %v7951
    %8217 = vmatprep.subr.bf16.mxu0 %v7950
    %8218 = vmatpush1.bf16.msra.mxu0 %v7949
    %8219 = vmatprep.subr.bf16.mxu0 %v7948
    %8220 = vmatpush1.bf16.msra.mxu0 %v7947
    %8221 = vmatprep.subr.bf16.mxu0 %v7946
    %8222 = vmatpush1.bf16.msra.mxu0 %v7945
    %8223 = vmatprep.subr.bf16.mxu0 %v7944
    %8224 = vmatpush1.bf16.msra.mxu0 %v7943
    %8225 = vmatprep.subr.bf16.mxu0 %v7942
    %8226 = vmatpush1.bf16.msra.mxu0 %v7941
    %8227 = vmatprep.subr.bf16.mxu0 %v7940
    %8228 = vmatpush1.bf16.msra.mxu0 %v7939
    %8229 = vmatprep.subr.bf16.mxu0 %v7970
    %8230 = vmatpush2.bf16.msra.mxu0 %v7969
    %8231 = vmatprep.subr.bf16.mxu0 %v7968
    %8232 = vmatpush2.bf16.msra.mxu0 %v7967
    %8233 = vmatprep.subr.bf16.mxu0 %v7966
    %8234 = vmatpush2.bf16.msra.mxu0 %v7965
    %8235 = vmatprep.subr.bf16.mxu0 %v7964
    %8236 = vmatpush2.bf16.msra.mxu0 %v7963
    %8237 = vmatprep.subr.bf16.mxu0 %v7962
    %8238 = vmatpush2.bf16.msra.mxu0 %v7961
    %8239 = vmatprep.subr.bf16.mxu0 %v7960
    %8240 = vmatpush2.bf16.msra.mxu0 %v7959
    %8241 = vmatprep.subr.bf16.mxu0 %v7958
    %8242 = vmatpush2.bf16.msra.mxu0 %v7957
    %8243 = vmatprep.subr.bf16.mxu0 %v7956
    %8244 = vmatpush2.bf16.msra.mxu0 %v7955
    %8245 = vmatprep.mubr.bf16.mxu0 %v7348
    %8246 = vmatmul.mubr.bf16.gmra.mxu0 %v7347
    %v8247 = vpop.f32.mrf.mxu0
    %v8248 = vadd.f32 %v8207, %v8247
    %v8249 = vpop.f32.mrf.mxu0
    %v8250 = vadd.f32 %v8209, %v8249
    %v8251 = vpop.f32.mrf.mxu0
    %v8252 = vpop.f32.mrf.mxu0
    %8253 = vdwg.mxu0
    %8254 = vmatprep.subr.bf16.mxu0 %v7986
    %8255 = vmatpush1.bf16.msra.mxu0 %v7985
    %8256 = vmatprep.subr.bf16.mxu0 %v7984
    %8257 = vmatpush1.bf16.msra.mxu0 %v7983
    %8258 = vmatprep.subr.bf16.mxu0 %v7982
    %8259 = vmatpush1.bf16.msra.mxu0 %v7981
    %8260 = vmatprep.subr.bf16.mxu0 %v7980
    %8261 = vmatpush1.bf16.msra.mxu0 %v7979
    %8262 = vmatprep.subr.bf16.mxu0 %v7978
    %8263 = vmatpush1.bf16.msra.mxu0 %v7977
    %8264 = vmatprep.subr.bf16.mxu0 %v7976
    %8265 = vmatpush1.bf16.msra.mxu0 %v7975
    %8266 = vmatprep.subr.bf16.mxu0 %v7974
    %8267 = vmatpush1.bf16.msra.mxu0 %v7973
    %8268 = vmatprep.subr.bf16.mxu0 %v7972
    %8269 = vmatpush1.bf16.msra.mxu0 %v7971
    %8270 = vmatprep.subr.bf16.mxu0 %v8002
    %8271 = vmatpush2.bf16.msra.mxu0 %v8001
    %8272 = vmatprep.subr.bf16.mxu0 %v8000
    %8273 = vmatpush2.bf16.msra.mxu0 %v7999
    %8274 = vmatprep.subr.bf16.mxu0 %v7998
    %8275 = vmatpush2.bf16.msra.mxu0 %v7997
    %8276 = vmatprep.subr.bf16.mxu0 %v7996
    %8277 = vmatpush2.bf16.msra.mxu0 %v7995
    %8278 = vmatprep.subr.bf16.mxu0 %v7994
    %8279 = vmatpush2.bf16.msra.mxu0 %v7993
    %8280 = vmatprep.subr.bf16.mxu0 %v7992
    %8281 = vmatpush2.bf16.msra.mxu0 %v7991
    %8282 = vmatprep.subr.bf16.mxu0 %v7990
    %8283 = vmatpush2.bf16.msra.mxu0 %v7989
    %8284 = vmatprep.subr.bf16.mxu0 %v7988
    %8285 = vmatpush2.bf16.msra.mxu0 %v7987
    %8286 = vmatprep.mubr.bf16.mxu0 %v7350
    %8287 = vmatmul.mubr.bf16.gmra.mxu0 %v7349
    %v8288 = vpop.f32.mrf.mxu0
    %v8289 = vadd.f32 %v8248, %v8288
    %v8290 = vpop.f32.mrf.mxu0
    %v8291 = vadd.f32 %v8250, %v8290
    %v8292 = vpop.f32.mrf.mxu0
    %v8293 = vpop.f32.mrf.mxu0
    %8294 = vdwg.mxu0
    %v8295 = vmax.f32 %v8289, 0.0
    %v8296 = vmax.f32 %v8291, 0.0
    %v8297 = vpack.c.bf16 %v8295, %v8295
    %v8298 = vpack.c.bf16 %v8296, %v8296
    %v8299 = vld [vmem:[#allocation12] sm:$0xf]
    %v8300 = vld [vmem:[#allocation12 + $0x4] sm:$0xf]
    %v8301 = vld [vmem:[#allocation12 + $0x8] sm:$0xf]
    %v8302 = vld [vmem:[#allocation12 + $0xc] sm:$0xf]
    %v8303 = vld [vmem:[#allocation12 + $0x10] sm:$0xf]
    %v8304 = vld [vmem:[#allocation12 + $0x14] sm:$0xf]
    %v8305 = vld [vmem:[#allocation12 + $0x18] sm:$0xf]
    %v8306 = vld [vmem:[#allocation12 + $0x1c] sm:$0xf]
    %v8307 = vld [vmem:[#allocation12 + $0x20] sm:$0xf]
    %v8308 = vld [vmem:[#allocation12 + $0x24] sm:$0xf]
    %v8309 = vld [vmem:[#allocation12 + $0x28] sm:$0xf]
    %v8310 = vld [vmem:[#allocation12 + $0x2c] sm:$0xf]
    %v8311 = vld [vmem:[#allocation12 + $0x30] sm:$0xf]
    %v8312 = vld [vmem:[#allocation12 + $0x34] sm:$0xf]
    %v8313 = vld [vmem:[#allocation12 + $0x38] sm:$0xf]
    %v8314 = vld [vmem:[#allocation12 + $0x3c] sm:$0xf]
    %v8315 = vld [vmem:[#allocation12 + $0x40] sm:$0xf]
    %v8316 = vld [vmem:[#allocation12 + $0x44] sm:$0xf]
    %v8317 = vld [vmem:[#allocation12 + $0x48] sm:$0xf]
    %v8318 = vld [vmem:[#allocation12 + $0x4c] sm:$0xf]
    %v8319 = vld [vmem:[#allocation12 + $0x50] sm:$0xf]
    %v8320 = vld [vmem:[#allocation12 + $0x54] sm:$0xf]
    %v8321 = vld [vmem:[#allocation12 + $0x58] sm:$0xf]
    %v8322 = vld [vmem:[#allocation12 + $0x5c] sm:$0xf]
    %v8323 = vld [vmem:[#allocation12 + $0x60] sm:$0xf]
    %v8324 = vld [vmem:[#allocation12 + $0x64] sm:$0xf]
    %v8325 = vld [vmem:[#allocation12 + $0x68] sm:$0xf]
    %v8326 = vld [vmem:[#allocation12 + $0x6c] sm:$0xf]
    %v8327 = vld [vmem:[#allocation12 + $0x70] sm:$0xf]
    %v8328 = vld [vmem:[#allocation12 + $0x74] sm:$0xf]
    %v8329 = vld [vmem:[#allocation12 + $0x78] sm:$0xf]
    %v8330 = vld [vmem:[#allocation12 + $0x7c] sm:$0xf]
    %v8331 = vld [vmem:[#allocation13] sm:$0x1]
    %v8333 = vlaneseq
    %v8334 = vshrl.u32 %v8333, 7
    %v8335 = vsub.s32 0, %v8334
    %v8336 = vrot.slane %v8331, %v8335
    %v8370 = vunpack.c.l.b16 %v8299
    %v8371 = vunpack.c.l.b16 %v8300
    %v8372 = vunpack.c.l.b16 %v8301
    %v8373 = vunpack.c.l.b16 %v8302
    %v8374 = vunpack.c.l.b16 %v8303
    %v8375 = vunpack.c.l.b16 %v8304
    %v8376 = vunpack.c.l.b16 %v8305
    %v8377 = vunpack.c.l.b16 %v8306
    %v8378 = vunpack.c.l.b16 %v8307
    %v8379 = vunpack.c.l.b16 %v8308
    %v8380 = vunpack.c.l.b16 %v8309
    %v8381 = vunpack.c.l.b16 %v8310
    %v8382 = vunpack.c.l.b16 %v8311
    %v8383 = vunpack.c.l.b16 %v8312
    %v8384 = vunpack.c.l.b16 %v8313
    %v8385 = vunpack.c.l.b16 %v8314
    %v8386 = vunpack.c.l.b16 %v8315
    %v8387 = vunpack.c.l.b16 %v8316
    %v8388 = vunpack.c.l.b16 %v8317
    %v8389 = vunpack.c.l.b16 %v8318
    %v8390 = vunpack.c.l.b16 %v8319
    %v8391 = vunpack.c.l.b16 %v8320
    %v8392 = vunpack.c.l.b16 %v8321
    %v8393 = vunpack.c.l.b16 %v8322
    %v8394 = vunpack.c.l.b16 %v8323
    %v8395 = vunpack.c.l.b16 %v8324
    %v8396 = vunpack.c.l.b16 %v8325
    %v8397 = vunpack.c.l.b16 %v8326
    %v8398 = vunpack.c.l.b16 %v8327
    %v8399 = vunpack.c.l.b16 %v8328
    %v8400 = vunpack.c.l.b16 %v8329
    %v8401 = vunpack.c.l.b16 %v8330
    %v8402 = vpack.c.b16 %v8371, %v8370
    %v8403 = vpack.c.b16 %v8373, %v8372
    %v8404 = vpack.c.b16 %v8375, %v8374
    %v8405 = vpack.c.b16 %v8377, %v8376
    %v8406 = vpack.c.b16 %v8379, %v8378
    %v8407 = vpack.c.b16 %v8381, %v8380
    %v8408 = vpack.c.b16 %v8383, %v8382
    %v8409 = vpack.c.b16 %v8385, %v8384
    %v8410 = vpack.c.b16 %v8387, %v8386
    %v8411 = vpack.c.b16 %v8389, %v8388
    %v8412 = vpack.c.b16 %v8391, %v8390
    %v8413 = vpack.c.b16 %v8393, %v8392
    %v8414 = vpack.c.b16 %v8395, %v8394
    %v8415 = vpack.c.b16 %v8397, %v8396
    %v8416 = vpack.c.b16 %v8399, %v8398
    %v8417 = vpack.c.b16 %v8401, %v8400
    %8434 = vmatprep.subr.bf16.mxu0 0
    %8435 = vmatpush1.bf16.msra.mxu0 %v8409
    %8436 = vmatprep.subr.bf16.mxu0 0
    %8437 = vmatpush1.bf16.msra.mxu0 %v8408
    %8438 = vmatprep.subr.bf16.mxu0 0
    %8439 = vmatpush1.bf16.msra.mxu0 %v8407
    %8440 = vmatprep.subr.bf16.mxu0 0
    %8441 = vmatpush1.bf16.msra.mxu0 %v8406
    %8442 = vmatprep.subr.bf16.mxu0 0
    %8443 = vmatpush1.bf16.msra.mxu0 %v8405
    %8444 = vmatprep.subr.bf16.mxu0 0
    %8445 = vmatpush1.bf16.msra.mxu0 %v8404
    %8446 = vmatprep.subr.bf16.mxu0 0
    %8447 = vmatpush1.bf16.msra.mxu0 %v8403
    %8448 = vmatprep.subr.bf16.mxu0 0
    %8449 = vmatpush1.bf16.msra.mxu0 %v8402
    %8450 = vmatprep.subr.bf16.mxu0 0
    %8451 = vmatpush2.bf16.msra.mxu0 %v8417
    %8452 = vmatprep.subr.bf16.mxu0 0
    %8453 = vmatpush2.bf16.msra.mxu0 %v8416
    %8454 = vmatprep.subr.bf16.mxu0 0
    %8455 = vmatpush2.bf16.msra.mxu0 %v8415
    %8456 = vmatprep.subr.bf16.mxu0 0
    %8457 = vmatpush2.bf16.msra.mxu0 %v8414
    %8458 = vmatprep.subr.bf16.mxu0 0
    %8459 = vmatpush2.bf16.msra.mxu0 %v8413
    %8460 = vmatprep.subr.bf16.mxu0 0
    %8461 = vmatpush2.bf16.msra.mxu0 %v8412
    %8462 = vmatprep.subr.bf16.mxu0 0
    %8463 = vmatpush2.bf16.msra.mxu0 %v8411
    %8464 = vmatprep.subr.bf16.mxu0 0
    %8465 = vmatpush2.bf16.msra.mxu0 %v8410
    %8466 = vmatprep.mubr.bf16.mxu0 %v8298
    %8467 = vmatmul.mubr.bf16.gmra.mxu0 %v8297
    %v8468 = vpop.f32.mrf.mxu0
    %v8469 = vadd.f32 %v8336, %v8468
    %v8470 = vpop.f32.mrf.mxu0
    %v8471 = vpop.f32.mrf.mxu0
    %v8472 = vpop.f32.mrf.mxu0
    %8473 = vdwg.mxu0
    %8474 = vst [vmem:[%s9] sm:$0xff] %v8469
    // Predicated region
    $region70: #{mlp_forward.1} parent=1 // pred_check
      _
    $region71: #{mlp_forward.1} parent=1 // pred_check_branch
      %8476 = sbr.rel (0) target = $region73
    $region72: #{mlp_forward.1} parent=1 // pred_region
      _
    $region73: #{mlp_forward.1} parent=1 // pred_fallthru
      _
    // Predicated region
    $region74: #{mlp_forward.1} parent=1 // pred_check
      _
    $region75: #{mlp_forward.1} parent=1 // pred_check_branch
      %8478 = sbr.rel (0) target = $region77
    $region76: #{mlp_forward.1} parent=1 // pred_region
      _
    $region77: #{mlp_forward.1} parent=1 // pred_fallthru
      _
    %8479 = vsyncpa [#allocation3], 1
    %8480 = vsyncpa [#allocation5], 1
    %8481 = vsyncpa [#allocation8], 1
    %8482 = vsyncpa [#allocation11], 1
    %8483 = vsyncpa [#allocation14], 1

</llo_original>
